<compile_context>
chip_gen: v5e
topology: v5e:2x2
jax: 0.10.0
libtpu: 0.0.40
codegen_flags: <defaults>
</compile_context>

<pallas_src>
import math
import functools

import jax
import jax.numpy as jnp
from jax.experimental import pallas as pl
from jax.experimental.pallas import tpu as pltpu

# ---------------- configuration (mirrors the PyTorch module) ----------------
D_NUMERICAL = 4
CATEGORIES = [3, 5]
D_TOKEN = 32
N_HEADS = 4
N_LAYERS = 2
N_LAYERS_DEC = 1
D_FFN_FACTOR = 2.0
MASK_RATIO = 0.5
D_OUT = 1

N_FEATURES = D_NUMERICAL + len(CATEGORIES)        # 6 feature tokens (no CLS)
N_COLS = N_FEATURES + 1                           # 7 = CLS + features
D_COL = math.ceil(2 * math.log2(N_COLS))          # 6
D_HEAD = D_TOKEN // N_HEADS                       # 8
D_HIDDEN = int(D_TOKEN * D_FFN_FACTOR)            # 64
ME_IN = N_LAYERS * D_COL * 2                      # 24 (sym_topology=False)

T_PAD = 8                                         # token dim padded to sublanes
NEG_MASK = -10000.0                               # reference adjacency mask value
NEG_PAD = -1e9                                    # kills padded key columns (exp underflows to 0)
VMEM_LIMIT = 32 * 1024 * 1024                     # explicit, safe on v5e/v6e/v7x


def _round_up(a, m):
    return ((a + m - 1) // m) * m


def _batch_tile(n):
    """Batch-tile size (tb) and padded batch (n_pad).

    Guarantees >=2 grid tiles once n_pad >= 16 so both v7x TensorCores are fed;
    caps tb at 128 so the f32 adjacency-mask VMEM footprint stays bounded.
    """
    n8 = _round_up(max(n, 1), 8)
    if n8 >= 16:
        tb = min(128, _round_up((n8 + 1) // 2, 8))
    else:
        tb = n8
    return tb, _round_up(n8, tb)


# ---------------- shared in-kernel helpers ----------------
def _ln(x, g, b):
    mean = jnp.mean(x, axis=-1, keepdims=True)
    xc = x - mean
    var = jnp.mean(xc * xc, axis=-1, keepdims=True)
    return xc * jax.lax.rsqrt(var + 1e-5) * g + b


def _block_core(x_in, adjm, n0g, n0b, whv, bhv, wo, bo, n1g, n1b, w0, b0, w1, b1,
                *, tb, t_pad, d, n_heads, d_head, scale, has_norm0):
    """norm0 -> fused [k|q|v] projection -> FR-graph attention -> out proj ->
    residual -> norm1 -> FFN -> residual.  Returns the new activations."""
    xr = _ln(x_in, n0g, n0b) if has_norm0 else x_in

    # One MXU pass: columns = [ k (=W_head x) | q (=W_head x, rel folded in) | v ]
    fkqv = jnp.dot(xr, whv, preferred_element_type=jnp.float32) + bhv      # [rows, 3d]
    f3 = fkqv.reshape(tb, t_pad, 3 * d)                                    # leading split (free)

    acc = None
    for h in range(n_heads):
        lo = h * d_head
        k = f3[:, :, lo:lo + d_head]                                       # [tb, t_pad, dh]
        q = f3[:, :, d + lo:d + lo + d_head]
        v = f3[:, :, 2 * d + lo:2 * d + lo + d_head]
        s = jnp.einsum('bid,bjd->bij', q, k,
                       preferred_element_type=jnp.float32) * scale
        s = s + adjm[:, h]                                                 # broadcasts if mask batch dim is 1
        s = s - jnp.max(s, axis=-1, keepdims=True)
        e = jnp.exp(s)
        p = e * pl.reciprocal(jnp.sum(e, axis=-1, keepdims=True), approx=True)
        o_h = jnp.einsum('bij,bjd->bid', p, v,
                         preferred_element_type=jnp.float32)               # [tb, t_pad, dh]
        # concat-free out projection: sum of per-head row-block matmuls of W_out
        contrib = jnp.dot(o_h.reshape(tb * t_pad, d_head), wo[lo:lo + d_head, :],
                          preferred_element_type=jnp.float32)
        acc = contrib if acc is None else acc + contrib

    x_mid = x_in + acc + bo

    # FFN (pre-norm, ReLU)
    xr2 = _ln(x_mid, n1g, n1b)
    hdn = jnp.maximum(jnp.dot(xr2, w0, preferred_element_type=jnp.float32) + b0, 0.0)
    ffn = jnp.dot(hdn, w1, preferred_element_type=jnp.float32) + b1
    return x_mid + ffn


# ---------------- fused transformer block kernels ----------------
def _block_kernel(x_ref, adjm_ref, n0g_ref, n0b_ref, whv_ref, bhv_ref,
                  wo_ref, bo_ref, n1g_ref, n1b_ref,
                  w0_ref, b0_ref, w1_ref, b1_ref,
                  o_ref, *, tb, t_pad, d, n_heads, d_head, scale, has_norm0):
    o_ref[...] = _block_core(
        x_ref[...], adjm_ref[...],
        n0g_ref[...], n0b_ref[...], whv_ref[...], bhv_ref[...],
        wo_ref[...], bo_ref[...], n1g_ref[...], n1b_ref[...],
        w0_ref[...], b0_ref[...], w1_ref[...], b1_ref[...],
        tb=tb, t_pad=t_pad, d=d, n_heads=n_heads,
        d_head=d_head, scale=scale, has_norm0=has_norm0)


def _block_loss_kernel(x_ref, adjm_ref, n0g_ref, n0b_ref, whv_ref, bhv_ref,
                       wo_ref, bo_ref, n1g_ref, n1b_ref,
                       w0_ref, b0_ref, w1_ref, b1_ref,
                       gt_ref, m_ref, lng_ref, lnb_ref, hw_ref,
                       o_ref, *, tb, t_pad, d, n_heads, d_head, scale, has_norm0):
    x_out = _block_core(
        x_ref[...], adjm_ref[...],
        n0g_ref[...], n0b_ref[...], whv_ref[...], bhv_ref[...],
        wo_ref[...], bo_ref[...], n1g_ref[...], n1b_ref[...],
        w0_ref[...], b0_ref[...], w1_ref[...], b1_ref[...],
        tb=tb, t_pad=t_pad, d=d, n_heads=n_heads,
        d_head=d_head, scale=scale, has_norm0=has_norm0)
    # fused: last_norm -> ReLU -> head matvec -> masked squared error
    x3 = x_out.reshape(tb, t_pad, d)                                       # leading split (free)
    xl = jnp.maximum(_ln(x3, lng_ref[...], lnb_ref[...]), 0.0)
    pred = jnp.sum(xl * hw_ref[...], axis=-1)                              # [tb, t_pad]
    diff = pred - gt_ref[...]                                              # head bias folded into gt
    o_ref[...] = diff * diff * m_ref[...]


def fused_block(x_flat, adj_mask, lp, *, tb, has_norm0, loss_tail=None):
    """x_flat: [N_pad*T_PAD, d]; adj_mask: [N_pad|1, H, T_PAD, T_PAD] f32.

    loss_tail=(gt_pad, m_pad, ln_g, ln_b, head_w) -> the block also computes the
    masked per-token squared error and returns [N_pad, T_PAD] instead of the
    activation slab (the slab never hits HBM)."""
    rows, d = x_flat.shape
    t_pad = T_PAD
    n_tiles = rows // (tb * t_pad)
    h = N_HEADS
    ap = lp['attn']

    # fold rel_emb into the q columns of the fused projection weight
    rel_flat = ap['rel_emb'].reshape(-1)                                   # [d], head-major
    whv = jnp.concatenate(
        [ap['w_head'], ap['w_head'] * rel_flat[None, :], ap['w_v']], axis=1)      # [d, 3d]
    bhv = jnp.concatenate(
        [ap['b_head'], ap['b_head'] * rel_flat, ap['b_v']]).reshape(1, 3 * d)

    if has_norm0:
        n0g = lp['norm0_g'].reshape(1, d)
        n0b = lp['norm0_b'].reshape(1, d)
    else:  # layer 0 with prenormalization has no norm0 -> identity dummies
        n0g = jnp.ones((1, d), jnp.float32)
        n0b = jnp.zeros((1, d), jnp.float32)

    if adj_mask.shape[0] != 1:
        mask_spec = pl.BlockSpec((tb, h, t_pad, t_pad), lambda i: (i, 0, 0, 0))
    else:
        mask_spec = pl.BlockSpec((1, h, t_pad, t_pad), lambda i: (0, 0, 0, 0))

    def full(a):
        return pl.BlockSpec(a.shape, lambda i, _nd=a.ndim: (0,) * _nd)

    args = [x_flat, adj_mask,
            n0g, n0b, whv, bhv,
            ap['w_out'], ap['b_out'].reshape(1, d),
            lp['norm1_g'].reshape(1, d), lp['norm1_b'].reshape(1, d),
            lp['lin0_w'], lp['lin0_b'].reshape(1, -1),
            lp['lin1_w'], lp['lin1_b'].reshape(1, d)]
    in_specs = [pl.BlockSpec((tb * t_pad, d), lambda i: (i, 0)), mask_spec]
    in_specs += [full(a) for a in args[2:]]

    core_kw = dict(tb=tb, t_pad=t_pad, d=d, n_heads=h, d_head=d // h,
                   scale=1.0 / math.sqrt(d // h), has_norm0=has_norm0)

    if loss_tail is None:
        kernel = functools.partial(_block_kernel, **core_kw)
        out_shape = jax.ShapeDtypeStruct((rows, d), jnp.float32)
        out_spec = pl.BlockSpec((tb * t_pad, d), lambda i: (i, 0))
        io_aliases = {0: 0}                       # reuse the input HBM slab for the output
    else:
        gt_pad, m_pad, lng, lnb, hw = loss_tail
        args += [gt_pad, m_pad,
                 lng.reshape(1, d), lnb.reshape(1, d), hw.reshape(1, d)]
        in_specs += [pl.BlockSpec((tb, t_pad), lambda i: (i, 0)),
                     pl.BlockSpec((tb, t_pad), lambda i: (i, 0)),
                     full(args[-3]), full(args[-2]), full(args[-1])]
        kernel = functools.partial(_block_loss_kernel, **core_kw)
        out_shape = jax.ShapeDtypeStruct((rows // t_pad, t_pad), jnp.float32)
        out_spec = pl.BlockSpec((tb, t_pad), lambda i: (i, 0))
        io_aliases = {}

    return pl.pallas_call(
        kernel,
        out_shape=out_shape,
        grid=(n_tiles,),
        in_specs=in_specs,
        out_specs=out_spec,
        input_output_aliases=io_aliases,
        compiler_params=pltpu.CompilerParams(
            dimension_semantics=("parallel",),
            vmem_limit_bytes=VMEM_LIMIT),
    )(*args)


# ---------------- model glue (plain JAX, tiny gather/scatter work) ----------------
def l2_normalize(x, axis=-1, eps=1e-12):
    n = jnp.sqrt(jnp.sum(x * x, axis=axis, keepdims=True))
    return x / jnp.maximum(n, eps)


def tokenize(p, x_num, x_cat):
    n = x_num.shape[0]
    x_num_aug = jnp.concatenate([jnp.ones((n, 1), jnp.float32), x_num], axis=1)
    x = p['weight'][None] * x_num_aug[:, :, None]                      # [N, d_num+1, d]
    cat_idx = x_cat + p['category_offsets'][None]
    x_cat_emb = jnp.take(p['category_embeddings'], cat_idx, axis=0)    # [N, n_cat, d]
    x = jnp.concatenate([x, x_cat_emb], axis=1)                        # [N, N_COLS, d]
    bias = jnp.concatenate([jnp.zeros((1, D_TOKEN), jnp.float32), p['bias']], axis=0)
    return x + bias[None]


def _topology_mask(adj_probs):
    """NSI -> prune readout -> hard threshold (forward value of STE) -> additive mask."""
    tn = adj_probs.shape[-1]
    if tn > 1:
        adj_probs = adj_probs * (1.0 - jnp.eye(tn, dtype=jnp.float32))
    adj_probs = adj_probs * jnp.ones((tn,), jnp.float32).at[0].set(0.0)
    adj = (adj_probs > 0.5).astype(jnp.float32)
    return (1.0 - adj) * NEG_MASK


def build_adj_mask_enc(ap, ids_keep, n, n_pad):
    h, dc = N_HEADS, D_COL
    ceh = l2_normalize(ap['col_head'])
    cet = l2_normalize(ap['col_tail'])

    def gather_cols(ce):
        cls_part = ce[:, :1, :]
        g = jnp.take(ce[:, 1:, :], ids_keep, axis=1)          # [H, N, Lk, dc]
        g = g.transpose(1, 0, 2, 3)                           # [N, H, Lk, dc]
        cls_b = jnp.broadcast_to(cls_part[None], (n, h, 1, dc))
        return jnp.concatenate([cls_b, g], axis=2)            # [N, H, 1+Lk, dc]

    top = jnp.einsum('nhid,nhjd->nhij', gather_cols(ceh), gather_cols(cet))
    m = _topology_mask(jax.nn.sigmoid(top + ap['topo_bias']))  # [N, H, tn, tn]
    tn = m.shape[-1]
    full = jnp.zeros((n_pad, h, T_PAD, T_PAD), jnp.float32)
    full = full.at[:n, :, :tn, :tn].set(m)
    full = full.at[:, :, :, tn:].set(NEG_PAD)                  # padded keys never attended
    return full


def build_adj_mask_dec(ap):
    ceh = l2_normalize(ap['col_head'])
    cet = l2_normalize(ap['col_tail'])
    top = jnp.einsum('hid,hjd->hij', ceh, cet)
    m = _topology_mask(jax.nn.sigmoid(top + ap['topo_bias']))  # [H, tn, tn]
    tn = m.shape[-1]
    full = jnp.zeros((1, N_HEADS, T_PAD, T_PAD), jnp.float32)  # shared across batch
    full = full.at[0, :, :tn, :tn].set(m)
    full = full.at[:, :, :, tn:].set(NEG_PAD)
    return full


def construct_masked_embedding(params):
    feats = []
    for lp in params['encoder']:
        ap = lp['attn']
        feats.append(l2_normalize(ap['col_head'][:, 1:, :]))
        feats.append(l2_normalize(ap['col_tail'][:, 1:, :]))   # sym_topology=False
    cat = jnp.concatenate(feats, axis=-1)                      # [H, L, ME_IN]
    enc = jnp.dot(cat, params['me_w']) + params['me_b']        # [H, L, d_head]
    l = cat.shape[1]
    return enc.transpose(1, 0, 2).reshape(l, -1)               # [L, d_token]


def _pad_tokens(x, n_pad):
    """[N, T, D] -> [N_pad*T_PAD, D] f32 with zero padding (rows are (batch, token))."""
    n, t, d = x.shape
    out = jnp.zeros((n_pad, T_PAD, d), jnp.float32)
    out = out.at[:n, :t, :].set(x)
    return out.reshape(n_pad * T_PAD, d)


def forward(params, x_num, x_cat, mask_key):
    n = x_num.shape[0]
    l = N_FEATURES
    len_keep = int(l * (1 - MASK_RATIO))
    tb, n_pad = _batch_tile(n)

    # ---- tokenize + MAE random masking ----
    x = tokenize(params['tok'], x_num, x_cat)                  # [N, N_COLS, d]
    cls_tok = x[:, :1, :]
    body = x[:, 1:, :]

    noise = jax.random.uniform(mask_key, (n, l))
    ids_shuffle = jnp.argsort(noise, axis=1)
    ids_restore = jnp.argsort(ids_shuffle, axis=1)
    ids_keep = ids_shuffle[:, :len_keep]
    x_masked = jnp.take_along_axis(body, ids_keep[:, :, None], axis=1)
    mask = jnp.ones((n, l), jnp.float32).at[:, :len_keep].set(0.0)
    mask = jnp.take_along_axis(mask, ids_restore, axis=1)

    t_enc = 1 + len_keep
    x_enc = jnp.concatenate([cls_tok, x_masked], axis=1)       # [N, t_enc, d]
    x_flat = _pad_tokens(x_enc, n_pad)                         # [N_pad*T_PAD, d]

    # ---- encoder (fused blocks, layer slab aliased in place) ----
    for li, lp in enumerate(params['encoder']):
        adj_mask = build_adj_mask_enc(lp['attn'], ids_keep, n, n_pad)
        x_flat = fused_block(x_flat, adj_mask, lp, tb=tb, has_norm0=(li > 0))

    x = x_flat.reshape(n_pad, T_PAD, D_TOKEN)[:n]
    cls_tok = x[:, :1, :]
    x_kept = x[:, 1:t_enc, :]

    # ---- MAE reconstruction (gather/scatter glue) ----
    me = construct_masked_embedding(params)                    # [L, d]
    ids_masked = jnp.sort(ids_shuffle[:, len_keep:], axis=1)   # = nonzero(mask) per row
    retrieved = jnp.take(me, ids_masked, axis=0)               # [N, L-len_keep, d]
    bidx = jnp.arange(n)[:, None]
    full_rec = jnp.zeros((n, l, D_TOKEN), jnp.float32)
    full_rec = full_rec.at[bidx, ids_keep].set(x_kept)
    full_rec = full_rec.at[bidx, ids_masked].set(retrieved)
    x_dec = jnp.concatenate([cls_tok, full_rec], axis=1)       # [N, 1+L, d]
    x_flat = _pad_tokens(x_dec, n_pad)

    # ---- loss targets (lane-friendly [n_pad, T_PAD] layout, head bias folded in) ----
    gt = jnp.concatenate([x_num, x_cat.astype(jnp.float32)], axis=-1) - params['head_b'][0]
    gt_pad = jnp.zeros((n_pad, T_PAD), jnp.float32).at[:n, 1:1 + l].set(gt)
    m_pad = jnp.zeros((n_pad, T_PAD), jnp.float32).at[:n, 1:1 + l].set(mask)
    loss_tail = (gt_pad, m_pad, params['last_norm_g'], params['last_norm_b'],
                 params['head_w'][:, 0])

    # ---- decoder (mask shared across batch); loss fused into the last block ----
    n_dec = len(params['decoder'])
    sqerr = None
    for li, lp in enumerate(params['decoder']):
        adj_mask = build_adj_mask_dec(lp['attn'])
        if li == n_dec - 1:
            sqerr = fused_block(x_flat, adj_mask, lp, tb=tb, has_norm0=(li > 0),
                                loss_tail=loss_tail)           # [n_pad, T_PAD]
        else:
            x_flat = fused_block(x_flat, adj_mask, lp, tb=tb, has_norm0=(li > 0))

    return jnp.sum(sqerr) / jnp.sum(mask)


# ---------------- deterministic parameter init ----------------
def init_params(key):
    keys = iter(jax.random.split(key, 256))

    def nrm(shape, scale=0.1):
        return (scale * jax.random.normal(next(keys), shape)).astype(jnp.float32)

    def attn_params():
        return {
            'w_head': nrm((D_TOKEN, D_TOKEN)), 'b_head': jnp.zeros((D_TOKEN,), jnp.float32),
            'w_v': nrm((D_TOKEN, D_TOKEN)), 'b_v': jnp.zeros((D_TOKEN,), jnp.float32),
            'w_out': nrm((D_TOKEN, D_TOKEN)), 'b_out': jnp.zeros((D_TOKEN,), jnp.float32),
            'rel_emb': jnp.ones((N_HEADS, D_HEAD), jnp.float32),
            'col_head': nrm((N_HEADS, N_COLS, D_COL), 1.0),
            'col_tail': nrm((N_HEADS, N_COLS, D_COL), 1.0),
            'topo_bias': jnp.zeros((), jnp.float32),
        }

    def layer_params(has_norm0):
        return {
            'attn': attn_params(),
            'norm0_g': jnp.ones((D_TOKEN,), jnp.float32) if has_norm0 else None,
            'norm0_b': jnp.zeros((D_TOKEN,), jnp.float32) if has_norm0 else None,
            'norm1_g': jnp.ones((D_TOKEN,), jnp.float32),
            'norm1_b': jnp.zeros((D_TOKEN,), jnp.float32),
            'lin0_w': nrm((D_TOKEN, D_HIDDEN)), 'lin0_b': jnp.zeros((D_HIDDEN,), jnp.float32),
            'lin1_w': nrm((D_HIDDEN, D_TOKEN)), 'lin1_b': jnp.zeros((D_TOKEN,), jnp.float32),
        }

    offsets = [0]
    for c in CATEGORIES[:-1]:
        offsets.append(offsets[-1] + c)

    return {
        'tok': {
            'weight': nrm((D_NUMERICAL + 1, D_TOKEN), 0.5),
            'bias': nrm((N_FEATURES, D_TOKEN), 0.1),
            'category_offsets': jnp.array(offsets, jnp.int32),
            'category_embeddings': nrm((sum(CATEGORIES), D_TOKEN), 0.5),
        },
        # prenormalization=True -> layer 0 has no norm0
        'encoder': [layer_params(has_norm0=(i > 0)) for i in range(N_LAYERS)],
        'decoder': [layer_params(has_norm0=(i > 0)) for i in range(N_LAYERS_DEC)],
        'last_norm_g': jnp.ones((D_TOKEN,), jnp.float32),
        'last_norm_b': jnp.zeros((D_TOKEN,), jnp.float32),
        'head_w': nrm((D_TOKEN, D_OUT)), 'head_b': jnp.zeros((D_OUT,), jnp.float32),
        'me_w': nrm((ME_IN, D_HEAD)), 'me_b': jnp.zeros((D_HEAD,), jnp.float32),
        # TODO(synk): decoder_pred_list heads are defined in __init__ but unused in forward(); omitted.
    }


if __name__ == "__main__":
    key = jax.random.PRNGKey(0)
    pkey, nkey, c0key, c1key, mkey = jax.random.split(key, 5)
    params = init_params(pkey)

    batch = 2
    x_num = jax.random.normal(nkey, (batch, D_NUMERICAL), jnp.float32)
    x_cat = jnp.stack([
        jax.random.randint(c0key, (batch,), 0, CATEGORIES[0]),
        jax.random.randint(c1key, (batch,), 0, CATEGORIES[1]),
    ], axis=1).astype(jnp.int32)

    loss = jax.jit(forward)(params, x_num, x_cat, mkey)
    loss = jax.block_until_ready(loss)
    assert bool(jnp.isfinite(loss)), f"non-finite loss: {loss}"
    print("KERNEL_OK")
</pallas_src>

<mosaic_0001>
module attributes {stable_mosaic.version = 11 : i64} {
  func.func @_block_kernel(%arg0: i32, %arg1: memref<64x32xf32, #tpu.memory_space<vmem>>, %arg2: memref<8x4x8x8xf32, #tpu.memory_space<vmem>>, %arg3: memref<1x32xf32, #tpu.memory_space<vmem>>, %arg4: memref<1x32xf32, #tpu.memory_space<vmem>>, %arg5: memref<32x96xf32, #tpu.memory_space<vmem>>, %arg6: memref<1x96xf32, #tpu.memory_space<vmem>>, %arg7: memref<32x32xf32, #tpu.memory_space<vmem>>, %arg8: memref<1x32xf32, #tpu.memory_space<vmem>>, %arg9: memref<1x32xf32, #tpu.memory_space<vmem>>, %arg10: memref<1x32xf32, #tpu.memory_space<vmem>>, %arg11: memref<32x64xf32, #tpu.memory_space<vmem>>, %arg12: memref<1x64xf32, #tpu.memory_space<vmem>>, %arg13: memref<64x32xf32, #tpu.memory_space<vmem>>, %arg14: memref<1x32xf32, #tpu.memory_space<vmem>>, %arg15: memref<64x32xf32, #tpu.memory_space<vmem>>) attributes {dimension_semantics = [#tpu.dimension_semantics<parallel>], iteration_bounds = array<i64: 1>, scalar_prefetch = 0 : i64, scratch_operands = 0 : i64, tpu.core_type = #tpu.core_type<tc>, window_params = [{transform_indices = @transform_0, window_bounds = array<i64: 64, 32>}, {transform_indices = @transform_1, window_bounds = array<i64: 8, 4, 8, 8>}, {pipeline_mode = #tpu.pipeline_mode<synchronous>, transform_indices = @transform_2, window_bounds = array<i64: 1, 32>}, {pipeline_mode = #tpu.pipeline_mode<synchronous>, transform_indices = @transform_3, window_bounds = array<i64: 1, 32>}, {pipeline_mode = #tpu.pipeline_mode<synchronous>, transform_indices = @transform_4, window_bounds = array<i64: 32, 96>}, {pipeline_mode = #tpu.pipeline_mode<synchronous>, transform_indices = @transform_5, window_bounds = array<i64: 1, 96>}, {pipeline_mode = #tpu.pipeline_mode<synchronous>, transform_indices = @transform_6, window_bounds = array<i64: 32, 32>}, {pipeline_mode = #tpu.pipeline_mode<synchronous>, transform_indices = @transform_7, window_bounds = array<i64: 1, 32>}, {pipeline_mode = #tpu.pipeline_mode<synchronous>, transform_indices = @transform_8, window_bounds = array<i64: 1, 32>}, {pipeline_mode = #tpu.pipeline_mode<synchronous>, transform_indices = @transform_9, window_bounds = array<i64: 1, 32>}, {pipeline_mode = #tpu.pipeline_mode<synchronous>, transform_indices = @transform_10, window_bounds = array<i64: 32, 64>}, {pipeline_mode = #tpu.pipeline_mode<synchronous>, transform_indices = @transform_11, window_bounds = array<i64: 1, 64>}, {pipeline_mode = #tpu.pipeline_mode<synchronous>, transform_indices = @transform_12, window_bounds = array<i64: 64, 32>}, {pipeline_mode = #tpu.pipeline_mode<synchronous>, transform_indices = @transform_13, window_bounds = array<i64: 1, 32>}, {transform_indices = @transform_14, window_bounds = array<i64: 64, 32>}]} {
    %c0 = arith.constant 0 : index
    %c0_0 = arith.constant 0 : index
    %0 = vector.load %arg1[%c0, %c0_0] : memref<64x32xf32, #tpu.memory_space<vmem>>, vector<64x32xf32>
    %c0_1 = arith.constant 0 : index
    %c0_2 = arith.constant 0 : index
    %c0_3 = arith.constant 0 : index
    %c0_4 = arith.constant 0 : index
    %1 = vector.load %arg2[%c0_1, %c0_2, %c0_3, %c0_4] : memref<8x4x8x8xf32, #tpu.memory_space<vmem>>, vector<8x4x8x8xf32>
    %c0_5 = arith.constant 0 : index
    %c0_6 = arith.constant 0 : index
    %2 = vector.load %arg5[%c0_5, %c0_6] : memref<32x96xf32, #tpu.memory_space<vmem>>, vector<32x96xf32>
    %c0_7 = arith.constant 0 : index
    %c0_8 = arith.constant 0 : index
    %3 = vector.load %arg6[%c0_7, %c0_8] : memref<1x96xf32, #tpu.memory_space<vmem>>, vector<1x96xf32>
    %c0_9 = arith.constant 0 : index
    %c0_10 = arith.constant 0 : index
    %4 = vector.load %arg7[%c0_9, %c0_10] : memref<32x32xf32, #tpu.memory_space<vmem>>, vector<32x32xf32>
    %c0_11 = arith.constant 0 : index
    %c0_12 = arith.constant 0 : index
    %5 = vector.load %arg8[%c0_11, %c0_12] : memref<1x32xf32, #tpu.memory_space<vmem>>, vector<1x32xf32>
    %c0_13 = arith.constant 0 : index
    %c0_14 = arith.constant 0 : index
    %6 = vector.load %arg9[%c0_13, %c0_14] : memref<1x32xf32, #tpu.memory_space<vmem>>, vector<1x32xf32>
    %c0_15 = arith.constant 0 : index
    %c0_16 = arith.constant 0 : index
    %7 = vector.load %arg10[%c0_15, %c0_16] : memref<1x32xf32, #tpu.memory_space<vmem>>, vector<1x32xf32>
    %c0_17 = arith.constant 0 : index
    %c0_18 = arith.constant 0 : index
    %8 = vector.load %arg11[%c0_17, %c0_18] : memref<32x64xf32, #tpu.memory_space<vmem>>, vector<32x64xf32>
    %c0_19 = arith.constant 0 : index
    %c0_20 = arith.constant 0 : index
    %9 = vector.load %arg12[%c0_19, %c0_20] : memref<1x64xf32, #tpu.memory_space<vmem>>, vector<1x64xf32>
    %c0_21 = arith.constant 0 : index
    %c0_22 = arith.constant 0 : index
    %10 = vector.load %arg13[%c0_21, %c0_22] : memref<64x32xf32, #tpu.memory_space<vmem>>, vector<64x32xf32>
    %c0_23 = arith.constant 0 : index
    %c0_24 = arith.constant 0 : index
    %11 = vector.load %arg14[%c0_23, %c0_24] : memref<1x32xf32, #tpu.memory_space<vmem>>, vector<1x32xf32>
    %cst = arith.constant dense<0.000000e+00> : vector<64x96xf32>
    %12 = tpu.matmul %0, %2, %cst {dimension_numbers = #tpu.dot_dimension_numbers<[1], [0], [0], [1], [0, 0, 1, 1], [], []>} : vector<64x32xf32>, vector<32x96xf32>, vector<64x96xf32> -> vector<64x96xf32>
    %13 = vector.broadcast %3 : vector<1x96xf32> to vector<64x96xf32>
    %14 = arith.addf %12, %13 : vector<64x96xf32>
    %15 = vector.shape_cast %14 : vector<64x96xf32> to vector<8x8x96xf32>
    %16 = vector.extract_strided_slice %15 {offsets = [0, 0, 0], sizes = [8, 8, 8], strides = [1, 1, 1]} : vector<8x8x96xf32> to vector<8x8x8xf32>
    %17 = vector.extract_strided_slice %15 {offsets = [0, 0, 32], sizes = [8, 8, 8], strides = [1, 1, 1]} : vector<8x8x96xf32> to vector<8x8x8xf32>
    %18 = vector.extract_strided_slice %15 {offsets = [0, 0, 64], sizes = [8, 8, 8], strides = [1, 1, 1]} : vector<8x8x96xf32> to vector<8x8x8xf32>
    "tpu.trace_start"() <{level = 10 : i32, message = "bid,bjd->bij"}> : () -> ()
    %cst_25 = arith.constant dense<0.000000e+00> : vector<8x8x8xf32>
    %19 = tpu.matmul %17, %16, %cst_25 {dimension_numbers = #tpu.dot_dimension_numbers<[2], [2], [1], [1], [0, 0, 0, 1, 1, 1], [0], [0]>} : vector<8x8x8xf32>, vector<8x8x8xf32>, vector<8x8x8xf32> -> vector<8x8x8xf32>
    "tpu.trace_stop"() : () -> ()
    %cst_26 = arith.constant 0.353553385 : f32
    %20 = vector.broadcast %cst_26 : f32 to vector<8x8x8xf32>
    %21 = arith.mulf %19, %20 : vector<8x8x8xf32>
    %22 = vector.extract_strided_slice %1 {offsets = [0, 0, 0, 0], sizes = [8, 1, 8, 8], strides = [1, 1, 1, 1]} : vector<8x4x8x8xf32> to vector<8x1x8x8xf32>
    %23 = vector.shape_cast %22 : vector<8x1x8x8xf32> to vector<8x8x8xf32>
    %24 = arith.addf %21, %23 : vector<8x8x8xf32>
    %cst_27 = arith.constant dense<0xFF800000> : vector<8x8xf32>
    %25 = vector.multi_reduction <maximumf>, %24, %cst_27 [2] : vector<8x8x8xf32> to vector<8x8xf32>
    %26 = vector.shape_cast %25 : vector<8x8xf32> to vector<8x8x1xf32>
    %27 = vector.broadcast %26 : vector<8x8x1xf32> to vector<8x8x8xf32>
    %28 = arith.subf %24, %27 : vector<8x8x8xf32>
    %29 = math.exp %28 : vector<8x8x8xf32>
    %cst_28 = arith.constant dense<0.000000e+00> : vector<8x8xf32>
    %30 = vector.multi_reduction <add>, %29, %cst_28 [2] : vector<8x8x8xf32> to vector<8x8xf32>
    %31 = vector.shape_cast %30 : vector<8x8xf32> to vector<8x8x1xf32>
    %32 = tpu.reciprocal %31 {approx = true} : vector<8x8x1xf32> -> vector<8x8x1xf32>
    %33 = vector.broadcast %32 : vector<8x8x1xf32> to vector<8x8x8xf32>
    %34 = arith.mulf %29, %33 : vector<8x8x8xf32>
    "tpu.trace_start"() <{level = 10 : i32, message = "bij,bjd->bid"}> : () -> ()
    %cst_29 = arith.constant dense<0.000000e+00> : vector<8x8x8xf32>
    %35 = tpu.matmul %34, %18, %cst_29 {dimension_numbers = #tpu.dot_dimension_numbers<[2], [1], [1], [2], [0, 0, 0, 1, 1, 2], [0], [0]>} : vector<8x8x8xf32>, vector<8x8x8xf32>, vector<8x8x8xf32> -> vector<8x8x8xf32>
    "tpu.trace_stop"() : () -> ()
    %36 = vector.shape_cast %35 : vector<8x8x8xf32> to vector<64x8xf32>
    %37 = vector.extract_strided_slice %4 {offsets = [0, 0], sizes = [8, 32], strides = [1, 1]} : vector<32x32xf32> to vector<8x32xf32>
    %cst_30 = arith.constant dense<0.000000e+00> : vector<64x32xf32>
    %38 = tpu.matmul %36, %37, %cst_30 {dimension_numbers = #tpu.dot_dimension_numbers<[1], [0], [0], [1], [0, 0, 1, 1], [], []>} : vector<64x8xf32>, vector<8x32xf32>, vector<64x32xf32> -> vector<64x32xf32>
    %39 = vector.extract_strided_slice %15 {offsets = [0, 0, 8], sizes = [8, 8, 8], strides = [1, 1, 1]} : vector<8x8x96xf32> to vector<8x8x8xf32>
    %40 = vector.extract_strided_slice %15 {offsets = [0, 0, 40], sizes = [8, 8, 8], strides = [1, 1, 1]} : vector<8x8x96xf32> to vector<8x8x8xf32>
    %41 = vector.extract_strided_slice %15 {offsets = [0, 0, 72], sizes = [8, 8, 8], strides = [1, 1, 1]} : vector<8x8x96xf32> to vector<8x8x8xf32>
    "tpu.trace_start"() <{level = 10 : i32, message = "bid,bjd->bij"}> : () -> ()
    %cst_31 = arith.constant dense<0.000000e+00> : vector<8x8x8xf32>
    %42 = tpu.matmul %40, %39, %cst_31 {dimension_numbers = #tpu.dot_dimension_numbers<[2], [2], [1], [1], [0, 0, 0, 1, 1, 1], [0], [0]>} : vector<8x8x8xf32>, vector<8x8x8xf32>, vector<8x8x8xf32> -> vector<8x8x8xf32>
    "tpu.trace_stop"() : () -> ()
    %cst_32 = arith.constant 0.353553385 : f32
    %43 = vector.broadcast %cst_32 : f32 to vector<8x8x8xf32>
    %44 = arith.mulf %42, %43 : vector<8x8x8xf32>
    %45 = vector.extract_strided_slice %1 {offsets = [0, 1, 0, 0], sizes = [8, 1, 8, 8], strides = [1, 1, 1, 1]} : vector<8x4x8x8xf32> to vector<8x1x8x8xf32>
    %46 = vector.shape_cast %45 : vector<8x1x8x8xf32> to vector<8x8x8xf32>
    %47 = arith.addf %44, %46 : vector<8x8x8xf32>
    %cst_33 = arith.constant dense<0xFF800000> : vector<8x8xf32>
    %48 = vector.multi_reduction <maximumf>, %47, %cst_33 [2] : vector<8x8x8xf32> to vector<8x8xf32>
    %49 = vector.shape_cast %48 : vector<8x8xf32> to vector<8x8x1xf32>
    %50 = vector.broadcast %49 : vector<8x8x1xf32> to vector<8x8x8xf32>
    %51 = arith.subf %47, %50 : vector<8x8x8xf32>
    %52 = math.exp %51 : vector<8x8x8xf32>
    %cst_34 = arith.constant dense<0.000000e+00> : vector<8x8xf32>
    %53 = vector.multi_reduction <add>, %52, %cst_34 [2] : vector<8x8x8xf32> to vector<8x8xf32>
    %54 = vector.shape_cast %53 : vector<8x8xf32> to vector<8x8x1xf32>
    %55 = tpu.reciprocal %54 {approx = true} : vector<8x8x1xf32> -> vector<8x8x1xf32>
    %56 = vector.broadcast %55 : vector<8x8x1xf32> to vector<8x8x8xf32>
    %57 = arith.mulf %52, %56 : vector<8x8x8xf32>
    "tpu.trace_start"() <{level = 10 : i32, message = "bij,bjd->bid"}> : () -> ()
    %cst_35 = arith.constant dense<0.000000e+00> : vector<8x8x8xf32>
    %58 = tpu.matmul %57, %41, %cst_35 {dimension_numbers = #tpu.dot_dimension_numbers<[2], [1], [1], [2], [0, 0, 0, 1, 1, 2], [0], [0]>} : vector<8x8x8xf32>, vector<8x8x8xf32>, vector<8x8x8xf32> -> vector<8x8x8xf32>
    "tpu.trace_stop"() : () -> ()
    %59 = vector.shape_cast %58 : vector<8x8x8xf32> to vector<64x8xf32>
    %60 = vector.extract_strided_slice %4 {offsets = [8, 0], sizes = [8, 32], strides = [1, 1]} : vector<32x32xf32> to vector<8x32xf32>
    %cst_36 = arith.constant dense<0.000000e+00> : vector<64x32xf32>
    %61 = tpu.matmul %59, %60, %cst_36 {dimension_numbers = #tpu.dot_dimension_numbers<[1], [0], [0], [1], [0, 0, 1, 1], [], []>} : vector<64x8xf32>, vector<8x32xf32>, vector<64x32xf32> -> vector<64x32xf32>
    %62 = arith.addf %38, %61 : vector<64x32xf32>
    %63 = vector.extract_strided_slice %15 {offsets = [0, 0, 16], sizes = [8, 8, 8], strides = [1, 1, 1]} : vector<8x8x96xf32> to vector<8x8x8xf32>
    %64 = vector.extract_strided_slice %15 {offsets = [0, 0, 48], sizes = [8, 8, 8], strides = [1, 1, 1]} : vector<8x8x96xf32> to vector<8x8x8xf32>
    %65 = vector.extract_strided_slice %15 {offsets = [0, 0, 80], sizes = [8, 8, 8], strides = [1, 1, 1]} : vector<8x8x96xf32> to vector<8x8x8xf32>
    "tpu.trace_start"() <{level = 10 : i32, message = "bid,bjd->bij"}> : () -> ()
    %cst_37 = arith.constant dense<0.000000e+00> : vector<8x8x8xf32>
    %66 = tpu.matmul %64, %63, %cst_37 {dimension_numbers = #tpu.dot_dimension_numbers<[2], [2], [1], [1], [0, 0, 0, 1, 1, 1], [0], [0]>} : vector<8x8x8xf32>, vector<8x8x8xf32>, vector<8x8x8xf32> -> vector<8x8x8xf32>
    "tpu.trace_stop"() : () -> ()
    %cst_38 = arith.constant 0.353553385 : f32
    %67 = vector.broadcast %cst_38 : f32 to vector<8x8x8xf32>
    %68 = arith.mulf %66, %67 : vector<8x8x8xf32>
    %69 = vector.extract_strided_slice %1 {offsets = [0, 2, 0, 0], sizes = [8, 1, 8, 8], strides = [1, 1, 1, 1]} : vector<8x4x8x8xf32> to vector<8x1x8x8xf32>
    %70 = vector.shape_cast %69 : vector<8x1x8x8xf32> to vector<8x8x8xf32>
    %71 = arith.addf %68, %70 : vector<8x8x8xf32>
    %cst_39 = arith.constant dense<0xFF800000> : vector<8x8xf32>
    %72 = vector.multi_reduction <maximumf>, %71, %cst_39 [2] : vector<8x8x8xf32> to vector<8x8xf32>
    %73 = vector.shape_cast %72 : vector<8x8xf32> to vector<8x8x1xf32>
    %74 = vector.broadcast %73 : vector<8x8x1xf32> to vector<8x8x8xf32>
    %75 = arith.subf %71, %74 : vector<8x8x8xf32>
    %76 = math.exp %75 : vector<8x8x8xf32>
    %cst_40 = arith.constant dense<0.000000e+00> : vector<8x8xf32>
    %77 = vector.multi_reduction <add>, %76, %cst_40 [2] : vector<8x8x8xf32> to vector<8x8xf32>
    %78 = vector.shape_cast %77 : vector<8x8xf32> to vector<8x8x1xf32>
    %79 = tpu.reciprocal %78 {approx = true} : vector<8x8x1xf32> -> vector<8x8x1xf32>
    %80 = vector.broadcast %79 : vector<8x8x1xf32> to vector<8x8x8xf32>
    %81 = arith.mulf %76, %80 : vector<8x8x8xf32>
    "tpu.trace_start"() <{level = 10 : i32, message = "bij,bjd->bid"}> : () -> ()
    %cst_41 = arith.constant dense<0.000000e+00> : vector<8x8x8xf32>
    %82 = tpu.matmul %81, %65, %cst_41 {dimension_numbers = #tpu.dot_dimension_numbers<[2], [1], [1], [2], [0, 0, 0, 1, 1, 2], [0], [0]>} : vector<8x8x8xf32>, vector<8x8x8xf32>, vector<8x8x8xf32> -> vector<8x8x8xf32>
    "tpu.trace_stop"() : () -> ()
    %83 = vector.shape_cast %82 : vector<8x8x8xf32> to vector<64x8xf32>
    %84 = vector.extract_strided_slice %4 {offsets = [16, 0], sizes = [8, 32], strides = [1, 1]} : vector<32x32xf32> to vector<8x32xf32>
    %cst_42 = arith.constant dense<0.000000e+00> : vector<64x32xf32>
    %85 = tpu.matmul %83, %84, %cst_42 {dimension_numbers = #tpu.dot_dimension_numbers<[1], [0], [0], [1], [0, 0, 1, 1], [], []>} : vector<64x8xf32>, vector<8x32xf32>, vector<64x32xf32> -> vector<64x32xf32>
    %86 = arith.addf %62, %85 : vector<64x32xf32>
    %87 = vector.extract_strided_slice %15 {offsets = [0, 0, 24], sizes = [8, 8, 8], strides = [1, 1, 1]} : vector<8x8x96xf32> to vector<8x8x8xf32>
    %88 = vector.extract_strided_slice %15 {offsets = [0, 0, 56], sizes = [8, 8, 8], strides = [1, 1, 1]} : vector<8x8x96xf32> to vector<8x8x8xf32>
    %89 = vector.extract_strided_slice %15 {offsets = [0, 0, 88], sizes = [8, 8, 8], strides = [1, 1, 1]} : vector<8x8x96xf32> to vector<8x8x8xf32>
    "tpu.trace_start"() <{level = 10 : i32, message = "bid,bjd->bij"}> : () -> ()
    %cst_43 = arith.constant dense<0.000000e+00> : vector<8x8x8xf32>
    %90 = tpu.matmul %88, %87, %cst_43 {dimension_numbers = #tpu.dot_dimension_numbers<[2], [2], [1], [1], [0, 0, 0, 1, 1, 1], [0], [0]>} : vector<8x8x8xf32>, vector<8x8x8xf32>, vector<8x8x8xf32> -> vector<8x8x8xf32>
    "tpu.trace_stop"() : () -> ()
    %cst_44 = arith.constant 0.353553385 : f32
    %91 = vector.broadcast %cst_44 : f32 to vector<8x8x8xf32>
    %92 = arith.mulf %90, %91 : vector<8x8x8xf32>
    %93 = vector.extract_strided_slice %1 {offsets = [0, 3, 0, 0], sizes = [8, 1, 8, 8], strides = [1, 1, 1, 1]} : vector<8x4x8x8xf32> to vector<8x1x8x8xf32>
    %94 = vector.shape_cast %93 : vector<8x1x8x8xf32> to vector<8x8x8xf32>
    %95 = arith.addf %92, %94 : vector<8x8x8xf32>
    %cst_45 = arith.constant dense<0xFF800000> : vector<8x8xf32>
    %96 = vector.multi_reduction <maximumf>, %95, %cst_45 [2] : vector<8x8x8xf32> to vector<8x8xf32>
    %97 = vector.shape_cast %96 : vector<8x8xf32> to vector<8x8x1xf32>
    %98 = vector.broadcast %97 : vector<8x8x1xf32> to vector<8x8x8xf32>
    %99 = arith.subf %95, %98 : vector<8x8x8xf32>
    %100 = math.exp %99 : vector<8x8x8xf32>
    %cst_46 = arith.constant dense<0.000000e+00> : vector<8x8xf32>
    %101 = vector.multi_reduction <add>, %100, %cst_46 [2] : vector<8x8x8xf32> to vector<8x8xf32>
    %102 = vector.shape_cast %101 : vector<8x8xf32> to vector<8x8x1xf32>
    %103 = tpu.reciprocal %102 {approx = true} : vector<8x8x1xf32> -> vector<8x8x1xf32>
    %104 = vector.broadcast %103 : vector<8x8x1xf32> to vector<8x8x8xf32>
    %105 = arith.mulf %100, %104 : vector<8x8x8xf32>
    "tpu.trace_start"() <{level = 10 : i32, message = "bij,bjd->bid"}> : () -> ()
    %cst_47 = arith.constant dense<0.000000e+00> : vector<8x8x8xf32>
    %106 = tpu.matmul %105, %89, %cst_47 {dimension_numbers = #tpu.dot_dimension_numbers<[2], [1], [1], [2], [0, 0, 0, 1, 1, 2], [0], [0]>} : vector<8x8x8xf32>, vector<8x8x8xf32>, vector<8x8x8xf32> -> vector<8x8x8xf32>
    "tpu.trace_stop"() : () -> ()
    %107 = vector.shape_cast %106 : vector<8x8x8xf32> to vector<64x8xf32>
    %108 = vector.extract_strided_slice %4 {offsets = [24, 0], sizes = [8, 32], strides = [1, 1]} : vector<32x32xf32> to vector<8x32xf32>
    %cst_48 = arith.constant dense<0.000000e+00> : vector<64x32xf32>
    %109 = tpu.matmul %107, %108, %cst_48 {dimension_numbers = #tpu.dot_dimension_numbers<[1], [0], [0], [1], [0, 0, 1, 1], [], []>} : vector<64x8xf32>, vector<8x32xf32>, vector<64x32xf32> -> vector<64x32xf32>
    %110 = arith.addf %86, %109 : vector<64x32xf32>
    %111 = arith.addf %0, %110 : vector<64x32xf32>
    %112 = vector.broadcast %5 : vector<1x32xf32> to vector<64x32xf32>
    %113 = arith.addf %111, %112 : vector<64x32xf32>
    %cst_49 = arith.constant dense<0.000000e+00> : vector<64xf32>
    %114 = vector.multi_reduction <add>, %113, %cst_49 [1] : vector<64x32xf32> to vector<64xf32>
    %115 = vector.shape_cast %114 : vector<64xf32> to vector<64x1xf32>
    %cst_50 = arith.constant 3.200000e+01 : f32
    %116 = vector.broadcast %cst_50 : f32 to vector<64x1xf32>
    %117 = arith.divf %115, %116 : vector<64x1xf32>
    %118 = vector.broadcast %117 : vector<64x1xf32> to vector<64x32xf32>
    %119 = arith.subf %113, %118 : vector<64x32xf32>
    %120 = arith.mulf %119, %119 : vector<64x32xf32>
    %cst_51 = arith.constant dense<0.000000e+00> : vector<64xf32>
    %121 = vector.multi_reduction <add>, %120, %cst_51 [1] : vector<64x32xf32> to vector<64xf32>
    %122 = vector.shape_cast %121 : vector<64xf32> to vector<64x1xf32>
    %cst_52 = arith.constant 3.200000e+01 : f32
    %123 = vector.broadcast %cst_52 : f32 to vector<64x1xf32>
    %124 = arith.divf %122, %123 : vector<64x1xf32>
    %cst_53 = arith.constant 9.99999974E-6 : f32
    %125 = vector.broadcast %cst_53 : f32 to vector<64x1xf32>
    %126 = arith.addf %124, %125 : vector<64x1xf32>
    %127 = math.rsqrt %126 : vector<64x1xf32>
    %128 = vector.broadcast %127 : vector<64x1xf32> to vector<64x32xf32>
    %129 = arith.mulf %119, %128 : vector<64x32xf32>
    %130 = vector.broadcast %6 : vector<1x32xf32> to vector<64x32xf32>
    %131 = arith.mulf %129, %130 : vector<64x32xf32>
    %132 = vector.broadcast %7 : vector<1x32xf32> to vector<64x32xf32>
    %133 = arith.addf %131, %132 : vector<64x32xf32>
    %cst_54 = arith.constant dense<0.000000e+00> : vector<64x64xf32>
    %134 = tpu.matmul %133, %8, %cst_54 {dimension_numbers = #tpu.dot_dimension_numbers<[1], [0], [0], [1], [0, 0, 1, 1], [], []>} : vector<64x32xf32>, vector<32x64xf32>, vector<64x64xf32> -> vector<64x64xf32>
    %135 = vector.broadcast %9 : vector<1x64xf32> to vector<64x64xf32>
    %136 = arith.addf %134, %135 : vector<64x64xf32>
    %cst_55 = arith.constant 0.000000e+00 : f32
    %137 = vector.broadcast %cst_55 : f32 to vector<64x64xf32>
    %138 = arith.maximumf %136, %137 : vector<64x64xf32>
    %cst_56 = arith.constant dense<0.000000e+00> : vector<64x32xf32>
    %139 = tpu.matmul %138, %10, %cst_56 {dimension_numbers = #tpu.dot_dimension_numbers<[1], [0], [0], [1], [0, 0, 1, 1], [], []>} : vector<64x64xf32>, vector<64x32xf32>, vector<64x32xf32> -> vector<64x32xf32>
    %140 = vector.broadcast %11 : vector<1x32xf32> to vector<64x32xf32>
    %141 = arith.addf %139, %140 : vector<64x32xf32>
    %142 = arith.addf %113, %141 : vector<64x32xf32>
    %c0_57 = arith.constant 0 : index
    %c0_58 = arith.constant 0 : index
    %143 = vector.load %arg15[%c0_57, %c0_58] : memref<64x32xf32, #tpu.memory_space<vmem>>, vector<64x32xf32>
    tpu.vector_store %arg15[%c0_57, %c0_58], %142 {strides = array<i32>} : memref<64x32xf32, #tpu.memory_space<vmem>>, vector<64x32xf32>,
    return
  }
  func.func @transform_0(%arg0: i32) -> (i32, i32) {
    %c0_i32 = arith.constant 0 : i32
    %c0_i32_0 = arith.constant 0 : i32
    return %arg0, %c0_i32 : i32, i32
  }
  func.func @transform_1(%arg0: i32) -> (i32, i32, i32, i32) {
    %c0_i32 = arith.constant 0 : i32
    %c0_i32_0 = arith.constant 0 : i32
    %c0_i32_1 = arith.constant 0 : i32
    %c0_i32_2 = arith.constant 0 : i32
    return %arg0, %c0_i32, %c0_i32_0, %c0_i32_1 : i32, i32, i32, i32
  }
  func.func @transform_2(%arg0: i32) -> (i32, i32) {
    %c0_i32 = arith.constant 0 : i32
    %c0_i32_0 = arith.constant 0 : i32
    %c0_i32_1 = arith.constant 0 : i32
    return %c0_i32, %c0_i32_0 : i32, i32
  }
  func.func @transform_3(%arg0: i32) -> (i32, i32) {
    %c0_i32 = arith.constant 0 : i32
    %c0_i32_0 = arith.constant 0 : i32
    %c0_i32_1 = arith.constant 0 : i32
    return %c0_i32, %c0_i32_0 : i32, i32
  }
  func.func @transform_4(%arg0: i32) -> (i32, i32) {
    %c0_i32 = arith.constant 0 : i32
    %c0_i32_0 = arith.constant 0 : i32
    %c0_i32_1 = arith.constant 0 : i32
    return %c0_i32, %c0_i32_0 : i32, i32
  }
  func.func @transform_5(%arg0: i32) -> (i32, i32) {
    %c0_i32 = arith.constant 0 : i32
    %c0_i32_0 = arith.constant 0 : i32
    %c0_i32_1 = arith.constant 0 : i32
    return %c0_i32, %c0_i32_0 : i32, i32
  }
  func.func @transform_6(%arg0: i32) -> (i32, i32) {
    %c0_i32 = arith.constant 0 : i32
    %c0_i32_0 = arith.constant 0 : i32
    %c0_i32_1 = arith.constant 0 : i32
    return %c0_i32, %c0_i32_0 : i32, i32
  }
  func.func @transform_7(%arg0: i32) -> (i32, i32) {
    %c0_i32 = arith.constant 0 : i32
    %c0_i32_0 = arith.constant 0 : i32
    %c0_i32_1 = arith.constant 0 : i32
    return %c0_i32, %c0_i32_0 : i32, i32
  }
  func.func @transform_8(%arg0: i32) -> (i32, i32) {
    %c0_i32 = arith.constant 0 : i32
    %c0_i32_0 = arith.constant 0 : i32
    %c0_i32_1 = arith.constant 0 : i32
    return %c0_i32, %c0_i32_0 : i32, i32
  }
  func.func @transform_9(%arg0: i32) -> (i32, i32) {
    %c0_i32 = arith.constant 0 : i32
    %c0_i32_0 = arith.constant 0 : i32
    %c0_i32_1 = arith.constant 0 : i32
    return %c0_i32, %c0_i32_0 : i32, i32
  }
  func.func @transform_10(%arg0: i32) -> (i32, i32) {
    %c0_i32 = arith.constant 0 : i32
    %c0_i32_0 = arith.constant 0 : i32
    %c0_i32_1 = arith.constant 0 : i32
    return %c0_i32, %c0_i32_0 : i32, i32
  }
  func.func @transform_11(%arg0: i32) -> (i32, i32) {
    %c0_i32 = arith.constant 0 : i32
    %c0_i32_0 = arith.constant 0 : i32
    %c0_i32_1 = arith.constant 0 : i32
    return %c0_i32, %c0_i32_0 : i32, i32
  }
  func.func @transform_12(%arg0: i32) -> (i32, i32) {
    %c0_i32 = arith.constant 0 : i32
    %c0_i32_0 = arith.constant 0 : i32
    %c0_i32_1 = arith.constant 0 : i32
    return %c0_i32, %c0_i32_0 : i32, i32
  }
  func.func @transform_13(%arg0: i32) -> (i32, i32) {
    %c0_i32 = arith.constant 0 : i32
    %c0_i32_0 = arith.constant 0 : i32
    %c0_i32_1 = arith.constant 0 : i32
    return %c0_i32, %c0_i32_0 : i32, i32
  }
  func.func @transform_14(%arg0: i32) -> (i32, i32) {
    %c0_i32 = arith.constant 0 : i32
    %c0_i32_0 = arith.constant 0 : i32
    return %arg0, %c0_i32 : i32, i32
  }
}

module attributes {stable_mosaic.version = 11 : i64} {
  func.func @_block_kernel(%arg0: i32, %arg1: memref<64x32xf32, #tpu.memory_space<vmem>>, %arg2: memref<8x4x8x8xf32, #tpu.memory_space<vmem>>, %arg3: memref<1x32xf32, #tpu.memory_space<vmem>>, %arg4: memref<1x32xf32, #tpu.memory_space<vmem>>, %arg5: memref<32x96xf32, #tpu.memory_space<vmem>>, %arg6: memref<1x96xf32, #tpu.memory_space<vmem>>, %arg7: memref<32x32xf32, #tpu.memory_space<vmem>>, %arg8: memref<1x32xf32, #tpu.memory_space<vmem>>, %arg9: memref<1x32xf32, #tpu.memory_space<vmem>>, %arg10: memref<1x32xf32, #tpu.memory_space<vmem>>, %arg11: memref<32x64xf32, #tpu.memory_space<vmem>>, %arg12: memref<1x64xf32, #tpu.memory_space<vmem>>, %arg13: memref<64x32xf32, #tpu.memory_space<vmem>>, %arg14: memref<1x32xf32, #tpu.memory_space<vmem>>, %arg15: memref<64x32xf32, #tpu.memory_space<vmem>>) attributes {dimension_semantics = [#tpu.dimension_semantics<parallel>], iteration_bounds = array<i64: 1>, scalar_prefetch = 0 : i64, scratch_operands = 0 : i64, tpu.core_type = #tpu.core_type<tc>, window_params = [{transform_indices = @transform_0, window_bounds = array<i64: 64, 32>}, {transform_indices = @transform_1, window_bounds = array<i64: 8, 4, 8, 8>}, {pipeline_mode = #tpu.pipeline_mode<synchronous>, transform_indices = @transform_2, window_bounds = array<i64: 1, 32>}, {pipeline_mode = #tpu.pipeline_mode<synchronous>, transform_indices = @transform_3, window_bounds = array<i64: 1, 32>}, {pipeline_mode = #tpu.pipeline_mode<synchronous>, transform_indices = @transform_4, window_bounds = array<i64: 32, 96>}, {pipeline_mode = #tpu.pipeline_mode<synchronous>, transform_indices = @transform_5, window_bounds = array<i64: 1, 96>}, {pipeline_mode = #tpu.pipeline_mode<synchronous>, transform_indices = @transform_6, window_bounds = array<i64: 32, 32>}, {pipeline_mode = #tpu.pipeline_mode<synchronous>, transform_indices = @transform_7, window_bounds = array<i64: 1, 32>}, {pipeline_mode = #tpu.pipeline_mode<synchronous>, transform_indices = @transform_8, window_bounds = array<i64: 1, 32>}, {pipeline_mode = #tpu.pipeline_mode<synchronous>, transform_indices = @transform_9, window_bounds = array<i64: 1, 32>}, {pipeline_mode = #tpu.pipeline_mode<synchronous>, transform_indices = @transform_10, window_bounds = array<i64: 32, 64>}, {pipeline_mode = #tpu.pipeline_mode<synchronous>, transform_indices = @transform_11, window_bounds = array<i64: 1, 64>}, {pipeline_mode = #tpu.pipeline_mode<synchronous>, transform_indices = @transform_12, window_bounds = array<i64: 64, 32>}, {pipeline_mode = #tpu.pipeline_mode<synchronous>, transform_indices = @transform_13, window_bounds = array<i64: 1, 32>}, {transform_indices = @transform_14, window_bounds = array<i64: 64, 32>}]} {
    %c0 = arith.constant 0 : index
    %c0_0 = arith.constant 0 : index
    %0 = vector.load %arg1[%c0, %c0_0] : memref<64x32xf32, #tpu.memory_space<vmem>>, vector<64x32xf32>
    %c0_1 = arith.constant 0 : index
    %c0_2 = arith.constant 0 : index
    %c0_3 = arith.constant 0 : index
    %c0_4 = arith.constant 0 : index
    %1 = vector.load %arg2[%c0_1, %c0_2, %c0_3, %c0_4] : memref<8x4x8x8xf32, #tpu.memory_space<vmem>>, vector<8x4x8x8xf32>
    %c0_5 = arith.constant 0 : index
    %c0_6 = arith.constant 0 : index
    %2 = vector.load %arg3[%c0_5, %c0_6] : memref<1x32xf32, #tpu.memory_space<vmem>>, vector<1x32xf32>
    %c0_7 = arith.constant 0 : index
    %c0_8 = arith.constant 0 : index
    %3 = vector.load %arg4[%c0_7, %c0_8] : memref<1x32xf32, #tpu.memory_space<vmem>>, vector<1x32xf32>
    %c0_9 = arith.constant 0 : index
    %c0_10 = arith.constant 0 : index
    %4 = vector.load %arg5[%c0_9, %c0_10] : memref<32x96xf32, #tpu.memory_space<vmem>>, vector<32x96xf32>
    %c0_11 = arith.constant 0 : index
    %c0_12 = arith.constant 0 : index
    %5 = vector.load %arg6[%c0_11, %c0_12] : memref<1x96xf32, #tpu.memory_space<vmem>>, vector<1x96xf32>
    %c0_13 = arith.constant 0 : index
    %c0_14 = arith.constant 0 : index
    %6 = vector.load %arg7[%c0_13, %c0_14] : memref<32x32xf32, #tpu.memory_space<vmem>>, vector<32x32xf32>
    %c0_15 = arith.constant 0 : index
    %c0_16 = arith.constant 0 : index
    %7 = vector.load %arg8[%c0_15, %c0_16] : memref<1x32xf32, #tpu.memory_space<vmem>>, vector<1x32xf32>
    %c0_17 = arith.constant 0 : index
    %c0_18 = arith.constant 0 : index
    %8 = vector.load %arg9[%c0_17, %c0_18] : memref<1x32xf32, #tpu.memory_space<vmem>>, vector<1x32xf32>
    %c0_19 = arith.constant 0 : index
    %c0_20 = arith.constant 0 : index
    %9 = vector.load %arg10[%c0_19, %c0_20] : memref<1x32xf32, #tpu.memory_space<vmem>>, vector<1x32xf32>
    %c0_21 = arith.constant 0 : index
    %c0_22 = arith.constant 0 : index
    %10 = vector.load %arg11[%c0_21, %c0_22] : memref<32x64xf32, #tpu.memory_space<vmem>>, vector<32x64xf32>
    %c0_23 = arith.constant 0 : index
    %c0_24 = arith.constant 0 : index
    %11 = vector.load %arg12[%c0_23, %c0_24] : memref<1x64xf32, #tpu.memory_space<vmem>>, vector<1x64xf32>
    %c0_25 = arith.constant 0 : index
    %c0_26 = arith.constant 0 : index
    %12 = vector.load %arg13[%c0_25, %c0_26] : memref<64x32xf32, #tpu.memory_space<vmem>>, vector<64x32xf32>
    %c0_27 = arith.constant 0 : index
    %c0_28 = arith.constant 0 : index
    %13 = vector.load %arg14[%c0_27, %c0_28] : memref<1x32xf32, #tpu.memory_space<vmem>>, vector<1x32xf32>
    %cst = arith.constant dense<0.000000e+00> : vector<64xf32>
    %14 = vector.multi_reduction <add>, %0, %cst [1] : vector<64x32xf32> to vector<64xf32>
    %15 = vector.shape_cast %14 : vector<64xf32> to vector<64x1xf32>
    %cst_29 = arith.constant 3.200000e+01 : f32
    %16 = vector.broadcast %cst_29 : f32 to vector<64x1xf32>
    %17 = arith.divf %15, %16 : vector<64x1xf32>
    %18 = vector.broadcast %17 : vector<64x1xf32> to vector<64x32xf32>
    %19 = arith.subf %0, %18 : vector<64x32xf32>
    %20 = arith.mulf %19, %19 : vector<64x32xf32>
    %cst_30 = arith.constant dense<0.000000e+00> : vector<64xf32>
    %21 = vector.multi_reduction <add>, %20, %cst_30 [1] : vector<64x32xf32> to vector<64xf32>
    %22 = vector.shape_cast %21 : vector<64xf32> to vector<64x1xf32>
    %cst_31 = arith.constant 3.200000e+01 : f32
    %23 = vector.broadcast %cst_31 : f32 to vector<64x1xf32>
    %24 = arith.divf %22, %23 : vector<64x1xf32>
    %cst_32 = arith.constant 9.99999974E-6 : f32
    %25 = vector.broadcast %cst_32 : f32 to vector<64x1xf32>
    %26 = arith.addf %24, %25 : vector<64x1xf32>
    %27 = math.rsqrt %26 : vector<64x1xf32>
    %28 = vector.broadcast %27 : vector<64x1xf32> to vector<64x32xf32>
    %29 = arith.mulf %19, %28 : vector<64x32xf32>
    %30 = vector.broadcast %2 : vector<1x32xf32> to vector<64x32xf32>
    %31 = arith.mulf %29, %30 : vector<64x32xf32>
    %32 = vector.broadcast %3 : vector<1x32xf32> to vector<64x32xf32>
    %33 = arith.addf %31, %32 : vector<64x32xf32>
    %cst_33 = arith.constant dense<0.000000e+00> : vector<64x96xf32>
    %34 = tpu.matmul %33, %4, %cst_33 {dimension_numbers = #tpu.dot_dimension_numbers<[1], [0], [0], [1], [0, 0, 1, 1], [], []>} : vector<64x32xf32>, vector<32x96xf32>, vector<64x96xf32> -> vector<64x96xf32>
    %35 = vector.broadcast %5 : vector<1x96xf32> to vector<64x96xf32>
    %36 = arith.addf %34, %35 : vector<64x96xf32>
    %37 = vector.shape_cast %36 : vector<64x96xf32> to vector<8x8x96xf32>
    %38 = vector.extract_strided_slice %37 {offsets = [0, 0, 0], sizes = [8, 8, 8], strides = [1, 1, 1]} : vector<8x8x96xf32> to vector<8x8x8xf32>
    %39 = vector.extract_strided_slice %37 {offsets = [0, 0, 32], sizes = [8, 8, 8], strides = [1, 1, 1]} : vector<8x8x96xf32> to vector<8x8x8xf32>
    %40 = vector.extract_strided_slice %37 {offsets = [0, 0, 64], sizes = [8, 8, 8], strides = [1, 1, 1]} : vector<8x8x96xf32> to vector<8x8x8xf32>
    "tpu.trace_start"() <{level = 10 : i32, message = "bid,bjd->bij"}> : () -> ()
    %cst_34 = arith.constant dense<0.000000e+00> : vector<8x8x8xf32>
    %41 = tpu.matmul %39, %38, %cst_34 {dimension_numbers = #tpu.dot_dimension_numbers<[2], [2], [1], [1], [0, 0, 0, 1, 1, 1], [0], [0]>} : vector<8x8x8xf32>, vector<8x8x8xf32>, vector<8x8x8xf32> -> vector<8x8x8xf32>
    "tpu.trace_stop"() : () -> ()
    %cst_35 = arith.constant 0.353553385 : f32
    %42 = vector.broadcast %cst_35 : f32 to vector<8x8x8xf32>
    %43 = arith.mulf %41, %42 : vector<8x8x8xf32>
    %44 = vector.extract_strided_slice %1 {offsets = [0, 0, 0, 0], sizes = [8, 1, 8, 8], strides = [1, 1, 1, 1]} : vector<8x4x8x8xf32> to vector<8x1x8x8xf32>
    %45 = vector.shape_cast %44 : vector<8x1x8x8xf32> to vector<8x8x8xf32>
    %46 = arith.addf %43, %45 : vector<8x8x8xf32>
    %cst_36 = arith.constant dense<0xFF800000> : vector<8x8xf32>
    %47 = vector.multi_reduction <maximumf>, %46, %cst_36 [2] : vector<8x8x8xf32> to vector<8x8xf32>
    %48 = vector.shape_cast %47 : vector<8x8xf32> to vector<8x8x1xf32>
    %49 = vector.broadcast %48 : vector<8x8x1xf32> to vector<8x8x8xf32>
    %50 = arith.subf %46, %49 : vector<8x8x8xf32>
    %51 = math.exp %50 : vector<8x8x8xf32>
    %cst_37 = arith.constant dense<0.000000e+00> : vector<8x8xf32>
    %52 = vector.multi_reduction <add>, %51, %cst_37 [2] : vector<8x8x8xf32> to vector<8x8xf32>
    %53 = vector.shape_cast %52 : vector<8x8xf32> to vector<8x8x1xf32>
    %54 = tpu.reciprocal %53 {approx = true} : vector<8x8x1xf32> -> vector<8x8x1xf32>
    %55 = vector.broadcast %54 : vector<8x8x1xf32> to vector<8x8x8xf32>
    %56 = arith.mulf %51, %55 : vector<8x8x8xf32>
    "tpu.trace_start"() <{level = 10 : i32, message = "bij,bjd->bid"}> : () -> ()
    %cst_38 = arith.constant dense<0.000000e+00> : vector<8x8x8xf32>
    %57 = tpu.matmul %56, %40, %cst_38 {dimension_numbers = #tpu.dot_dimension_numbers<[2], [1], [1], [2], [0, 0, 0, 1, 1, 2], [0], [0]>} : vector<8x8x8xf32>, vector<8x8x8xf32>, vector<8x8x8xf32> -> vector<8x8x8xf32>
    "tpu.trace_stop"() : () -> ()
    %58 = vector.shape_cast %57 : vector<8x8x8xf32> to vector<64x8xf32>
    %59 = vector.extract_strided_slice %6 {offsets = [0, 0], sizes = [8, 32], strides = [1, 1]} : vector<32x32xf32> to vector<8x32xf32>
    %cst_39 = arith.constant dense<0.000000e+00> : vector<64x32xf32>
    %60 = tpu.matmul %58, %59, %cst_39 {dimension_numbers = #tpu.dot_dimension_numbers<[1], [0], [0], [1], [0, 0, 1, 1], [], []>} : vector<64x8xf32>, vector<8x32xf32>, vector<64x32xf32> -> vector<64x32xf32>
    %61 = vector.extract_strided_slice %37 {offsets = [0, 0, 8], sizes = [8, 8, 8], strides = [1, 1, 1]} : vector<8x8x96xf32> to vector<8x8x8xf32>
    %62 = vector.extract_strided_slice %37 {offsets = [0, 0, 40], sizes = [8, 8, 8], strides = [1, 1, 1]} : vector<8x8x96xf32> to vector<8x8x8xf32>
    %63 = vector.extract_strided_slice %37 {offsets = [0, 0, 72], sizes = [8, 8, 8], strides = [1, 1, 1]} : vector<8x8x96xf32> to vector<8x8x8xf32>
    "tpu.trace_start"() <{level = 10 : i32, message = "bid,bjd->bij"}> : () -> ()
    %cst_40 = arith.constant dense<0.000000e+00> : vector<8x8x8xf32>
    %64 = tpu.matmul %62, %61, %cst_40 {dimension_numbers = #tpu.dot_dimension_numbers<[2], [2], [1], [1], [0, 0, 0, 1, 1, 1], [0], [0]>} : vector<8x8x8xf32>, vector<8x8x8xf32>, vector<8x8x8xf32> -> vector<8x8x8xf32>
    "tpu.trace_stop"() : () -> ()
    %cst_41 = arith.constant 0.353553385 : f32
    %65 = vector.broadcast %cst_41 : f32 to vector<8x8x8xf32>
    %66 = arith.mulf %64, %65 : vector<8x8x8xf32>
    %67 = vector.extract_strided_slice %1 {offsets = [0, 1, 0, 0], sizes = [8, 1, 8, 8], strides = [1, 1, 1, 1]} : vector<8x4x8x8xf32> to vector<8x1x8x8xf32>
    %68 = vector.shape_cast %67 : vector<8x1x8x8xf32> to vector<8x8x8xf32>
    %69 = arith.addf %66, %68 : vector<8x8x8xf32>
    %cst_42 = arith.constant dense<0xFF800000> : vector<8x8xf32>
    %70 = vector.multi_reduction <maximumf>, %69, %cst_42 [2] : vector<8x8x8xf32> to vector<8x8xf32>
    %71 = vector.shape_cast %70 : vector<8x8xf32> to vector<8x8x1xf32>
    %72 = vector.broadcast %71 : vector<8x8x1xf32> to vector<8x8x8xf32>
    %73 = arith.subf %69, %72 : vector<8x8x8xf32>
    %74 = math.exp %73 : vector<8x8x8xf32>
    %cst_43 = arith.constant dense<0.000000e+00> : vector<8x8xf32>
    %75 = vector.multi_reduction <add>, %74, %cst_43 [2] : vector<8x8x8xf32> to vector<8x8xf32>
    %76 = vector.shape_cast %75 : vector<8x8xf32> to vector<8x8x1xf32>
    %77 = tpu.reciprocal %76 {approx = true} : vector<8x8x1xf32> -> vector<8x8x1xf32>
    %78 = vector.broadcast %77 : vector<8x8x1xf32> to vector<8x8x8xf32>
    %79 = arith.mulf %74, %78 : vector<8x8x8xf32>
    "tpu.trace_start"() <{level = 10 : i32, message = "bij,bjd->bid"}> : () -> ()
    %cst_44 = arith.constant dense<0.000000e+00> : vector<8x8x8xf32>
    %80 = tpu.matmul %79, %63, %cst_44 {dimension_numbers = #tpu.dot_dimension_numbers<[2], [1], [1], [2], [0, 0, 0, 1, 1, 2], [0], [0]>} : vector<8x8x8xf32>, vector<8x8x8xf32>, vector<8x8x8xf32> -> vector<8x8x8xf32>
    "tpu.trace_stop"() : () -> ()
    %81 = vector.shape_cast %80 : vector<8x8x8xf32> to vector<64x8xf32>
    %82 = vector.extract_strided_slice %6 {offsets = [8, 0], sizes = [8, 32], strides = [1, 1]} : vector<32x32xf32> to vector<8x32xf32>
    %cst_45 = arith.constant dense<0.000000e+00> : vector<64x32xf32>
    %83 = tpu.matmul %81, %82, %cst_45 {dimension_numbers = #tpu.dot_dimension_numbers<[1], [0], [0], [1], [0, 0, 1, 1], [], []>} : vector<64x8xf32>, vector<8x32xf32>, vector<64x32xf32> -> vector<64x32xf32>
    %84 = arith.addf %60, %83 : vector<64x32xf32>
    %85 = vector.extract_strided_slice %37 {offsets = [0, 0, 16], sizes = [8, 8, 8], strides = [1, 1, 1]} : vector<8x8x96xf32> to vector<8x8x8xf32>
    %86 = vector.extract_strided_slice %37 {offsets = [0, 0, 48], sizes = [8, 8, 8], strides = [1, 1, 1]} : vector<8x8x96xf32> to vector<8x8x8xf32>
    %87 = vector.extract_strided_slice %37 {offsets = [0, 0, 80], sizes = [8, 8, 8], strides = [1, 1, 1]} : vector<8x8x96xf32> to vector<8x8x8xf32>
    "tpu.trace_start"() <{level = 10 : i32, message = "bid,bjd->bij"}> : () -> ()
    %cst_46 = arith.constant dense<0.000000e+00> : vector<8x8x8xf32>
    %88 = tpu.matmul %86, %85, %cst_46 {dimension_numbers = #tpu.dot_dimension_numbers<[2], [2], [1], [1], [0, 0, 0, 1, 1, 1], [0], [0]>} : vector<8x8x8xf32>, vector<8x8x8xf32>, vector<8x8x8xf32> -> vector<8x8x8xf32>
    "tpu.trace_stop"() : () -> ()
    %cst_47 = arith.constant 0.353553385 : f32
    %89 = vector.broadcast %cst_47 : f32 to vector<8x8x8xf32>
    %90 = arith.mulf %88, %89 : vector<8x8x8xf32>
    %91 = vector.extract_strided_slice %1 {offsets = [0, 2, 0, 0], sizes = [8, 1, 8, 8], strides = [1, 1, 1, 1]} : vector<8x4x8x8xf32> to vector<8x1x8x8xf32>
    %92 = vector.shape_cast %91 : vector<8x1x8x8xf32> to vector<8x8x8xf32>
    %93 = arith.addf %90, %92 : vector<8x8x8xf32>
    %cst_48 = arith.constant dense<0xFF800000> : vector<8x8xf32>
    %94 = vector.multi_reduction <maximumf>, %93, %cst_48 [2] : vector<8x8x8xf32> to vector<8x8xf32>
    %95 = vector.shape_cast %94 : vector<8x8xf32> to vector<8x8x1xf32>
    %96 = vector.broadcast %95 : vector<8x8x1xf32> to vector<8x8x8xf32>
    %97 = arith.subf %93, %96 : vector<8x8x8xf32>
    %98 = math.exp %97 : vector<8x8x8xf32>
    %cst_49 = arith.constant dense<0.000000e+00> : vector<8x8xf32>
    %99 = vector.multi_reduction <add>, %98, %cst_49 [2] : vector<8x8x8xf32> to vector<8x8xf32>
    %100 = vector.shape_cast %99 : vector<8x8xf32> to vector<8x8x1xf32>
    %101 = tpu.reciprocal %100 {approx = true} : vector<8x8x1xf32> -> vector<8x8x1xf32>
    %102 = vector.broadcast %101 : vector<8x8x1xf32> to vector<8x8x8xf32>
    %103 = arith.mulf %98, %102 : vector<8x8x8xf32>
    "tpu.trace_start"() <{level = 10 : i32, message = "bij,bjd->bid"}> : () -> ()
    %cst_50 = arith.constant dense<0.000000e+00> : vector<8x8x8xf32>
    %104 = tpu.matmul %103, %87, %cst_50 {dimension_numbers = #tpu.dot_dimension_numbers<[2], [1], [1], [2], [0, 0, 0, 1, 1, 2], [0], [0]>} : vector<8x8x8xf32>, vector<8x8x8xf32>, vector<8x8x8xf32> -> vector<8x8x8xf32>
    "tpu.trace_stop"() : () -> ()
    %105 = vector.shape_cast %104 : vector<8x8x8xf32> to vector<64x8xf32>
    %106 = vector.extract_strided_slice %6 {offsets = [16, 0], sizes = [8, 32], strides = [1, 1]} : vector<32x32xf32> to vector<8x32xf32>
    %cst_51 = arith.constant dense<0.000000e+00> : vector<64x32xf32>
    %107 = tpu.matmul %105, %106, %cst_51 {dimension_numbers = #tpu.dot_dimension_numbers<[1], [0], [0], [1], [0, 0, 1, 1], [], []>} : vector<64x8xf32>, vector<8x32xf32>, vector<64x32xf32> -> vector<64x32xf32>
    %108 = arith.addf %84, %107 : vector<64x32xf32>
    %109 = vector.extract_strided_slice %37 {offsets = [0, 0, 24], sizes = [8, 8, 8], strides = [1, 1, 1]} : vector<8x8x96xf32> to vector<8x8x8xf32>
    %110 = vector.extract_strided_slice %37 {offsets = [0, 0, 56], sizes = [8, 8, 8], strides = [1, 1, 1]} : vector<8x8x96xf32> to vector<8x8x8xf32>
    %111 = vector.extract_strided_slice %37 {offsets = [0, 0, 88], sizes = [8, 8, 8], strides = [1, 1, 1]} : vector<8x8x96xf32> to vector<8x8x8xf32>
    "tpu.trace_start"() <{level = 10 : i32, message = "bid,bjd->bij"}> : () -> ()
    %cst_52 = arith.constant dense<0.000000e+00> : vector<8x8x8xf32>
    %112 = tpu.matmul %110, %109, %cst_52 {dimension_numbers = #tpu.dot_dimension_numbers<[2], [2], [1], [1], [0, 0, 0, 1, 1, 1], [0], [0]>} : vector<8x8x8xf32>, vector<8x8x8xf32>, vector<8x8x8xf32> -> vector<8x8x8xf32>
    "tpu.trace_stop"() : () -> ()
    %cst_53 = arith.constant 0.353553385 : f32
    %113 = vector.broadcast %cst_53 : f32 to vector<8x8x8xf32>
    %114 = arith.mulf %112, %113 : vector<8x8x8xf32>
    %115 = vector.extract_strided_slice %1 {offsets = [0, 3, 0, 0], sizes = [8, 1, 8, 8], strides = [1, 1, 1, 1]} : vector<8x4x8x8xf32> to vector<8x1x8x8xf32>
    %116 = vector.shape_cast %115 : vector<8x1x8x8xf32> to vector<8x8x8xf32>
    %117 = arith.addf %114, %116 : vector<8x8x8xf32>
    %cst_54 = arith.constant dense<0xFF800000> : vector<8x8xf32>
    %118 = vector.multi_reduction <maximumf>, %117, %cst_54 [2] : vector<8x8x8xf32> to vector<8x8xf32>
    %119 = vector.shape_cast %118 : vector<8x8xf32> to vector<8x8x1xf32>
    %120 = vector.broadcast %119 : vector<8x8x1xf32> to vector<8x8x8xf32>
    %121 = arith.subf %117, %120 : vector<8x8x8xf32>
    %122 = math.exp %121 : vector<8x8x8xf32>
    %cst_55 = arith.constant dense<0.000000e+00> : vector<8x8xf32>
    %123 = vector.multi_reduction <add>, %122, %cst_55 [2] : vector<8x8x8xf32> to vector<8x8xf32>
    %124 = vector.shape_cast %123 : vector<8x8xf32> to vector<8x8x1xf32>
    %125 = tpu.reciprocal %124 {approx = true} : vector<8x8x1xf32> -> vector<8x8x1xf32>
    %126 = vector.broadcast %125 : vector<8x8x1xf32> to vector<8x8x8xf32>
    %127 = arith.mulf %122, %126 : vector<8x8x8xf32>
    "tpu.trace_start"() <{level = 10 : i32, message = "bij,bjd->bid"}> : () -> ()
    %cst_56 = arith.constant dense<0.000000e+00> : vector<8x8x8xf32>
    %128 = tpu.matmul %127, %111, %cst_56 {dimension_numbers = #tpu.dot_dimension_numbers<[2], [1], [1], [2], [0, 0, 0, 1, 1, 2], [0], [0]>} : vector<8x8x8xf32>, vector<8x8x8xf32>, vector<8x8x8xf32> -> vector<8x8x8xf32>
    "tpu.trace_stop"() : () -> ()
    %129 = vector.shape_cast %128 : vector<8x8x8xf32> to vector<64x8xf32>
    %130 = vector.extract_strided_slice %6 {offsets = [24, 0], sizes = [8, 32], strides = [1, 1]} : vector<32x32xf32> to vector<8x32xf32>
    %cst_57 = arith.constant dense<0.000000e+00> : vector<64x32xf32>
    %131 = tpu.matmul %129, %130, %cst_57 {dimension_numbers = #tpu.dot_dimension_numbers<[1], [0], [0], [1], [0, 0, 1, 1], [], []>} : vector<64x8xf32>, vector<8x32xf32>, vector<64x32xf32> -> vector<64x32xf32>
    %132 = arith.addf %108, %131 : vector<64x32xf32>
    %133 = arith.addf %0, %132 : vector<64x32xf32>
    %134 = vector.broadcast %7 : vector<1x32xf32> to vector<64x32xf32>
    %135 = arith.addf %133, %134 : vector<64x32xf32>
    %cst_58 = arith.constant dense<0.000000e+00> : vector<64xf32>
    %136 = vector.multi_reduction <add>, %135, %cst_58 [1] : vector<64x32xf32> to vector<64xf32>
    %137 = vector.shape_cast %136 : vector<64xf32> to vector<64x1xf32>
    %cst_59 = arith.constant 3.200000e+01 : f32
    %138 = vector.broadcast %cst_59 : f32 to vector<64x1xf32>
    %139 = arith.divf %137, %138 : vector<64x1xf32>
    %140 = vector.broadcast %139 : vector<64x1xf32> to vector<64x32xf32>
    %141 = arith.subf %135, %140 : vector<64x32xf32>
    %142 = arith.mulf %141, %141 : vector<64x32xf32>
    %cst_60 = arith.constant dense<0.000000e+00> : vector<64xf32>
    %143 = vector.multi_reduction <add>, %142, %cst_60 [1] : vector<64x32xf32> to vector<64xf32>
    %144 = vector.shape_cast %143 : vector<64xf32> to vector<64x1xf32>
    %cst_61 = arith.constant 3.200000e+01 : f32
    %145 = vector.broadcast %cst_61 : f32 to vector<64x1xf32>
    %146 = arith.divf %144, %145 : vector<64x1xf32>
    %cst_62 = arith.constant 9.99999974E-6 : f32
    %147 = vector.broadcast %cst_62 : f32 to vector<64x1xf32>
    %148 = arith.addf %146, %147 : vector<64x1xf32>
    %149 = math.rsqrt %148 : vector<64x1xf32>
    %150 = vector.broadcast %149 : vector<64x1xf32> to vector<64x32xf32>
    %151 = arith.mulf %141, %150 : vector<64x32xf32>
    %152 = vector.broadcast %8 : vector<1x32xf32> to vector<64x32xf32>
    %153 = arith.mulf %151, %152 : vector<64x32xf32>
    %154 = vector.broadcast %9 : vector<1x32xf32> to vector<64x32xf32>
    %155 = arith.addf %153, %154 : vector<64x32xf32>
    %cst_63 = arith.constant dense<0.000000e+00> : vector<64x64xf32>
    %156 = tpu.matmul %155, %10, %cst_63 {dimension_numbers = #tpu.dot_dimension_numbers<[1], [0], [0], [1], [0, 0, 1, 1], [], []>} : vector<64x32xf32>, vector<32x64xf32>, vector<64x64xf32> -> vector<64x64xf32>
    %157 = vector.broadcast %11 : vector<1x64xf32> to vector<64x64xf32>
    %158 = arith.addf %156, %157 : vector<64x64xf32>
    %cst_64 = arith.constant 0.000000e+00 : f32
    %159 = vector.broadcast %cst_64 : f32 to vector<64x64xf32>
    %160 = arith.maximumf %158, %159 : vector<64x64xf32>
    %cst_65 = arith.constant dense<0.000000e+00> : vector<64x32xf32>
    %161 = tpu.matmul %160, %12, %cst_65 {dimension_numbers = #tpu.dot_dimension_numbers<[1], [0], [0], [1], [0, 0, 1, 1], [], []>} : vector<64x64xf32>, vector<64x32xf32>, vector<64x32xf32> -> vector<64x32xf32>
    %162 = vector.broadcast %13 : vector<1x32xf32> to vector<64x32xf32>
    %163 = arith.addf %161, %162 : vector<64x32xf32>
    %164 = arith.addf %135, %163 : vector<64x32xf32>
    %c0_66 = arith.constant 0 : index
    %c0_67 = arith.constant 0 : index
    %165 = vector.load %arg15[%c0_66, %c0_67] : memref<64x32xf32, #tpu.memory_space<vmem>>, vector<64x32xf32>
    tpu.vector_store %arg15[%c0_66, %c0_67], %164 {strides = array<i32>} : memref<64x32xf32, #tpu.memory_space<vmem>>, vector<64x32xf32>,
    return
  }
  func.func @transform_0(%arg0: i32) -> (i32, i32) {
    %c0_i32 = arith.constant 0 : i32
    %c0_i32_0 = arith.constant 0 : i32
    return %arg0, %c0_i32 : i32, i32
  }
  func.func @transform_1(%arg0: i32) -> (i32, i32, i32, i32) {
    %c0_i32 = arith.constant 0 : i32
    %c0_i32_0 = arith.constant 0 : i32
    %c0_i32_1 = arith.constant 0 : i32
    %c0_i32_2 = arith.constant 0 : i32
    return %arg0, %c0_i32, %c0_i32_0, %c0_i32_1 : i32, i32, i32, i32
  }
  func.func @transform_2(%arg0: i32) -> (i32, i32) {
    %c0_i32 = arith.constant 0 : i32
    %c0_i32_0 = arith.constant 0 : i32
    %c0_i32_1 = arith.constant 0 : i32
    return %c0_i32, %c0_i32_0 : i32, i32
  }
  func.func @transform_3(%arg0: i32) -> (i32, i32) {
    %c0_i32 = arith.constant 0 : i32
    %c0_i32_0 = arith.constant 0 : i32
    %c0_i32_1 = arith.constant 0 : i32
    return %c0_i32, %c0_i32_0 : i32, i32
  }
  func.func @transform_4(%arg0: i32) -> (i32, i32) {
    %c0_i32 = arith.constant 0 : i32
    %c0_i32_0 = arith.constant 0 : i32
    %c0_i32_1 = arith.constant 0 : i32
    return %c0_i32, %c0_i32_0 : i32, i32
  }
  func.func @transform_5(%arg0: i32) -> (i32, i32) {
    %c0_i32 = arith.constant 0 : i32
    %c0_i32_0 = arith.constant 0 : i32
    %c0_i32_1 = arith.constant 0 : i32
    return %c0_i32, %c0_i32_0 : i32, i32
  }
  func.func @transform_6(%arg0: i32) -> (i32, i32) {
    %c0_i32 = arith.constant 0 : i32
    %c0_i32_0 = arith.constant 0 : i32
    %c0_i32_1 = arith.constant 0 : i32
    return %c0_i32, %c0_i32_0 : i32, i32
  }
  func.func @transform_7(%arg0: i32) -> (i32, i32) {
    %c0_i32 = arith.constant 0 : i32
    %c0_i32_0 = arith.constant 0 : i32
    %c0_i32_1 = arith.constant 0 : i32
    return %c0_i32, %c0_i32_0 : i32, i32
  }
  func.func @transform_8(%arg0: i32) -> (i32, i32) {
    %c0_i32 = arith.constant 0 : i32
    %c0_i32_0 = arith.constant 0 : i32
    %c0_i32_1 = arith.constant 0 : i32
    return %c0_i32, %c0_i32_0 : i32, i32
  }
  func.func @transform_9(%arg0: i32) -> (i32, i32) {
    %c0_i32 = arith.constant 0 : i32
    %c0_i32_0 = arith.constant 0 : i32
    %c0_i32_1 = arith.constant 0 : i32
    return %c0_i32, %c0_i32_0 : i32, i32
  }
  func.func @transform_10(%arg0: i32) -> (i32, i32) {
    %c0_i32 = arith.constant 0 : i32
    %c0_i32_0 = arith.constant 0 : i32
    %c0_i32_1 = arith.constant 0 : i32
    return %c0_i32, %c0_i32_0 : i32, i32
  }
  func.func @transform_11(%arg0: i32) -> (i32, i32) {
    %c0_i32 = arith.constant 0 : i32
    %c0_i32_0 = arith.constant 0 : i32
    %c0_i32_1 = arith.constant 0 : i32
    return %c0_i32, %c0_i32_0 : i32, i32
  }
  func.func @transform_12(%arg0: i32) -> (i32, i32) {
    %c0_i32 = arith.constant 0 : i32
    %c0_i32_0 = arith.constant 0 : i32
    %c0_i32_1 = arith.constant 0 : i32
    return %c0_i32, %c0_i32_0 : i32, i32
  }
  func.func @transform_13(%arg0: i32) -> (i32, i32) {
    %c0_i32 = arith.constant 0 : i32
    %c0_i32_0 = arith.constant 0 : i32
    %c0_i32_1 = arith.constant 0 : i32
    return %c0_i32, %c0_i32_0 : i32, i32
  }
  func.func @transform_14(%arg0: i32) -> (i32, i32) {
    %c0_i32 = arith.constant 0 : i32
    %c0_i32_0 = arith.constant 0 : i32
    return %arg0, %c0_i32 : i32, i32
  }
}

module attributes {stable_mosaic.version = 11 : i64} {
  func.func @_block_loss_kernel(%arg0: i32, %arg1: memref<64x32xf32, #tpu.memory_space<vmem>>, %arg2: memref<1x4x8x8xf32, #tpu.memory_space<vmem>>, %arg3: memref<1x32xf32, #tpu.memory_space<vmem>>, %arg4: memref<1x32xf32, #tpu.memory_space<vmem>>, %arg5: memref<32x96xf32, #tpu.memory_space<vmem>>, %arg6: memref<1x96xf32, #tpu.memory_space<vmem>>, %arg7: memref<32x32xf32, #tpu.memory_space<vmem>>, %arg8: memref<1x32xf32, #tpu.memory_space<vmem>>, %arg9: memref<1x32xf32, #tpu.memory_space<vmem>>, %arg10: memref<1x32xf32, #tpu.memory_space<vmem>>, %arg11: memref<32x64xf32, #tpu.memory_space<vmem>>, %arg12: memref<1x64xf32, #tpu.memory_space<vmem>>, %arg13: memref<64x32xf32, #tpu.memory_space<vmem>>, %arg14: memref<1x32xf32, #tpu.memory_space<vmem>>, %arg15: memref<8x8xf32, #tpu.memory_space<vmem>>, %arg16: memref<8x8xf32, #tpu.memory_space<vmem>>, %arg17: memref<1x32xf32, #tpu.memory_space<vmem>>, %arg18: memref<1x32xf32, #tpu.memory_space<vmem>>, %arg19: memref<1x32xf32, #tpu.memory_space<vmem>>, %arg20: memref<8x8xf32, #tpu.memory_space<vmem>>) attributes {dimension_semantics = [#tpu.dimension_semantics<parallel>], iteration_bounds = array<i64: 1>, scalar_prefetch = 0 : i64, scratch_operands = 0 : i64, tpu.core_type = #tpu.core_type<tc>, window_params = [{transform_indices = @transform_0, window_bounds = array<i64: 64, 32>}, {pipeline_mode = #tpu.pipeline_mode<synchronous>, transform_indices = @transform_1, window_bounds = array<i64: 1, 4, 8, 8>}, {pipeline_mode = #tpu.pipeline_mode<synchronous>, transform_indices = @transform_2, window_bounds = array<i64: 1, 32>}, {pipeline_mode = #tpu.pipeline_mode<synchronous>, transform_indices = @transform_3, window_bounds = array<i64: 1, 32>}, {pipeline_mode = #tpu.pipeline_mode<synchronous>, transform_indices = @transform_4, window_bounds = array<i64: 32, 96>}, {pipeline_mode = #tpu.pipeline_mode<synchronous>, transform_indices = @transform_5, window_bounds = array<i64: 1, 96>}, {pipeline_mode = #tpu.pipeline_mode<synchronous>, transform_indices = @transform_6, window_bounds = array<i64: 32, 32>}, {pipeline_mode = #tpu.pipeline_mode<synchronous>, transform_indices = @transform_7, window_bounds = array<i64: 1, 32>}, {pipeline_mode = #tpu.pipeline_mode<synchronous>, transform_indices = @transform_8, window_bounds = array<i64: 1, 32>}, {pipeline_mode = #tpu.pipeline_mode<synchronous>, transform_indices = @transform_9, window_bounds = array<i64: 1, 32>}, {pipeline_mode = #tpu.pipeline_mode<synchronous>, transform_indices = @transform_10, window_bounds = array<i64: 32, 64>}, {pipeline_mode = #tpu.pipeline_mode<synchronous>, transform_indices = @transform_11, window_bounds = array<i64: 1, 64>}, {pipeline_mode = #tpu.pipeline_mode<synchronous>, transform_indices = @transform_12, window_bounds = array<i64: 64, 32>}, {pipeline_mode = #tpu.pipeline_mode<synchronous>, transform_indices = @transform_13, window_bounds = array<i64: 1, 32>}, {transform_indices = @transform_14, window_bounds = array<i64: 8, 8>}, {transform_indices = @transform_15, window_bounds = array<i64: 8, 8>}, {pipeline_mode = #tpu.pipeline_mode<synchronous>, transform_indices = @transform_16, window_bounds = array<i64: 1, 32>}, {pipeline_mode = #tpu.pipeline_mode<synchronous>, transform_indices = @transform_17, window_bounds = array<i64: 1, 32>}, {pipeline_mode = #tpu.pipeline_mode<synchronous>, transform_indices = @transform_18, window_bounds = array<i64: 1, 32>}, {transform_indices = @transform_19, window_bounds = array<i64: 8, 8>}]} {
    %c0 = arith.constant 0 : index
    %c0_0 = arith.constant 0 : index
    %0 = vector.load %arg1[%c0, %c0_0] : memref<64x32xf32, #tpu.memory_space<vmem>>, vector<64x32xf32>
    %c0_1 = arith.constant 0 : index
    %c0_2 = arith.constant 0 : index
    %c0_3 = arith.constant 0 : index
    %c0_4 = arith.constant 0 : index
    %1 = vector.load %arg2[%c0_1, %c0_2, %c0_3, %c0_4] : memref<1x4x8x8xf32, #tpu.memory_space<vmem>>, vector<1x4x8x8xf32>
    %c0_5 = arith.constant 0 : index
    %c0_6 = arith.constant 0 : index
    %2 = vector.load %arg5[%c0_5, %c0_6] : memref<32x96xf32, #tpu.memory_space<vmem>>, vector<32x96xf32>
    %c0_7 = arith.constant 0 : index
    %c0_8 = arith.constant 0 : index
    %3 = vector.load %arg6[%c0_7, %c0_8] : memref<1x96xf32, #tpu.memory_space<vmem>>, vector<1x96xf32>
    %c0_9 = arith.constant 0 : index
    %c0_10 = arith.constant 0 : index
    %4 = vector.load %arg7[%c0_9, %c0_10] : memref<32x32xf32, #tpu.memory_space<vmem>>, vector<32x32xf32>
    %c0_11 = arith.constant 0 : index
    %c0_12 = arith.constant 0 : index
    %5 = vector.load %arg8[%c0_11, %c0_12] : memref<1x32xf32, #tpu.memory_space<vmem>>, vector<1x32xf32>
    %c0_13 = arith.constant 0 : index
    %c0_14 = arith.constant 0 : index
    %6 = vector.load %arg9[%c0_13, %c0_14] : memref<1x32xf32, #tpu.memory_space<vmem>>, vector<1x32xf32>
    %c0_15 = arith.constant 0 : index
    %c0_16 = arith.constant 0 : index
    %7 = vector.load %arg10[%c0_15, %c0_16] : memref<1x32xf32, #tpu.memory_space<vmem>>, vector<1x32xf32>
    %c0_17 = arith.constant 0 : index
    %c0_18 = arith.constant 0 : index
    %8 = vector.load %arg11[%c0_17, %c0_18] : memref<32x64xf32, #tpu.memory_space<vmem>>, vector<32x64xf32>
    %c0_19 = arith.constant 0 : index
    %c0_20 = arith.constant 0 : index
    %9 = vector.load %arg12[%c0_19, %c0_20] : memref<1x64xf32, #tpu.memory_space<vmem>>, vector<1x64xf32>
    %c0_21 = arith.constant 0 : index
    %c0_22 = arith.constant 0 : index
    %10 = vector.load %arg13[%c0_21, %c0_22] : memref<64x32xf32, #tpu.memory_space<vmem>>, vector<64x32xf32>
    %c0_23 = arith.constant 0 : index
    %c0_24 = arith.constant 0 : index
    %11 = vector.load %arg14[%c0_23, %c0_24] : memref<1x32xf32, #tpu.memory_space<vmem>>, vector<1x32xf32>
    %cst = arith.constant dense<0.000000e+00> : vector<64x96xf32>
    %12 = tpu.matmul %0, %2, %cst {dimension_numbers = #tpu.dot_dimension_numbers<[1], [0], [0], [1], [0, 0, 1, 1], [], []>} : vector<64x32xf32>, vector<32x96xf32>, vector<64x96xf32> -> vector<64x96xf32>
    %13 = vector.broadcast %3 : vector<1x96xf32> to vector<64x96xf32>
    %14 = arith.addf %12, %13 : vector<64x96xf32>
    %15 = vector.shape_cast %14 : vector<64x96xf32> to vector<8x8x96xf32>
    %16 = vector.extract_strided_slice %15 {offsets = [0, 0, 0], sizes = [8, 8, 8], strides = [1, 1, 1]} : vector<8x8x96xf32> to vector<8x8x8xf32>
    %17 = vector.extract_strided_slice %15 {offsets = [0, 0, 32], sizes = [8, 8, 8], strides = [1, 1, 1]} : vector<8x8x96xf32> to vector<8x8x8xf32>
    %18 = vector.extract_strided_slice %15 {offsets = [0, 0, 64], sizes = [8, 8, 8], strides = [1, 1, 1]} : vector<8x8x96xf32> to vector<8x8x8xf32>
    "tpu.trace_start"() <{level = 10 : i32, message = "bid,bjd->bij"}> : () -> ()
    %cst_25 = arith.constant dense<0.000000e+00> : vector<8x8x8xf32>
    %19 = tpu.matmul %17, %16, %cst_25 {dimension_numbers = #tpu.dot_dimension_numbers<[2], [2], [1], [1], [0, 0, 0, 1, 1, 1], [0], [0]>} : vector<8x8x8xf32>, vector<8x8x8xf32>, vector<8x8x8xf32> -> vector<8x8x8xf32>
    "tpu.trace_stop"() : () -> ()
    %cst_26 = arith.constant 0.353553385 : f32
    %20 = vector.broadcast %cst_26 : f32 to vector<8x8x8xf32>
    %21 = arith.mulf %19, %20 : vector<8x8x8xf32>
    %22 = vector.extract_strided_slice %1 {offsets = [0, 0, 0, 0], sizes = [1, 1, 8, 8], strides = [1, 1, 1, 1]} : vector<1x4x8x8xf32> to vector<1x1x8x8xf32>
    %23 = vector.shape_cast %22 : vector<1x1x8x8xf32> to vector<1x8x8xf32>
    %24 = vector.broadcast %23 : vector<1x8x8xf32> to vector<8x8x8xf32>
    %25 = arith.addf %21, %24 : vector<8x8x8xf32>
    %cst_27 = arith.constant dense<0xFF800000> : vector<8x8xf32>
    %26 = vector.multi_reduction <maximumf>, %25, %cst_27 [2] : vector<8x8x8xf32> to vector<8x8xf32>
    %27 = vector.shape_cast %26 : vector<8x8xf32> to vector<8x8x1xf32>
    %28 = vector.broadcast %27 : vector<8x8x1xf32> to vector<8x8x8xf32>
    %29 = arith.subf %25, %28 : vector<8x8x8xf32>
    %30 = math.exp %29 : vector<8x8x8xf32>
    %cst_28 = arith.constant dense<0.000000e+00> : vector<8x8xf32>
    %31 = vector.multi_reduction <add>, %30, %cst_28 [2] : vector<8x8x8xf32> to vector<8x8xf32>
    %32 = vector.shape_cast %31 : vector<8x8xf32> to vector<8x8x1xf32>
    %33 = tpu.reciprocal %32 {approx = true} : vector<8x8x1xf32> -> vector<8x8x1xf32>
    %34 = vector.broadcast %33 : vector<8x8x1xf32> to vector<8x8x8xf32>
    %35 = arith.mulf %30, %34 : vector<8x8x8xf32>
    "tpu.trace_start"() <{level = 10 : i32, message = "bij,bjd->bid"}> : () -> ()
    %cst_29 = arith.constant dense<0.000000e+00> : vector<8x8x8xf32>
    %36 = tpu.matmul %35, %18, %cst_29 {dimension_numbers = #tpu.dot_dimension_numbers<[2], [1], [1], [2], [0, 0, 0, 1, 1, 2], [0], [0]>} : vector<8x8x8xf32>, vector<8x8x8xf32>, vector<8x8x8xf32> -> vector<8x8x8xf32>
    "tpu.trace_stop"() : () -> ()
    %37 = vector.shape_cast %36 : vector<8x8x8xf32> to vector<64x8xf32>
    %38 = vector.extract_strided_slice %4 {offsets = [0, 0], sizes = [8, 32], strides = [1, 1]} : vector<32x32xf32> to vector<8x32xf32>
    %cst_30 = arith.constant dense<0.000000e+00> : vector<64x32xf32>
    %39 = tpu.matmul %37, %38, %cst_30 {dimension_numbers = #tpu.dot_dimension_numbers<[1], [0], [0], [1], [0, 0, 1, 1], [], []>} : vector<64x8xf32>, vector<8x32xf32>, vector<64x32xf32> -> vector<64x32xf32>
    %40 = vector.extract_strided_slice %15 {offsets = [0, 0, 8], sizes = [8, 8, 8], strides = [1, 1, 1]} : vector<8x8x96xf32> to vector<8x8x8xf32>
    %41 = vector.extract_strided_slice %15 {offsets = [0, 0, 40], sizes = [8, 8, 8], strides = [1, 1, 1]} : vector<8x8x96xf32> to vector<8x8x8xf32>
    %42 = vector.extract_strided_slice %15 {offsets = [0, 0, 72], sizes = [8, 8, 8], strides = [1, 1, 1]} : vector<8x8x96xf32> to vector<8x8x8xf32>
    "tpu.trace_start"() <{level = 10 : i32, message = "bid,bjd->bij"}> : () -> ()
    %cst_31 = arith.constant dense<0.000000e+00> : vector<8x8x8xf32>
    %43 = tpu.matmul %41, %40, %cst_31 {dimension_numbers = #tpu.dot_dimension_numbers<[2], [2], [1], [1], [0, 0, 0, 1, 1, 1], [0], [0]>} : vector<8x8x8xf32>, vector<8x8x8xf32>, vector<8x8x8xf32> -> vector<8x8x8xf32>
    "tpu.trace_stop"() : () -> ()
    %cst_32 = arith.constant 0.353553385 : f32
    %44 = vector.broadcast %cst_32 : f32 to vector<8x8x8xf32>
    %45 = arith.mulf %43, %44 : vector<8x8x8xf32>
    %46 = vector.extract_strided_slice %1 {offsets = [0, 1, 0, 0], sizes = [1, 1, 8, 8], strides = [1, 1, 1, 1]} : vector<1x4x8x8xf32> to vector<1x1x8x8xf32>
    %47 = vector.shape_cast %46 : vector<1x1x8x8xf32> to vector<1x8x8xf32>
    %48 = vector.broadcast %47 : vector<1x8x8xf32> to vector<8x8x8xf32>
    %49 = arith.addf %45, %48 : vector<8x8x8xf32>
    %cst_33 = arith.constant dense<0xFF800000> : vector<8x8xf32>
    %50 = vector.multi_reduction <maximumf>, %49, %cst_33 [2] : vector<8x8x8xf32> to vector<8x8xf32>
    %51 = vector.shape_cast %50 : vector<8x8xf32> to vector<8x8x1xf32>
    %52 = vector.broadcast %51 : vector<8x8x1xf32> to vector<8x8x8xf32>
    %53 = arith.subf %49, %52 : vector<8x8x8xf32>
    %54 = math.exp %53 : vector<8x8x8xf32>
    %cst_34 = arith.constant dense<0.000000e+00> : vector<8x8xf32>
    %55 = vector.multi_reduction <add>, %54, %cst_34 [2] : vector<8x8x8xf32> to vector<8x8xf32>
    %56 = vector.shape_cast %55 : vector<8x8xf32> to vector<8x8x1xf32>
    %57 = tpu.reciprocal %56 {approx = true} : vector<8x8x1xf32> -> vector<8x8x1xf32>
    %58 = vector.broadcast %57 : vector<8x8x1xf32> to vector<8x8x8xf32>
    %59 = arith.mulf %54, %58 : vector<8x8x8xf32>
    "tpu.trace_start"() <{level = 10 : i32, message = "bij,bjd->bid"}> : () -> ()
    %cst_35 = arith.constant dense<0.000000e+00> : vector<8x8x8xf32>
    %60 = tpu.matmul %59, %42, %cst_35 {dimension_numbers = #tpu.dot_dimension_numbers<[2], [1], [1], [2], [0, 0, 0, 1, 1, 2], [0], [0]>} : vector<8x8x8xf32>, vector<8x8x8xf32>, vector<8x8x8xf32> -> vector<8x8x8xf32>
    "tpu.trace_stop"() : () -> ()
    %61 = vector.shape_cast %60 : vector<8x8x8xf32> to vector<64x8xf32>
    %62 = vector.extract_strided_slice %4 {offsets = [8, 0], sizes = [8, 32], strides = [1, 1]} : vector<32x32xf32> to vector<8x32xf32>
    %cst_36 = arith.constant dense<0.000000e+00> : vector<64x32xf32>
    %63 = tpu.matmul %61, %62, %cst_36 {dimension_numbers = #tpu.dot_dimension_numbers<[1], [0], [0], [1], [0, 0, 1, 1], [], []>} : vector<64x8xf32>, vector<8x32xf32>, vector<64x32xf32> -> vector<64x32xf32>
    %64 = arith.addf %39, %63 : vector<64x32xf32>
    %65 = vector.extract_strided_slice %15 {offsets = [0, 0, 16], sizes = [8, 8, 8], strides = [1, 1, 1]} : vector<8x8x96xf32> to vector<8x8x8xf32>
    %66 = vector.extract_strided_slice %15 {offsets = [0, 0, 48], sizes = [8, 8, 8], strides = [1, 1, 1]} : vector<8x8x96xf32> to vector<8x8x8xf32>
    %67 = vector.extract_strided_slice %15 {offsets = [0, 0, 80], sizes = [8, 8, 8], strides = [1, 1, 1]} : vector<8x8x96xf32> to vector<8x8x8xf32>
    "tpu.trace_start"() <{level = 10 : i32, message = "bid,bjd->bij"}> : () -> ()
    %cst_37 = arith.constant dense<0.000000e+00> : vector<8x8x8xf32>
    %68 = tpu.matmul %66, %65, %cst_37 {dimension_numbers = #tpu.dot_dimension_numbers<[2], [2], [1], [1], [0, 0, 0, 1, 1, 1], [0], [0]>} : vector<8x8x8xf32>, vector<8x8x8xf32>, vector<8x8x8xf32> -> vector<8x8x8xf32>
    "tpu.trace_stop"() : () -> ()
    %cst_38 = arith.constant 0.353553385 : f32
    %69 = vector.broadcast %cst_38 : f32 to vector<8x8x8xf32>
    %70 = arith.mulf %68, %69 : vector<8x8x8xf32>
    %71 = vector.extract_strided_slice %1 {offsets = [0, 2, 0, 0], sizes = [1, 1, 8, 8], strides = [1, 1, 1, 1]} : vector<1x4x8x8xf32> to vector<1x1x8x8xf32>
    %72 = vector.shape_cast %71 : vector<1x1x8x8xf32> to vector<1x8x8xf32>
    %73 = vector.broadcast %72 : vector<1x8x8xf32> to vector<8x8x8xf32>
    %74 = arith.addf %70, %73 : vector<8x8x8xf32>
    %cst_39 = arith.constant dense<0xFF800000> : vector<8x8xf32>
    %75 = vector.multi_reduction <maximumf>, %74, %cst_39 [2] : vector<8x8x8xf32> to vector<8x8xf32>
    %76 = vector.shape_cast %75 : vector<8x8xf32> to vector<8x8x1xf32>
    %77 = vector.broadcast %76 : vector<8x8x1xf32> to vector<8x8x8xf32>
    %78 = arith.subf %74, %77 : vector<8x8x8xf32>
    %79 = math.exp %78 : vector<8x8x8xf32>
    %cst_40 = arith.constant dense<0.000000e+00> : vector<8x8xf32>
    %80 = vector.multi_reduction <add>, %79, %cst_40 [2] : vector<8x8x8xf32> to vector<8x8xf32>
    %81 = vector.shape_cast %80 : vector<8x8xf32> to vector<8x8x1xf32>
    %82 = tpu.reciprocal %81 {approx = true} : vector<8x8x1xf32> -> vector<8x8x1xf32>
    %83 = vector.broadcast %82 : vector<8x8x1xf32> to vector<8x8x8xf32>
    %84 = arith.mulf %79, %83 : vector<8x8x8xf32>
    "tpu.trace_start"() <{level = 10 : i32, message = "bij,bjd->bid"}> : () -> ()
    %cst_41 = arith.constant dense<0.000000e+00> : vector<8x8x8xf32>
    %85 = tpu.matmul %84, %67, %cst_41 {dimension_numbers = #tpu.dot_dimension_numbers<[2], [1], [1], [2], [0, 0, 0, 1, 1, 2], [0], [0]>} : vector<8x8x8xf32>, vector<8x8x8xf32>, vector<8x8x8xf32> -> vector<8x8x8xf32>
    "tpu.trace_stop"() : () -> ()
    %86 = vector.shape_cast %85 : vector<8x8x8xf32> to vector<64x8xf32>
    %87 = vector.extract_strided_slice %4 {offsets = [16, 0], sizes = [8, 32], strides = [1, 1]} : vector<32x32xf32> to vector<8x32xf32>
    %cst_42 = arith.constant dense<0.000000e+00> : vector<64x32xf32>
    %88 = tpu.matmul %86, %87, %cst_42 {dimension_numbers = #tpu.dot_dimension_numbers<[1], [0], [0], [1], [0, 0, 1, 1], [], []>} : vector<64x8xf32>, vector<8x32xf32>, vector<64x32xf32> -> vector<64x32xf32>
    %89 = arith.addf %64, %88 : vector<64x32xf32>
    %90 = vector.extract_strided_slice %15 {offsets = [0, 0, 24], sizes = [8, 8, 8], strides = [1, 1, 1]} : vector<8x8x96xf32> to vector<8x8x8xf32>
    %91 = vector.extract_strided_slice %15 {offsets = [0, 0, 56], sizes = [8, 8, 8], strides = [1, 1, 1]} : vector<8x8x96xf32> to vector<8x8x8xf32>
    %92 = vector.extract_strided_slice %15 {offsets = [0, 0, 88], sizes = [8, 8, 8], strides = [1, 1, 1]} : vector<8x8x96xf32> to vector<8x8x8xf32>
    "tpu.trace_start"() <{level = 10 : i32, message = "bid,bjd->bij"}> : () -> ()
    %cst_43 = arith.constant dense<0.000000e+00> : vector<8x8x8xf32>
    %93 = tpu.matmul %91, %90, %cst_43 {dimension_numbers = #tpu.dot_dimension_numbers<[2], [2], [1], [1], [0, 0, 0, 1, 1, 1], [0], [0]>} : vector<8x8x8xf32>, vector<8x8x8xf32>, vector<8x8x8xf32> -> vector<8x8x8xf32>
    "tpu.trace_stop"() : () -> ()
    %cst_44 = arith.constant 0.353553385 : f32
    %94 = vector.broadcast %cst_44 : f32 to vector<8x8x8xf32>
    %95 = arith.mulf %93, %94 : vector<8x8x8xf32>
    %96 = vector.extract_strided_slice %1 {offsets = [0, 3, 0, 0], sizes = [1, 1, 8, 8], strides = [1, 1, 1, 1]} : vector<1x4x8x8xf32> to vector<1x1x8x8xf32>
    %97 = vector.shape_cast %96 : vector<1x1x8x8xf32> to vector<1x8x8xf32>
    %98 = vector.broadcast %97 : vector<1x8x8xf32> to vector<8x8x8xf32>
    %99 = arith.addf %95, %98 : vector<8x8x8xf32>
    %cst_45 = arith.constant dense<0xFF800000> : vector<8x8xf32>
    %100 = vector.multi_reduction <maximumf>, %99, %cst_45 [2] : vector<8x8x8xf32> to vector<8x8xf32>
    %101 = vector.shape_cast %100 : vector<8x8xf32> to vector<8x8x1xf32>
    %102 = vector.broadcast %101 : vector<8x8x1xf32> to vector<8x8x8xf32>
    %103 = arith.subf %99, %102 : vector<8x8x8xf32>
    %104 = math.exp %103 : vector<8x8x8xf32>
    %cst_46 = arith.constant dense<0.000000e+00> : vector<8x8xf32>
    %105 = vector.multi_reduction <add>, %104, %cst_46 [2] : vector<8x8x8xf32> to vector<8x8xf32>
    %106 = vector.shape_cast %105 : vector<8x8xf32> to vector<8x8x1xf32>
    %107 = tpu.reciprocal %106 {approx = true} : vector<8x8x1xf32> -> vector<8x8x1xf32>
    %108 = vector.broadcast %107 : vector<8x8x1xf32> to vector<8x8x8xf32>
    %109 = arith.mulf %104, %108 : vector<8x8x8xf32>
    "tpu.trace_start"() <{level = 10 : i32, message = "bij,bjd->bid"}> : () -> ()
    %cst_47 = arith.constant dense<0.000000e+00> : vector<8x8x8xf32>
    %110 = tpu.matmul %109, %92, %cst_47 {dimension_numbers = #tpu.dot_dimension_numbers<[2], [1], [1], [2], [0, 0, 0, 1, 1, 2], [0], [0]>} : vector<8x8x8xf32>, vector<8x8x8xf32>, vector<8x8x8xf32> -> vector<8x8x8xf32>
    "tpu.trace_stop"() : () -> ()
    %111 = vector.shape_cast %110 : vector<8x8x8xf32> to vector<64x8xf32>
    %112 = vector.extract_strided_slice %4 {offsets = [24, 0], sizes = [8, 32], strides = [1, 1]} : vector<32x32xf32> to vector<8x32xf32>
    %cst_48 = arith.constant dense<0.000000e+00> : vector<64x32xf32>
    %113 = tpu.matmul %111, %112, %cst_48 {dimension_numbers = #tpu.dot_dimension_numbers<[1], [0], [0], [1], [0, 0, 1, 1], [], []>} : vector<64x8xf32>, vector<8x32xf32>, vector<64x32xf32> -> vector<64x32xf32>
    %114 = arith.addf %89, %113 : vector<64x32xf32>
    %115 = arith.addf %0, %114 : vector<64x32xf32>
    %116 = vector.broadcast %5 : vector<1x32xf32> to vector<64x32xf32>
    %117 = arith.addf %115, %116 : vector<64x32xf32>
    %cst_49 = arith.constant dense<0.000000e+00> : vector<64xf32>
    %118 = vector.multi_reduction <add>, %117, %cst_49 [1] : vector<64x32xf32> to vector<64xf32>
    %119 = vector.shape_cast %118 : vector<64xf32> to vector<64x1xf32>
    %cst_50 = arith.constant 3.200000e+01 : f32
    %120 = vector.broadcast %cst_50 : f32 to vector<64x1xf32>
    %121 = arith.divf %119, %120 : vector<64x1xf32>
    %122 = vector.broadcast %121 : vector<64x1xf32> to vector<64x32xf32>
    %123 = arith.subf %117, %122 : vector<64x32xf32>
    %124 = arith.mulf %123, %123 : vector<64x32xf32>
    %cst_51 = arith.constant dense<0.000000e+00> : vector<64xf32>
    %125 = vector.multi_reduction <add>, %124, %cst_51 [1] : vector<64x32xf32> to vector<64xf32>
    %126 = vector.shape_cast %125 : vector<64xf32> to vector<64x1xf32>
    %cst_52 = arith.constant 3.200000e+01 : f32
    %127 = vector.broadcast %cst_52 : f32 to vector<64x1xf32>
    %128 = arith.divf %126, %127 : vector<64x1xf32>
    %cst_53 = arith.constant 9.99999974E-6 : f32
    %129 = vector.broadcast %cst_53 : f32 to vector<64x1xf32>
    %130 = arith.addf %128, %129 : vector<64x1xf32>
    %131 = math.rsqrt %130 : vector<64x1xf32>
    %132 = vector.broadcast %131 : vector<64x1xf32> to vector<64x32xf32>
    %133 = arith.mulf %123, %132 : vector<64x32xf32>
    %134 = vector.broadcast %6 : vector<1x32xf32> to vector<64x32xf32>
    %135 = arith.mulf %133, %134 : vector<64x32xf32>
    %136 = vector.broadcast %7 : vector<1x32xf32> to vector<64x32xf32>
    %137 = arith.addf %135, %136 : vector<64x32xf32>
    %cst_54 = arith.constant dense<0.000000e+00> : vector<64x64xf32>
    %138 = tpu.matmul %137, %8, %cst_54 {dimension_numbers = #tpu.dot_dimension_numbers<[1], [0], [0], [1], [0, 0, 1, 1], [], []>} : vector<64x32xf32>, vector<32x64xf32>, vector<64x64xf32> -> vector<64x64xf32>
    %139 = vector.broadcast %9 : vector<1x64xf32> to vector<64x64xf32>
    %140 = arith.addf %138, %139 : vector<64x64xf32>
    %cst_55 = arith.constant 0.000000e+00 : f32
    %141 = vector.broadcast %cst_55 : f32 to vector<64x64xf32>
    %142 = arith.maximumf %140, %141 : vector<64x64xf32>
    %cst_56 = arith.constant dense<0.000000e+00> : vector<64x32xf32>
    %143 = tpu.matmul %142, %10, %cst_56 {dimension_numbers = #tpu.dot_dimension_numbers<[1], [0], [0], [1], [0, 0, 1, 1], [], []>} : vector<64x64xf32>, vector<64x32xf32>, vector<64x32xf32> -> vector<64x32xf32>
    %144 = vector.broadcast %11 : vector<1x32xf32> to vector<64x32xf32>
    %145 = arith.addf %143, %144 : vector<64x32xf32>
    %146 = arith.addf %117, %145 : vector<64x32xf32>
    %147 = vector.shape_cast %146 : vector<64x32xf32> to vector<8x8x32xf32>
    %c0_57 = arith.constant 0 : index
    %c0_58 = arith.constant 0 : index
    %148 = vector.load %arg17[%c0_57, %c0_58] : memref<1x32xf32, #tpu.memory_space<vmem>>, vector<1x32xf32>
    %c0_59 = arith.constant 0 : index
    %c0_60 = arith.constant 0 : index
    %149 = vector.load %arg18[%c0_59, %c0_60] : memref<1x32xf32, #tpu.memory_space<vmem>>, vector<1x32xf32>
    %cst_61 = arith.constant dense<0.000000e+00> : vector<8x8xf32>
    %150 = vector.multi_reduction <add>, %147, %cst_61 [2] : vector<8x8x32xf32> to vector<8x8xf32>
    %151 = vector.shape_cast %150 : vector<8x8xf32> to vector<8x8x1xf32>
    %cst_62 = arith.constant 3.200000e+01 : f32
    %152 = vector.broadcast %cst_62 : f32 to vector<8x8x1xf32>
    %153 = arith.divf %151, %152 : vector<8x8x1xf32>
    %154 = vector.broadcast %153 : vector<8x8x1xf32> to vector<8x8x32xf32>
    %155 = arith.subf %147, %154 : vector<8x8x32xf32>
    %156 = arith.mulf %155, %155 : vector<8x8x32xf32>
    %cst_63 = arith.constant dense<0.000000e+00> : vector<8x8xf32>
    %157 = vector.multi_reduction <add>, %156, %cst_63 [2] : vector<8x8x32xf32> to vector<8x8xf32>
    %158 = vector.shape_cast %157 : vector<8x8xf32> to vector<8x8x1xf32>
    %cst_64 = arith.constant 3.200000e+01 : f32
    %159 = vector.broadcast %cst_64 : f32 to vector<8x8x1xf32>
    %160 = arith.divf %158, %159 : vector<8x8x1xf32>
    %cst_65 = arith.constant 9.99999974E-6 : f32
    %161 = vector.broadcast %cst_65 : f32 to vector<8x8x1xf32>
    %162 = arith.addf %160, %161 : vector<8x8x1xf32>
    %163 = math.rsqrt %162 : vector<8x8x1xf32>
    %164 = vector.broadcast %163 : vector<8x8x1xf32> to vector<8x8x32xf32>
    %165 = arith.mulf %155, %164 : vector<8x8x32xf32>
    %166 = vector.shape_cast %148 : vector<1x32xf32> to vector<1x1x32xf32>
    %167 = vector.broadcast %166 : vector<1x1x32xf32> to vector<8x8x32xf32>
    %168 = arith.mulf %165, %167 : vector<8x8x32xf32>
    %169 = vector.shape_cast %149 : vector<1x32xf32> to vector<1x1x32xf32>
    %170 = vector.broadcast %169 : vector<1x1x32xf32> to vector<8x8x32xf32>
    %171 = arith.addf %168, %170 : vector<8x8x32xf32>
    %cst_66 = arith.constant 0.000000e+00 : f32
    %172 = vector.broadcast %cst_66 : f32 to vector<8x8x32xf32>
    %173 = arith.maximumf %171, %172 : vector<8x8x32xf32>
    %c0_67 = arith.constant 0 : index
    %c0_68 = arith.constant 0 : index
    %174 = vector.load %arg19[%c0_67, %c0_68] : memref<1x32xf32, #tpu.memory_space<vmem>>, vector<1x32xf32>
    %175 = vector.shape_cast %174 : vector<1x32xf32> to vector<1x1x32xf32>
    %176 = vector.broadcast %175 : vector<1x1x32xf32> to vector<8x8x32xf32>
    %177 = arith.mulf %173, %176 : vector<8x8x32xf32>
    %cst_69 = arith.constant dense<0.000000e+00> : vector<8x8xf32>
    %178 = vector.multi_reduction <add>, %177, %cst_69 [2] : vector<8x8x32xf32> to vector<8x8xf32>
    %c0_70 = arith.constant 0 : index
    %c0_71 = arith.constant 0 : index
    %179 = vector.load %arg15[%c0_70, %c0_71] : memref<8x8xf32, #tpu.memory_space<vmem>>, vector<8x8xf32>
    %180 = arith.subf %178, %179 : vector<8x8xf32>
    %181 = arith.mulf %180, %180 : vector<8x8xf32>
    %c0_72 = arith.constant 0 : index
    %c0_73 = arith.constant 0 : index
    %182 = vector.load %arg16[%c0_72, %c0_73] : memref<8x8xf32, #tpu.memory_space<vmem>>, vector<8x8xf32>
    %183 = arith.mulf %181, %182 : vector<8x8xf32>
    %c0_74 = arith.constant 0 : index
    %c0_75 = arith.constant 0 : index
    %184 = vector.load %arg20[%c0_74, %c0_75] : memref<8x8xf32, #tpu.memory_space<vmem>>, vector<8x8xf32>
    tpu.vector_store %arg20[%c0_74, %c0_75], %183 {strides = array<i32>} : memref<8x8xf32, #tpu.memory_space<vmem>>, vector<8x8xf32>,
    return
  }
  func.func @transform_0(%arg0: i32) -> (i32, i32) {
    %c0_i32 = arith.constant 0 : i32
    %c0_i32_0 = arith.constant 0 : i32
    return %arg0, %c0_i32 : i32, i32
  }
  func.func @transform_1(%arg0: i32) -> (i32, i32, i32, i32) {
    %c0_i32 = arith.constant 0 : i32
    %c0_i32_0 = arith.constant 0 : i32
    %c0_i32_1 = arith.constant 0 : i32
    %c0_i32_2 = arith.constant 0 : i32
    %c0_i32_3 = arith.constant 0 : i32
    return %c0_i32, %c0_i32_0, %c0_i32_1, %c0_i32_2 : i32, i32, i32, i32
  }
  func.func @transform_2(%arg0: i32) -> (i32, i32) {
    %c0_i32 = arith.constant 0 : i32
    %c0_i32_0 = arith.constant 0 : i32
    %c0_i32_1 = arith.constant 0 : i32
    return %c0_i32, %c0_i32_0 : i32, i32
  }
  func.func @transform_3(%arg0: i32) -> (i32, i32) {
    %c0_i32 = arith.constant 0 : i32
    %c0_i32_0 = arith.constant 0 : i32
    %c0_i32_1 = arith.constant 0 : i32
    return %c0_i32, %c0_i32_0 : i32, i32
  }
  func.func @transform_4(%arg0: i32) -> (i32, i32) {
    %c0_i32 = arith.constant 0 : i32
    %c0_i32_0 = arith.constant 0 : i32
    %c0_i32_1 = arith.constant 0 : i32
    return %c0_i32, %c0_i32_0 : i32, i32
  }
  func.func @transform_5(%arg0: i32) -> (i32, i32) {
    %c0_i32 = arith.constant 0 : i32
    %c0_i32_0 = arith.constant 0 : i32
    %c0_i32_1 = arith.constant 0 : i32
    return %c0_i32, %c0_i32_0 : i32, i32
  }
  func.func @transform_6(%arg0: i32) -> (i32, i32) {
    %c0_i32 = arith.constant 0 : i32
    %c0_i32_0 = arith.constant 0 : i32
    %c0_i32_1 = arith.constant 0 : i32
    return %c0_i32, %c0_i32_0 : i32, i32
  }
  func.func @transform_7(%arg0: i32) -> (i32, i32) {
    %c0_i32 = arith.constant 0 : i32
    %c0_i32_0 = arith.constant 0 : i32
    %c0_i32_1 = arith.constant 0 : i32
    return %c0_i32, %c0_i32_0 : i32, i32
  }
  func.func @transform_8(%arg0: i32) -> (i32, i32) {
    %c0_i32 = arith.constant 0 : i32
    %c0_i32_0 = arith.constant 0 : i32
    %c0_i32_1 = arith.constant 0 : i32
    return %c0_i32, %c0_i32_0 : i32, i32
  }
  func.func @transform_9(%arg0: i32) -> (i32, i32) {
    %c0_i32 = arith.constant 0 : i32
    %c0_i32_0 = arith.constant 0 : i32
    %c0_i32_1 = arith.constant 0 : i32
    return %c0_i32, %c0_i32_0 : i32, i32
  }
  func.func @transform_10(%arg0: i32) -> (i32, i32) {
    %c0_i32 = arith.constant 0 : i32
    %c0_i32_0 = arith.constant 0 : i32
    %c0_i32_1 = arith.constant 0 : i32
    return %c0_i32, %c0_i32_0 : i32, i32
  }
  func.func @transform_11(%arg0: i32) -> (i32, i32) {
    %c0_i32 = arith.constant 0 : i32
    %c0_i32_0 = arith.constant 0 : i32
    %c0_i32_1 = arith.constant 0 : i32
    return %c0_i32, %c0_i32_0 : i32, i32
  }
  func.func @transform_12(%arg0: i32) -> (i32, i32) {
    %c0_i32 = arith.constant 0 : i32
    %c0_i32_0 = arith.constant 0 : i32
    %c0_i32_1 = arith.constant 0 : i32
    return %c0_i32, %c0_i32_0 : i32, i32
  }
  func.func @transform_13(%arg0: i32) -> (i32, i32) {
    %c0_i32 = arith.constant 0 : i32
    %c0_i32_0 = arith.constant 0 : i32
    %c0_i32_1 = arith.constant 0 : i32
    return %c0_i32, %c0_i32_0 : i32, i32
  }
  func.func @transform_14(%arg0: i32) -> (i32, i32) {
    %c0_i32 = arith.constant 0 : i32
    %c0_i32_0 = arith.constant 0 : i32
    return %arg0, %c0_i32 : i32, i32
  }
  func.func @transform_15(%arg0: i32) -> (i32, i32) {
    %c0_i32 = arith.constant 0 : i32
    %c0_i32_0 = arith.constant 0 : i32
    return %arg0, %c0_i32 : i32, i32
  }
  func.func @transform_16(%arg0: i32) -> (i32, i32) {
    %c0_i32 = arith.constant 0 : i32
    %c0_i32_0 = arith.constant 0 : i32
    %c0_i32_1 = arith.constant 0 : i32
    return %c0_i32, %c0_i32_0 : i32, i32
  }
  func.func @transform_17(%arg0: i32) -> (i32, i32) {
    %c0_i32 = arith.constant 0 : i32
    %c0_i32_0 = arith.constant 0 : i32
    %c0_i32_1 = arith.constant 0 : i32
    return %c0_i32, %c0_i32_0 : i32, i32
  }
  func.func @transform_18(%arg0: i32) -> (i32, i32) {
    %c0_i32 = arith.constant 0 : i32
    %c0_i32_0 = arith.constant 0 : i32
    %c0_i32_1 = arith.constant 0 : i32
    return %c0_i32, %c0_i32_0 : i32, i32
  }
  func.func @transform_19(%arg0: i32) -> (i32, i32) {
    %c0_i32 = arith.constant 0 : i32
    %c0_i32_0 = arith.constant 0 : i32
    return %arg0, %c0_i32 : i32, i32
  }
}

</mosaic_0001>

<llo_original>
// kernel: mul.88
$region0: #{mul.88}
  %s0 = inlined_call_operand.vmem [shape: f32[4,8], index: 0, kind: input, shape index: {}]
  %s1 = inlined_call_operand.vmem [shape: f32[32], index: 1, kind: output, shape index: {}]
  $region1: #{mul.88} parent=0
    #allocation0 [shape = 'u8[4096]{0}', space=vmem, size = 0x1000, scoped, tag = 'scoped mem for output reshape']
    #allocation1 [shape = 'u8[4096]{0}', space=vmem, size = 0x1000, scoped, tag = 'scoped mem for input reshape']
    %s3 = ssub.s32 16, 1
    %v4 = vld [vmem:[%s0] sm:%s3]
    %5 = vst [vmem:[#allocation1] sm:%s3] %v4
    %v6 = vld [vmem:[#allocation1] sm:$0x1]
    %vm7 = vcmask 64512
    %8 = vst.msk [vmem:[#allocation0] sm:$0x1] %vm7, %v6
    %s9 = scalar_lea.vmem [#allocation1], 3
    %v10 = vld [vmem:[%s9] sm:$0x1]
    %11 = vrot.lane.b32.xlu0 %v10, 24
    %v12 = vpop.permute.xlu0 %11
    %vm13 = vcmask 261312
    %14 = vst.msk [vmem:[#allocation0] sm:$0x1] %vm13, %v12
    %s15 = scalar_lea.vmem [#allocation1], 2
    %v16 = vld [vmem:[%s15] sm:$0x1]
    %17 = vrot.lane.b32.xlu0 %v16, 16
    %v18 = vpop.permute.xlu0 %17
    %vm19 = vcmask 195712
    %20 = vst.msk [vmem:[#allocation0] sm:$0x1] %vm19, %v18
    %s21 = scalar_lea.vmem [#allocation1], 1
    %v22 = vld [vmem:[%s21] sm:$0x1]
    %23 = vrot.lane.b32.xlu0 %v22, 8
    %v24 = vpop.permute.xlu0 %23
    %vm25 = vcmask 130112
    %26 = vst.msk [vmem:[#allocation0] sm:$0x1] %vm25, %v24
    %s28 = ssub.s32 2, 1
    %v29 = vld [vmem:[#allocation0] sm:%s28]
    %s31 = ssub.s32 2, 1
    %32 = vst [vmem:[%s1] sm:%s31] %v29

// kernel: mul.91
$region0: #{mul.91}
  #allocation0 [shape = 's32[1]{0}', space=sflag, size = 0x4, scoped, tag = 'scoped memory for mul.91']
  %s0 = inlined_call_operand.vmem [shape: f32[32], index: 0, kind: input, shape index: {}]
  %s1 = inlined_call_operand.vmem [shape: f32[32], index: 1, kind: input, shape index: {}]
  %s2 = inlined_call_operand.vmem [shape: f32[32], index: 2, kind: output, shape index: {}]
  %v3 = vld [vmem:[%s0] sm:$0x1]
  %v4 = vld [vmem:[%s1] sm:$0x1]
  %5 = xla_tuple %v3, %v4
  %6 = xla_tuple %5
  %v7 = vmul.f32 %v3, %v4
  %8 = xla_tuple %v7
  %9 = vst [vmem:[%s2] sm:$0x1] %v7

// kernel: forward.3
$region0: #{forward.3}
  #allocation0 [shape = 'u32[]', space=smem, size = 0x4, offset = 0x4, fixed_abs, tag = 'smem constant byte address 0x4 - core index']
  #allocation1 [shape = 'u32[72,128]{1,0:T(1,128)}', space=vmem, size = 0x9000, scoped, tag = 'internal scratch']
  %s0 = inlined_call_operand.vmem [shape: f32[64,32], index: 0, kind: input, shape index: {}, may-alias: {0,14}]
  %s1 = inlined_call_operand.vmem [shape: f32[8,4,8,8], index: 1, kind: input, shape index: {}]
  %s2 = inlined_call_operand.vmem [shape: f32[1,32], index: 2, kind: input, shape index: {}]
  %s3 = inlined_call_operand.vmem [shape: f32[1,32], index: 3, kind: input, shape index: {}]
  %s4 = inlined_call_operand.vmem [shape: f32[32,96], index: 4, kind: input, shape index: {}]
  %s5 = inlined_call_operand.vmem [shape: f32[1,96], index: 5, kind: input, shape index: {}]
  %s6 = inlined_call_operand.vmem [shape: f32[32,32], index: 6, kind: input, shape index: {}]
  %s7 = inlined_call_operand.vmem [shape: f32[1,32], index: 7, kind: input, shape index: {}]
  %s8 = inlined_call_operand.vmem [shape: f32[1,32], index: 8, kind: input, shape index: {}]
  %s9 = inlined_call_operand.vmem [shape: f32[1,32], index: 9, kind: input, shape index: {}]
  %s10 = inlined_call_operand.vmem [shape: f32[32,64], index: 10, kind: input, shape index: {}]
  %s11 = inlined_call_operand.vmem [shape: f32[1,64], index: 11, kind: input, shape index: {}]
  %s12 = inlined_call_operand.vmem [shape: f32[64,32], index: 12, kind: input, shape index: {}]
  %s13 = inlined_call_operand.vmem [shape: f32[1,32], index: 13, kind: input, shape index: {}]
  %s14 = inlined_call_operand.vmem [shape: f32[64,32], index: 14, kind: output, shape index: {}, may-alias: {0,14}]
  %s15 = sld [smem:[#allocation0]]
  $region66: #{forward.3} parent=0
    _
  %s17 = ssub.s32 1, %s15
  %s18 = scalar_select 0, %s17, %s15
  // Predicated region
  $region2: #{forward.3} parent=0 // pred_check
    _
  $region3: #{forward.3} parent=0 // pred_check_branch
    %20 = sbr.rel (0) target = $region5
  $region4: #{forward.3} parent=0 // pred_region
    _
  $region5: #{forward.3} parent=0 // pred_fallthru
    _
  // Predicated region
  $region6: #{forward.3} parent=0 // pred_check
    _
  $region7: #{forward.3} parent=0 // pred_check_branch
    %22 = sbr.rel (0) target = $region9
  $region8: #{forward.3} parent=0 // pred_region
    _
  $region9: #{forward.3} parent=0 // pred_fallthru
    _
  // Predicated region
  $region10: #{forward.3} parent=0 // pred_check
    _
  $region11: #{forward.3} parent=0 // pred_check_branch
    %24 = sbr.rel (0) target = $region13
  $region12: #{forward.3} parent=0 // pred_region
    _
  $region13: #{forward.3} parent=0 // pred_fallthru
    _
  // Predicated region
  $region14: #{forward.3} parent=0 // pred_check
    _
  $region15: #{forward.3} parent=0 // pred_check_branch
    %26 = sbr.rel (0) target = $region17
  $region16: #{forward.3} parent=0 // pred_region
    _
  $region17: #{forward.3} parent=0 // pred_fallthru
    _
  // Predicated region
  $region18: #{forward.3} parent=0 // pred_check
    _
  $region19: #{forward.3} parent=0 // pred_check_branch
    %28 = sbr.rel (0) target = $region21
  $region20: #{forward.3} parent=0 // pred_region
    _
  $region21: #{forward.3} parent=0 // pred_fallthru
    _
  // Predicated region
  $region22: #{forward.3} parent=0 // pred_check
    _
  $region23: #{forward.3} parent=0 // pred_check_branch
    %30 = sbr.rel (0) target = $region25
  $region24: #{forward.3} parent=0 // pred_region
    _
  $region25: #{forward.3} parent=0 // pred_fallthru
    _
  // Predicated region
  $region26: #{forward.3} parent=0 // pred_check
    _
  $region27: #{forward.3} parent=0 // pred_check_branch
    %32 = sbr.rel (0) target = $region29
  $region28: #{forward.3} parent=0 // pred_region
    _
  $region29: #{forward.3} parent=0 // pred_fallthru
    _
  // Predicated region
  $region30: #{forward.3} parent=0 // pred_check
    _
  $region31: #{forward.3} parent=0 // pred_check_branch
    %34 = sbr.rel (0) target = $region33
  $region32: #{forward.3} parent=0 // pred_region
    _
  $region33: #{forward.3} parent=0 // pred_fallthru
    _
  // Predicated region
  $region34: #{forward.3} parent=0 // pred_check
    _
  $region35: #{forward.3} parent=0 // pred_check_branch
    %36 = sbr.rel (0) target = $region37
  $region36: #{forward.3} parent=0 // pred_region
    _
  $region37: #{forward.3} parent=0 // pred_fallthru
    _
  // Predicated region
  $region38: #{forward.3} parent=0 // pred_check
    _
  $region39: #{forward.3} parent=0 // pred_check_branch
    %38 = sbr.rel (0) target = $region41
  $region40: #{forward.3} parent=0 // pred_region
    _
  $region41: #{forward.3} parent=0 // pred_fallthru
    _
  // Predicated region
  $region42: #{forward.3} parent=0 // pred_check
    _
  $region43: #{forward.3} parent=0 // pred_check_branch
    %40 = sbr.rel (0) target = $region45
  $region44: #{forward.3} parent=0 // pred_region
    _
  $region45: #{forward.3} parent=0 // pred_fallthru
    _
  // Predicated region
  $region46: #{forward.3} parent=0 // pred_check
    _
  $region47: #{forward.3} parent=0 // pred_check_branch
    %42 = sbr.rel (0) target = $region49
  $region48: #{forward.3} parent=0 // pred_region
    _
  $region49: #{forward.3} parent=0 // pred_fallthru
    _
  // Predicated region
  $region50: #{forward.3} parent=0 // pred_check
    _
  $region51: #{forward.3} parent=0 // pred_check_branch
    %44 = sbr.rel (0) target = $region53
  $region52: #{forward.3} parent=0 // pred_region
    _
  $region53: #{forward.3} parent=0 // pred_fallthru
    _
  // Predicated region
  $region54: #{forward.3} parent=0 // pred_check
    _
  $region55: #{forward.3} parent=0 // pred_check_branch
    %46 = sbr.rel (0) target = $region57
  $region56: #{forward.3} parent=0 // pred_region
    _
  $region57: #{forward.3} parent=0 // pred_fallthru
    _
  %v47 = vld [vmem:[%s0] sm:$0xff]
  %v48 = vld [vmem:[%s0 + $0x8] sm:$0xff]
  %v49 = vld [vmem:[%s0 + $0x10] sm:$0xff]
  %v50 = vld [vmem:[%s0 + $0x18] sm:$0xff]
  %v51 = vld [vmem:[%s0 + $0x20] sm:$0xff]
  %v52 = vld [vmem:[%s0 + $0x28] sm:$0xff]
  %v53 = vld [vmem:[%s0 + $0x30] sm:$0xff]
  %v54 = vld [vmem:[%s0 + $0x38] sm:$0xff]
  %v55 = vld [vmem:[%s1] sm:$0xff]
  %v56 = vld [vmem:[%s1 + $0x8] sm:$0xff]
  %v57 = vld [vmem:[%s1 + $0x10] sm:$0xff]
  %v58 = vld [vmem:[%s1 + $0x18] sm:$0xff]
  %v59 = vld [vmem:[%s1 + $0x20] sm:$0xff]
  %v60 = vld [vmem:[%s1 + $0x28] sm:$0xff]
  %v61 = vld [vmem:[%s1 + $0x30] sm:$0xff]
  %v62 = vld [vmem:[%s1 + $0x38] sm:$0xff]
  %v63 = vld [vmem:[%s1 + $0x40] sm:$0xff]
  %v64 = vld [vmem:[%s1 + $0x48] sm:$0xff]
  %v65 = vld [vmem:[%s1 + $0x50] sm:$0xff]
  %v66 = vld [vmem:[%s1 + $0x58] sm:$0xff]
  %v67 = vld [vmem:[%s1 + $0x60] sm:$0xff]
  %v68 = vld [vmem:[%s1 + $0x68] sm:$0xff]
  %v69 = vld [vmem:[%s1 + $0x70] sm:$0xff]
  %v70 = vld [vmem:[%s1 + $0x78] sm:$0xff]
  %v71 = vld [vmem:[%s1 + $0x80] sm:$0xff]
  %v72 = vld [vmem:[%s1 + $0x88] sm:$0xff]
  %v73 = vld [vmem:[%s1 + $0x90] sm:$0xff]
  %v74 = vld [vmem:[%s1 + $0x98] sm:$0xff]
  %v75 = vld [vmem:[%s1 + $0xa0] sm:$0xff]
  %v76 = vld [vmem:[%s1 + $0xa8] sm:$0xff]
  %v77 = vld [vmem:[%s1 + $0xb0] sm:$0xff]
  %v78 = vld [vmem:[%s1 + $0xb8] sm:$0xff]
  %v79 = vld [vmem:[%s1 + $0xc0] sm:$0xff]
  %v80 = vld [vmem:[%s1 + $0xc8] sm:$0xff]
  %v81 = vld [vmem:[%s1 + $0xd0] sm:$0xff]
  %v82 = vld [vmem:[%s1 + $0xd8] sm:$0xff]
  %v83 = vld [vmem:[%s1 + $0xe0] sm:$0xff]
  %v84 = vld [vmem:[%s1 + $0xe8] sm:$0xff]
  %v85 = vld [vmem:[%s1 + $0xf0] sm:$0xff]
  %v86 = vld [vmem:[%s1 + $0xf8] sm:$0xff]
  %v87 = vld [vmem:[%s4] sm:$0xff]
  %v88 = vld [vmem:[%s4 + $0x8] sm:$0xff]
  %v89 = vld [vmem:[%s4 + $0x10] sm:$0xff]
  %v90 = vld [vmem:[%s4 + $0x18] sm:$0xff]
  %v91 = vld [vmem:[%s5] sm:$0x1]
  %v92 = vld [vmem:[%s6] sm:$0xff]
  %v93 = vld [vmem:[%s6 + $0x8] sm:$0xff]
  %v94 = vld [vmem:[%s6 + $0x10] sm:$0xff]
  %v95 = vld [vmem:[%s6 + $0x18] sm:$0xff]
  %v96 = vld [vmem:[%s7] sm:$0x1]
  %v97 = vld [vmem:[%s8] sm:$0x1]
  %v98 = vld [vmem:[%s9] sm:$0x1]
  %v99 = vld [vmem:[%s10] sm:$0xff]
  %v100 = vld [vmem:[%s10 + $0x8] sm:$0xff]
  %v101 = vld [vmem:[%s10 + $0x10] sm:$0xff]
  %v102 = vld [vmem:[%s10 + $0x18] sm:$0xff]
  %v103 = vld [vmem:[%s11] sm:$0x1]
  %v104 = vld [vmem:[%s12] sm:$0xff]
  %v105 = vld [vmem:[%s12 + $0x8] sm:$0xff]
  %v106 = vld [vmem:[%s12 + $0x10] sm:$0xff]
  %v107 = vld [vmem:[%s12 + $0x18] sm:$0xff]
  %v108 = vld [vmem:[%s12 + $0x20] sm:$0xff]
  %v109 = vld [vmem:[%s12 + $0x28] sm:$0xff]
  %v110 = vld [vmem:[%s12 + $0x30] sm:$0xff]
  %v111 = vld [vmem:[%s12 + $0x38] sm:$0xff]
  %v112 = vld [vmem:[%s13] sm:$0x1]
  %v114 = vperm.slane %v91, 0
  %vm116 = vcmask 261120
  %v118 = vsel %vm116, %v47, 0
  %v121 = vsel %vm116, %v48, 0
  %v124 = vsel %vm116, %v49, 0
  %v127 = vsel %vm116, %v50, 0
  %v130 = vsel %vm116, %v51, 0
  %v133 = vsel %vm116, %v52, 0
  %v136 = vsel %vm116, %v53, 0
  %v139 = vsel %vm116, %v54, 0
  %141 = vmatpush.msra.mxu0 0.0
  %142 = vmatpush.msra.mxu0 0.0
  %143 = vmatpush.msra.mxu0 0.0
  %144 = vmatpush.msra.mxu0 0.0
  %145 = vmatpush.msra.mxu0 0.0
  %146 = vmatpush.msra.mxu0 0.0
  %147 = vmatpush.msra.mxu0 0.0
  %148 = vmatpush.msra.mxu0 0.0
  %149 = vmatpush.msra.mxu0 0.0
  %150 = vmatpush.msra.mxu0 0.0
  %151 = vmatpush.msra.mxu0 0.0
  %152 = vmatpush.msra.mxu0 0.0
  %153 = vmatpush.msra.mxu0 %v90
  %154 = vmatpush.msra.mxu0 %v89
  %155 = vmatpush.msra.mxu0 %v88
  %156 = vmatpush.msra.mxu0 %v87
  %157 = vmatmul.f32.gmra.mxu0 %v118
  %v158 = vpop.f32.mrf.mxu0
  %v159 = vadd.f32 %v114, %v158
  %160 = vmatmul.f32.gmra.mxu0 %v121
  %v161 = vpop.f32.mrf.mxu0
  %v162 = vadd.f32 %v114, %v161
  %163 = vmatmul.f32.gmra.mxu0 %v124
  %v164 = vpop.f32.mrf.mxu0
  %v165 = vadd.f32 %v114, %v164
  %166 = vmatmul.f32.gmra.mxu0 %v127
  %v167 = vpop.f32.mrf.mxu0
  %v168 = vadd.f32 %v114, %v167
  %169 = vmatmul.f32.gmra.mxu0 %v130
  %v170 = vpop.f32.mrf.mxu0
  %v171 = vadd.f32 %v114, %v170
  %172 = vmatmul.f32.gmra.mxu0 %v133
  %v173 = vpop.f32.mrf.mxu0
  %v174 = vadd.f32 %v114, %v173
  %175 = vmatmul.f32.gmra.mxu0 %v136
  %v176 = vpop.f32.mrf.mxu0
  %v177 = vadd.f32 %v114, %v176
  %178 = vmatmul.f32.gmra.mxu0 %v139
  %v179 = vpop.f32.mrf.mxu0
  %v180 = vadd.f32 %v114, %v179
  %181 = vdwg.mxu0
  %183 = vrot.lane.b32.xlu0 %v159, 96
  %v184 = vpop.permute.xlu0 %183
  %vm185 = vcmask 64512
  %v186 = vsel %vm185, %v184, 0
  %v188 = vsel %vm185, %v159, 0
  %190 = vmatpush.xpose.msra.mxu0 0.0
  %191 = vmatpush.xpose.msra.mxu0 0.0
  %192 = vmatpush.xpose.msra.mxu0 0.0
  %193 = vmatpush.xpose.msra.mxu0 0.0
  %194 = vmatpush.xpose.msra.mxu0 0.0
  %195 = vmatpush.xpose.msra.mxu0 0.0
  %196 = vmatpush.xpose.msra.mxu0 0.0
  %197 = vmatpush.xpose.msra.mxu0 0.0
  %198 = vmatpush.xpose.msra.mxu0 0.0
  %199 = vmatpush.xpose.msra.mxu0 0.0
  %200 = vmatpush.xpose.msra.mxu0 0.0
  %201 = vmatpush.xpose.msra.mxu0 0.0
  %202 = vmatpush.xpose.msra.mxu0 0.0
  %203 = vmatpush.xpose.msra.mxu0 0.0
  %204 = vmatpush.xpose.msra.mxu0 0.0
  %205 = vmatpush.xpose.msra.mxu0 %v188
  %206 = vmatmul.f32.gmra.mxu0 %v186
  %v207 = vpop.f32.mrf.mxu0
  %v208 = vadd.f32 0.0, %v207
  %209 = vdwg.mxu0
  %211 = vrot.lane.b32.xlu0 %v162, 96
  %v212 = vpop.permute.xlu0 %211
  %v213 = vsel %vm185, %v212, 0
  %v215 = vsel %vm185, %v162, 0
  %217 = vmatpush.xpose.msra.mxu0 0.0
  %218 = vmatpush.xpose.msra.mxu0 0.0
  %219 = vmatpush.xpose.msra.mxu0 0.0
  %220 = vmatpush.xpose.msra.mxu0 0.0
  %221 = vmatpush.xpose.msra.mxu0 0.0
  %222 = vmatpush.xpose.msra.mxu0 0.0
  %223 = vmatpush.xpose.msra.mxu0 0.0
  %224 = vmatpush.xpose.msra.mxu0 0.0
  %225 = vmatpush.xpose.msra.mxu0 0.0
  %226 = vmatpush.xpose.msra.mxu0 0.0
  %227 = vmatpush.xpose.msra.mxu0 0.0
  %228 = vmatpush.xpose.msra.mxu0 0.0
  %229 = vmatpush.xpose.msra.mxu0 0.0
  %230 = vmatpush.xpose.msra.mxu0 0.0
  %231 = vmatpush.xpose.msra.mxu0 0.0
  %232 = vmatpush.xpose.msra.mxu0 %v215
  %233 = vmatmul.f32.gmra.mxu0 %v213
  %v234 = vpop.f32.mrf.mxu0
  %v235 = vadd.f32 0.0, %v234
  %236 = vdwg.mxu0
  %238 = vrot.lane.b32.xlu0 %v165, 96
  %v239 = vpop.permute.xlu0 %238
  %v240 = vsel %vm185, %v239, 0
  %v242 = vsel %vm185, %v165, 0
  %244 = vmatpush.xpose.msra.mxu0 0.0
  %245 = vmatpush.xpose.msra.mxu0 0.0
  %246 = vmatpush.xpose.msra.mxu0 0.0
  %247 = vmatpush.xpose.msra.mxu0 0.0
  %248 = vmatpush.xpose.msra.mxu0 0.0
  %249 = vmatpush.xpose.msra.mxu0 0.0
  %250 = vmatpush.xpose.msra.mxu0 0.0
  %251 = vmatpush.xpose.msra.mxu0 0.0
  %252 = vmatpush.xpose.msra.mxu0 0.0
  %253 = vmatpush.xpose.msra.mxu0 0.0
  %254 = vmatpush.xpose.msra.mxu0 0.0
  %255 = vmatpush.xpose.msra.mxu0 0.0
  %256 = vmatpush.xpose.msra.mxu0 0.0
  %257 = vmatpush.xpose.msra.mxu0 0.0
  %258 = vmatpush.xpose.msra.mxu0 0.0
  %259 = vmatpush.xpose.msra.mxu0 %v242
  %260 = vmatmul.f32.gmra.mxu0 %v240
  %v261 = vpop.f32.mrf.mxu0
  %v262 = vadd.f32 0.0, %v261
  %263 = vdwg.mxu0
  %265 = vrot.lane.b32.xlu0 %v168, 96
  %v266 = vpop.permute.xlu0 %265
  %v267 = vsel %vm185, %v266, 0
  %v269 = vsel %vm185, %v168, 0
  %271 = vmatpush.xpose.msra.mxu0 0.0
  %272 = vmatpush.xpose.msra.mxu0 0.0
  %273 = vmatpush.xpose.msra.mxu0 0.0
  %274 = vmatpush.xpose.msra.mxu0 0.0
  %275 = vmatpush.xpose.msra.mxu0 0.0
  %276 = vmatpush.xpose.msra.mxu0 0.0
  %277 = vmatpush.xpose.msra.mxu0 0.0
  %278 = vmatpush.xpose.msra.mxu0 0.0
  %279 = vmatpush.xpose.msra.mxu0 0.0
  %280 = vmatpush.xpose.msra.mxu0 0.0
  %281 = vmatpush.xpose.msra.mxu0 0.0
  %282 = vmatpush.xpose.msra.mxu0 0.0
  %283 = vmatpush.xpose.msra.mxu0 0.0
  %284 = vmatpush.xpose.msra.mxu0 0.0
  %285 = vmatpush.xpose.msra.mxu0 0.0
  %286 = vmatpush.xpose.msra.mxu0 %v269
  %287 = vmatmul.f32.gmra.mxu0 %v267
  %v288 = vpop.f32.mrf.mxu0
  %v289 = vadd.f32 0.0, %v288
  %290 = vdwg.mxu0
  %292 = vrot.lane.b32.xlu0 %v171, 96
  %v293 = vpop.permute.xlu0 %292
  %v294 = vsel %vm185, %v293, 0
  %v296 = vsel %vm185, %v171, 0
  %298 = vmatpush.xpose.msra.mxu0 0.0
  %299 = vmatpush.xpose.msra.mxu0 0.0
  %300 = vmatpush.xpose.msra.mxu0 0.0
  %301 = vmatpush.xpose.msra.mxu0 0.0
  %302 = vmatpush.xpose.msra.mxu0 0.0
  %303 = vmatpush.xpose.msra.mxu0 0.0
  %304 = vmatpush.xpose.msra.mxu0 0.0
  %305 = vmatpush.xpose.msra.mxu0 0.0
  %306 = vmatpush.xpose.msra.mxu0 0.0
  %307 = vmatpush.xpose.msra.mxu0 0.0
  %308 = vmatpush.xpose.msra.mxu0 0.0
  %309 = vmatpush.xpose.msra.mxu0 0.0
  %310 = vmatpush.xpose.msra.mxu0 0.0
  %311 = vmatpush.xpose.msra.mxu0 0.0
  %312 = vmatpush.xpose.msra.mxu0 0.0
  %313 = vmatpush.xpose.msra.mxu0 %v296
  %314 = vmatmul.f32.gmra.mxu0 %v294
  %v315 = vpop.f32.mrf.mxu0
  %v316 = vadd.f32 0.0, %v315
  %317 = vdwg.mxu0
  %319 = vrot.lane.b32.xlu0 %v174, 96
  %v320 = vpop.permute.xlu0 %319
  %v321 = vsel %vm185, %v320, 0
  %v323 = vsel %vm185, %v174, 0
  %325 = vmatpush.xpose.msra.mxu0 0.0
  %326 = vmatpush.xpose.msra.mxu0 0.0
  %327 = vmatpush.xpose.msra.mxu0 0.0
  %328 = vmatpush.xpose.msra.mxu0 0.0
  %329 = vmatpush.xpose.msra.mxu0 0.0
  %330 = vmatpush.xpose.msra.mxu0 0.0
  %331 = vmatpush.xpose.msra.mxu0 0.0
  %332 = vmatpush.xpose.msra.mxu0 0.0
  %333 = vmatpush.xpose.msra.mxu0 0.0
  %334 = vmatpush.xpose.msra.mxu0 0.0
  %335 = vmatpush.xpose.msra.mxu0 0.0
  %336 = vmatpush.xpose.msra.mxu0 0.0
  %337 = vmatpush.xpose.msra.mxu0 0.0
  %338 = vmatpush.xpose.msra.mxu0 0.0
  %339 = vmatpush.xpose.msra.mxu0 0.0
  %340 = vmatpush.xpose.msra.mxu0 %v323
  %341 = vmatmul.f32.gmra.mxu0 %v321
  %v342 = vpop.f32.mrf.mxu0
  %v343 = vadd.f32 0.0, %v342
  %344 = vdwg.mxu0
  %346 = vrot.lane.b32.xlu0 %v177, 96
  %v347 = vpop.permute.xlu0 %346
  %v348 = vsel %vm185, %v347, 0
  %v350 = vsel %vm185, %v177, 0
  %352 = vmatpush.xpose.msra.mxu0 0.0
  %353 = vmatpush.xpose.msra.mxu0 0.0
  %354 = vmatpush.xpose.msra.mxu0 0.0
  %355 = vmatpush.xpose.msra.mxu0 0.0
  %356 = vmatpush.xpose.msra.mxu0 0.0
  %357 = vmatpush.xpose.msra.mxu0 0.0
  %358 = vmatpush.xpose.msra.mxu0 0.0
  %359 = vmatpush.xpose.msra.mxu0 0.0
  %360 = vmatpush.xpose.msra.mxu0 0.0
  %361 = vmatpush.xpose.msra.mxu0 0.0
  %362 = vmatpush.xpose.msra.mxu0 0.0
  %363 = vmatpush.xpose.msra.mxu0 0.0
  %364 = vmatpush.xpose.msra.mxu0 0.0
  %365 = vmatpush.xpose.msra.mxu0 0.0
  %366 = vmatpush.xpose.msra.mxu0 0.0
  %367 = vmatpush.xpose.msra.mxu0 %v350
  %368 = vmatmul.f32.gmra.mxu0 %v348
  %v369 = vpop.f32.mrf.mxu0
  %v370 = vadd.f32 0.0, %v369
  %371 = vdwg.mxu0
  %373 = vrot.lane.b32.xlu0 %v180, 96
  %v374 = vpop.permute.xlu0 %373
  %v375 = vsel %vm185, %v374, 0
  %v377 = vsel %vm185, %v180, 0
  %379 = vmatpush.xpose.msra.mxu0 0.0
  %380 = vmatpush.xpose.msra.mxu0 0.0
  %381 = vmatpush.xpose.msra.mxu0 0.0
  %382 = vmatpush.xpose.msra.mxu0 0.0
  %383 = vmatpush.xpose.msra.mxu0 0.0
  %384 = vmatpush.xpose.msra.mxu0 0.0
  %385 = vmatpush.xpose.msra.mxu0 0.0
  %386 = vmatpush.xpose.msra.mxu0 0.0
  %387 = vmatpush.xpose.msra.mxu0 0.0
  %388 = vmatpush.xpose.msra.mxu0 0.0
  %389 = vmatpush.xpose.msra.mxu0 0.0
  %390 = vmatpush.xpose.msra.mxu0 0.0
  %391 = vmatpush.xpose.msra.mxu0 0.0
  %392 = vmatpush.xpose.msra.mxu0 0.0
  %393 = vmatpush.xpose.msra.mxu0 0.0
  %394 = vmatpush.xpose.msra.mxu0 %v377
  %395 = vmatmul.f32.gmra.mxu0 %v375
  %v396 = vpop.f32.mrf.mxu0
  %v397 = vadd.f32 0.0, %v396
  %398 = vdwg.mxu0
  %v399 = vmul.f32 %v208, 0.35355338
  %v400 = vmul.f32 %v235, 0.35355338
  %v401 = vmul.f32 %v262, 0.35355338
  %v402 = vmul.f32 %v289, 0.35355338
  %v403 = vmul.f32 %v316, 0.35355338
  %v404 = vmul.f32 %v343, 0.35355338
  %v405 = vmul.f32 %v370, 0.35355338
  %v406 = vmul.f32 %v397, 0.35355338
  %v407 = vadd.f32 %v399, %v55
  %v408 = vadd.f32 %v400, %v59
  %v409 = vadd.f32 %v401, %v63
  %v410 = vadd.f32 %v402, %v67
  %v411 = vadd.f32 %v403, %v71
  %v412 = vadd.f32 %v404, %v75
  %v413 = vadd.f32 %v405, %v79
  %v414 = vadd.f32 %v406, %v83
  %v415 = vsel %vm185, %v407, -inf
  %416 = vmax.xlane.f32.xlu0 %v415
  %v417 = vpop.xlane.xlu0 %416
  %v418 = vsel %vm185, %v408, -inf
  %419 = vmax.xlane.f32.xlu0 %v418
  %v420 = vpop.xlane.xlu0 %419
  %v421 = vsel %vm185, %v409, -inf
  %422 = vmax.xlane.f32.xlu0 %v421
  %v423 = vpop.xlane.xlu0 %422
  %v424 = vsel %vm185, %v410, -inf
  %425 = vmax.xlane.f32.xlu0 %v424
  %v426 = vpop.xlane.xlu0 %425
  %v427 = vsel %vm185, %v411, -inf
  %428 = vmax.xlane.f32.xlu0 %v427
  %v429 = vpop.xlane.xlu0 %428
  %v430 = vsel %vm185, %v412, -inf
  %431 = vmax.xlane.f32.xlu0 %v430
  %v432 = vpop.xlane.xlu0 %431
  %v433 = vsel %vm185, %v413, -inf
  %434 = vmax.xlane.f32.xlu0 %v433
  %v435 = vpop.xlane.xlu0 %434
  %v436 = vsel %vm185, %v414, -inf
  %437 = vmax.xlane.f32.xlu0 %v436
  %v438 = vpop.xlane.xlu0 %437
  %v439 = vsub.f32 %v407, %v417
  %v440 = vsub.f32 %v408, %v420
  %v441 = vsub.f32 %v409, %v423
  %v442 = vsub.f32 %v410, %v426
  %v443 = vsub.f32 %v411, %v429
  %v444 = vsub.f32 %v412, %v432
  %v445 = vsub.f32 %v413, %v435
  %v446 = vsub.f32 %v414, %v438
  %v447 = vmul.f32 %v439, 1.442695
  %v448 = vpow.pop %v447
  %v449 = vmul.f32 %v440, 1.442695
  %v450 = vpow.pop %v449
  %v451 = vmul.f32 %v441, 1.442695
  %v452 = vpow.pop %v451
  %v453 = vmul.f32 %v442, 1.442695
  %v454 = vpow.pop %v453
  %v455 = vmul.f32 %v443, 1.442695
  %v456 = vpow.pop %v455
  %v457 = vmul.f32 %v444, 1.442695
  %v458 = vpow.pop %v457
  %v459 = vmul.f32 %v445, 1.442695
  %v460 = vpow.pop %v459
  %v461 = vmul.f32 %v446, 1.442695
  %v462 = vpow.pop %v461
  %v463 = vsel %vm185, %v448, 0.0
  %464 = vadd.xlane.f32.xlu0 %v463
  %v465 = vpop.xlane.xlu0 %464
  %v466 = vsel %vm185, %v450, 0.0
  %467 = vadd.xlane.f32.xlu0 %v466
  %v468 = vpop.xlane.xlu0 %467
  %v469 = vsel %vm185, %v452, 0.0
  %470 = vadd.xlane.f32.xlu0 %v469
  %v471 = vpop.xlane.xlu0 %470
  %v472 = vsel %vm185, %v454, 0.0
  %473 = vadd.xlane.f32.xlu0 %v472
  %v474 = vpop.xlane.xlu0 %473
  %v475 = vsel %vm185, %v456, 0.0
  %476 = vadd.xlane.f32.xlu0 %v475
  %v477 = vpop.xlane.xlu0 %476
  %v478 = vsel %vm185, %v458, 0.0
  %479 = vadd.xlane.f32.xlu0 %v478
  %v480 = vpop.xlane.xlu0 %479
  %v481 = vsel %vm185, %v460, 0.0
  %482 = vadd.xlane.f32.xlu0 %v481
  %v483 = vpop.xlane.xlu0 %482
  %v484 = vsel %vm185, %v462, 0.0
  %485 = vadd.xlane.f32.xlu0 %v484
  %v486 = vpop.xlane.xlu0 %485
  %v487 = vrcp.pop %v465
  %v488 = vrcp.pop %v468
  %v489 = vrcp.pop %v471
  %v490 = vrcp.pop %v474
  %v491 = vrcp.pop %v477
  %v492 = vrcp.pop %v480
  %v493 = vrcp.pop %v483
  %v494 = vrcp.pop %v486
  %v495 = vmul.f32 %v448, %v487
  %v496 = vmul.f32 %v450, %v488
  %v497 = vmul.f32 %v452, %v489
  %v498 = vmul.f32 %v454, %v490
  %v499 = vmul.f32 %v456, %v491
  %v500 = vmul.f32 %v458, %v492
  %v501 = vmul.f32 %v460, %v493
  %v502 = vmul.f32 %v462, %v494
  %503 = vrot.lane.b32.xlu0 %v159, 64
  %v504 = vpop.permute.xlu0 %503
  %v507 = vsel %vm185, %v495, 0
  %509 = vmatpush.msra.mxu0 0.0
  %510 = vmatpush.msra.mxu0 0.0
  %511 = vmatpush.msra.mxu0 0.0
  %512 = vmatpush.msra.mxu0 0.0
  %513 = vmatpush.msra.mxu0 0.0
  %514 = vmatpush.msra.mxu0 0.0
  %515 = vmatpush.msra.mxu0 0.0
  %516 = vmatpush.msra.mxu0 0.0
  %517 = vmatpush.msra.mxu0 0.0
  %518 = vmatpush.msra.mxu0 0.0
  %519 = vmatpush.msra.mxu0 0.0
  %520 = vmatpush.msra.mxu0 0.0
  %521 = vmatpush.msra.mxu0 0.0
  %522 = vmatpush.msra.mxu0 0.0
  %523 = vmatpush.msra.mxu0 0.0
  %524 = vmatpush.msra.mxu0 %v504
  %525 = vmatmul.f32.gmra.mxu0 %v507
  %v526 = vpop.f32.mrf.mxu0
  %v527 = vadd.f32 0.0, %v526
  %528 = vdwg.mxu0
  %529 = vrot.lane.b32.xlu0 %v162, 64
  %v530 = vpop.permute.xlu0 %529
  %v533 = vsel %vm185, %v496, 0
  %535 = vmatpush.msra.mxu0 0.0
  %536 = vmatpush.msra.mxu0 0.0
  %537 = vmatpush.msra.mxu0 0.0
  %538 = vmatpush.msra.mxu0 0.0
  %539 = vmatpush.msra.mxu0 0.0
  %540 = vmatpush.msra.mxu0 0.0
  %541 = vmatpush.msra.mxu0 0.0
  %542 = vmatpush.msra.mxu0 0.0
  %543 = vmatpush.msra.mxu0 0.0
  %544 = vmatpush.msra.mxu0 0.0
  %545 = vmatpush.msra.mxu0 0.0
  %546 = vmatpush.msra.mxu0 0.0
  %547 = vmatpush.msra.mxu0 0.0
  %548 = vmatpush.msra.mxu0 0.0
  %549 = vmatpush.msra.mxu0 0.0
  %550 = vmatpush.msra.mxu0 %v530
  %551 = vmatmul.f32.gmra.mxu0 %v533
  %v552 = vpop.f32.mrf.mxu0
  %v553 = vadd.f32 0.0, %v552
  %554 = vdwg.mxu0
  %555 = vrot.lane.b32.xlu0 %v165, 64
  %v556 = vpop.permute.xlu0 %555
  %v559 = vsel %vm185, %v497, 0
  %561 = vmatpush.msra.mxu0 0.0
  %562 = vmatpush.msra.mxu0 0.0
  %563 = vmatpush.msra.mxu0 0.0
  %564 = vmatpush.msra.mxu0 0.0
  %565 = vmatpush.msra.mxu0 0.0
  %566 = vmatpush.msra.mxu0 0.0
  %567 = vmatpush.msra.mxu0 0.0
  %568 = vmatpush.msra.mxu0 0.0
  %569 = vmatpush.msra.mxu0 0.0
  %570 = vmatpush.msra.mxu0 0.0
  %571 = vmatpush.msra.mxu0 0.0
  %572 = vmatpush.msra.mxu0 0.0
  %573 = vmatpush.msra.mxu0 0.0
  %574 = vmatpush.msra.mxu0 0.0
  %575 = vmatpush.msra.mxu0 0.0
  %576 = vmatpush.msra.mxu0 %v556
  %577 = vmatmul.f32.gmra.mxu0 %v559
  %v578 = vpop.f32.mrf.mxu0
  %v579 = vadd.f32 0.0, %v578
  %580 = vdwg.mxu0
  %581 = vrot.lane.b32.xlu0 %v168, 64
  %v582 = vpop.permute.xlu0 %581
  %v585 = vsel %vm185, %v498, 0
  %587 = vmatpush.msra.mxu0 0.0
  %588 = vmatpush.msra.mxu0 0.0
  %589 = vmatpush.msra.mxu0 0.0
  %590 = vmatpush.msra.mxu0 0.0
  %591 = vmatpush.msra.mxu0 0.0
  %592 = vmatpush.msra.mxu0 0.0
  %593 = vmatpush.msra.mxu0 0.0
  %594 = vmatpush.msra.mxu0 0.0
  %595 = vmatpush.msra.mxu0 0.0
  %596 = vmatpush.msra.mxu0 0.0
  %597 = vmatpush.msra.mxu0 0.0
  %598 = vmatpush.msra.mxu0 0.0
  %599 = vmatpush.msra.mxu0 0.0
  %600 = vmatpush.msra.mxu0 0.0
  %601 = vmatpush.msra.mxu0 0.0
  %602 = vmatpush.msra.mxu0 %v582
  %603 = vmatmul.f32.gmra.mxu0 %v585
  %v604 = vpop.f32.mrf.mxu0
  %v605 = vadd.f32 0.0, %v604
  %606 = vdwg.mxu0
  %607 = vrot.lane.b32.xlu0 %v171, 64
  %v608 = vpop.permute.xlu0 %607
  %v611 = vsel %vm185, %v499, 0
  %613 = vmatpush.msra.mxu0 0.0
  %614 = vmatpush.msra.mxu0 0.0
  %615 = vmatpush.msra.mxu0 0.0
  %616 = vmatpush.msra.mxu0 0.0
  %617 = vmatpush.msra.mxu0 0.0
  %618 = vmatpush.msra.mxu0 0.0
  %619 = vmatpush.msra.mxu0 0.0
  %620 = vmatpush.msra.mxu0 0.0
  %621 = vmatpush.msra.mxu0 0.0
  %622 = vmatpush.msra.mxu0 0.0
  %623 = vmatpush.msra.mxu0 0.0
  %624 = vmatpush.msra.mxu0 0.0
  %625 = vmatpush.msra.mxu0 0.0
  %626 = vmatpush.msra.mxu0 0.0
  %627 = vmatpush.msra.mxu0 0.0
  %628 = vmatpush.msra.mxu0 %v608
  %629 = vmatmul.f32.gmra.mxu0 %v611
  %v630 = vpop.f32.mrf.mxu0
  %v631 = vadd.f32 0.0, %v630
  %632 = vdwg.mxu0
  %633 = vrot.lane.b32.xlu0 %v174, 64
  %v634 = vpop.permute.xlu0 %633
  %v637 = vsel %vm185, %v500, 0
  %639 = vmatpush.msra.mxu0 0.0
  %640 = vmatpush.msra.mxu0 0.0
  %641 = vmatpush.msra.mxu0 0.0
  %642 = vmatpush.msra.mxu0 0.0
  %643 = vmatpush.msra.mxu0 0.0
  %644 = vmatpush.msra.mxu0 0.0
  %645 = vmatpush.msra.mxu0 0.0
  %646 = vmatpush.msra.mxu0 0.0
  %647 = vmatpush.msra.mxu0 0.0
  %648 = vmatpush.msra.mxu0 0.0
  %649 = vmatpush.msra.mxu0 0.0
  %650 = vmatpush.msra.mxu0 0.0
  %651 = vmatpush.msra.mxu0 0.0
  %652 = vmatpush.msra.mxu0 0.0
  %653 = vmatpush.msra.mxu0 0.0
  %654 = vmatpush.msra.mxu0 %v634
  %655 = vmatmul.f32.gmra.mxu0 %v637
  %v656 = vpop.f32.mrf.mxu0
  %v657 = vadd.f32 0.0, %v656
  %658 = vdwg.mxu0
  %659 = vrot.lane.b32.xlu0 %v177, 64
  %v660 = vpop.permute.xlu0 %659
  %v663 = vsel %vm185, %v501, 0
  %665 = vmatpush.msra.mxu0 0.0
  %666 = vmatpush.msra.mxu0 0.0
  %667 = vmatpush.msra.mxu0 0.0
  %668 = vmatpush.msra.mxu0 0.0
  %669 = vmatpush.msra.mxu0 0.0
  %670 = vmatpush.msra.mxu0 0.0
  %671 = vmatpush.msra.mxu0 0.0
  %672 = vmatpush.msra.mxu0 0.0
  %673 = vmatpush.msra.mxu0 0.0
  %674 = vmatpush.msra.mxu0 0.0
  %675 = vmatpush.msra.mxu0 0.0
  %676 = vmatpush.msra.mxu0 0.0
  %677 = vmatpush.msra.mxu0 0.0
  %678 = vmatpush.msra.mxu0 0.0
  %679 = vmatpush.msra.mxu0 0.0
  %680 = vmatpush.msra.mxu0 %v660
  %681 = vmatmul.f32.gmra.mxu0 %v663
  %v682 = vpop.f32.mrf.mxu0
  %v683 = vadd.f32 0.0, %v682
  %684 = vdwg.mxu0
  %685 = vrot.lane.b32.xlu0 %v180, 64
  %v686 = vpop.permute.xlu0 %685
  %v689 = vsel %vm185, %v502, 0
  %691 = vmatpush.msra.mxu0 0.0
  %692 = vmatpush.msra.mxu0 0.0
  %693 = vmatpush.msra.mxu0 0.0
  %694 = vmatpush.msra.mxu0 0.0
  %695 = vmatpush.msra.mxu0 0.0
  %696 = vmatpush.msra.mxu0 0.0
  %697 = vmatpush.msra.mxu0 0.0
  %698 = vmatpush.msra.mxu0 0.0
  %699 = vmatpush.msra.mxu0 0.0
  %700 = vmatpush.msra.mxu0 0.0
  %701 = vmatpush.msra.mxu0 0.0
  %702 = vmatpush.msra.mxu0 0.0
  %703 = vmatpush.msra.mxu0 0.0
  %704 = vmatpush.msra.mxu0 0.0
  %705 = vmatpush.msra.mxu0 0.0
  %706 = vmatpush.msra.mxu0 %v686
  %707 = vmatmul.f32.gmra.mxu0 %v689
  %v708 = vpop.f32.mrf.mxu0
  %v709 = vadd.f32 0.0, %v708
  %710 = vdwg.mxu0
  %711 = vrot.lane.b32.xlu0 %v159, 88
  %v712 = vpop.permute.xlu0 %711
  %713 = vrot.lane.b32.xlu0 %v159, 120
  %v714 = vpop.permute.xlu0 %713
  %v715 = vsel %vm185, %v712, 0
  %v717 = vsel %vm185, %v714, 0
  %719 = vmatpush.xpose.msra.mxu0 0.0
  %720 = vmatpush.xpose.msra.mxu0 0.0
  %721 = vmatpush.xpose.msra.mxu0 0.0
  %722 = vmatpush.xpose.msra.mxu0 0.0
  %723 = vmatpush.xpose.msra.mxu0 0.0
  %724 = vmatpush.xpose.msra.mxu0 0.0
  %725 = vmatpush.xpose.msra.mxu0 0.0
  %726 = vmatpush.xpose.msra.mxu0 0.0
  %727 = vmatpush.xpose.msra.mxu0 0.0
  %728 = vmatpush.xpose.msra.mxu0 0.0
  %729 = vmatpush.xpose.msra.mxu0 0.0
  %730 = vmatpush.xpose.msra.mxu0 0.0
  %731 = vmatpush.xpose.msra.mxu0 0.0
  %732 = vmatpush.xpose.msra.mxu0 0.0
  %733 = vmatpush.xpose.msra.mxu0 0.0
  %734 = vmatpush.xpose.msra.mxu0 %v717
  %735 = vmatmul.f32.gmra.mxu0 %v715
  %v736 = vpop.f32.mrf.mxu0
  %v737 = vadd.f32 0.0, %v736
  %738 = vdwg.mxu0
  %739 = vrot.lane.b32.xlu0 %v162, 88
  %v740 = vpop.permute.xlu0 %739
  %741 = vrot.lane.b32.xlu0 %v162, 120
  %v742 = vpop.permute.xlu0 %741
  %v743 = vsel %vm185, %v740, 0
  %v745 = vsel %vm185, %v742, 0
  %747 = vmatpush.xpose.msra.mxu0 0.0
  %748 = vmatpush.xpose.msra.mxu0 0.0
  %749 = vmatpush.xpose.msra.mxu0 0.0
  %750 = vmatpush.xpose.msra.mxu0 0.0
  %751 = vmatpush.xpose.msra.mxu0 0.0
  %752 = vmatpush.xpose.msra.mxu0 0.0
  %753 = vmatpush.xpose.msra.mxu0 0.0
  %754 = vmatpush.xpose.msra.mxu0 0.0
  %755 = vmatpush.xpose.msra.mxu0 0.0
  %756 = vmatpush.xpose.msra.mxu0 0.0
  %757 = vmatpush.xpose.msra.mxu0 0.0
  %758 = vmatpush.xpose.msra.mxu0 0.0
  %759 = vmatpush.xpose.msra.mxu0 0.0
  %760 = vmatpush.xpose.msra.mxu0 0.0
  %761 = vmatpush.xpose.msra.mxu0 0.0
  %762 = vmatpush.xpose.msra.mxu0 %v745
  %763 = vmatmul.f32.gmra.mxu0 %v743
  %v764 = vpop.f32.mrf.mxu0
  %v765 = vadd.f32 0.0, %v764
  %766 = vdwg.mxu0
  %767 = vrot.lane.b32.xlu0 %v165, 88
  %v768 = vpop.permute.xlu0 %767
  %769 = vrot.lane.b32.xlu0 %v165, 120
  %v770 = vpop.permute.xlu0 %769
  %v771 = vsel %vm185, %v768, 0
  %v773 = vsel %vm185, %v770, 0
  %775 = vmatpush.xpose.msra.mxu0 0.0
  %776 = vmatpush.xpose.msra.mxu0 0.0
  %777 = vmatpush.xpose.msra.mxu0 0.0
  %778 = vmatpush.xpose.msra.mxu0 0.0
  %779 = vmatpush.xpose.msra.mxu0 0.0
  %780 = vmatpush.xpose.msra.mxu0 0.0
  %781 = vmatpush.xpose.msra.mxu0 0.0
  %782 = vmatpush.xpose.msra.mxu0 0.0
  %783 = vmatpush.xpose.msra.mxu0 0.0
  %784 = vmatpush.xpose.msra.mxu0 0.0
  %785 = vmatpush.xpose.msra.mxu0 0.0
  %786 = vmatpush.xpose.msra.mxu0 0.0
  %787 = vmatpush.xpose.msra.mxu0 0.0
  %788 = vmatpush.xpose.msra.mxu0 0.0
  %789 = vmatpush.xpose.msra.mxu0 0.0
  %790 = vmatpush.xpose.msra.mxu0 %v773
  %791 = vmatmul.f32.gmra.mxu0 %v771
  %v792 = vpop.f32.mrf.mxu0
  %v793 = vadd.f32 0.0, %v792
  %794 = vdwg.mxu0
  %795 = vrot.lane.b32.xlu0 %v168, 88
  %v796 = vpop.permute.xlu0 %795
  %797 = vrot.lane.b32.xlu0 %v168, 120
  %v798 = vpop.permute.xlu0 %797
  %v799 = vsel %vm185, %v796, 0
  %v801 = vsel %vm185, %v798, 0
  %803 = vmatpush.xpose.msra.mxu0 0.0
  %804 = vmatpush.xpose.msra.mxu0 0.0
  %805 = vmatpush.xpose.msra.mxu0 0.0
  %806 = vmatpush.xpose.msra.mxu0 0.0
  %807 = vmatpush.xpose.msra.mxu0 0.0
  %808 = vmatpush.xpose.msra.mxu0 0.0
  %809 = vmatpush.xpose.msra.mxu0 0.0
  %810 = vmatpush.xpose.msra.mxu0 0.0
  %811 = vmatpush.xpose.msra.mxu0 0.0
  %812 = vmatpush.xpose.msra.mxu0 0.0
  %813 = vmatpush.xpose.msra.mxu0 0.0
  %814 = vmatpush.xpose.msra.mxu0 0.0
  %815 = vmatpush.xpose.msra.mxu0 0.0
  %816 = vmatpush.xpose.msra.mxu0 0.0
  %817 = vmatpush.xpose.msra.mxu0 0.0
  %818 = vmatpush.xpose.msra.mxu0 %v801
  %819 = vmatmul.f32.gmra.mxu0 %v799
  %v820 = vpop.f32.mrf.mxu0
  %v821 = vadd.f32 0.0, %v820
  %822 = vdwg.mxu0
  %823 = vrot.lane.b32.xlu0 %v171, 88
  %v824 = vpop.permute.xlu0 %823
  %825 = vrot.lane.b32.xlu0 %v171, 120
  %v826 = vpop.permute.xlu0 %825
  %v827 = vsel %vm185, %v824, 0
  %v829 = vsel %vm185, %v826, 0
  %831 = vmatpush.xpose.msra.mxu0 0.0
  %832 = vmatpush.xpose.msra.mxu0 0.0
  %833 = vmatpush.xpose.msra.mxu0 0.0
  %834 = vmatpush.xpose.msra.mxu0 0.0
  %835 = vmatpush.xpose.msra.mxu0 0.0
  %836 = vmatpush.xpose.msra.mxu0 0.0
  %837 = vmatpush.xpose.msra.mxu0 0.0
  %838 = vmatpush.xpose.msra.mxu0 0.0
  %839 = vmatpush.xpose.msra.mxu0 0.0
  %840 = vmatpush.xpose.msra.mxu0 0.0
  %841 = vmatpush.xpose.msra.mxu0 0.0
  %842 = vmatpush.xpose.msra.mxu0 0.0
  %843 = vmatpush.xpose.msra.mxu0 0.0
  %844 = vmatpush.xpose.msra.mxu0 0.0
  %845 = vmatpush.xpose.msra.mxu0 0.0
  %846 = vmatpush.xpose.msra.mxu0 %v829
  %847 = vmatmul.f32.gmra.mxu0 %v827
  %v848 = vpop.f32.mrf.mxu0
  %v849 = vadd.f32 0.0, %v848
  %850 = vdwg.mxu0
  %851 = vrot.lane.b32.xlu0 %v174, 88
  %v852 = vpop.permute.xlu0 %851
  %853 = vrot.lane.b32.xlu0 %v174, 120
  %v854 = vpop.permute.xlu0 %853
  %v855 = vsel %vm185, %v852, 0
  %v857 = vsel %vm185, %v854, 0
  %859 = vmatpush.xpose.msra.mxu0 0.0
  %860 = vmatpush.xpose.msra.mxu0 0.0
  %861 = vmatpush.xpose.msra.mxu0 0.0
  %862 = vmatpush.xpose.msra.mxu0 0.0
  %863 = vmatpush.xpose.msra.mxu0 0.0
  %864 = vmatpush.xpose.msra.mxu0 0.0
  %865 = vmatpush.xpose.msra.mxu0 0.0
  %866 = vmatpush.xpose.msra.mxu0 0.0
  %867 = vmatpush.xpose.msra.mxu0 0.0
  %868 = vmatpush.xpose.msra.mxu0 0.0
  %869 = vmatpush.xpose.msra.mxu0 0.0
  %870 = vmatpush.xpose.msra.mxu0 0.0
  %871 = vmatpush.xpose.msra.mxu0 0.0
  %872 = vmatpush.xpose.msra.mxu0 0.0
  %873 = vmatpush.xpose.msra.mxu0 0.0
  %874 = vmatpush.xpose.msra.mxu0 %v857
  %875 = vmatmul.f32.gmra.mxu0 %v855
  %v876 = vpop.f32.mrf.mxu0
  %v877 = vadd.f32 0.0, %v876
  %878 = vdwg.mxu0
  %879 = vrot.lane.b32.xlu0 %v177, 88
  %v880 = vpop.permute.xlu0 %879
  %881 = vrot.lane.b32.xlu0 %v177, 120
  %v882 = vpop.permute.xlu0 %881
  %v883 = vsel %vm185, %v880, 0
  %v885 = vsel %vm185, %v882, 0
  %887 = vmatpush.xpose.msra.mxu0 0.0
  %888 = vmatpush.xpose.msra.mxu0 0.0
  %889 = vmatpush.xpose.msra.mxu0 0.0
  %890 = vmatpush.xpose.msra.mxu0 0.0
  %891 = vmatpush.xpose.msra.mxu0 0.0
  %892 = vmatpush.xpose.msra.mxu0 0.0
  %893 = vmatpush.xpose.msra.mxu0 0.0
  %894 = vmatpush.xpose.msra.mxu0 0.0
  %895 = vmatpush.xpose.msra.mxu0 0.0
  %896 = vmatpush.xpose.msra.mxu0 0.0
  %897 = vmatpush.xpose.msra.mxu0 0.0
  %898 = vmatpush.xpose.msra.mxu0 0.0
  %899 = vmatpush.xpose.msra.mxu0 0.0
  %900 = vmatpush.xpose.msra.mxu0 0.0
  %901 = vmatpush.xpose.msra.mxu0 0.0
  %902 = vmatpush.xpose.msra.mxu0 %v885
  %903 = vmatmul.f32.gmra.mxu0 %v883
  %v904 = vpop.f32.mrf.mxu0
  %v905 = vadd.f32 0.0, %v904
  %906 = vdwg.mxu0
  %907 = vrot.lane.b32.xlu0 %v180, 88
  %v908 = vpop.permute.xlu0 %907
  %909 = vrot.lane.b32.xlu0 %v180, 120
  %v910 = vpop.permute.xlu0 %909
  %v911 = vsel %vm185, %v908, 0
  %v913 = vsel %vm185, %v910, 0
  %915 = vmatpush.xpose.msra.mxu0 0.0
  %916 = vmatpush.xpose.msra.mxu0 0.0
  %917 = vmatpush.xpose.msra.mxu0 0.0
  %918 = vmatpush.xpose.msra.mxu0 0.0
  %919 = vmatpush.xpose.msra.mxu0 0.0
  %920 = vmatpush.xpose.msra.mxu0 0.0
  %921 = vmatpush.xpose.msra.mxu0 0.0
  %922 = vmatpush.xpose.msra.mxu0 0.0
  %923 = vmatpush.xpose.msra.mxu0 0.0
  %924 = vmatpush.xpose.msra.mxu0 0.0
  %925 = vmatpush.xpose.msra.mxu0 0.0
  %926 = vmatpush.xpose.msra.mxu0 0.0
  %927 = vmatpush.xpose.msra.mxu0 0.0
  %928 = vmatpush.xpose.msra.mxu0 0.0
  %929 = vmatpush.xpose.msra.mxu0 0.0
  %930 = vmatpush.xpose.msra.mxu0 %v913
  %931 = vmatmul.f32.gmra.mxu0 %v911
  %v932 = vpop.f32.mrf.mxu0
  %v933 = vadd.f32 0.0, %v932
  %934 = vdwg.mxu0
  %v935 = vmul.f32 %v737, 0.35355338
  %v936 = vmul.f32 %v765, 0.35355338
  %v937 = vmul.f32 %v793, 0.35355338
  %v938 = vmul.f32 %v821, 0.35355338
  %v939 = vmul.f32 %v849, 0.35355338
  %v940 = vmul.f32 %v877, 0.35355338
  %v941 = vmul.f32 %v905, 0.35355338
  %v942 = vmul.f32 %v933, 0.35355338
  %v943 = vadd.f32 %v935, %v56
  %v944 = vadd.f32 %v936, %v60
  %v945 = vadd.f32 %v937, %v64
  %v946 = vadd.f32 %v938, %v68
  %v947 = vadd.f32 %v939, %v72
  %v948 = vadd.f32 %v940, %v76
  %v949 = vadd.f32 %v941, %v80
  %v950 = vadd.f32 %v942, %v84
  %v951 = vsel %vm185, %v943, -inf
  %952 = vmax.xlane.f32.xlu0 %v951
  %v953 = vpop.xlane.xlu0 %952
  %v954 = vsel %vm185, %v944, -inf
  %955 = vmax.xlane.f32.xlu0 %v954
  %v956 = vpop.xlane.xlu0 %955
  %v957 = vsel %vm185, %v945, -inf
  %958 = vmax.xlane.f32.xlu0 %v957
  %v959 = vpop.xlane.xlu0 %958
  %v960 = vsel %vm185, %v946, -inf
  %961 = vmax.xlane.f32.xlu0 %v960
  %v962 = vpop.xlane.xlu0 %961
  %v963 = vsel %vm185, %v947, -inf
  %964 = vmax.xlane.f32.xlu0 %v963
  %v965 = vpop.xlane.xlu0 %964
  %v966 = vsel %vm185, %v948, -inf
  %967 = vmax.xlane.f32.xlu0 %v966
  %v968 = vpop.xlane.xlu0 %967
  %v969 = vsel %vm185, %v949, -inf
  %970 = vmax.xlane.f32.xlu0 %v969
  %v971 = vpop.xlane.xlu0 %970
  %v972 = vsel %vm185, %v950, -inf
  %973 = vmax.xlane.f32.xlu0 %v972
  %v974 = vpop.xlane.xlu0 %973
  %v975 = vsub.f32 %v943, %v953
  %v976 = vsub.f32 %v944, %v956
  %v977 = vsub.f32 %v945, %v959
  %v978 = vsub.f32 %v946, %v962
  %v979 = vsub.f32 %v947, %v965
  %v980 = vsub.f32 %v948, %v968
  %v981 = vsub.f32 %v949, %v971
  %v982 = vsub.f32 %v950, %v974
  %v983 = vmul.f32 %v975, 1.442695
  %v984 = vpow.pop %v983
  %v985 = vmul.f32 %v976, 1.442695
  %v986 = vpow.pop %v985
  %v987 = vmul.f32 %v977, 1.442695
  %v988 = vpow.pop %v987
  %v989 = vmul.f32 %v978, 1.442695
  %v990 = vpow.pop %v989
  %v991 = vmul.f32 %v979, 1.442695
  %v992 = vpow.pop %v991
  %v993 = vmul.f32 %v980, 1.442695
  %v994 = vpow.pop %v993
  %v995 = vmul.f32 %v981, 1.442695
  %v996 = vpow.pop %v995
  %v997 = vmul.f32 %v982, 1.442695
  %v998 = vpow.pop %v997
  %v999 = vsel %vm185, %v984, 0.0
  %1000 = vadd.xlane.f32.xlu0 %v999
  %v1001 = vpop.xlane.xlu0 %1000
  %v1002 = vsel %vm185, %v986, 0.0
  %1003 = vadd.xlane.f32.xlu0 %v1002
  %v1004 = vpop.xlane.xlu0 %1003
  %v1005 = vsel %vm185, %v988, 0.0
  %1006 = vadd.xlane.f32.xlu0 %v1005
  %v1007 = vpop.xlane.xlu0 %1006
  %v1008 = vsel %vm185, %v990, 0.0
  %1009 = vadd.xlane.f32.xlu0 %v1008
  %v1010 = vpop.xlane.xlu0 %1009
  %v1011 = vsel %vm185, %v992, 0.0
  %1012 = vadd.xlane.f32.xlu0 %v1011
  %v1013 = vpop.xlane.xlu0 %1012
  %v1014 = vsel %vm185, %v994, 0.0
  %1015 = vadd.xlane.f32.xlu0 %v1014
  %v1016 = vpop.xlane.xlu0 %1015
  %v1017 = vsel %vm185, %v996, 0.0
  %1018 = vadd.xlane.f32.xlu0 %v1017
  %v1019 = vpop.xlane.xlu0 %1018
  %v1020 = vsel %vm185, %v998, 0.0
  %1021 = vadd.xlane.f32.xlu0 %v1020
  %v1022 = vpop.xlane.xlu0 %1021
  %v1023 = vrcp.pop %v1001
  %v1024 = vrcp.pop %v1004
  %v1025 = vrcp.pop %v1007
  %v1026 = vrcp.pop %v1010
  %v1027 = vrcp.pop %v1013
  %v1028 = vrcp.pop %v1016
  %v1029 = vrcp.pop %v1019
  %v1030 = vrcp.pop %v1022
  %v1031 = vmul.f32 %v984, %v1023
  %v1032 = vmul.f32 %v986, %v1024
  %v1033 = vmul.f32 %v988, %v1025
  %v1034 = vmul.f32 %v990, %v1026
  %v1035 = vmul.f32 %v992, %v1027
  %v1036 = vmul.f32 %v994, %v1028
  %v1037 = vmul.f32 %v996, %v1029
  %v1038 = vmul.f32 %v998, %v1030
  %1039 = vrot.lane.b32.xlu0 %v159, 56
  %v1040 = vpop.permute.xlu0 %1039
  %v1043 = vsel %vm185, %v1031, 0
  %1045 = vmatpush.msra.mxu0 0.0
  %1046 = vmatpush.msra.mxu0 0.0
  %1047 = vmatpush.msra.mxu0 0.0
  %1048 = vmatpush.msra.mxu0 0.0
  %1049 = vmatpush.msra.mxu0 0.0
  %1050 = vmatpush.msra.mxu0 0.0
  %1051 = vmatpush.msra.mxu0 0.0
  %1052 = vmatpush.msra.mxu0 0.0
  %1053 = vmatpush.msra.mxu0 0.0
  %1054 = vmatpush.msra.mxu0 0.0
  %1055 = vmatpush.msra.mxu0 0.0
  %1056 = vmatpush.msra.mxu0 0.0
  %1057 = vmatpush.msra.mxu0 0.0
  %1058 = vmatpush.msra.mxu0 0.0
  %1059 = vmatpush.msra.mxu0 0.0
  %1060 = vmatpush.msra.mxu0 %v1040
  %1061 = vmatmul.f32.gmra.mxu0 %v1043
  %v1062 = vpop.f32.mrf.mxu0
  %v1063 = vadd.f32 0.0, %v1062
  %1064 = vdwg.mxu0
  %1065 = vrot.lane.b32.xlu0 %v162, 56
  %v1066 = vpop.permute.xlu0 %1065
  %v1069 = vsel %vm185, %v1032, 0
  %1071 = vmatpush.msra.mxu0 0.0
  %1072 = vmatpush.msra.mxu0 0.0
  %1073 = vmatpush.msra.mxu0 0.0
  %1074 = vmatpush.msra.mxu0 0.0
  %1075 = vmatpush.msra.mxu0 0.0
  %1076 = vmatpush.msra.mxu0 0.0
  %1077 = vmatpush.msra.mxu0 0.0
  %1078 = vmatpush.msra.mxu0 0.0
  %1079 = vmatpush.msra.mxu0 0.0
  %1080 = vmatpush.msra.mxu0 0.0
  %1081 = vmatpush.msra.mxu0 0.0
  %1082 = vmatpush.msra.mxu0 0.0
  %1083 = vmatpush.msra.mxu0 0.0
  %1084 = vmatpush.msra.mxu0 0.0
  %1085 = vmatpush.msra.mxu0 0.0
  %1086 = vmatpush.msra.mxu0 %v1066
  %1087 = vmatmul.f32.gmra.mxu0 %v1069
  %v1088 = vpop.f32.mrf.mxu0
  %v1089 = vadd.f32 0.0, %v1088
  %1090 = vdwg.mxu0
  %1091 = vrot.lane.b32.xlu0 %v165, 56
  %v1092 = vpop.permute.xlu0 %1091
  %v1095 = vsel %vm185, %v1033, 0
  %1097 = vmatpush.msra.mxu0 0.0
  %1098 = vmatpush.msra.mxu0 0.0
  %1099 = vmatpush.msra.mxu0 0.0
  %1100 = vmatpush.msra.mxu0 0.0
  %1101 = vmatpush.msra.mxu0 0.0
  %1102 = vmatpush.msra.mxu0 0.0
  %1103 = vmatpush.msra.mxu0 0.0
  %1104 = vmatpush.msra.mxu0 0.0
  %1105 = vmatpush.msra.mxu0 0.0
  %1106 = vmatpush.msra.mxu0 0.0
  %1107 = vmatpush.msra.mxu0 0.0
  %1108 = vmatpush.msra.mxu0 0.0
  %1109 = vmatpush.msra.mxu0 0.0
  %1110 = vmatpush.msra.mxu0 0.0
  %1111 = vmatpush.msra.mxu0 0.0
  %1112 = vmatpush.msra.mxu0 %v1092
  %1113 = vmatmul.f32.gmra.mxu0 %v1095
  %v1114 = vpop.f32.mrf.mxu0
  %v1115 = vadd.f32 0.0, %v1114
  %1116 = vdwg.mxu0
  %1117 = vrot.lane.b32.xlu0 %v168, 56
  %v1118 = vpop.permute.xlu0 %1117
  %v1121 = vsel %vm185, %v1034, 0
  %1123 = vmatpush.msra.mxu0 0.0
  %1124 = vmatpush.msra.mxu0 0.0
  %1125 = vmatpush.msra.mxu0 0.0
  %1126 = vmatpush.msra.mxu0 0.0
  %1127 = vmatpush.msra.mxu0 0.0
  %1128 = vmatpush.msra.mxu0 0.0
  %1129 = vmatpush.msra.mxu0 0.0
  %1130 = vmatpush.msra.mxu0 0.0
  %1131 = vmatpush.msra.mxu0 0.0
  %1132 = vmatpush.msra.mxu0 0.0
  %1133 = vmatpush.msra.mxu0 0.0
  %1134 = vmatpush.msra.mxu0 0.0
  %1135 = vmatpush.msra.mxu0 0.0
  %1136 = vmatpush.msra.mxu0 0.0
  %1137 = vmatpush.msra.mxu0 0.0
  %1138 = vmatpush.msra.mxu0 %v1118
  %1139 = vmatmul.f32.gmra.mxu0 %v1121
  %v1140 = vpop.f32.mrf.mxu0
  %v1141 = vadd.f32 0.0, %v1140
  %1142 = vdwg.mxu0
  %1143 = vrot.lane.b32.xlu0 %v171, 56
  %v1144 = vpop.permute.xlu0 %1143
  %v1147 = vsel %vm185, %v1035, 0
  %1149 = vmatpush.msra.mxu0 0.0
  %1150 = vmatpush.msra.mxu0 0.0
  %1151 = vmatpush.msra.mxu0 0.0
  %1152 = vmatpush.msra.mxu0 0.0
  %1153 = vmatpush.msra.mxu0 0.0
  %1154 = vmatpush.msra.mxu0 0.0
  %1155 = vmatpush.msra.mxu0 0.0
  %1156 = vmatpush.msra.mxu0 0.0
  %1157 = vmatpush.msra.mxu0 0.0
  %1158 = vmatpush.msra.mxu0 0.0
  %1159 = vmatpush.msra.mxu0 0.0
  %1160 = vmatpush.msra.mxu0 0.0
  %1161 = vmatpush.msra.mxu0 0.0
  %1162 = vmatpush.msra.mxu0 0.0
  %1163 = vmatpush.msra.mxu0 0.0
  %1164 = vmatpush.msra.mxu0 %v1144
  %1165 = vmatmul.f32.gmra.mxu0 %v1147
  %v1166 = vpop.f32.mrf.mxu0
  %v1167 = vadd.f32 0.0, %v1166
  %1168 = vdwg.mxu0
  %1169 = vrot.lane.b32.xlu0 %v174, 56
  %v1170 = vpop.permute.xlu0 %1169
  %v1173 = vsel %vm185, %v1036, 0
  %1175 = vmatpush.msra.mxu0 0.0
  %1176 = vmatpush.msra.mxu0 0.0
  %1177 = vmatpush.msra.mxu0 0.0
  %1178 = vmatpush.msra.mxu0 0.0
  %1179 = vmatpush.msra.mxu0 0.0
  %1180 = vmatpush.msra.mxu0 0.0
  %1181 = vmatpush.msra.mxu0 0.0
  %1182 = vmatpush.msra.mxu0 0.0
  %1183 = vmatpush.msra.mxu0 0.0
  %1184 = vmatpush.msra.mxu0 0.0
  %1185 = vmatpush.msra.mxu0 0.0
  %1186 = vmatpush.msra.mxu0 0.0
  %1187 = vmatpush.msra.mxu0 0.0
  %1188 = vmatpush.msra.mxu0 0.0
  %1189 = vmatpush.msra.mxu0 0.0
  %1190 = vmatpush.msra.mxu0 %v1170
  %1191 = vmatmul.f32.gmra.mxu0 %v1173
  %v1192 = vpop.f32.mrf.mxu0
  %v1193 = vadd.f32 0.0, %v1192
  %1194 = vdwg.mxu0
  %1195 = vrot.lane.b32.xlu0 %v177, 56
  %v1196 = vpop.permute.xlu0 %1195
  %v1199 = vsel %vm185, %v1037, 0
  %1201 = vmatpush.msra.mxu0 0.0
  %1202 = vmatpush.msra.mxu0 0.0
  %1203 = vmatpush.msra.mxu0 0.0
  %1204 = vmatpush.msra.mxu0 0.0
  %1205 = vmatpush.msra.mxu0 0.0
  %1206 = vmatpush.msra.mxu0 0.0
  %1207 = vmatpush.msra.mxu0 0.0
  %1208 = vmatpush.msra.mxu0 0.0
  %1209 = vmatpush.msra.mxu0 0.0
  %1210 = vmatpush.msra.mxu0 0.0
  %1211 = vmatpush.msra.mxu0 0.0
  %1212 = vmatpush.msra.mxu0 0.0
  %1213 = vmatpush.msra.mxu0 0.0
  %1214 = vmatpush.msra.mxu0 0.0
  %1215 = vmatpush.msra.mxu0 0.0
  %1216 = vmatpush.msra.mxu0 %v1196
  %1217 = vmatmul.f32.gmra.mxu0 %v1199
  %v1218 = vpop.f32.mrf.mxu0
  %v1219 = vadd.f32 0.0, %v1218
  %1220 = vdwg.mxu0
  %1221 = vrot.lane.b32.xlu0 %v180, 56
  %v1222 = vpop.permute.xlu0 %1221
  %v1225 = vsel %vm185, %v1038, 0
  %1227 = vmatpush.msra.mxu0 0.0
  %1228 = vmatpush.msra.mxu0 0.0
  %1229 = vmatpush.msra.mxu0 0.0
  %1230 = vmatpush.msra.mxu0 0.0
  %1231 = vmatpush.msra.mxu0 0.0
  %1232 = vmatpush.msra.mxu0 0.0
  %1233 = vmatpush.msra.mxu0 0.0
  %1234 = vmatpush.msra.mxu0 0.0
  %1235 = vmatpush.msra.mxu0 0.0
  %1236 = vmatpush.msra.mxu0 0.0
  %1237 = vmatpush.msra.mxu0 0.0
  %1238 = vmatpush.msra.mxu0 0.0
  %1239 = vmatpush.msra.mxu0 0.0
  %1240 = vmatpush.msra.mxu0 0.0
  %1241 = vmatpush.msra.mxu0 0.0
  %1242 = vmatpush.msra.mxu0 %v1222
  %1243 = vmatmul.f32.gmra.mxu0 %v1225
  %v1244 = vpop.f32.mrf.mxu0
  %v1245 = vadd.f32 0.0, %v1244
  %1246 = vdwg.mxu0
  %v1248 = vsel %vm185, %v1063, 0
  %v1251 = vsel %vm185, %v1089, 0
  %v1254 = vsel %vm185, %v1115, 0
  %v1257 = vsel %vm185, %v1141, 0
  %v1260 = vsel %vm185, %v1167, 0
  %v1263 = vsel %vm185, %v1193, 0
  %v1266 = vsel %vm185, %v1219, 0
  %v1269 = vsel %vm185, %v1245, 0
  %1271 = vmatpush.msra.mxu0 0.0
  %1272 = vmatpush.msra.mxu0 0.0
  %1273 = vmatpush.msra.mxu0 0.0
  %1274 = vmatpush.msra.mxu0 0.0
  %1275 = vmatpush.msra.mxu0 0.0
  %1276 = vmatpush.msra.mxu0 0.0
  %1277 = vmatpush.msra.mxu0 0.0
  %1278 = vmatpush.msra.mxu0 0.0
  %1279 = vmatpush.msra.mxu0 0.0
  %1280 = vmatpush.msra.mxu0 0.0
  %1281 = vmatpush.msra.mxu0 0.0
  %1282 = vmatpush.msra.mxu0 0.0
  %1283 = vmatpush.msra.mxu0 0.0
  %1284 = vmatpush.msra.mxu0 0.0
  %1285 = vmatpush.msra.mxu0 0.0
  %1286 = vmatpush.msra.mxu0 %v93
  %1287 = vmatmul.f32.gmra.mxu0 %v1248
  %v1288 = vpop.f32.mrf.mxu0
  %v1289 = vadd.f32 0.0, %v1288
  %1290 = vmatmul.f32.gmra.mxu0 %v1251
  %v1291 = vpop.f32.mrf.mxu0
  %v1292 = vadd.f32 0.0, %v1291
  %1293 = vmatmul.f32.gmra.mxu0 %v1254
  %v1294 = vpop.f32.mrf.mxu0
  %v1295 = vadd.f32 0.0, %v1294
  %1296 = vmatmul.f32.gmra.mxu0 %v1257
  %v1297 = vpop.f32.mrf.mxu0
  %v1298 = vadd.f32 0.0, %v1297
  %1299 = vmatmul.f32.gmra.mxu0 %v1260
  %v1300 = vpop.f32.mrf.mxu0
  %v1301 = vadd.f32 0.0, %v1300
  %1302 = vmatmul.f32.gmra.mxu0 %v1263
  %v1303 = vpop.f32.mrf.mxu0
  %v1304 = vadd.f32 0.0, %v1303
  %1305 = vmatmul.f32.gmra.mxu0 %v1266
  %v1306 = vpop.f32.mrf.mxu0
  %v1307 = vadd.f32 0.0, %v1306
  %1308 = vmatmul.f32.gmra.mxu0 %v1269
  %v1309 = vpop.f32.mrf.mxu0
  %v1310 = vadd.f32 0.0, %v1309
  %1311 = vdwg.mxu0
  %v1313 = vsel %vm185, %v527, 0
  %v1316 = vsel %vm185, %v553, 0
  %v1319 = vsel %vm185, %v579, 0
  %v1322 = vsel %vm185, %v605, 0
  %v1325 = vsel %vm185, %v631, 0
  %v1328 = vsel %vm185, %v657, 0
  %v1331 = vsel %vm185, %v683, 0
  %v1334 = vsel %vm185, %v709, 0
  %1336 = vmatpush.msra.mxu0 0.0
  %1337 = vmatpush.msra.mxu0 0.0
  %1338 = vmatpush.msra.mxu0 0.0
  %1339 = vmatpush.msra.mxu0 0.0
  %1340 = vmatpush.msra.mxu0 0.0
  %1341 = vmatpush.msra.mxu0 0.0
  %1342 = vmatpush.msra.mxu0 0.0
  %1343 = vmatpush.msra.mxu0 0.0
  %1344 = vmatpush.msra.mxu0 0.0
  %1345 = vmatpush.msra.mxu0 0.0
  %1346 = vmatpush.msra.mxu0 0.0
  %1347 = vmatpush.msra.mxu0 0.0
  %1348 = vmatpush.msra.mxu0 0.0
  %1349 = vmatpush.msra.mxu0 0.0
  %1350 = vmatpush.msra.mxu0 0.0
  %1351 = vmatpush.msra.mxu0 %v92
  %1352 = vmatmul.f32.gmra.mxu0 %v1313
  %v1353 = vpop.f32.mrf.mxu0
  %v1354 = vadd.f32 %v1289, %v1353
  %1355 = vmatmul.f32.gmra.mxu0 %v1316
  %v1356 = vpop.f32.mrf.mxu0
  %v1357 = vadd.f32 %v1292, %v1356
  %1358 = vmatmul.f32.gmra.mxu0 %v1319
  %v1359 = vpop.f32.mrf.mxu0
  %v1360 = vadd.f32 %v1295, %v1359
  %1361 = vmatmul.f32.gmra.mxu0 %v1322
  %v1362 = vpop.f32.mrf.mxu0
  %v1363 = vadd.f32 %v1298, %v1362
  %1364 = vmatmul.f32.gmra.mxu0 %v1325
  %v1365 = vpop.f32.mrf.mxu0
  %v1366 = vadd.f32 %v1301, %v1365
  %1367 = vmatmul.f32.gmra.mxu0 %v1328
  %v1368 = vpop.f32.mrf.mxu0
  %v1369 = vadd.f32 %v1304, %v1368
  %1370 = vmatmul.f32.gmra.mxu0 %v1331
  %v1371 = vpop.f32.mrf.mxu0
  %v1372 = vadd.f32 %v1307, %v1371
  %1373 = vmatmul.f32.gmra.mxu0 %v1334
  %v1374 = vpop.f32.mrf.mxu0
  %v1375 = vadd.f32 %v1310, %v1374
  %1376 = vdwg.mxu0
  %1377 = vrot.lane.b32.xlu0 %v159, 80
  %v1378 = vpop.permute.xlu0 %1377
  %1379 = vrot.lane.b32.xlu0 %v159, 112
  %v1380 = vpop.permute.xlu0 %1379
  %v1381 = vsel %vm185, %v1378, 0
  %v1383 = vsel %vm185, %v1380, 0
  %1385 = vmatpush.xpose.msra.mxu0 0.0
  %1386 = vmatpush.xpose.msra.mxu0 0.0
  %1387 = vmatpush.xpose.msra.mxu0 0.0
  %1388 = vmatpush.xpose.msra.mxu0 0.0
  %1389 = vmatpush.xpose.msra.mxu0 0.0
  %1390 = vmatpush.xpose.msra.mxu0 0.0
  %1391 = vmatpush.xpose.msra.mxu0 0.0
  %1392 = vmatpush.xpose.msra.mxu0 0.0
  %1393 = vmatpush.xpose.msra.mxu0 0.0
  %1394 = vmatpush.xpose.msra.mxu0 0.0
  %1395 = vmatpush.xpose.msra.mxu0 0.0
  %1396 = vmatpush.xpose.msra.mxu0 0.0
  %1397 = vmatpush.xpose.msra.mxu0 0.0
  %1398 = vmatpush.xpose.msra.mxu0 0.0
  %1399 = vmatpush.xpose.msra.mxu0 0.0
  %1400 = vmatpush.xpose.msra.mxu0 %v1383
  %1401 = vmatmul.f32.gmra.mxu0 %v1381
  %v1402 = vpop.f32.mrf.mxu0
  %v1403 = vadd.f32 0.0, %v1402
  %1404 = vdwg.mxu0
  %1405 = vrot.lane.b32.xlu0 %v162, 80
  %v1406 = vpop.permute.xlu0 %1405
  %1407 = vrot.lane.b32.xlu0 %v162, 112
  %v1408 = vpop.permute.xlu0 %1407
  %v1409 = vsel %vm185, %v1406, 0
  %v1411 = vsel %vm185, %v1408, 0
  %1413 = vmatpush.xpose.msra.mxu0 0.0
  %1414 = vmatpush.xpose.msra.mxu0 0.0
  %1415 = vmatpush.xpose.msra.mxu0 0.0
  %1416 = vmatpush.xpose.msra.mxu0 0.0
  %1417 = vmatpush.xpose.msra.mxu0 0.0
  %1418 = vmatpush.xpose.msra.mxu0 0.0
  %1419 = vmatpush.xpose.msra.mxu0 0.0
  %1420 = vmatpush.xpose.msra.mxu0 0.0
  %1421 = vmatpush.xpose.msra.mxu0 0.0
  %1422 = vmatpush.xpose.msra.mxu0 0.0
  %1423 = vmatpush.xpose.msra.mxu0 0.0
  %1424 = vmatpush.xpose.msra.mxu0 0.0
  %1425 = vmatpush.xpose.msra.mxu0 0.0
  %1426 = vmatpush.xpose.msra.mxu0 0.0
  %1427 = vmatpush.xpose.msra.mxu0 0.0
  %1428 = vmatpush.xpose.msra.mxu0 %v1411
  %1429 = vmatmul.f32.gmra.mxu0 %v1409
  %v1430 = vpop.f32.mrf.mxu0
  %v1431 = vadd.f32 0.0, %v1430
  %1432 = vdwg.mxu0
  %1433 = vrot.lane.b32.xlu0 %v165, 80
  %v1434 = vpop.permute.xlu0 %1433
  %1435 = vrot.lane.b32.xlu0 %v165, 112
  %v1436 = vpop.permute.xlu0 %1435
  %v1437 = vsel %vm185, %v1434, 0
  %v1439 = vsel %vm185, %v1436, 0
  %1441 = vmatpush.xpose.msra.mxu0 0.0
  %1442 = vmatpush.xpose.msra.mxu0 0.0
  %1443 = vmatpush.xpose.msra.mxu0 0.0
  %1444 = vmatpush.xpose.msra.mxu0 0.0
  %1445 = vmatpush.xpose.msra.mxu0 0.0
  %1446 = vmatpush.xpose.msra.mxu0 0.0
  %1447 = vmatpush.xpose.msra.mxu0 0.0
  %1448 = vmatpush.xpose.msra.mxu0 0.0
  %1449 = vmatpush.xpose.msra.mxu0 0.0
  %1450 = vmatpush.xpose.msra.mxu0 0.0
  %1451 = vmatpush.xpose.msra.mxu0 0.0
  %1452 = vmatpush.xpose.msra.mxu0 0.0
  %1453 = vmatpush.xpose.msra.mxu0 0.0
  %1454 = vmatpush.xpose.msra.mxu0 0.0
  %1455 = vmatpush.xpose.msra.mxu0 0.0
  %1456 = vmatpush.xpose.msra.mxu0 %v1439
  %1457 = vmatmul.f32.gmra.mxu0 %v1437
  %v1458 = vpop.f32.mrf.mxu0
  %v1459 = vadd.f32 0.0, %v1458
  %1460 = vdwg.mxu0
  %1461 = vrot.lane.b32.xlu0 %v168, 80
  %v1462 = vpop.permute.xlu0 %1461
  %1463 = vrot.lane.b32.xlu0 %v168, 112
  %v1464 = vpop.permute.xlu0 %1463
  %v1465 = vsel %vm185, %v1462, 0
  %v1467 = vsel %vm185, %v1464, 0
  %1469 = vmatpush.xpose.msra.mxu0 0.0
  %1470 = vmatpush.xpose.msra.mxu0 0.0
  %1471 = vmatpush.xpose.msra.mxu0 0.0
  %1472 = vmatpush.xpose.msra.mxu0 0.0
  %1473 = vmatpush.xpose.msra.mxu0 0.0
  %1474 = vmatpush.xpose.msra.mxu0 0.0
  %1475 = vmatpush.xpose.msra.mxu0 0.0
  %1476 = vmatpush.xpose.msra.mxu0 0.0
  %1477 = vmatpush.xpose.msra.mxu0 0.0
  %1478 = vmatpush.xpose.msra.mxu0 0.0
  %1479 = vmatpush.xpose.msra.mxu0 0.0
  %1480 = vmatpush.xpose.msra.mxu0 0.0
  %1481 = vmatpush.xpose.msra.mxu0 0.0
  %1482 = vmatpush.xpose.msra.mxu0 0.0
  %1483 = vmatpush.xpose.msra.mxu0 0.0
  %1484 = vmatpush.xpose.msra.mxu0 %v1467
  %1485 = vmatmul.f32.gmra.mxu0 %v1465
  %v1486 = vpop.f32.mrf.mxu0
  %v1487 = vadd.f32 0.0, %v1486
  %1488 = vdwg.mxu0
  %1489 = vrot.lane.b32.xlu0 %v171, 80
  %v1490 = vpop.permute.xlu0 %1489
  %1491 = vrot.lane.b32.xlu0 %v171, 112
  %v1492 = vpop.permute.xlu0 %1491
  %v1493 = vsel %vm185, %v1490, 0
  %v1495 = vsel %vm185, %v1492, 0
  %1497 = vmatpush.xpose.msra.mxu0 0.0
  %1498 = vmatpush.xpose.msra.mxu0 0.0
  %1499 = vmatpush.xpose.msra.mxu0 0.0
  %1500 = vmatpush.xpose.msra.mxu0 0.0
  %1501 = vmatpush.xpose.msra.mxu0 0.0
  %1502 = vmatpush.xpose.msra.mxu0 0.0
  %1503 = vmatpush.xpose.msra.mxu0 0.0
  %1504 = vmatpush.xpose.msra.mxu0 0.0
  %1505 = vmatpush.xpose.msra.mxu0 0.0
  %1506 = vmatpush.xpose.msra.mxu0 0.0
  %1507 = vmatpush.xpose.msra.mxu0 0.0
  %1508 = vmatpush.xpose.msra.mxu0 0.0
  %1509 = vmatpush.xpose.msra.mxu0 0.0
  %1510 = vmatpush.xpose.msra.mxu0 0.0
  %1511 = vmatpush.xpose.msra.mxu0 0.0
  %1512 = vmatpush.xpose.msra.mxu0 %v1495
  %1513 = vmatmul.f32.gmra.mxu0 %v1493
  %v1514 = vpop.f32.mrf.mxu0
  %v1515 = vadd.f32 0.0, %v1514
  %1516 = vdwg.mxu0
  %1517 = vrot.lane.b32.xlu0 %v174, 80
  %v1518 = vpop.permute.xlu0 %1517
  %1519 = vrot.lane.b32.xlu0 %v174, 112
  %v1520 = vpop.permute.xlu0 %1519
  %v1521 = vsel %vm185, %v1518, 0
  %v1523 = vsel %vm185, %v1520, 0
  %1525 = vmatpush.xpose.msra.mxu0 0.0
  %1526 = vmatpush.xpose.msra.mxu0 0.0
  %1527 = vmatpush.xpose.msra.mxu0 0.0
  %1528 = vmatpush.xpose.msra.mxu0 0.0
  %1529 = vmatpush.xpose.msra.mxu0 0.0
  %1530 = vmatpush.xpose.msra.mxu0 0.0
  %1531 = vmatpush.xpose.msra.mxu0 0.0
  %1532 = vmatpush.xpose.msra.mxu0 0.0
  %1533 = vmatpush.xpose.msra.mxu0 0.0
  %1534 = vmatpush.xpose.msra.mxu0 0.0
  %1535 = vmatpush.xpose.msra.mxu0 0.0
  %1536 = vmatpush.xpose.msra.mxu0 0.0
  %1537 = vmatpush.xpose.msra.mxu0 0.0
  %1538 = vmatpush.xpose.msra.mxu0 0.0
  %1539 = vmatpush.xpose.msra.mxu0 0.0
  %1540 = vmatpush.xpose.msra.mxu0 %v1523
  %1541 = vmatmul.f32.gmra.mxu0 %v1521
  %v1542 = vpop.f32.mrf.mxu0
  %v1543 = vadd.f32 0.0, %v1542
  %1544 = vdwg.mxu0
  %1545 = vrot.lane.b32.xlu0 %v177, 80
  %v1546 = vpop.permute.xlu0 %1545
  %1547 = vrot.lane.b32.xlu0 %v177, 112
  %v1548 = vpop.permute.xlu0 %1547
  %v1549 = vsel %vm185, %v1546, 0
  %v1551 = vsel %vm185, %v1548, 0
  %1553 = vmatpush.xpose.msra.mxu0 0.0
  %1554 = vmatpush.xpose.msra.mxu0 0.0
  %1555 = vmatpush.xpose.msra.mxu0 0.0
  %1556 = vmatpush.xpose.msra.mxu0 0.0
  %1557 = vmatpush.xpose.msra.mxu0 0.0
  %1558 = vmatpush.xpose.msra.mxu0 0.0
  %1559 = vmatpush.xpose.msra.mxu0 0.0
  %1560 = vmatpush.xpose.msra.mxu0 0.0
  %1561 = vmatpush.xpose.msra.mxu0 0.0
  %1562 = vmatpush.xpose.msra.mxu0 0.0
  %1563 = vmatpush.xpose.msra.mxu0 0.0
  %1564 = vmatpush.xpose.msra.mxu0 0.0
  %1565 = vmatpush.xpose.msra.mxu0 0.0
  %1566 = vmatpush.xpose.msra.mxu0 0.0
  %1567 = vmatpush.xpose.msra.mxu0 0.0
  %1568 = vmatpush.xpose.msra.mxu0 %v1551
  %1569 = vmatmul.f32.gmra.mxu0 %v1549
  %v1570 = vpop.f32.mrf.mxu0
  %v1571 = vadd.f32 0.0, %v1570
  %1572 = vdwg.mxu0
  %1573 = vrot.lane.b32.xlu0 %v180, 80
  %v1574 = vpop.permute.xlu0 %1573
  %1575 = vrot.lane.b32.xlu0 %v180, 112
  %v1576 = vpop.permute.xlu0 %1575
  %v1577 = vsel %vm185, %v1574, 0
  %v1579 = vsel %vm185, %v1576, 0
  %1581 = vmatpush.xpose.msra.mxu0 0.0
  %1582 = vmatpush.xpose.msra.mxu0 0.0
  %1583 = vmatpush.xpose.msra.mxu0 0.0
  %1584 = vmatpush.xpose.msra.mxu0 0.0
  %1585 = vmatpush.xpose.msra.mxu0 0.0
  %1586 = vmatpush.xpose.msra.mxu0 0.0
  %1587 = vmatpush.xpose.msra.mxu0 0.0
  %1588 = vmatpush.xpose.msra.mxu0 0.0
  %1589 = vmatpush.xpose.msra.mxu0 0.0
  %1590 = vmatpush.xpose.msra.mxu0 0.0
  %1591 = vmatpush.xpose.msra.mxu0 0.0
  %1592 = vmatpush.xpose.msra.mxu0 0.0
  %1593 = vmatpush.xpose.msra.mxu0 0.0
  %1594 = vmatpush.xpose.msra.mxu0 0.0
  %1595 = vmatpush.xpose.msra.mxu0 0.0
  %1596 = vmatpush.xpose.msra.mxu0 %v1579
  %1597 = vmatmul.f32.gmra.mxu0 %v1577
  %v1598 = vpop.f32.mrf.mxu0
  %v1599 = vadd.f32 0.0, %v1598
  %1600 = vdwg.mxu0
  %v1601 = vmul.f32 %v1403, 0.35355338
  %v1602 = vmul.f32 %v1431, 0.35355338
  %v1603 = vmul.f32 %v1459, 0.35355338
  %v1604 = vmul.f32 %v1487, 0.35355338
  %v1605 = vmul.f32 %v1515, 0.35355338
  %v1606 = vmul.f32 %v1543, 0.35355338
  %v1607 = vmul.f32 %v1571, 0.35355338
  %v1608 = vmul.f32 %v1599, 0.35355338
  %v1609 = vadd.f32 %v1601, %v57
  %v1610 = vadd.f32 %v1602, %v61
  %v1611 = vadd.f32 %v1603, %v65
  %v1612 = vadd.f32 %v1604, %v69
  %v1613 = vadd.f32 %v1605, %v73
  %v1614 = vadd.f32 %v1606, %v77
  %v1615 = vadd.f32 %v1607, %v81
  %v1616 = vadd.f32 %v1608, %v85
  %v1617 = vsel %vm185, %v1609, -inf
  %1618 = vmax.xlane.f32.xlu0 %v1617
  %v1619 = vpop.xlane.xlu0 %1618
  %v1620 = vsel %vm185, %v1610, -inf
  %1621 = vmax.xlane.f32.xlu0 %v1620
  %v1622 = vpop.xlane.xlu0 %1621
  %v1623 = vsel %vm185, %v1611, -inf
  %1624 = vmax.xlane.f32.xlu0 %v1623
  %v1625 = vpop.xlane.xlu0 %1624
  %v1626 = vsel %vm185, %v1612, -inf
  %1627 = vmax.xlane.f32.xlu0 %v1626
  %v1628 = vpop.xlane.xlu0 %1627
  %v1629 = vsel %vm185, %v1613, -inf
  %1630 = vmax.xlane.f32.xlu0 %v1629
  %v1631 = vpop.xlane.xlu0 %1630
  %v1632 = vsel %vm185, %v1614, -inf
  %1633 = vmax.xlane.f32.xlu0 %v1632
  %v1634 = vpop.xlane.xlu0 %1633
  %v1635 = vsel %vm185, %v1615, -inf
  %1636 = vmax.xlane.f32.xlu0 %v1635
  %v1637 = vpop.xlane.xlu0 %1636
  %v1638 = vsel %vm185, %v1616, -inf
  %1639 = vmax.xlane.f32.xlu0 %v1638
  %v1640 = vpop.xlane.xlu0 %1639
  %v1641 = vsub.f32 %v1609, %v1619
  %v1642 = vsub.f32 %v1610, %v1622
  %v1643 = vsub.f32 %v1611, %v1625
  %v1644 = vsub.f32 %v1612, %v1628
  %v1645 = vsub.f32 %v1613, %v1631
  %v1646 = vsub.f32 %v1614, %v1634
  %v1647 = vsub.f32 %v1615, %v1637
  %v1648 = vsub.f32 %v1616, %v1640
  %v1649 = vmul.f32 %v1641, 1.442695
  %v1650 = vpow.pop %v1649
  %v1651 = vmul.f32 %v1642, 1.442695
  %v1652 = vpow.pop %v1651
  %v1653 = vmul.f32 %v1643, 1.442695
  %v1654 = vpow.pop %v1653
  %v1655 = vmul.f32 %v1644, 1.442695
  %v1656 = vpow.pop %v1655
  %v1657 = vmul.f32 %v1645, 1.442695
  %v1658 = vpow.pop %v1657
  %v1659 = vmul.f32 %v1646, 1.442695
  %v1660 = vpow.pop %v1659
  %v1661 = vmul.f32 %v1647, 1.442695
  %v1662 = vpow.pop %v1661
  %v1663 = vmul.f32 %v1648, 1.442695
  %v1664 = vpow.pop %v1663
  %v1665 = vsel %vm185, %v1650, 0.0
  %1666 = vadd.xlane.f32.xlu0 %v1665
  %v1667 = vpop.xlane.xlu0 %1666
  %v1668 = vsel %vm185, %v1652, 0.0
  %1669 = vadd.xlane.f32.xlu0 %v1668
  %v1670 = vpop.xlane.xlu0 %1669
  %v1671 = vsel %vm185, %v1654, 0.0
  %1672 = vadd.xlane.f32.xlu0 %v1671
  %v1673 = vpop.xlane.xlu0 %1672
  %v1674 = vsel %vm185, %v1656, 0.0
  %1675 = vadd.xlane.f32.xlu0 %v1674
  %v1676 = vpop.xlane.xlu0 %1675
  %v1677 = vsel %vm185, %v1658, 0.0
  %1678 = vadd.xlane.f32.xlu0 %v1677
  %v1679 = vpop.xlane.xlu0 %1678
  %v1680 = vsel %vm185, %v1660, 0.0
  %1681 = vadd.xlane.f32.xlu0 %v1680
  %v1682 = vpop.xlane.xlu0 %1681
  %v1683 = vsel %vm185, %v1662, 0.0
  %1684 = vadd.xlane.f32.xlu0 %v1683
  %v1685 = vpop.xlane.xlu0 %1684
  %v1686 = vsel %vm185, %v1664, 0.0
  %1687 = vadd.xlane.f32.xlu0 %v1686
  %v1688 = vpop.xlane.xlu0 %1687
  %v1689 = vrcp.pop %v1667
  %v1690 = vrcp.pop %v1670
  %v1691 = vrcp.pop %v1673
  %v1692 = vrcp.pop %v1676
  %v1693 = vrcp.pop %v1679
  %v1694 = vrcp.pop %v1682
  %v1695 = vrcp.pop %v1685
  %v1696 = vrcp.pop %v1688
  %v1697 = vmul.f32 %v1650, %v1689
  %v1698 = vmul.f32 %v1652, %v1690
  %v1699 = vmul.f32 %v1654, %v1691
  %v1700 = vmul.f32 %v1656, %v1692
  %v1701 = vmul.f32 %v1658, %v1693
  %v1702 = vmul.f32 %v1660, %v1694
  %v1703 = vmul.f32 %v1662, %v1695
  %v1704 = vmul.f32 %v1664, %v1696
  %1705 = vrot.lane.b32.xlu0 %v159, 48
  %v1706 = vpop.permute.xlu0 %1705
  %v1709 = vsel %vm185, %v1697, 0
  %1711 = vmatpush.msra.mxu0 0.0
  %1712 = vmatpush.msra.mxu0 0.0
  %1713 = vmatpush.msra.mxu0 0.0
  %1714 = vmatpush.msra.mxu0 0.0
  %1715 = vmatpush.msra.mxu0 0.0
  %1716 = vmatpush.msra.mxu0 0.0
  %1717 = vmatpush.msra.mxu0 0.0
  %1718 = vmatpush.msra.mxu0 0.0
  %1719 = vmatpush.msra.mxu0 0.0
  %1720 = vmatpush.msra.mxu0 0.0
  %1721 = vmatpush.msra.mxu0 0.0
  %1722 = vmatpush.msra.mxu0 0.0
  %1723 = vmatpush.msra.mxu0 0.0
  %1724 = vmatpush.msra.mxu0 0.0
  %1725 = vmatpush.msra.mxu0 0.0
  %1726 = vmatpush.msra.mxu0 %v1706
  %1727 = vmatmul.f32.gmra.mxu0 %v1709
  %v1728 = vpop.f32.mrf.mxu0
  %v1729 = vadd.f32 0.0, %v1728
  %1730 = vdwg.mxu0
  %1731 = vrot.lane.b32.xlu0 %v162, 48
  %v1732 = vpop.permute.xlu0 %1731
  %v1735 = vsel %vm185, %v1698, 0
  %1737 = vmatpush.msra.mxu0 0.0
  %1738 = vmatpush.msra.mxu0 0.0
  %1739 = vmatpush.msra.mxu0 0.0
  %1740 = vmatpush.msra.mxu0 0.0
  %1741 = vmatpush.msra.mxu0 0.0
  %1742 = vmatpush.msra.mxu0 0.0
  %1743 = vmatpush.msra.mxu0 0.0
  %1744 = vmatpush.msra.mxu0 0.0
  %1745 = vmatpush.msra.mxu0 0.0
  %1746 = vmatpush.msra.mxu0 0.0
  %1747 = vmatpush.msra.mxu0 0.0
  %1748 = vmatpush.msra.mxu0 0.0
  %1749 = vmatpush.msra.mxu0 0.0
  %1750 = vmatpush.msra.mxu0 0.0
  %1751 = vmatpush.msra.mxu0 0.0
  %1752 = vmatpush.msra.mxu0 %v1732
  %1753 = vmatmul.f32.gmra.mxu0 %v1735
  %v1754 = vpop.f32.mrf.mxu0
  %v1755 = vadd.f32 0.0, %v1754
  %1756 = vdwg.mxu0
  %1757 = vrot.lane.b32.xlu0 %v165, 48
  %v1758 = vpop.permute.xlu0 %1757
  %v1761 = vsel %vm185, %v1699, 0
  %1763 = vmatpush.msra.mxu0 0.0
  %1764 = vmatpush.msra.mxu0 0.0
  %1765 = vmatpush.msra.mxu0 0.0
  %1766 = vmatpush.msra.mxu0 0.0
  %1767 = vmatpush.msra.mxu0 0.0
  %1768 = vmatpush.msra.mxu0 0.0
  %1769 = vmatpush.msra.mxu0 0.0
  %1770 = vmatpush.msra.mxu0 0.0
  %1771 = vmatpush.msra.mxu0 0.0
  %1772 = vmatpush.msra.mxu0 0.0
  %1773 = vmatpush.msra.mxu0 0.0
  %1774 = vmatpush.msra.mxu0 0.0
  %1775 = vmatpush.msra.mxu0 0.0
  %1776 = vmatpush.msra.mxu0 0.0
  %1777 = vmatpush.msra.mxu0 0.0
  %1778 = vmatpush.msra.mxu0 %v1758
  %1779 = vmatmul.f32.gmra.mxu0 %v1761
  %v1780 = vpop.f32.mrf.mxu0
  %v1781 = vadd.f32 0.0, %v1780
  %1782 = vdwg.mxu0
  %1783 = vrot.lane.b32.xlu0 %v168, 48
  %v1784 = vpop.permute.xlu0 %1783
  %v1787 = vsel %vm185, %v1700, 0
  %1789 = vmatpush.msra.mxu0 0.0
  %1790 = vmatpush.msra.mxu0 0.0
  %1791 = vmatpush.msra.mxu0 0.0
  %1792 = vmatpush.msra.mxu0 0.0
  %1793 = vmatpush.msra.mxu0 0.0
  %1794 = vmatpush.msra.mxu0 0.0
  %1795 = vmatpush.msra.mxu0 0.0
  %1796 = vmatpush.msra.mxu0 0.0
  %1797 = vmatpush.msra.mxu0 0.0
  %1798 = vmatpush.msra.mxu0 0.0
  %1799 = vmatpush.msra.mxu0 0.0
  %1800 = vmatpush.msra.mxu0 0.0
  %1801 = vmatpush.msra.mxu0 0.0
  %1802 = vmatpush.msra.mxu0 0.0
  %1803 = vmatpush.msra.mxu0 0.0
  %1804 = vmatpush.msra.mxu0 %v1784
  %1805 = vmatmul.f32.gmra.mxu0 %v1787
  %v1806 = vpop.f32.mrf.mxu0
  %v1807 = vadd.f32 0.0, %v1806
  %1808 = vdwg.mxu0
  %1809 = vrot.lane.b32.xlu0 %v171, 48
  %v1810 = vpop.permute.xlu0 %1809
  %v1813 = vsel %vm185, %v1701, 0
  %1815 = vmatpush.msra.mxu0 0.0
  %1816 = vmatpush.msra.mxu0 0.0
  %1817 = vmatpush.msra.mxu0 0.0
  %1818 = vmatpush.msra.mxu0 0.0
  %1819 = vmatpush.msra.mxu0 0.0
  %1820 = vmatpush.msra.mxu0 0.0
  %1821 = vmatpush.msra.mxu0 0.0
  %1822 = vmatpush.msra.mxu0 0.0
  %1823 = vmatpush.msra.mxu0 0.0
  %1824 = vmatpush.msra.mxu0 0.0
  %1825 = vmatpush.msra.mxu0 0.0
  %1826 = vmatpush.msra.mxu0 0.0
  %1827 = vmatpush.msra.mxu0 0.0
  %1828 = vmatpush.msra.mxu0 0.0
  %1829 = vmatpush.msra.mxu0 0.0
  %1830 = vmatpush.msra.mxu0 %v1810
  %1831 = vmatmul.f32.gmra.mxu0 %v1813
  %v1832 = vpop.f32.mrf.mxu0
  %v1833 = vadd.f32 0.0, %v1832
  %1834 = vdwg.mxu0
  %1835 = vrot.lane.b32.xlu0 %v174, 48
  %v1836 = vpop.permute.xlu0 %1835
  %v1839 = vsel %vm185, %v1702, 0
  %1841 = vmatpush.msra.mxu0 0.0
  %1842 = vmatpush.msra.mxu0 0.0
  %1843 = vmatpush.msra.mxu0 0.0
  %1844 = vmatpush.msra.mxu0 0.0
  %1845 = vmatpush.msra.mxu0 0.0
  %1846 = vmatpush.msra.mxu0 0.0
  %1847 = vmatpush.msra.mxu0 0.0
  %1848 = vmatpush.msra.mxu0 0.0
  %1849 = vmatpush.msra.mxu0 0.0
  %1850 = vmatpush.msra.mxu0 0.0
  %1851 = vmatpush.msra.mxu0 0.0
  %1852 = vmatpush.msra.mxu0 0.0
  %1853 = vmatpush.msra.mxu0 0.0
  %1854 = vmatpush.msra.mxu0 0.0
  %1855 = vmatpush.msra.mxu0 0.0
  %1856 = vmatpush.msra.mxu0 %v1836
  %1857 = vmatmul.f32.gmra.mxu0 %v1839
  %v1858 = vpop.f32.mrf.mxu0
  %v1859 = vadd.f32 0.0, %v1858
  %1860 = vdwg.mxu0
  %1861 = vrot.lane.b32.xlu0 %v177, 48
  %v1862 = vpop.permute.xlu0 %1861
  %v1865 = vsel %vm185, %v1703, 0
  %1867 = vmatpush.msra.mxu0 0.0
  %1868 = vmatpush.msra.mxu0 0.0
  %1869 = vmatpush.msra.mxu0 0.0
  %1870 = vmatpush.msra.mxu0 0.0
  %1871 = vmatpush.msra.mxu0 0.0
  %1872 = vmatpush.msra.mxu0 0.0
  %1873 = vmatpush.msra.mxu0 0.0
  %1874 = vmatpush.msra.mxu0 0.0
  %1875 = vmatpush.msra.mxu0 0.0
  %1876 = vmatpush.msra.mxu0 0.0
  %1877 = vmatpush.msra.mxu0 0.0
  %1878 = vmatpush.msra.mxu0 0.0
  %1879 = vmatpush.msra.mxu0 0.0
  %1880 = vmatpush.msra.mxu0 0.0
  %1881 = vmatpush.msra.mxu0 0.0
  %1882 = vmatpush.msra.mxu0 %v1862
  %1883 = vmatmul.f32.gmra.mxu0 %v1865
  %v1884 = vpop.f32.mrf.mxu0
  %v1885 = vadd.f32 0.0, %v1884
  %1886 = vdwg.mxu0
  %1887 = vrot.lane.b32.xlu0 %v180, 48
  %v1888 = vpop.permute.xlu0 %1887
  %v1891 = vsel %vm185, %v1704, 0
  %1893 = vmatpush.msra.mxu0 0.0
  %1894 = vmatpush.msra.mxu0 0.0
  %1895 = vmatpush.msra.mxu0 0.0
  %1896 = vmatpush.msra.mxu0 0.0
  %1897 = vmatpush.msra.mxu0 0.0
  %1898 = vmatpush.msra.mxu0 0.0
  %1899 = vmatpush.msra.mxu0 0.0
  %1900 = vmatpush.msra.mxu0 0.0
  %1901 = vmatpush.msra.mxu0 0.0
  %1902 = vmatpush.msra.mxu0 0.0
  %1903 = vmatpush.msra.mxu0 0.0
  %1904 = vmatpush.msra.mxu0 0.0
  %1905 = vmatpush.msra.mxu0 0.0
  %1906 = vmatpush.msra.mxu0 0.0
  %1907 = vmatpush.msra.mxu0 0.0
  %1908 = vmatpush.msra.mxu0 %v1888
  %1909 = vmatmul.f32.gmra.mxu0 %v1891
  %v1910 = vpop.f32.mrf.mxu0
  %v1911 = vadd.f32 0.0, %v1910
  %1912 = vdwg.mxu0
  %v1914 = vsel %vm185, %v1729, 0
  %v1917 = vsel %vm185, %v1755, 0
  %v1920 = vsel %vm185, %v1781, 0
  %v1923 = vsel %vm185, %v1807, 0
  %v1926 = vsel %vm185, %v1833, 0
  %v1929 = vsel %vm185, %v1859, 0
  %v1932 = vsel %vm185, %v1885, 0
  %v1935 = vsel %vm185, %v1911, 0
  %1937 = vmatpush.msra.mxu0 0.0
  %1938 = vmatpush.msra.mxu0 0.0
  %1939 = vmatpush.msra.mxu0 0.0
  %1940 = vmatpush.msra.mxu0 0.0
  %1941 = vmatpush.msra.mxu0 0.0
  %1942 = vmatpush.msra.mxu0 0.0
  %1943 = vmatpush.msra.mxu0 0.0
  %1944 = vmatpush.msra.mxu0 0.0
  %1945 = vmatpush.msra.mxu0 0.0
  %1946 = vmatpush.msra.mxu0 0.0
  %1947 = vmatpush.msra.mxu0 0.0
  %1948 = vmatpush.msra.mxu0 0.0
  %1949 = vmatpush.msra.mxu0 0.0
  %1950 = vmatpush.msra.mxu0 0.0
  %1951 = vmatpush.msra.mxu0 0.0
  %1952 = vmatpush.msra.mxu0 %v94
  %1953 = vmatmul.f32.gmra.mxu0 %v1914
  %v1954 = vpop.f32.mrf.mxu0
  %v1955 = vadd.f32 0.0, %v1954
  %1956 = vmatmul.f32.gmra.mxu0 %v1917
  %v1957 = vpop.f32.mrf.mxu0
  %v1958 = vadd.f32 0.0, %v1957
  %1959 = vmatmul.f32.gmra.mxu0 %v1920
  %v1960 = vpop.f32.mrf.mxu0
  %v1961 = vadd.f32 0.0, %v1960
  %1962 = vmatmul.f32.gmra.mxu0 %v1923
  %v1963 = vpop.f32.mrf.mxu0
  %v1964 = vadd.f32 0.0, %v1963
  %1965 = vmatmul.f32.gmra.mxu0 %v1926
  %v1966 = vpop.f32.mrf.mxu0
  %v1967 = vadd.f32 0.0, %v1966
  %1968 = vmatmul.f32.gmra.mxu0 %v1929
  %v1969 = vpop.f32.mrf.mxu0
  %v1970 = vadd.f32 0.0, %v1969
  %1971 = vmatmul.f32.gmra.mxu0 %v1932
  %v1972 = vpop.f32.mrf.mxu0
  %v1973 = vadd.f32 0.0, %v1972
  %1974 = vmatmul.f32.gmra.mxu0 %v1935
  %v1975 = vpop.f32.mrf.mxu0
  %v1976 = vadd.f32 0.0, %v1975
  %1977 = vdwg.mxu0
  %v1978 = vadd.f32 %v1354, %v1955
  %v1979 = vadd.f32 %v1357, %v1958
  %v1980 = vadd.f32 %v1360, %v1961
  %v1981 = vadd.f32 %v1363, %v1964
  %v1982 = vadd.f32 %v1366, %v1967
  %v1983 = vadd.f32 %v1369, %v1970
  %v1984 = vadd.f32 %v1372, %v1973
  %v1985 = vadd.f32 %v1375, %v1976
  %1986 = vrot.lane.b32.xlu0 %v159, 72
  %v1987 = vpop.permute.xlu0 %1986
  %1988 = vrot.lane.b32.xlu0 %v159, 104
  %v1989 = vpop.permute.xlu0 %1988
  %v1990 = vsel %vm185, %v1987, 0
  %v1992 = vsel %vm185, %v1989, 0
  %1994 = vmatpush.xpose.msra.mxu0 0.0
  %1995 = vmatpush.xpose.msra.mxu0 0.0
  %1996 = vmatpush.xpose.msra.mxu0 0.0
  %1997 = vmatpush.xpose.msra.mxu0 0.0
  %1998 = vmatpush.xpose.msra.mxu0 0.0
  %1999 = vmatpush.xpose.msra.mxu0 0.0
  %2000 = vmatpush.xpose.msra.mxu0 0.0
  %2001 = vmatpush.xpose.msra.mxu0 0.0
  %2002 = vmatpush.xpose.msra.mxu0 0.0
  %2003 = vmatpush.xpose.msra.mxu0 0.0
  %2004 = vmatpush.xpose.msra.mxu0 0.0
  %2005 = vmatpush.xpose.msra.mxu0 0.0
  %2006 = vmatpush.xpose.msra.mxu0 0.0
  %2007 = vmatpush.xpose.msra.mxu0 0.0
  %2008 = vmatpush.xpose.msra.mxu0 0.0
  %2009 = vmatpush.xpose.msra.mxu0 %v1992
  %2010 = vmatmul.f32.gmra.mxu0 %v1990
  %v2011 = vpop.f32.mrf.mxu0
  %v2012 = vadd.f32 0.0, %v2011
  %2013 = vdwg.mxu0
  %2014 = vrot.lane.b32.xlu0 %v162, 72
  %v2015 = vpop.permute.xlu0 %2014
  %2016 = vrot.lane.b32.xlu0 %v162, 104
  %v2017 = vpop.permute.xlu0 %2016
  %v2018 = vsel %vm185, %v2015, 0
  %v2020 = vsel %vm185, %v2017, 0
  %2022 = vmatpush.xpose.msra.mxu0 0.0
  %2023 = vmatpush.xpose.msra.mxu0 0.0
  %2024 = vmatpush.xpose.msra.mxu0 0.0
  %2025 = vmatpush.xpose.msra.mxu0 0.0
  %2026 = vmatpush.xpose.msra.mxu0 0.0
  %2027 = vmatpush.xpose.msra.mxu0 0.0
  %2028 = vmatpush.xpose.msra.mxu0 0.0
  %2029 = vmatpush.xpose.msra.mxu0 0.0
  %2030 = vmatpush.xpose.msra.mxu0 0.0
  %2031 = vmatpush.xpose.msra.mxu0 0.0
  %2032 = vmatpush.xpose.msra.mxu0 0.0
  %2033 = vmatpush.xpose.msra.mxu0 0.0
  %2034 = vmatpush.xpose.msra.mxu0 0.0
  %2035 = vmatpush.xpose.msra.mxu0 0.0
  %2036 = vmatpush.xpose.msra.mxu0 0.0
  %2037 = vmatpush.xpose.msra.mxu0 %v2020
  %2038 = vmatmul.f32.gmra.mxu0 %v2018
  %v2039 = vpop.f32.mrf.mxu0
  %v2040 = vadd.f32 0.0, %v2039
  %2041 = vdwg.mxu0
  %2042 = vrot.lane.b32.xlu0 %v165, 72
  %v2043 = vpop.permute.xlu0 %2042
  %2044 = vrot.lane.b32.xlu0 %v165, 104
  %v2045 = vpop.permute.xlu0 %2044
  %v2046 = vsel %vm185, %v2043, 0
  %v2048 = vsel %vm185, %v2045, 0
  %2050 = vmatpush.xpose.msra.mxu0 0.0
  %2051 = vmatpush.xpose.msra.mxu0 0.0
  %2052 = vmatpush.xpose.msra.mxu0 0.0
  %2053 = vmatpush.xpose.msra.mxu0 0.0
  %2054 = vmatpush.xpose.msra.mxu0 0.0
  %2055 = vmatpush.xpose.msra.mxu0 0.0
  %2056 = vmatpush.xpose.msra.mxu0 0.0
  %2057 = vmatpush.xpose.msra.mxu0 0.0
  %2058 = vmatpush.xpose.msra.mxu0 0.0
  %2059 = vmatpush.xpose.msra.mxu0 0.0
  %2060 = vmatpush.xpose.msra.mxu0 0.0
  %2061 = vmatpush.xpose.msra.mxu0 0.0
  %2062 = vmatpush.xpose.msra.mxu0 0.0
  %2063 = vmatpush.xpose.msra.mxu0 0.0
  %2064 = vmatpush.xpose.msra.mxu0 0.0
  %2065 = vmatpush.xpose.msra.mxu0 %v2048
  %2066 = vmatmul.f32.gmra.mxu0 %v2046
  %v2067 = vpop.f32.mrf.mxu0
  %v2068 = vadd.f32 0.0, %v2067
  %2069 = vdwg.mxu0
  %2070 = vrot.lane.b32.xlu0 %v168, 72
  %v2071 = vpop.permute.xlu0 %2070
  %2072 = vrot.lane.b32.xlu0 %v168, 104
  %v2073 = vpop.permute.xlu0 %2072
  %v2074 = vsel %vm185, %v2071, 0
  %v2076 = vsel %vm185, %v2073, 0
  %2078 = vmatpush.xpose.msra.mxu0 0.0
  %2079 = vmatpush.xpose.msra.mxu0 0.0
  %2080 = vmatpush.xpose.msra.mxu0 0.0
  %2081 = vmatpush.xpose.msra.mxu0 0.0
  %2082 = vmatpush.xpose.msra.mxu0 0.0
  %2083 = vmatpush.xpose.msra.mxu0 0.0
  %2084 = vmatpush.xpose.msra.mxu0 0.0
  %2085 = vmatpush.xpose.msra.mxu0 0.0
  %2086 = vmatpush.xpose.msra.mxu0 0.0
  %2087 = vmatpush.xpose.msra.mxu0 0.0
  %2088 = vmatpush.xpose.msra.mxu0 0.0
  %2089 = vmatpush.xpose.msra.mxu0 0.0
  %2090 = vmatpush.xpose.msra.mxu0 0.0
  %2091 = vmatpush.xpose.msra.mxu0 0.0
  %2092 = vmatpush.xpose.msra.mxu0 0.0
  %2093 = vmatpush.xpose.msra.mxu0 %v2076
  %2094 = vmatmul.f32.gmra.mxu0 %v2074
  %v2095 = vpop.f32.mrf.mxu0
  %v2096 = vadd.f32 0.0, %v2095
  %2097 = vdwg.mxu0
  %2098 = vrot.lane.b32.xlu0 %v171, 72
  %v2099 = vpop.permute.xlu0 %2098
  %2100 = vrot.lane.b32.xlu0 %v171, 104
  %v2101 = vpop.permute.xlu0 %2100
  %v2102 = vsel %vm185, %v2099, 0
  %v2104 = vsel %vm185, %v2101, 0
  %2106 = vmatpush.xpose.msra.mxu0 0.0
  %2107 = vmatpush.xpose.msra.mxu0 0.0
  %2108 = vmatpush.xpose.msra.mxu0 0.0
  %2109 = vmatpush.xpose.msra.mxu0 0.0
  %2110 = vmatpush.xpose.msra.mxu0 0.0
  %2111 = vmatpush.xpose.msra.mxu0 0.0
  %2112 = vmatpush.xpose.msra.mxu0 0.0
  %2113 = vmatpush.xpose.msra.mxu0 0.0
  %2114 = vmatpush.xpose.msra.mxu0 0.0
  %2115 = vmatpush.xpose.msra.mxu0 0.0
  %2116 = vmatpush.xpose.msra.mxu0 0.0
  %2117 = vmatpush.xpose.msra.mxu0 0.0
  %2118 = vmatpush.xpose.msra.mxu0 0.0
  %2119 = vmatpush.xpose.msra.mxu0 0.0
  %2120 = vmatpush.xpose.msra.mxu0 0.0
  %2121 = vmatpush.xpose.msra.mxu0 %v2104
  %2122 = vmatmul.f32.gmra.mxu0 %v2102
  %v2123 = vpop.f32.mrf.mxu0
  %v2124 = vadd.f32 0.0, %v2123
  %2125 = vdwg.mxu0
  %2126 = vrot.lane.b32.xlu0 %v174, 72
  %v2127 = vpop.permute.xlu0 %2126
  %2128 = vrot.lane.b32.xlu0 %v174, 104
  %v2129 = vpop.permute.xlu0 %2128
  %v2130 = vsel %vm185, %v2127, 0
  %v2132 = vsel %vm185, %v2129, 0
  %2134 = vmatpush.xpose.msra.mxu0 0.0
  %2135 = vmatpush.xpose.msra.mxu0 0.0
  %2136 = vmatpush.xpose.msra.mxu0 0.0
  %2137 = vmatpush.xpose.msra.mxu0 0.0
  %2138 = vmatpush.xpose.msra.mxu0 0.0
  %2139 = vmatpush.xpose.msra.mxu0 0.0
  %2140 = vmatpush.xpose.msra.mxu0 0.0
  %2141 = vmatpush.xpose.msra.mxu0 0.0
  %2142 = vmatpush.xpose.msra.mxu0 0.0
  %2143 = vmatpush.xpose.msra.mxu0 0.0
  %2144 = vmatpush.xpose.msra.mxu0 0.0
  %2145 = vmatpush.xpose.msra.mxu0 0.0
  %2146 = vmatpush.xpose.msra.mxu0 0.0
  %2147 = vmatpush.xpose.msra.mxu0 0.0
  %2148 = vmatpush.xpose.msra.mxu0 0.0
  %2149 = vmatpush.xpose.msra.mxu0 %v2132
  %2150 = vmatmul.f32.gmra.mxu0 %v2130
  %v2151 = vpop.f32.mrf.mxu0
  %v2152 = vadd.f32 0.0, %v2151
  %2153 = vdwg.mxu0
  %2154 = vrot.lane.b32.xlu0 %v177, 72
  %v2155 = vpop.permute.xlu0 %2154
  %2156 = vrot.lane.b32.xlu0 %v177, 104
  %v2157 = vpop.permute.xlu0 %2156
  %v2158 = vsel %vm185, %v2155, 0
  %v2160 = vsel %vm185, %v2157, 0
  %2162 = vmatpush.xpose.msra.mxu0 0.0
  %2163 = vmatpush.xpose.msra.mxu0 0.0
  %2164 = vmatpush.xpose.msra.mxu0 0.0
  %2165 = vmatpush.xpose.msra.mxu0 0.0
  %2166 = vmatpush.xpose.msra.mxu0 0.0
  %2167 = vmatpush.xpose.msra.mxu0 0.0
  %2168 = vmatpush.xpose.msra.mxu0 0.0
  %2169 = vmatpush.xpose.msra.mxu0 0.0
  %2170 = vmatpush.xpose.msra.mxu0 0.0
  %2171 = vmatpush.xpose.msra.mxu0 0.0
  %2172 = vmatpush.xpose.msra.mxu0 0.0
  %2173 = vmatpush.xpose.msra.mxu0 0.0
  %2174 = vmatpush.xpose.msra.mxu0 0.0
  %2175 = vmatpush.xpose.msra.mxu0 0.0
  %2176 = vmatpush.xpose.msra.mxu0 0.0
  %2177 = vmatpush.xpose.msra.mxu0 %v2160
  %2178 = vmatmul.f32.gmra.mxu0 %v2158
  %v2179 = vpop.f32.mrf.mxu0
  %v2180 = vadd.f32 0.0, %v2179
  %2181 = vdwg.mxu0
  %2182 = vrot.lane.b32.xlu0 %v180, 72
  %v2183 = vpop.permute.xlu0 %2182
  %2184 = vrot.lane.b32.xlu0 %v180, 104
  %v2185 = vpop.permute.xlu0 %2184
  %v2186 = vsel %vm185, %v2183, 0
  %v2188 = vsel %vm185, %v2185, 0
  %2190 = vmatpush.xpose.msra.mxu0 0.0
  %2191 = vmatpush.xpose.msra.mxu0 0.0
  %2192 = vmatpush.xpose.msra.mxu0 0.0
  %2193 = vmatpush.xpose.msra.mxu0 0.0
  %2194 = vmatpush.xpose.msra.mxu0 0.0
  %2195 = vmatpush.xpose.msra.mxu0 0.0
  %2196 = vmatpush.xpose.msra.mxu0 0.0
  %2197 = vmatpush.xpose.msra.mxu0 0.0
  %2198 = vmatpush.xpose.msra.mxu0 0.0
  %2199 = vmatpush.xpose.msra.mxu0 0.0
  %2200 = vmatpush.xpose.msra.mxu0 0.0
  %2201 = vmatpush.xpose.msra.mxu0 0.0
  %2202 = vmatpush.xpose.msra.mxu0 0.0
  %2203 = vmatpush.xpose.msra.mxu0 0.0
  %2204 = vmatpush.xpose.msra.mxu0 0.0
  %2205 = vmatpush.xpose.msra.mxu0 %v2188
  %2206 = vmatmul.f32.gmra.mxu0 %v2186
  %v2207 = vpop.f32.mrf.mxu0
  %v2208 = vadd.f32 0.0, %v2207
  %2209 = vdwg.mxu0
  %v2210 = vmul.f32 %v2012, 0.35355338
  %v2211 = vmul.f32 %v2040, 0.35355338
  %v2212 = vmul.f32 %v2068, 0.35355338
  %v2213 = vmul.f32 %v2096, 0.35355338
  %v2214 = vmul.f32 %v2124, 0.35355338
  %v2215 = vmul.f32 %v2152, 0.35355338
  %v2216 = vmul.f32 %v2180, 0.35355338
  %v2217 = vmul.f32 %v2208, 0.35355338
  %v2218 = vadd.f32 %v2210, %v58
  %v2219 = vadd.f32 %v2211, %v62
  %v2220 = vadd.f32 %v2212, %v66
  %v2221 = vadd.f32 %v2213, %v70
  %v2222 = vadd.f32 %v2214, %v74
  %v2223 = vadd.f32 %v2215, %v78
  %v2224 = vadd.f32 %v2216, %v82
  %v2225 = vadd.f32 %v2217, %v86
  %v2226 = vsel %vm185, %v2218, -inf
  %2227 = vmax.xlane.f32.xlu0 %v2226
  %v2228 = vpop.xlane.xlu0 %2227
  %v2229 = vsel %vm185, %v2219, -inf
  %2230 = vmax.xlane.f32.xlu0 %v2229
  %v2231 = vpop.xlane.xlu0 %2230
  %v2232 = vsel %vm185, %v2220, -inf
  %2233 = vmax.xlane.f32.xlu0 %v2232
  %v2234 = vpop.xlane.xlu0 %2233
  %v2235 = vsel %vm185, %v2221, -inf
  %2236 = vmax.xlane.f32.xlu0 %v2235
  %v2237 = vpop.xlane.xlu0 %2236
  %v2238 = vsel %vm185, %v2222, -inf
  %2239 = vmax.xlane.f32.xlu0 %v2238
  %v2240 = vpop.xlane.xlu0 %2239
  %v2241 = vsel %vm185, %v2223, -inf
  %2242 = vmax.xlane.f32.xlu0 %v2241
  %v2243 = vpop.xlane.xlu0 %2242
  %v2244 = vsel %vm185, %v2224, -inf
  %2245 = vmax.xlane.f32.xlu0 %v2244
  %v2246 = vpop.xlane.xlu0 %2245
  %v2247 = vsel %vm185, %v2225, -inf
  %2248 = vmax.xlane.f32.xlu0 %v2247
  %v2249 = vpop.xlane.xlu0 %2248
  %v2250 = vsub.f32 %v2218, %v2228
  %v2251 = vsub.f32 %v2219, %v2231
  %v2252 = vsub.f32 %v2220, %v2234
  %v2253 = vsub.f32 %v2221, %v2237
  %v2254 = vsub.f32 %v2222, %v2240
  %v2255 = vsub.f32 %v2223, %v2243
  %v2256 = vsub.f32 %v2224, %v2246
  %v2257 = vsub.f32 %v2225, %v2249
  %v2258 = vmul.f32 %v2250, 1.442695
  %v2259 = vpow.pop %v2258
  %v2260 = vmul.f32 %v2251, 1.442695
  %v2261 = vpow.pop %v2260
  %v2262 = vmul.f32 %v2252, 1.442695
  %v2263 = vpow.pop %v2262
  %v2264 = vmul.f32 %v2253, 1.442695
  %v2265 = vpow.pop %v2264
  %v2266 = vmul.f32 %v2254, 1.442695
  %v2267 = vpow.pop %v2266
  %v2268 = vmul.f32 %v2255, 1.442695
  %v2269 = vpow.pop %v2268
  %v2270 = vmul.f32 %v2256, 1.442695
  %v2271 = vpow.pop %v2270
  %v2272 = vmul.f32 %v2257, 1.442695
  %v2273 = vpow.pop %v2272
  %v2274 = vsel %vm185, %v2259, 0.0
  %2275 = vadd.xlane.f32.xlu0 %v2274
  %v2276 = vpop.xlane.xlu0 %2275
  %v2277 = vsel %vm185, %v2261, 0.0
  %2278 = vadd.xlane.f32.xlu0 %v2277
  %v2279 = vpop.xlane.xlu0 %2278
  %v2280 = vsel %vm185, %v2263, 0.0
  %2281 = vadd.xlane.f32.xlu0 %v2280
  %v2282 = vpop.xlane.xlu0 %2281
  %v2283 = vsel %vm185, %v2265, 0.0
  %2284 = vadd.xlane.f32.xlu0 %v2283
  %v2285 = vpop.xlane.xlu0 %2284
  %v2286 = vsel %vm185, %v2267, 0.0
  %2287 = vadd.xlane.f32.xlu0 %v2286
  %v2288 = vpop.xlane.xlu0 %2287
  %v2289 = vsel %vm185, %v2269, 0.0
  %2290 = vadd.xlane.f32.xlu0 %v2289
  %v2291 = vpop.xlane.xlu0 %2290
  %v2292 = vsel %vm185, %v2271, 0.0
  %2293 = vadd.xlane.f32.xlu0 %v2292
  %v2294 = vpop.xlane.xlu0 %2293
  %v2295 = vsel %vm185, %v2273, 0.0
  %2296 = vadd.xlane.f32.xlu0 %v2295
  %v2297 = vpop.xlane.xlu0 %2296
  %v2298 = vrcp.pop %v2276
  %v2299 = vrcp.pop %v2279
  %v2300 = vrcp.pop %v2282
  %v2301 = vrcp.pop %v2285
  %v2302 = vrcp.pop %v2288
  %v2303 = vrcp.pop %v2291
  %v2304 = vrcp.pop %v2294
  %v2305 = vrcp.pop %v2297
  %v2306 = vmul.f32 %v2259, %v2298
  %v2307 = vmul.f32 %v2261, %v2299
  %v2308 = vmul.f32 %v2263, %v2300
  %v2309 = vmul.f32 %v2265, %v2301
  %v2310 = vmul.f32 %v2267, %v2302
  %v2311 = vmul.f32 %v2269, %v2303
  %v2312 = vmul.f32 %v2271, %v2304
  %v2313 = vmul.f32 %v2273, %v2305
  %2314 = vrot.lane.b32.xlu0 %v159, 40
  %v2315 = vpop.permute.xlu0 %2314
  %v2318 = vsel %vm185, %v2306, 0
  %2320 = vmatpush.msra.mxu0 0.0
  %2321 = vmatpush.msra.mxu0 0.0
  %2322 = vmatpush.msra.mxu0 0.0
  %2323 = vmatpush.msra.mxu0 0.0
  %2324 = vmatpush.msra.mxu0 0.0
  %2325 = vmatpush.msra.mxu0 0.0
  %2326 = vmatpush.msra.mxu0 0.0
  %2327 = vmatpush.msra.mxu0 0.0
  %2328 = vmatpush.msra.mxu0 0.0
  %2329 = vmatpush.msra.mxu0 0.0
  %2330 = vmatpush.msra.mxu0 0.0
  %2331 = vmatpush.msra.mxu0 0.0
  %2332 = vmatpush.msra.mxu0 0.0
  %2333 = vmatpush.msra.mxu0 0.0
  %2334 = vmatpush.msra.mxu0 0.0
  %2335 = vmatpush.msra.mxu0 %v2315
  %2336 = vmatmul.f32.gmra.mxu0 %v2318
  %v2337 = vpop.f32.mrf.mxu0
  %v2338 = vadd.f32 0.0, %v2337
  %2339 = vdwg.mxu0
  %2340 = vrot.lane.b32.xlu0 %v162, 40
  %v2341 = vpop.permute.xlu0 %2340
  %v2344 = vsel %vm185, %v2307, 0
  %2346 = vmatpush.msra.mxu0 0.0
  %2347 = vmatpush.msra.mxu0 0.0
  %2348 = vmatpush.msra.mxu0 0.0
  %2349 = vmatpush.msra.mxu0 0.0
  %2350 = vmatpush.msra.mxu0 0.0
  %2351 = vmatpush.msra.mxu0 0.0
  %2352 = vmatpush.msra.mxu0 0.0
  %2353 = vmatpush.msra.mxu0 0.0
  %2354 = vmatpush.msra.mxu0 0.0
  %2355 = vmatpush.msra.mxu0 0.0
  %2356 = vmatpush.msra.mxu0 0.0
  %2357 = vmatpush.msra.mxu0 0.0
  %2358 = vmatpush.msra.mxu0 0.0
  %2359 = vmatpush.msra.mxu0 0.0
  %2360 = vmatpush.msra.mxu0 0.0
  %2361 = vmatpush.msra.mxu0 %v2341
  %2362 = vmatmul.f32.gmra.mxu0 %v2344
  %v2363 = vpop.f32.mrf.mxu0
  %v2364 = vadd.f32 0.0, %v2363
  %2365 = vdwg.mxu0
  %2366 = vrot.lane.b32.xlu0 %v165, 40
  %v2367 = vpop.permute.xlu0 %2366
  %v2370 = vsel %vm185, %v2308, 0
  %2372 = vmatpush.msra.mxu0 0.0
  %2373 = vmatpush.msra.mxu0 0.0
  %2374 = vmatpush.msra.mxu0 0.0
  %2375 = vmatpush.msra.mxu0 0.0
  %2376 = vmatpush.msra.mxu0 0.0
  %2377 = vmatpush.msra.mxu0 0.0
  %2378 = vmatpush.msra.mxu0 0.0
  %2379 = vmatpush.msra.mxu0 0.0
  %2380 = vmatpush.msra.mxu0 0.0
  %2381 = vmatpush.msra.mxu0 0.0
  %2382 = vmatpush.msra.mxu0 0.0
  %2383 = vmatpush.msra.mxu0 0.0
  %2384 = vmatpush.msra.mxu0 0.0
  %2385 = vmatpush.msra.mxu0 0.0
  %2386 = vmatpush.msra.mxu0 0.0
  %2387 = vmatpush.msra.mxu0 %v2367
  %2388 = vmatmul.f32.gmra.mxu0 %v2370
  %v2389 = vpop.f32.mrf.mxu0
  %v2390 = vadd.f32 0.0, %v2389
  %2391 = vdwg.mxu0
  %2392 = vrot.lane.b32.xlu0 %v168, 40
  %v2393 = vpop.permute.xlu0 %2392
  %v2396 = vsel %vm185, %v2309, 0
  %2398 = vmatpush.msra.mxu0 0.0
  %2399 = vmatpush.msra.mxu0 0.0
  %2400 = vmatpush.msra.mxu0 0.0
  %2401 = vmatpush.msra.mxu0 0.0
  %2402 = vmatpush.msra.mxu0 0.0
  %2403 = vmatpush.msra.mxu0 0.0
  %2404 = vmatpush.msra.mxu0 0.0
  %2405 = vmatpush.msra.mxu0 0.0
  %2406 = vmatpush.msra.mxu0 0.0
  %2407 = vmatpush.msra.mxu0 0.0
  %2408 = vmatpush.msra.mxu0 0.0
  %2409 = vmatpush.msra.mxu0 0.0
  %2410 = vmatpush.msra.mxu0 0.0
  %2411 = vmatpush.msra.mxu0 0.0
  %2412 = vmatpush.msra.mxu0 0.0
  %2413 = vmatpush.msra.mxu0 %v2393
  %2414 = vmatmul.f32.gmra.mxu0 %v2396
  %v2415 = vpop.f32.mrf.mxu0
  %v2416 = vadd.f32 0.0, %v2415
  %2417 = vdwg.mxu0
  %2418 = vrot.lane.b32.xlu0 %v171, 40
  %v2419 = vpop.permute.xlu0 %2418
  %v2422 = vsel %vm185, %v2310, 0
  %2424 = vmatpush.msra.mxu0 0.0
  %2425 = vmatpush.msra.mxu0 0.0
  %2426 = vmatpush.msra.mxu0 0.0
  %2427 = vmatpush.msra.mxu0 0.0
  %2428 = vmatpush.msra.mxu0 0.0
  %2429 = vmatpush.msra.mxu0 0.0
  %2430 = vmatpush.msra.mxu0 0.0
  %2431 = vmatpush.msra.mxu0 0.0
  %2432 = vmatpush.msra.mxu0 0.0
  %2433 = vmatpush.msra.mxu0 0.0
  %2434 = vmatpush.msra.mxu0 0.0
  %2435 = vmatpush.msra.mxu0 0.0
  %2436 = vmatpush.msra.mxu0 0.0
  %2437 = vmatpush.msra.mxu0 0.0
  %2438 = vmatpush.msra.mxu0 0.0
  %2439 = vmatpush.msra.mxu0 %v2419
  %2440 = vmatmul.f32.gmra.mxu0 %v2422
  %v2441 = vpop.f32.mrf.mxu0
  %v2442 = vadd.f32 0.0, %v2441
  %2443 = vdwg.mxu0
  %2444 = vrot.lane.b32.xlu0 %v174, 40
  %v2445 = vpop.permute.xlu0 %2444
  %v2448 = vsel %vm185, %v2311, 0
  %2450 = vmatpush.msra.mxu0 0.0
  %2451 = vmatpush.msra.mxu0 0.0
  %2452 = vmatpush.msra.mxu0 0.0
  %2453 = vmatpush.msra.mxu0 0.0
  %2454 = vmatpush.msra.mxu0 0.0
  %2455 = vmatpush.msra.mxu0 0.0
  %2456 = vmatpush.msra.mxu0 0.0
  %2457 = vmatpush.msra.mxu0 0.0
  %2458 = vmatpush.msra.mxu0 0.0
  %2459 = vmatpush.msra.mxu0 0.0
  %2460 = vmatpush.msra.mxu0 0.0
  %2461 = vmatpush.msra.mxu0 0.0
  %2462 = vmatpush.msra.mxu0 0.0
  %2463 = vmatpush.msra.mxu0 0.0
  %2464 = vmatpush.msra.mxu0 0.0
  %2465 = vmatpush.msra.mxu0 %v2445
  %2466 = vmatmul.f32.gmra.mxu0 %v2448
  %v2467 = vpop.f32.mrf.mxu0
  %v2468 = vadd.f32 0.0, %v2467
  %2469 = vdwg.mxu0
  %2470 = vrot.lane.b32.xlu0 %v177, 40
  %v2471 = vpop.permute.xlu0 %2470
  %v2474 = vsel %vm185, %v2312, 0
  %2476 = vmatpush.msra.mxu0 0.0
  %2477 = vmatpush.msra.mxu0 0.0
  %2478 = vmatpush.msra.mxu0 0.0
  %2479 = vmatpush.msra.mxu0 0.0
  %2480 = vmatpush.msra.mxu0 0.0
  %2481 = vmatpush.msra.mxu0 0.0
  %2482 = vmatpush.msra.mxu0 0.0
  %2483 = vmatpush.msra.mxu0 0.0
  %2484 = vmatpush.msra.mxu0 0.0
  %2485 = vmatpush.msra.mxu0 0.0
  %2486 = vmatpush.msra.mxu0 0.0
  %2487 = vmatpush.msra.mxu0 0.0
  %2488 = vmatpush.msra.mxu0 0.0
  %2489 = vmatpush.msra.mxu0 0.0
  %2490 = vmatpush.msra.mxu0 0.0
  %2491 = vmatpush.msra.mxu0 %v2471
  %2492 = vmatmul.f32.gmra.mxu0 %v2474
  %v2493 = vpop.f32.mrf.mxu0
  %v2494 = vadd.f32 0.0, %v2493
  %2495 = vdwg.mxu0
  %2496 = vrot.lane.b32.xlu0 %v180, 40
  %v2497 = vpop.permute.xlu0 %2496
  %v2500 = vsel %vm185, %v2313, 0
  %2502 = vmatpush.msra.mxu0 0.0
  %2503 = vmatpush.msra.mxu0 0.0
  %2504 = vmatpush.msra.mxu0 0.0
  %2505 = vmatpush.msra.mxu0 0.0
  %2506 = vmatpush.msra.mxu0 0.0
  %2507 = vmatpush.msra.mxu0 0.0
  %2508 = vmatpush.msra.mxu0 0.0
  %2509 = vmatpush.msra.mxu0 0.0
  %2510 = vmatpush.msra.mxu0 0.0
  %2511 = vmatpush.msra.mxu0 0.0
  %2512 = vmatpush.msra.mxu0 0.0
  %2513 = vmatpush.msra.mxu0 0.0
  %2514 = vmatpush.msra.mxu0 0.0
  %2515 = vmatpush.msra.mxu0 0.0
  %2516 = vmatpush.msra.mxu0 0.0
  %2517 = vmatpush.msra.mxu0 %v2497
  %2518 = vmatmul.f32.gmra.mxu0 %v2500
  %v2519 = vpop.f32.mrf.mxu0
  %v2520 = vadd.f32 0.0, %v2519
  %2521 = vdwg.mxu0
  %v2523 = vsel %vm185, %v2338, 0
  %v2526 = vsel %vm185, %v2364, 0
  %v2529 = vsel %vm185, %v2390, 0
  %v2532 = vsel %vm185, %v2416, 0
  %v2535 = vsel %vm185, %v2442, 0
  %v2538 = vsel %vm185, %v2468, 0
  %v2541 = vsel %vm185, %v2494, 0
  %v2544 = vsel %vm185, %v2520, 0
  %2546 = vmatpush.msra.mxu0 0.0
  %2547 = vmatpush.msra.mxu0 0.0
  %2548 = vmatpush.msra.mxu0 0.0
  %2549 = vmatpush.msra.mxu0 0.0
  %2550 = vmatpush.msra.mxu0 0.0
  %2551 = vmatpush.msra.mxu0 0.0
  %2552 = vmatpush.msra.mxu0 0.0
  %2553 = vmatpush.msra.mxu0 0.0
  %2554 = vmatpush.msra.mxu0 0.0
  %2555 = vmatpush.msra.mxu0 0.0
  %2556 = vmatpush.msra.mxu0 0.0
  %2557 = vmatpush.msra.mxu0 0.0
  %2558 = vmatpush.msra.mxu0 0.0
  %2559 = vmatpush.msra.mxu0 0.0
  %2560 = vmatpush.msra.mxu0 0.0
  %2561 = vmatpush.msra.mxu0 %v95
  %2562 = vmatmul.f32.gmra.mxu0 %v2523
  %v2563 = vpop.f32.mrf.mxu0
  %v2564 = vadd.f32 0.0, %v2563
  %2565 = vmatmul.f32.gmra.mxu0 %v2526
  %v2566 = vpop.f32.mrf.mxu0
  %v2567 = vadd.f32 0.0, %v2566
  %2568 = vmatmul.f32.gmra.mxu0 %v2529
  %v2569 = vpop.f32.mrf.mxu0
  %v2570 = vadd.f32 0.0, %v2569
  %2571 = vmatmul.f32.gmra.mxu0 %v2532
  %v2572 = vpop.f32.mrf.mxu0
  %v2573 = vadd.f32 0.0, %v2572
  %2574 = vmatmul.f32.gmra.mxu0 %v2535
  %v2575 = vpop.f32.mrf.mxu0
  %v2576 = vadd.f32 0.0, %v2575
  %2577 = vmatmul.f32.gmra.mxu0 %v2538
  %v2578 = vpop.f32.mrf.mxu0
  %v2579 = vadd.f32 0.0, %v2578
  %2580 = vmatmul.f32.gmra.mxu0 %v2541
  %v2581 = vpop.f32.mrf.mxu0
  %v2582 = vadd.f32 0.0, %v2581
  %2583 = vmatmul.f32.gmra.mxu0 %v2544
  %v2584 = vpop.f32.mrf.mxu0
  %v2585 = vadd.f32 0.0, %v2584
  %2586 = vdwg.mxu0
  %v2587 = vadd.f32 %v1978, %v2564
  %v2588 = vadd.f32 %v1979, %v2567
  %v2589 = vadd.f32 %v1980, %v2570
  %v2590 = vadd.f32 %v1981, %v2573
  %v2591 = vadd.f32 %v1982, %v2576
  %v2592 = vadd.f32 %v1983, %v2579
  %v2593 = vadd.f32 %v1984, %v2582
  %v2594 = vadd.f32 %v1985, %v2585
  %v2595 = vadd.f32 %v47, %v2587
  %v2596 = vadd.f32 %v48, %v2588
  %v2597 = vadd.f32 %v49, %v2589
  %v2598 = vadd.f32 %v50, %v2590
  %v2599 = vadd.f32 %v51, %v2591
  %v2600 = vadd.f32 %v52, %v2592
  %v2601 = vadd.f32 %v53, %v2593
  %v2602 = vadd.f32 %v54, %v2594
  %v2604 = vperm.slane %v96, 0
  %v2606 = vadd.f32 %v2595, %v2604
  %v2607 = vadd.f32 %v2596, %v2604
  %v2608 = vadd.f32 %v2597, %v2604
  %v2609 = vadd.f32 %v2598, %v2604
  %v2610 = vadd.f32 %v2599, %v2604
  %v2611 = vadd.f32 %v2600, %v2604
  %v2612 = vadd.f32 %v2601, %v2604
  %v2613 = vadd.f32 %v2602, %v2604
  %v2614 = vsel %vm116, %v2606, 0.0
  %2615 = vadd.xlane.f32.xlu0 %v2614
  %v2616 = vpop.xlane.xlu0 %2615
  %v2617 = vsel %vm116, %v2607, 0.0
  %2618 = vadd.xlane.f32.xlu0 %v2617
  %v2619 = vpop.xlane.xlu0 %2618
  %v2620 = vsel %vm116, %v2608, 0.0
  %2621 = vadd.xlane.f32.xlu0 %v2620
  %v2622 = vpop.xlane.xlu0 %2621
  %v2623 = vsel %vm116, %v2609, 0.0
  %2624 = vadd.xlane.f32.xlu0 %v2623
  %v2625 = vpop.xlane.xlu0 %2624
  %v2626 = vsel %vm116, %v2610, 0.0
  %2627 = vadd.xlane.f32.xlu0 %v2626
  %v2628 = vpop.xlane.xlu0 %2627
  %v2629 = vsel %vm116, %v2611, 0.0
  %2630 = vadd.xlane.f32.xlu0 %v2629
  %v2631 = vpop.xlane.xlu0 %2630
  %v2632 = vsel %vm116, %v2612, 0.0
  %2633 = vadd.xlane.f32.xlu0 %v2632
  %v2634 = vpop.xlane.xlu0 %2633
  %v2635 = vsel %vm116, %v2613, 0.0
  %2636 = vadd.xlane.f32.xlu0 %v2635
  %v2637 = vpop.xlane.xlu0 %2636
  %v2638 = vrcp.pop 32.0
  %v2639 = vmul.f32 32.0, %v2638
  %v2640 = vsub.f32 1.0, %v2639
  %v2641 = vmul.f32 %v2638, %v2640
  %v2642 = vadd.f32 %v2638, %v2641
  %vm2643 = vweird.f32 %v2638
  %v2644 = vsel %vm2643, %v2638, %v2642
  %v2645 = vmul.f32 %v2616, %v2644
  %v2646 = vmul.f32 %v2619, %v2644
  %v2647 = vmul.f32 %v2622, %v2644
  %v2648 = vmul.f32 %v2625, %v2644
  %v2649 = vmul.f32 %v2628, %v2644
  %v2650 = vmul.f32 %v2631, %v2644
  %v2651 = vmul.f32 %v2634, %v2644
  %v2652 = vmul.f32 %v2637, %v2644
  %v2653 = vsub.f32 %v2606, %v2645
  %v2654 = vsub.f32 %v2607, %v2646
  %v2655 = vsub.f32 %v2608, %v2647
  %v2656 = vsub.f32 %v2609, %v2648
  %v2657 = vsub.f32 %v2610, %v2649
  %v2658 = vsub.f32 %v2611, %v2650
  %v2659 = vsub.f32 %v2612, %v2651
  %v2660 = vsub.f32 %v2613, %v2652
  %v2661 = vmul.f32 %v2653, %v2653
  %v2662 = vmul.f32 %v2654, %v2654
  %v2663 = vmul.f32 %v2655, %v2655
  %v2664 = vmul.f32 %v2656, %v2656
  %v2665 = vmul.f32 %v2657, %v2657
  %v2666 = vmul.f32 %v2658, %v2658
  %v2667 = vmul.f32 %v2659, %v2659
  %v2668 = vmul.f32 %v2660, %v2660
  %v2669 = vsel %vm116, %v2661, 0.0
  %2670 = vadd.xlane.f32.xlu0 %v2669
  %v2671 = vpop.xlane.xlu0 %2670
  %v2672 = vsel %vm116, %v2662, 0.0
  %2673 = vadd.xlane.f32.xlu0 %v2672
  %v2674 = vpop.xlane.xlu0 %2673
  %v2675 = vsel %vm116, %v2663, 0.0
  %2676 = vadd.xlane.f32.xlu0 %v2675
  %v2677 = vpop.xlane.xlu0 %2676
  %v2678 = vsel %vm116, %v2664, 0.0
  %2679 = vadd.xlane.f32.xlu0 %v2678
  %v2680 = vpop.xlane.xlu0 %2679
  %v2681 = vsel %vm116, %v2665, 0.0
  %2682 = vadd.xlane.f32.xlu0 %v2681
  %v2683 = vpop.xlane.xlu0 %2682
  %v2684 = vsel %vm116, %v2666, 0.0
  %2685 = vadd.xlane.f32.xlu0 %v2684
  %v2686 = vpop.xlane.xlu0 %2685
  %v2687 = vsel %vm116, %v2667, 0.0
  %2688 = vadd.xlane.f32.xlu0 %v2687
  %v2689 = vpop.xlane.xlu0 %2688
  %v2690 = vsel %vm116, %v2668, 0.0
  %2691 = vadd.xlane.f32.xlu0 %v2690
  %v2692 = vpop.xlane.xlu0 %2691
  %v2693 = vmul.f32 %v2671, %v2644
  %v2694 = vmul.f32 %v2674, %v2644
  %v2695 = vmul.f32 %v2677, %v2644
  %v2696 = vmul.f32 %v2680, %v2644
  %v2697 = vmul.f32 %v2683, %v2644
  %v2698 = vmul.f32 %v2686, %v2644
  %v2699 = vmul.f32 %v2689, %v2644
  %v2700 = vmul.f32 %v2692, %v2644
  %v2701 = vadd.f32 %v2693, 1e-05
  %v2702 = vadd.f32 %v2694, 1e-05
  %v2703 = vadd.f32 %v2695, 1e-05
  %v2704 = vadd.f32 %v2696, 1e-05
  %v2705 = vadd.f32 %v2697, 1e-05
  %v2706 = vadd.f32 %v2698, 1e-05
  %v2707 = vadd.f32 %v2699, 1e-05
  %v2708 = vadd.f32 %v2700, 1e-05
  %v2709 = vrsqrt.pop %v2701
  %v2710 = vmul.f32 %v2709, %v2701
  %v2711 = vmul.f32 %v2710, %v2709
  %v2712 = vmul.f32 0.5, %v2711
  %v2713 = vsub.f32 1.5, %v2712
  %v2714 = vmul.f32 %v2709, %v2713
  %vm2715 = vweird.f32 %v2701
  %vm2716 = vweird.f32 %v2709
  %vm2717 = vmor %vm2715, %vm2716
  %v2718 = vsel %vm2717, %v2709, %v2714
  %v2719 = vrsqrt.pop %v2702
  %v2720 = vmul.f32 %v2719, %v2702
  %v2721 = vmul.f32 %v2720, %v2719
  %v2722 = vmul.f32 0.5, %v2721
  %v2723 = vsub.f32 1.5, %v2722
  %v2724 = vmul.f32 %v2719, %v2723
  %vm2725 = vweird.f32 %v2702
  %vm2726 = vweird.f32 %v2719
  %vm2727 = vmor %vm2725, %vm2726
  %v2728 = vsel %vm2727, %v2719, %v2724
  %v2729 = vrsqrt.pop %v2703
  %v2730 = vmul.f32 %v2729, %v2703
  %v2731 = vmul.f32 %v2730, %v2729
  %v2732 = vmul.f32 0.5, %v2731
  %v2733 = vsub.f32 1.5, %v2732
  %v2734 = vmul.f32 %v2729, %v2733
  %vm2735 = vweird.f32 %v2703
  %vm2736 = vweird.f32 %v2729
  %vm2737 = vmor %vm2735, %vm2736
  %v2738 = vsel %vm2737, %v2729, %v2734
  %v2739 = vrsqrt.pop %v2704
  %v2740 = vmul.f32 %v2739, %v2704
  %v2741 = vmul.f32 %v2740, %v2739
  %v2742 = vmul.f32 0.5, %v2741
  %v2743 = vsub.f32 1.5, %v2742
  %v2744 = vmul.f32 %v2739, %v2743
  %vm2745 = vweird.f32 %v2704
  %vm2746 = vweird.f32 %v2739
  %vm2747 = vmor %vm2745, %vm2746
  %v2748 = vsel %vm2747, %v2739, %v2744
  %v2749 = vrsqrt.pop %v2705
  %v2750 = vmul.f32 %v2749, %v2705
  %v2751 = vmul.f32 %v2750, %v2749
  %v2752 = vmul.f32 0.5, %v2751
  %v2753 = vsub.f32 1.5, %v2752
  %v2754 = vmul.f32 %v2749, %v2753
  %vm2755 = vweird.f32 %v2705
  %vm2756 = vweird.f32 %v2749
  %vm2757 = vmor %vm2755, %vm2756
  %v2758 = vsel %vm2757, %v2749, %v2754
  %v2759 = vrsqrt.pop %v2706
  %v2760 = vmul.f32 %v2759, %v2706
  %v2761 = vmul.f32 %v2760, %v2759
  %v2762 = vmul.f32 0.5, %v2761
  %v2763 = vsub.f32 1.5, %v2762
  %v2764 = vmul.f32 %v2759, %v2763
  %vm2765 = vweird.f32 %v2706
  %vm2766 = vweird.f32 %v2759
  %vm2767 = vmor %vm2765, %vm2766
  %v2768 = vsel %vm2767, %v2759, %v2764
  %v2769 = vrsqrt.pop %v2707
  %v2770 = vmul.f32 %v2769, %v2707
  %v2771 = vmul.f32 %v2770, %v2769
  %v2772 = vmul.f32 0.5, %v2771
  %v2773 = vsub.f32 1.5, %v2772
  %v2774 = vmul.f32 %v2769, %v2773
  %vm2775 = vweird.f32 %v2707
  %vm2776 = vweird.f32 %v2769
  %vm2777 = vmor %vm2775, %vm2776
  %v2778 = vsel %vm2777, %v2769, %v2774
  %v2779 = vrsqrt.pop %v2708
  %v2780 = vmul.f32 %v2779, %v2708
  %v2781 = vmul.f32 %v2780, %v2779
  %v2782 = vmul.f32 0.5, %v2781
  %v2783 = vsub.f32 1.5, %v2782
  %v2784 = vmul.f32 %v2779, %v2783
  %vm2785 = vweird.f32 %v2708
  %vm2786 = vweird.f32 %v2779
  %vm2787 = vmor %vm2785, %vm2786
  %v2788 = vsel %vm2787, %v2779, %v2784
  %v2789 = vmul.f32 %v2653, %v2718
  %v2790 = vmul.f32 %v2654, %v2728
  %v2791 = vmul.f32 %v2655, %v2738
  %v2792 = vmul.f32 %v2656, %v2748
  %v2793 = vmul.f32 %v2657, %v2758
  %v2794 = vmul.f32 %v2658, %v2768
  %v2795 = vmul.f32 %v2659, %v2778
  %v2796 = vmul.f32 %v2660, %v2788
  %v2798 = vperm.slane %v97, 0
  %v2800 = vmul.f32 %v2789, %v2798
  %v2801 = vmul.f32 %v2790, %v2798
  %v2802 = vmul.f32 %v2791, %v2798
  %v2803 = vmul.f32 %v2792, %v2798
  %v2804 = vmul.f32 %v2793, %v2798
  %v2805 = vmul.f32 %v2794, %v2798
  %v2806 = vmul.f32 %v2795, %v2798
  %v2807 = vmul.f32 %v2796, %v2798
  %v2809 = vperm.slane %v98, 0
  %v2811 = vadd.f32 %v2800, %v2809
  %v2812 = vadd.f32 %v2801, %v2809
  %v2813 = vadd.f32 %v2802, %v2809
  %v2814 = vadd.f32 %v2803, %v2809
  %v2815 = vadd.f32 %v2804, %v2809
  %v2816 = vadd.f32 %v2805, %v2809
  %v2817 = vadd.f32 %v2806, %v2809
  %v2818 = vadd.f32 %v2807, %v2809
  %v2820 = vperm.slane %v103, 0
  %v2823 = vsel %vm116, %v2811, 0
  %v2826 = vsel %vm116, %v2812, 0
  %v2829 = vsel %vm116, %v2813, 0
  %v2832 = vsel %vm116, %v2814, 0
  %v2835 = vsel %vm116, %v2815, 0
  %v2838 = vsel %vm116, %v2816, 0
  %v2841 = vsel %vm116, %v2817, 0
  %v2844 = vsel %vm116, %v2818, 0
  %2846 = vmatpush.msra.mxu0 0.0
  %2847 = vmatpush.msra.mxu0 0.0
  %2848 = vmatpush.msra.mxu0 0.0
  %2849 = vmatpush.msra.mxu0 0.0
  %2850 = vmatpush.msra.mxu0 0.0
  %2851 = vmatpush.msra.mxu0 0.0
  %2852 = vmatpush.msra.mxu0 0.0
  %2853 = vmatpush.msra.mxu0 0.0
  %2854 = vmatpush.msra.mxu0 0.0
  %2855 = vmatpush.msra.mxu0 0.0
  %2856 = vmatpush.msra.mxu0 0.0
  %2857 = vmatpush.msra.mxu0 0.0
  %2858 = vmatpush.msra.mxu0 %v102
  %2859 = vmatpush.msra.mxu0 %v101
  %2860 = vmatpush.msra.mxu0 %v100
  %2861 = vmatpush.msra.mxu0 %v99
  %2862 = vmatmul.f32.gmra.mxu0 %v2823
  %v2863 = vpop.f32.mrf.mxu0
  %v2864 = vadd.f32 %v2820, %v2863
  %2865 = vmatmul.f32.gmra.mxu0 %v2826
  %v2866 = vpop.f32.mrf.mxu0
  %v2867 = vadd.f32 %v2820, %v2866
  %2868 = vmatmul.f32.gmra.mxu0 %v2829
  %v2869 = vpop.f32.mrf.mxu0
  %v2870 = vadd.f32 %v2820, %v2869
  %2871 = vmatmul.f32.gmra.mxu0 %v2832
  %v2872 = vpop.f32.mrf.mxu0
  %v2873 = vadd.f32 %v2820, %v2872
  %2874 = vmatmul.f32.gmra.mxu0 %v2835
  %v2875 = vpop.f32.mrf.mxu0
  %v2876 = vadd.f32 %v2820, %v2875
  %2877 = vmatmul.f32.gmra.mxu0 %v2838
  %v2878 = vpop.f32.mrf.mxu0
  %v2879 = vadd.f32 %v2820, %v2878
  %2880 = vmatmul.f32.gmra.mxu0 %v2841
  %v2881 = vpop.f32.mrf.mxu0
  %v2882 = vadd.f32 %v2820, %v2881
  %2883 = vmatmul.f32.gmra.mxu0 %v2844
  %v2884 = vpop.f32.mrf.mxu0
  %v2885 = vadd.f32 %v2820, %v2884
  %2886 = vdwg.mxu0
  %v2887 = vmax.f32 %v2864, 0.0
  %v2888 = vmax.f32 %v2867, 0.0
  %v2889 = vmax.f32 %v2870, 0.0
  %v2890 = vmax.f32 %v2873, 0.0
  %v2891 = vmax.f32 %v2876, 0.0
  %v2892 = vmax.f32 %v2879, 0.0
  %v2893 = vmax.f32 %v2882, 0.0
  %v2894 = vmax.f32 %v2885, 0.0
  %v2896 = vperm.slane %v112, 0
  %vm2898 = vcmask 523264
  %v2900 = vsel %vm2898, %v2887, 0
  %v2903 = vsel %vm2898, %v2888, 0
  %v2906 = vsel %vm2898, %v2889, 0
  %v2909 = vsel %vm2898, %v2890, 0
  %v2912 = vsel %vm2898, %v2891, 0
  %v2915 = vsel %vm2898, %v2892, 0
  %v2918 = vsel %vm2898, %v2893, 0
  %v2921 = vsel %vm2898, %v2894, 0
  %2923 = vmatpush.msra.mxu0 0.0
  %2924 = vmatpush.msra.mxu0 0.0
  %2925 = vmatpush.msra.mxu0 0.0
  %2926 = vmatpush.msra.mxu0 0.0
  %2927 = vmatpush.msra.mxu0 0.0
  %2928 = vmatpush.msra.mxu0 0.0
  %2929 = vmatpush.msra.mxu0 0.0
  %2930 = vmatpush.msra.mxu0 0.0
  %2931 = vmatpush.msra.mxu0 %v111
  %2932 = vmatpush.msra.mxu0 %v110
  %2933 = vmatpush.msra.mxu0 %v109
  %2934 = vmatpush.msra.mxu0 %v108
  %2935 = vmatpush.msra.mxu0 %v107
  %2936 = vmatpush.msra.mxu0 %v106
  %2937 = vmatpush.msra.mxu0 %v105
  %2938 = vmatpush.msra.mxu0 %v104
  %2939 = vmatmul.f32.gmra.mxu0 %v2900
  %v2940 = vpop.f32.mrf.mxu0
  %v2941 = vadd.f32 %v2896, %v2940
  %2942 = vmatmul.f32.gmra.mxu0 %v2903
  %v2943 = vpop.f32.mrf.mxu0
  %v2944 = vadd.f32 %v2896, %v2943
  %2945 = vmatmul.f32.gmra.mxu0 %v2906
  %v2946 = vpop.f32.mrf.mxu0
  %v2947 = vadd.f32 %v2896, %v2946
  %2948 = vmatmul.f32.gmra.mxu0 %v2909
  %v2949 = vpop.f32.mrf.mxu0
  %v2950 = vadd.f32 %v2896, %v2949
  %2951 = vmatmul.f32.gmra.mxu0 %v2912
  %v2952 = vpop.f32.mrf.mxu0
  %v2953 = vadd.f32 %v2896, %v2952
  %2954 = vmatmul.f32.gmra.mxu0 %v2915
  %v2955 = vpop.f32.mrf.mxu0
  %v2956 = vadd.f32 %v2896, %v2955
  %2957 = vmatmul.f32.gmra.mxu0 %v2918
  %v2958 = vpop.f32.mrf.mxu0
  %v2959 = vadd.f32 %v2896, %v2958
  %2960 = vmatmul.f32.gmra.mxu0 %v2921
  %v2961 = vpop.f32.mrf.mxu0
  %v2962 = vadd.f32 %v2896, %v2961
  %2963 = vdwg.mxu0
  %v2964 = vadd.f32 %v2606, %v2941
  %v2965 = vadd.f32 %v2607, %v2944
  %v2966 = vadd.f32 %v2608, %v2947
  %v2967 = vadd.f32 %v2609, %v2950
  %v2968 = vadd.f32 %v2610, %v2953
  %v2969 = vadd.f32 %v2611, %v2956
  %v2970 = vadd.f32 %v2612, %v2959
  %v2971 = vadd.f32 %v2613, %v2962
  %2972 = vst.msk [vmem:[%s14] sm:$0xff] %vm116, %v2964
  %2973 = vst.msk [vmem:[%s14 + $0x8] sm:$0xff] %vm116, %v2965
  %2974 = vst.msk [vmem:[%s14 + $0x10] sm:$0xff] %vm116, %v2966
  %2975 = vst.msk [vmem:[%s14 + $0x18] sm:$0xff] %vm116, %v2967
  %2976 = vst.msk [vmem:[%s14 + $0x20] sm:$0xff] %vm116, %v2968
  %2977 = vst.msk [vmem:[%s14 + $0x28] sm:$0xff] %vm116, %v2969
  %2978 = vst.msk [vmem:[%s14 + $0x30] sm:$0xff] %vm116, %v2970
  %2979 = vst.msk [vmem:[%s14 + $0x38] sm:$0xff] %vm116, %v2971
  // Predicated region
  $region58: #{forward.3} parent=0 // pred_check
    _
  $region59: #{forward.3} parent=0 // pred_check_branch
    %2981 = sbr.rel (0) target = $region61
  $region60: #{forward.3} parent=0 // pred_region
    _
  $region61: #{forward.3} parent=0 // pred_fallthru
    _
  // Predicated region
  $region62: #{forward.3} parent=0 // pred_check
    _
  $region63: #{forward.3} parent=0 // pred_check_branch
    %2983 = sbr.rel (0) target = $region65
  $region64: #{forward.3} parent=0 // pred_region
    _
  $region65: #{forward.3} parent=0 // pred_fallthru
    _

// kernel: forward.4
$region0: #{forward.4}
  #allocation0 [shape = 'u32[]', space=smem, size = 0x4, offset = 0x4, fixed_abs, tag = 'smem constant byte address 0x4 - core index']
  #allocation1 [shape = 'u32[72,128]{1,0:T(1,128)}', space=vmem, size = 0x9000, scoped, tag = 'internal scratch']
  %s0 = inlined_call_operand.vmem [shape: f32[64,32], index: 0, kind: input, shape index: {}, may-alias: {0,14}]
  %s1 = inlined_call_operand.vmem [shape: f32[8,4,8,8], index: 1, kind: input, shape index: {}]
  %s2 = inlined_call_operand.vmem [shape: f32[1,32], index: 2, kind: input, shape index: {}]
  %s3 = inlined_call_operand.vmem [shape: f32[1,32], index: 3, kind: input, shape index: {}]
  %s4 = inlined_call_operand.vmem [shape: f32[32,96], index: 4, kind: input, shape index: {}]
  %s5 = inlined_call_operand.vmem [shape: f32[1,96], index: 5, kind: input, shape index: {}]
  %s6 = inlined_call_operand.vmem [shape: f32[32,32], index: 6, kind: input, shape index: {}]
  %s7 = inlined_call_operand.vmem [shape: f32[1,32], index: 7, kind: input, shape index: {}]
  %s8 = inlined_call_operand.vmem [shape: f32[1,32], index: 8, kind: input, shape index: {}]
  %s9 = inlined_call_operand.vmem [shape: f32[1,32], index: 9, kind: input, shape index: {}]
  %s10 = inlined_call_operand.vmem [shape: f32[32,64], index: 10, kind: input, shape index: {}]
  %s11 = inlined_call_operand.vmem [shape: f32[1,64], index: 11, kind: input, shape index: {}]
  %s12 = inlined_call_operand.vmem [shape: f32[64,32], index: 12, kind: input, shape index: {}]
  %s13 = inlined_call_operand.vmem [shape: f32[1,32], index: 13, kind: input, shape index: {}]
  %s14 = inlined_call_operand.vmem [shape: f32[64,32], index: 14, kind: output, shape index: {}, may-alias: {0,14}]
  %s15 = sld [smem:[#allocation0]]
  $region66: #{forward.4} parent=0
    _
  %s17 = ssub.s32 1, %s15
  %s18 = scalar_select 0, %s17, %s15
  // Predicated region
  $region2: #{forward.4} parent=0 // pred_check
    _
  $region3: #{forward.4} parent=0 // pred_check_branch
    %20 = sbr.rel (0) target = $region5
  $region4: #{forward.4} parent=0 // pred_region
    _
  $region5: #{forward.4} parent=0 // pred_fallthru
    _
  // Predicated region
  $region6: #{forward.4} parent=0 // pred_check
    _
  $region7: #{forward.4} parent=0 // pred_check_branch
    %22 = sbr.rel (0) target = $region9
  $region8: #{forward.4} parent=0 // pred_region
    _
  $region9: #{forward.4} parent=0 // pred_fallthru
    _
  // Predicated region
  $region10: #{forward.4} parent=0 // pred_check
    _
  $region11: #{forward.4} parent=0 // pred_check_branch
    %24 = sbr.rel (0) target = $region13
  $region12: #{forward.4} parent=0 // pred_region
    _
  $region13: #{forward.4} parent=0 // pred_fallthru
    _
  // Predicated region
  $region14: #{forward.4} parent=0 // pred_check
    _
  $region15: #{forward.4} parent=0 // pred_check_branch
    %26 = sbr.rel (0) target = $region17
  $region16: #{forward.4} parent=0 // pred_region
    _
  $region17: #{forward.4} parent=0 // pred_fallthru
    _
  // Predicated region
  $region18: #{forward.4} parent=0 // pred_check
    _
  $region19: #{forward.4} parent=0 // pred_check_branch
    %28 = sbr.rel (0) target = $region21
  $region20: #{forward.4} parent=0 // pred_region
    _
  $region21: #{forward.4} parent=0 // pred_fallthru
    _
  // Predicated region
  $region22: #{forward.4} parent=0 // pred_check
    _
  $region23: #{forward.4} parent=0 // pred_check_branch
    %30 = sbr.rel (0) target = $region25
  $region24: #{forward.4} parent=0 // pred_region
    _
  $region25: #{forward.4} parent=0 // pred_fallthru
    _
  // Predicated region
  $region26: #{forward.4} parent=0 // pred_check
    _
  $region27: #{forward.4} parent=0 // pred_check_branch
    %32 = sbr.rel (0) target = $region29
  $region28: #{forward.4} parent=0 // pred_region
    _
  $region29: #{forward.4} parent=0 // pred_fallthru
    _
  // Predicated region
  $region30: #{forward.4} parent=0 // pred_check
    _
  $region31: #{forward.4} parent=0 // pred_check_branch
    %34 = sbr.rel (0) target = $region33
  $region32: #{forward.4} parent=0 // pred_region
    _
  $region33: #{forward.4} parent=0 // pred_fallthru
    _
  // Predicated region
  $region34: #{forward.4} parent=0 // pred_check
    _
  $region35: #{forward.4} parent=0 // pred_check_branch
    %36 = sbr.rel (0) target = $region37
  $region36: #{forward.4} parent=0 // pred_region
    _
  $region37: #{forward.4} parent=0 // pred_fallthru
    _
  // Predicated region
  $region38: #{forward.4} parent=0 // pred_check
    _
  $region39: #{forward.4} parent=0 // pred_check_branch
    %38 = sbr.rel (0) target = $region41
  $region40: #{forward.4} parent=0 // pred_region
    _
  $region41: #{forward.4} parent=0 // pred_fallthru
    _
  // Predicated region
  $region42: #{forward.4} parent=0 // pred_check
    _
  $region43: #{forward.4} parent=0 // pred_check_branch
    %40 = sbr.rel (0) target = $region45
  $region44: #{forward.4} parent=0 // pred_region
    _
  $region45: #{forward.4} parent=0 // pred_fallthru
    _
  // Predicated region
  $region46: #{forward.4} parent=0 // pred_check
    _
  $region47: #{forward.4} parent=0 // pred_check_branch
    %42 = sbr.rel (0) target = $region49
  $region48: #{forward.4} parent=0 // pred_region
    _
  $region49: #{forward.4} parent=0 // pred_fallthru
    _
  // Predicated region
  $region50: #{forward.4} parent=0 // pred_check
    _
  $region51: #{forward.4} parent=0 // pred_check_branch
    %44 = sbr.rel (0) target = $region53
  $region52: #{forward.4} parent=0 // pred_region
    _
  $region53: #{forward.4} parent=0 // pred_fallthru
    _
  // Predicated region
  $region54: #{forward.4} parent=0 // pred_check
    _
  $region55: #{forward.4} parent=0 // pred_check_branch
    %46 = sbr.rel (0) target = $region57
  $region56: #{forward.4} parent=0 // pred_region
    _
  $region57: #{forward.4} parent=0 // pred_fallthru
    _
  %v47 = vld [vmem:[%s0] sm:$0xff]
  %v48 = vld [vmem:[%s0 + $0x8] sm:$0xff]
  %v49 = vld [vmem:[%s0 + $0x10] sm:$0xff]
  %v50 = vld [vmem:[%s0 + $0x18] sm:$0xff]
  %v51 = vld [vmem:[%s0 + $0x20] sm:$0xff]
  %v52 = vld [vmem:[%s0 + $0x28] sm:$0xff]
  %v53 = vld [vmem:[%s0 + $0x30] sm:$0xff]
  %v54 = vld [vmem:[%s0 + $0x38] sm:$0xff]
  %v55 = vld [vmem:[%s1] sm:$0xff]
  %v56 = vld [vmem:[%s1 + $0x8] sm:$0xff]
  %v57 = vld [vmem:[%s1 + $0x10] sm:$0xff]
  %v58 = vld [vmem:[%s1 + $0x18] sm:$0xff]
  %v59 = vld [vmem:[%s1 + $0x20] sm:$0xff]
  %v60 = vld [vmem:[%s1 + $0x28] sm:$0xff]
  %v61 = vld [vmem:[%s1 + $0x30] sm:$0xff]
  %v62 = vld [vmem:[%s1 + $0x38] sm:$0xff]
  %v63 = vld [vmem:[%s1 + $0x40] sm:$0xff]
  %v64 = vld [vmem:[%s1 + $0x48] sm:$0xff]
  %v65 = vld [vmem:[%s1 + $0x50] sm:$0xff]
  %v66 = vld [vmem:[%s1 + $0x58] sm:$0xff]
  %v67 = vld [vmem:[%s1 + $0x60] sm:$0xff]
  %v68 = vld [vmem:[%s1 + $0x68] sm:$0xff]
  %v69 = vld [vmem:[%s1 + $0x70] sm:$0xff]
  %v70 = vld [vmem:[%s1 + $0x78] sm:$0xff]
  %v71 = vld [vmem:[%s1 + $0x80] sm:$0xff]
  %v72 = vld [vmem:[%s1 + $0x88] sm:$0xff]
  %v73 = vld [vmem:[%s1 + $0x90] sm:$0xff]
  %v74 = vld [vmem:[%s1 + $0x98] sm:$0xff]
  %v75 = vld [vmem:[%s1 + $0xa0] sm:$0xff]
  %v76 = vld [vmem:[%s1 + $0xa8] sm:$0xff]
  %v77 = vld [vmem:[%s1 + $0xb0] sm:$0xff]
  %v78 = vld [vmem:[%s1 + $0xb8] sm:$0xff]
  %v79 = vld [vmem:[%s1 + $0xc0] sm:$0xff]
  %v80 = vld [vmem:[%s1 + $0xc8] sm:$0xff]
  %v81 = vld [vmem:[%s1 + $0xd0] sm:$0xff]
  %v82 = vld [vmem:[%s1 + $0xd8] sm:$0xff]
  %v83 = vld [vmem:[%s1 + $0xe0] sm:$0xff]
  %v84 = vld [vmem:[%s1 + $0xe8] sm:$0xff]
  %v85 = vld [vmem:[%s1 + $0xf0] sm:$0xff]
  %v86 = vld [vmem:[%s1 + $0xf8] sm:$0xff]
  %v87 = vld [vmem:[%s2] sm:$0x1]
  %v88 = vld [vmem:[%s3] sm:$0x1]
  %v89 = vld [vmem:[%s4] sm:$0xff]
  %v90 = vld [vmem:[%s4 + $0x8] sm:$0xff]
  %v91 = vld [vmem:[%s4 + $0x10] sm:$0xff]
  %v92 = vld [vmem:[%s4 + $0x18] sm:$0xff]
  %v93 = vld [vmem:[%s5] sm:$0x1]
  %v94 = vld [vmem:[%s6] sm:$0xff]
  %v95 = vld [vmem:[%s6 + $0x8] sm:$0xff]
  %v96 = vld [vmem:[%s6 + $0x10] sm:$0xff]
  %v97 = vld [vmem:[%s6 + $0x18] sm:$0xff]
  %v98 = vld [vmem:[%s7] sm:$0x1]
  %v99 = vld [vmem:[%s8] sm:$0x1]
  %v100 = vld [vmem:[%s9] sm:$0x1]
  %v101 = vld [vmem:[%s10] sm:$0xff]
  %v102 = vld [vmem:[%s10 + $0x8] sm:$0xff]
  %v103 = vld [vmem:[%s10 + $0x10] sm:$0xff]
  %v104 = vld [vmem:[%s10 + $0x18] sm:$0xff]
  %v105 = vld [vmem:[%s11] sm:$0x1]
  %v106 = vld [vmem:[%s12] sm:$0xff]
  %v107 = vld [vmem:[%s12 + $0x8] sm:$0xff]
  %v108 = vld [vmem:[%s12 + $0x10] sm:$0xff]
  %v109 = vld [vmem:[%s12 + $0x18] sm:$0xff]
  %v110 = vld [vmem:[%s12 + $0x20] sm:$0xff]
  %v111 = vld [vmem:[%s12 + $0x28] sm:$0xff]
  %v112 = vld [vmem:[%s12 + $0x30] sm:$0xff]
  %v113 = vld [vmem:[%s12 + $0x38] sm:$0xff]
  %v114 = vld [vmem:[%s13] sm:$0x1]
  %vm115 = vcmask 261120
  %v116 = vsel %vm115, %v47, 0.0
  %117 = vadd.xlane.f32.xlu0 %v116
  %v118 = vpop.xlane.xlu0 %117
  %v119 = vsel %vm115, %v48, 0.0
  %120 = vadd.xlane.f32.xlu0 %v119
  %v121 = vpop.xlane.xlu0 %120
  %v122 = vsel %vm115, %v49, 0.0
  %123 = vadd.xlane.f32.xlu0 %v122
  %v124 = vpop.xlane.xlu0 %123
  %v125 = vsel %vm115, %v50, 0.0
  %126 = vadd.xlane.f32.xlu0 %v125
  %v127 = vpop.xlane.xlu0 %126
  %v128 = vsel %vm115, %v51, 0.0
  %129 = vadd.xlane.f32.xlu0 %v128
  %v130 = vpop.xlane.xlu0 %129
  %v131 = vsel %vm115, %v52, 0.0
  %132 = vadd.xlane.f32.xlu0 %v131
  %v133 = vpop.xlane.xlu0 %132
  %v134 = vsel %vm115, %v53, 0.0
  %135 = vadd.xlane.f32.xlu0 %v134
  %v136 = vpop.xlane.xlu0 %135
  %v137 = vsel %vm115, %v54, 0.0
  %138 = vadd.xlane.f32.xlu0 %v137
  %v139 = vpop.xlane.xlu0 %138
  %v140 = vrcp.pop 32.0
  %v141 = vmul.f32 32.0, %v140
  %v142 = vsub.f32 1.0, %v141
  %v143 = vmul.f32 %v140, %v142
  %v144 = vadd.f32 %v140, %v143
  %vm145 = vweird.f32 %v140
  %v146 = vsel %vm145, %v140, %v144
  %v147 = vmul.f32 %v118, %v146
  %v148 = vmul.f32 %v121, %v146
  %v149 = vmul.f32 %v124, %v146
  %v150 = vmul.f32 %v127, %v146
  %v151 = vmul.f32 %v130, %v146
  %v152 = vmul.f32 %v133, %v146
  %v153 = vmul.f32 %v136, %v146
  %v154 = vmul.f32 %v139, %v146
  %v155 = vsub.f32 %v47, %v147
  %v156 = vsub.f32 %v48, %v148
  %v157 = vsub.f32 %v49, %v149
  %v158 = vsub.f32 %v50, %v150
  %v159 = vsub.f32 %v51, %v151
  %v160 = vsub.f32 %v52, %v152
  %v161 = vsub.f32 %v53, %v153
  %v162 = vsub.f32 %v54, %v154
  %v163 = vmul.f32 %v155, %v155
  %v164 = vmul.f32 %v156, %v156
  %v165 = vmul.f32 %v157, %v157
  %v166 = vmul.f32 %v158, %v158
  %v167 = vmul.f32 %v159, %v159
  %v168 = vmul.f32 %v160, %v160
  %v169 = vmul.f32 %v161, %v161
  %v170 = vmul.f32 %v162, %v162
  %v171 = vsel %vm115, %v163, 0.0
  %172 = vadd.xlane.f32.xlu0 %v171
  %v173 = vpop.xlane.xlu0 %172
  %v174 = vsel %vm115, %v164, 0.0
  %175 = vadd.xlane.f32.xlu0 %v174
  %v176 = vpop.xlane.xlu0 %175
  %v177 = vsel %vm115, %v165, 0.0
  %178 = vadd.xlane.f32.xlu0 %v177
  %v179 = vpop.xlane.xlu0 %178
  %v180 = vsel %vm115, %v166, 0.0
  %181 = vadd.xlane.f32.xlu0 %v180
  %v182 = vpop.xlane.xlu0 %181
  %v183 = vsel %vm115, %v167, 0.0
  %184 = vadd.xlane.f32.xlu0 %v183
  %v185 = vpop.xlane.xlu0 %184
  %v186 = vsel %vm115, %v168, 0.0
  %187 = vadd.xlane.f32.xlu0 %v186
  %v188 = vpop.xlane.xlu0 %187
  %v189 = vsel %vm115, %v169, 0.0
  %190 = vadd.xlane.f32.xlu0 %v189
  %v191 = vpop.xlane.xlu0 %190
  %v192 = vsel %vm115, %v170, 0.0
  %193 = vadd.xlane.f32.xlu0 %v192
  %v194 = vpop.xlane.xlu0 %193
  %v195 = vmul.f32 %v173, %v146
  %v196 = vmul.f32 %v176, %v146
  %v197 = vmul.f32 %v179, %v146
  %v198 = vmul.f32 %v182, %v146
  %v199 = vmul.f32 %v185, %v146
  %v200 = vmul.f32 %v188, %v146
  %v201 = vmul.f32 %v191, %v146
  %v202 = vmul.f32 %v194, %v146
  %v203 = vadd.f32 %v195, 1e-05
  %v204 = vadd.f32 %v196, 1e-05
  %v205 = vadd.f32 %v197, 1e-05
  %v206 = vadd.f32 %v198, 1e-05
  %v207 = vadd.f32 %v199, 1e-05
  %v208 = vadd.f32 %v200, 1e-05
  %v209 = vadd.f32 %v201, 1e-05
  %v210 = vadd.f32 %v202, 1e-05
  %v211 = vrsqrt.pop %v203
  %v212 = vmul.f32 %v211, %v203
  %v213 = vmul.f32 %v212, %v211
  %v214 = vmul.f32 0.5, %v213
  %v215 = vsub.f32 1.5, %v214
  %v216 = vmul.f32 %v211, %v215
  %vm217 = vweird.f32 %v203
  %vm218 = vweird.f32 %v211
  %vm219 = vmor %vm217, %vm218
  %v220 = vsel %vm219, %v211, %v216
  %v221 = vrsqrt.pop %v204
  %v222 = vmul.f32 %v221, %v204
  %v223 = vmul.f32 %v222, %v221
  %v224 = vmul.f32 0.5, %v223
  %v225 = vsub.f32 1.5, %v224
  %v226 = vmul.f32 %v221, %v225
  %vm227 = vweird.f32 %v204
  %vm228 = vweird.f32 %v221
  %vm229 = vmor %vm227, %vm228
  %v230 = vsel %vm229, %v221, %v226
  %v231 = vrsqrt.pop %v205
  %v232 = vmul.f32 %v231, %v205
  %v233 = vmul.f32 %v232, %v231
  %v234 = vmul.f32 0.5, %v233
  %v235 = vsub.f32 1.5, %v234
  %v236 = vmul.f32 %v231, %v235
  %vm237 = vweird.f32 %v205
  %vm238 = vweird.f32 %v231
  %vm239 = vmor %vm237, %vm238
  %v240 = vsel %vm239, %v231, %v236
  %v241 = vrsqrt.pop %v206
  %v242 = vmul.f32 %v241, %v206
  %v243 = vmul.f32 %v242, %v241
  %v244 = vmul.f32 0.5, %v243
  %v245 = vsub.f32 1.5, %v244
  %v246 = vmul.f32 %v241, %v245
  %vm247 = vweird.f32 %v206
  %vm248 = vweird.f32 %v241
  %vm249 = vmor %vm247, %vm248
  %v250 = vsel %vm249, %v241, %v246
  %v251 = vrsqrt.pop %v207
  %v252 = vmul.f32 %v251, %v207
  %v253 = vmul.f32 %v252, %v251
  %v254 = vmul.f32 0.5, %v253
  %v255 = vsub.f32 1.5, %v254
  %v256 = vmul.f32 %v251, %v255
  %vm257 = vweird.f32 %v207
  %vm258 = vweird.f32 %v251
  %vm259 = vmor %vm257, %vm258
  %v260 = vsel %vm259, %v251, %v256
  %v261 = vrsqrt.pop %v208
  %v262 = vmul.f32 %v261, %v208
  %v263 = vmul.f32 %v262, %v261
  %v264 = vmul.f32 0.5, %v263
  %v265 = vsub.f32 1.5, %v264
  %v266 = vmul.f32 %v261, %v265
  %vm267 = vweird.f32 %v208
  %vm268 = vweird.f32 %v261
  %vm269 = vmor %vm267, %vm268
  %v270 = vsel %vm269, %v261, %v266
  %v271 = vrsqrt.pop %v209
  %v272 = vmul.f32 %v271, %v209
  %v273 = vmul.f32 %v272, %v271
  %v274 = vmul.f32 0.5, %v273
  %v275 = vsub.f32 1.5, %v274
  %v276 = vmul.f32 %v271, %v275
  %vm277 = vweird.f32 %v209
  %vm278 = vweird.f32 %v271
  %vm279 = vmor %vm277, %vm278
  %v280 = vsel %vm279, %v271, %v276
  %v281 = vrsqrt.pop %v210
  %v282 = vmul.f32 %v281, %v210
  %v283 = vmul.f32 %v282, %v281
  %v284 = vmul.f32 0.5, %v283
  %v285 = vsub.f32 1.5, %v284
  %v286 = vmul.f32 %v281, %v285
  %vm287 = vweird.f32 %v210
  %vm288 = vweird.f32 %v281
  %vm289 = vmor %vm287, %vm288
  %v290 = vsel %vm289, %v281, %v286
  %v291 = vmul.f32 %v155, %v220
  %v292 = vmul.f32 %v156, %v230
  %v293 = vmul.f32 %v157, %v240
  %v294 = vmul.f32 %v158, %v250
  %v295 = vmul.f32 %v159, %v260
  %v296 = vmul.f32 %v160, %v270
  %v297 = vmul.f32 %v161, %v280
  %v298 = vmul.f32 %v162, %v290
  %v300 = vperm.slane %v87, 0
  %v302 = vmul.f32 %v291, %v300
  %v303 = vmul.f32 %v292, %v300
  %v304 = vmul.f32 %v293, %v300
  %v305 = vmul.f32 %v294, %v300
  %v306 = vmul.f32 %v295, %v300
  %v307 = vmul.f32 %v296, %v300
  %v308 = vmul.f32 %v297, %v300
  %v309 = vmul.f32 %v298, %v300
  %v311 = vperm.slane %v88, 0
  %v313 = vadd.f32 %v302, %v311
  %v314 = vadd.f32 %v303, %v311
  %v315 = vadd.f32 %v304, %v311
  %v316 = vadd.f32 %v305, %v311
  %v317 = vadd.f32 %v306, %v311
  %v318 = vadd.f32 %v307, %v311
  %v319 = vadd.f32 %v308, %v311
  %v320 = vadd.f32 %v309, %v311
  %v322 = vperm.slane %v93, 0
  %v325 = vsel %vm115, %v313, 0
  %v328 = vsel %vm115, %v314, 0
  %v331 = vsel %vm115, %v315, 0
  %v334 = vsel %vm115, %v316, 0
  %v337 = vsel %vm115, %v317, 0
  %v340 = vsel %vm115, %v318, 0
  %v343 = vsel %vm115, %v319, 0
  %v346 = vsel %vm115, %v320, 0
  %348 = vmatpush.msra.mxu0 0.0
  %349 = vmatpush.msra.mxu0 0.0
  %350 = vmatpush.msra.mxu0 0.0
  %351 = vmatpush.msra.mxu0 0.0
  %352 = vmatpush.msra.mxu0 0.0
  %353 = vmatpush.msra.mxu0 0.0
  %354 = vmatpush.msra.mxu0 0.0
  %355 = vmatpush.msra.mxu0 0.0
  %356 = vmatpush.msra.mxu0 0.0
  %357 = vmatpush.msra.mxu0 0.0
  %358 = vmatpush.msra.mxu0 0.0
  %359 = vmatpush.msra.mxu0 0.0
  %360 = vmatpush.msra.mxu0 %v92
  %361 = vmatpush.msra.mxu0 %v91
  %362 = vmatpush.msra.mxu0 %v90
  %363 = vmatpush.msra.mxu0 %v89
  %364 = vmatmul.f32.gmra.mxu0 %v325
  %v365 = vpop.f32.mrf.mxu0
  %v366 = vadd.f32 %v322, %v365
  %367 = vmatmul.f32.gmra.mxu0 %v328
  %v368 = vpop.f32.mrf.mxu0
  %v369 = vadd.f32 %v322, %v368
  %370 = vmatmul.f32.gmra.mxu0 %v331
  %v371 = vpop.f32.mrf.mxu0
  %v372 = vadd.f32 %v322, %v371
  %373 = vmatmul.f32.gmra.mxu0 %v334
  %v374 = vpop.f32.mrf.mxu0
  %v375 = vadd.f32 %v322, %v374
  %376 = vmatmul.f32.gmra.mxu0 %v337
  %v377 = vpop.f32.mrf.mxu0
  %v378 = vadd.f32 %v322, %v377
  %379 = vmatmul.f32.gmra.mxu0 %v340
  %v380 = vpop.f32.mrf.mxu0
  %v381 = vadd.f32 %v322, %v380
  %382 = vmatmul.f32.gmra.mxu0 %v343
  %v383 = vpop.f32.mrf.mxu0
  %v384 = vadd.f32 %v322, %v383
  %385 = vmatmul.f32.gmra.mxu0 %v346
  %v386 = vpop.f32.mrf.mxu0
  %v387 = vadd.f32 %v322, %v386
  %388 = vdwg.mxu0
  %390 = vrot.lane.b32.xlu0 %v366, 96
  %v391 = vpop.permute.xlu0 %390
  %vm392 = vcmask 64512
  %v393 = vsel %vm392, %v391, 0
  %v395 = vsel %vm392, %v366, 0
  %397 = vmatpush.xpose.msra.mxu0 0.0
  %398 = vmatpush.xpose.msra.mxu0 0.0
  %399 = vmatpush.xpose.msra.mxu0 0.0
  %400 = vmatpush.xpose.msra.mxu0 0.0
  %401 = vmatpush.xpose.msra.mxu0 0.0
  %402 = vmatpush.xpose.msra.mxu0 0.0
  %403 = vmatpush.xpose.msra.mxu0 0.0
  %404 = vmatpush.xpose.msra.mxu0 0.0
  %405 = vmatpush.xpose.msra.mxu0 0.0
  %406 = vmatpush.xpose.msra.mxu0 0.0
  %407 = vmatpush.xpose.msra.mxu0 0.0
  %408 = vmatpush.xpose.msra.mxu0 0.0
  %409 = vmatpush.xpose.msra.mxu0 0.0
  %410 = vmatpush.xpose.msra.mxu0 0.0
  %411 = vmatpush.xpose.msra.mxu0 0.0
  %412 = vmatpush.xpose.msra.mxu0 %v395
  %413 = vmatmul.f32.gmra.mxu0 %v393
  %v414 = vpop.f32.mrf.mxu0
  %v415 = vadd.f32 0.0, %v414
  %416 = vdwg.mxu0
  %418 = vrot.lane.b32.xlu0 %v369, 96
  %v419 = vpop.permute.xlu0 %418
  %v420 = vsel %vm392, %v419, 0
  %v422 = vsel %vm392, %v369, 0
  %424 = vmatpush.xpose.msra.mxu0 0.0
  %425 = vmatpush.xpose.msra.mxu0 0.0
  %426 = vmatpush.xpose.msra.mxu0 0.0
  %427 = vmatpush.xpose.msra.mxu0 0.0
  %428 = vmatpush.xpose.msra.mxu0 0.0
  %429 = vmatpush.xpose.msra.mxu0 0.0
  %430 = vmatpush.xpose.msra.mxu0 0.0
  %431 = vmatpush.xpose.msra.mxu0 0.0
  %432 = vmatpush.xpose.msra.mxu0 0.0
  %433 = vmatpush.xpose.msra.mxu0 0.0
  %434 = vmatpush.xpose.msra.mxu0 0.0
  %435 = vmatpush.xpose.msra.mxu0 0.0
  %436 = vmatpush.xpose.msra.mxu0 0.0
  %437 = vmatpush.xpose.msra.mxu0 0.0
  %438 = vmatpush.xpose.msra.mxu0 0.0
  %439 = vmatpush.xpose.msra.mxu0 %v422
  %440 = vmatmul.f32.gmra.mxu0 %v420
  %v441 = vpop.f32.mrf.mxu0
  %v442 = vadd.f32 0.0, %v441
  %443 = vdwg.mxu0
  %445 = vrot.lane.b32.xlu0 %v372, 96
  %v446 = vpop.permute.xlu0 %445
  %v447 = vsel %vm392, %v446, 0
  %v449 = vsel %vm392, %v372, 0
  %451 = vmatpush.xpose.msra.mxu0 0.0
  %452 = vmatpush.xpose.msra.mxu0 0.0
  %453 = vmatpush.xpose.msra.mxu0 0.0
  %454 = vmatpush.xpose.msra.mxu0 0.0
  %455 = vmatpush.xpose.msra.mxu0 0.0
  %456 = vmatpush.xpose.msra.mxu0 0.0
  %457 = vmatpush.xpose.msra.mxu0 0.0
  %458 = vmatpush.xpose.msra.mxu0 0.0
  %459 = vmatpush.xpose.msra.mxu0 0.0
  %460 = vmatpush.xpose.msra.mxu0 0.0
  %461 = vmatpush.xpose.msra.mxu0 0.0
  %462 = vmatpush.xpose.msra.mxu0 0.0
  %463 = vmatpush.xpose.msra.mxu0 0.0
  %464 = vmatpush.xpose.msra.mxu0 0.0
  %465 = vmatpush.xpose.msra.mxu0 0.0
  %466 = vmatpush.xpose.msra.mxu0 %v449
  %467 = vmatmul.f32.gmra.mxu0 %v447
  %v468 = vpop.f32.mrf.mxu0
  %v469 = vadd.f32 0.0, %v468
  %470 = vdwg.mxu0
  %472 = vrot.lane.b32.xlu0 %v375, 96
  %v473 = vpop.permute.xlu0 %472
  %v474 = vsel %vm392, %v473, 0
  %v476 = vsel %vm392, %v375, 0
  %478 = vmatpush.xpose.msra.mxu0 0.0
  %479 = vmatpush.xpose.msra.mxu0 0.0
  %480 = vmatpush.xpose.msra.mxu0 0.0
  %481 = vmatpush.xpose.msra.mxu0 0.0
  %482 = vmatpush.xpose.msra.mxu0 0.0
  %483 = vmatpush.xpose.msra.mxu0 0.0
  %484 = vmatpush.xpose.msra.mxu0 0.0
  %485 = vmatpush.xpose.msra.mxu0 0.0
  %486 = vmatpush.xpose.msra.mxu0 0.0
  %487 = vmatpush.xpose.msra.mxu0 0.0
  %488 = vmatpush.xpose.msra.mxu0 0.0
  %489 = vmatpush.xpose.msra.mxu0 0.0
  %490 = vmatpush.xpose.msra.mxu0 0.0
  %491 = vmatpush.xpose.msra.mxu0 0.0
  %492 = vmatpush.xpose.msra.mxu0 0.0
  %493 = vmatpush.xpose.msra.mxu0 %v476
  %494 = vmatmul.f32.gmra.mxu0 %v474
  %v495 = vpop.f32.mrf.mxu0
  %v496 = vadd.f32 0.0, %v495
  %497 = vdwg.mxu0
  %499 = vrot.lane.b32.xlu0 %v378, 96
  %v500 = vpop.permute.xlu0 %499
  %v501 = vsel %vm392, %v500, 0
  %v503 = vsel %vm392, %v378, 0
  %505 = vmatpush.xpose.msra.mxu0 0.0
  %506 = vmatpush.xpose.msra.mxu0 0.0
  %507 = vmatpush.xpose.msra.mxu0 0.0
  %508 = vmatpush.xpose.msra.mxu0 0.0
  %509 = vmatpush.xpose.msra.mxu0 0.0
  %510 = vmatpush.xpose.msra.mxu0 0.0
  %511 = vmatpush.xpose.msra.mxu0 0.0
  %512 = vmatpush.xpose.msra.mxu0 0.0
  %513 = vmatpush.xpose.msra.mxu0 0.0
  %514 = vmatpush.xpose.msra.mxu0 0.0
  %515 = vmatpush.xpose.msra.mxu0 0.0
  %516 = vmatpush.xpose.msra.mxu0 0.0
  %517 = vmatpush.xpose.msra.mxu0 0.0
  %518 = vmatpush.xpose.msra.mxu0 0.0
  %519 = vmatpush.xpose.msra.mxu0 0.0
  %520 = vmatpush.xpose.msra.mxu0 %v503
  %521 = vmatmul.f32.gmra.mxu0 %v501
  %v522 = vpop.f32.mrf.mxu0
  %v523 = vadd.f32 0.0, %v522
  %524 = vdwg.mxu0
  %526 = vrot.lane.b32.xlu0 %v381, 96
  %v527 = vpop.permute.xlu0 %526
  %v528 = vsel %vm392, %v527, 0
  %v530 = vsel %vm392, %v381, 0
  %532 = vmatpush.xpose.msra.mxu0 0.0
  %533 = vmatpush.xpose.msra.mxu0 0.0
  %534 = vmatpush.xpose.msra.mxu0 0.0
  %535 = vmatpush.xpose.msra.mxu0 0.0
  %536 = vmatpush.xpose.msra.mxu0 0.0
  %537 = vmatpush.xpose.msra.mxu0 0.0
  %538 = vmatpush.xpose.msra.mxu0 0.0
  %539 = vmatpush.xpose.msra.mxu0 0.0
  %540 = vmatpush.xpose.msra.mxu0 0.0
  %541 = vmatpush.xpose.msra.mxu0 0.0
  %542 = vmatpush.xpose.msra.mxu0 0.0
  %543 = vmatpush.xpose.msra.mxu0 0.0
  %544 = vmatpush.xpose.msra.mxu0 0.0
  %545 = vmatpush.xpose.msra.mxu0 0.0
  %546 = vmatpush.xpose.msra.mxu0 0.0
  %547 = vmatpush.xpose.msra.mxu0 %v530
  %548 = vmatmul.f32.gmra.mxu0 %v528
  %v549 = vpop.f32.mrf.mxu0
  %v550 = vadd.f32 0.0, %v549
  %551 = vdwg.mxu0
  %553 = vrot.lane.b32.xlu0 %v384, 96
  %v554 = vpop.permute.xlu0 %553
  %v555 = vsel %vm392, %v554, 0
  %v557 = vsel %vm392, %v384, 0
  %559 = vmatpush.xpose.msra.mxu0 0.0
  %560 = vmatpush.xpose.msra.mxu0 0.0
  %561 = vmatpush.xpose.msra.mxu0 0.0
  %562 = vmatpush.xpose.msra.mxu0 0.0
  %563 = vmatpush.xpose.msra.mxu0 0.0
  %564 = vmatpush.xpose.msra.mxu0 0.0
  %565 = vmatpush.xpose.msra.mxu0 0.0
  %566 = vmatpush.xpose.msra.mxu0 0.0
  %567 = vmatpush.xpose.msra.mxu0 0.0
  %568 = vmatpush.xpose.msra.mxu0 0.0
  %569 = vmatpush.xpose.msra.mxu0 0.0
  %570 = vmatpush.xpose.msra.mxu0 0.0
  %571 = vmatpush.xpose.msra.mxu0 0.0
  %572 = vmatpush.xpose.msra.mxu0 0.0
  %573 = vmatpush.xpose.msra.mxu0 0.0
  %574 = vmatpush.xpose.msra.mxu0 %v557
  %575 = vmatmul.f32.gmra.mxu0 %v555
  %v576 = vpop.f32.mrf.mxu0
  %v577 = vadd.f32 0.0, %v576
  %578 = vdwg.mxu0
  %580 = vrot.lane.b32.xlu0 %v387, 96
  %v581 = vpop.permute.xlu0 %580
  %v582 = vsel %vm392, %v581, 0
  %v584 = vsel %vm392, %v387, 0
  %586 = vmatpush.xpose.msra.mxu0 0.0
  %587 = vmatpush.xpose.msra.mxu0 0.0
  %588 = vmatpush.xpose.msra.mxu0 0.0
  %589 = vmatpush.xpose.msra.mxu0 0.0
  %590 = vmatpush.xpose.msra.mxu0 0.0
  %591 = vmatpush.xpose.msra.mxu0 0.0
  %592 = vmatpush.xpose.msra.mxu0 0.0
  %593 = vmatpush.xpose.msra.mxu0 0.0
  %594 = vmatpush.xpose.msra.mxu0 0.0
  %595 = vmatpush.xpose.msra.mxu0 0.0
  %596 = vmatpush.xpose.msra.mxu0 0.0
  %597 = vmatpush.xpose.msra.mxu0 0.0
  %598 = vmatpush.xpose.msra.mxu0 0.0
  %599 = vmatpush.xpose.msra.mxu0 0.0
  %600 = vmatpush.xpose.msra.mxu0 0.0
  %601 = vmatpush.xpose.msra.mxu0 %v584
  %602 = vmatmul.f32.gmra.mxu0 %v582
  %v603 = vpop.f32.mrf.mxu0
  %v604 = vadd.f32 0.0, %v603
  %605 = vdwg.mxu0
  %v606 = vmul.f32 %v415, 0.35355338
  %v607 = vmul.f32 %v442, 0.35355338
  %v608 = vmul.f32 %v469, 0.35355338
  %v609 = vmul.f32 %v496, 0.35355338
  %v610 = vmul.f32 %v523, 0.35355338
  %v611 = vmul.f32 %v550, 0.35355338
  %v612 = vmul.f32 %v577, 0.35355338
  %v613 = vmul.f32 %v604, 0.35355338
  %v614 = vadd.f32 %v606, %v55
  %v615 = vadd.f32 %v607, %v59
  %v616 = vadd.f32 %v608, %v63
  %v617 = vadd.f32 %v609, %v67
  %v618 = vadd.f32 %v610, %v71
  %v619 = vadd.f32 %v611, %v75
  %v620 = vadd.f32 %v612, %v79
  %v621 = vadd.f32 %v613, %v83
  %v622 = vsel %vm392, %v614, -inf
  %623 = vmax.xlane.f32.xlu0 %v622
  %v624 = vpop.xlane.xlu0 %623
  %v625 = vsel %vm392, %v615, -inf
  %626 = vmax.xlane.f32.xlu0 %v625
  %v627 = vpop.xlane.xlu0 %626
  %v628 = vsel %vm392, %v616, -inf
  %629 = vmax.xlane.f32.xlu0 %v628
  %v630 = vpop.xlane.xlu0 %629
  %v631 = vsel %vm392, %v617, -inf
  %632 = vmax.xlane.f32.xlu0 %v631
  %v633 = vpop.xlane.xlu0 %632
  %v634 = vsel %vm392, %v618, -inf
  %635 = vmax.xlane.f32.xlu0 %v634
  %v636 = vpop.xlane.xlu0 %635
  %v637 = vsel %vm392, %v619, -inf
  %638 = vmax.xlane.f32.xlu0 %v637
  %v639 = vpop.xlane.xlu0 %638
  %v640 = vsel %vm392, %v620, -inf
  %641 = vmax.xlane.f32.xlu0 %v640
  %v642 = vpop.xlane.xlu0 %641
  %v643 = vsel %vm392, %v621, -inf
  %644 = vmax.xlane.f32.xlu0 %v643
  %v645 = vpop.xlane.xlu0 %644
  %v646 = vsub.f32 %v614, %v624
  %v647 = vsub.f32 %v615, %v627
  %v648 = vsub.f32 %v616, %v630
  %v649 = vsub.f32 %v617, %v633
  %v650 = vsub.f32 %v618, %v636
  %v651 = vsub.f32 %v619, %v639
  %v652 = vsub.f32 %v620, %v642
  %v653 = vsub.f32 %v621, %v645
  %v654 = vmul.f32 %v646, 1.442695
  %v655 = vpow.pop %v654
  %v656 = vmul.f32 %v647, 1.442695
  %v657 = vpow.pop %v656
  %v658 = vmul.f32 %v648, 1.442695
  %v659 = vpow.pop %v658
  %v660 = vmul.f32 %v649, 1.442695
  %v661 = vpow.pop %v660
  %v662 = vmul.f32 %v650, 1.442695
  %v663 = vpow.pop %v662
  %v664 = vmul.f32 %v651, 1.442695
  %v665 = vpow.pop %v664
  %v666 = vmul.f32 %v652, 1.442695
  %v667 = vpow.pop %v666
  %v668 = vmul.f32 %v653, 1.442695
  %v669 = vpow.pop %v668
  %v670 = vsel %vm392, %v655, 0.0
  %671 = vadd.xlane.f32.xlu0 %v670
  %v672 = vpop.xlane.xlu0 %671
  %v673 = vsel %vm392, %v657, 0.0
  %674 = vadd.xlane.f32.xlu0 %v673
  %v675 = vpop.xlane.xlu0 %674
  %v676 = vsel %vm392, %v659, 0.0
  %677 = vadd.xlane.f32.xlu0 %v676
  %v678 = vpop.xlane.xlu0 %677
  %v679 = vsel %vm392, %v661, 0.0
  %680 = vadd.xlane.f32.xlu0 %v679
  %v681 = vpop.xlane.xlu0 %680
  %v682 = vsel %vm392, %v663, 0.0
  %683 = vadd.xlane.f32.xlu0 %v682
  %v684 = vpop.xlane.xlu0 %683
  %v685 = vsel %vm392, %v665, 0.0
  %686 = vadd.xlane.f32.xlu0 %v685
  %v687 = vpop.xlane.xlu0 %686
  %v688 = vsel %vm392, %v667, 0.0
  %689 = vadd.xlane.f32.xlu0 %v688
  %v690 = vpop.xlane.xlu0 %689
  %v691 = vsel %vm392, %v669, 0.0
  %692 = vadd.xlane.f32.xlu0 %v691
  %v693 = vpop.xlane.xlu0 %692
  %v694 = vrcp.pop %v672
  %v695 = vrcp.pop %v675
  %v696 = vrcp.pop %v678
  %v697 = vrcp.pop %v681
  %v698 = vrcp.pop %v684
  %v699 = vrcp.pop %v687
  %v700 = vrcp.pop %v690
  %v701 = vrcp.pop %v693
  %v702 = vmul.f32 %v655, %v694
  %v703 = vmul.f32 %v657, %v695
  %v704 = vmul.f32 %v659, %v696
  %v705 = vmul.f32 %v661, %v697
  %v706 = vmul.f32 %v663, %v698
  %v707 = vmul.f32 %v665, %v699
  %v708 = vmul.f32 %v667, %v700
  %v709 = vmul.f32 %v669, %v701
  %710 = vrot.lane.b32.xlu0 %v366, 64
  %v711 = vpop.permute.xlu0 %710
  %v714 = vsel %vm392, %v702, 0
  %716 = vmatpush.msra.mxu0 0.0
  %717 = vmatpush.msra.mxu0 0.0
  %718 = vmatpush.msra.mxu0 0.0
  %719 = vmatpush.msra.mxu0 0.0
  %720 = vmatpush.msra.mxu0 0.0
  %721 = vmatpush.msra.mxu0 0.0
  %722 = vmatpush.msra.mxu0 0.0
  %723 = vmatpush.msra.mxu0 0.0
  %724 = vmatpush.msra.mxu0 0.0
  %725 = vmatpush.msra.mxu0 0.0
  %726 = vmatpush.msra.mxu0 0.0
  %727 = vmatpush.msra.mxu0 0.0
  %728 = vmatpush.msra.mxu0 0.0
  %729 = vmatpush.msra.mxu0 0.0
  %730 = vmatpush.msra.mxu0 0.0
  %731 = vmatpush.msra.mxu0 %v711
  %732 = vmatmul.f32.gmra.mxu0 %v714
  %v733 = vpop.f32.mrf.mxu0
  %v734 = vadd.f32 0.0, %v733
  %735 = vdwg.mxu0
  %736 = vrot.lane.b32.xlu0 %v369, 64
  %v737 = vpop.permute.xlu0 %736
  %v740 = vsel %vm392, %v703, 0
  %742 = vmatpush.msra.mxu0 0.0
  %743 = vmatpush.msra.mxu0 0.0
  %744 = vmatpush.msra.mxu0 0.0
  %745 = vmatpush.msra.mxu0 0.0
  %746 = vmatpush.msra.mxu0 0.0
  %747 = vmatpush.msra.mxu0 0.0
  %748 = vmatpush.msra.mxu0 0.0
  %749 = vmatpush.msra.mxu0 0.0
  %750 = vmatpush.msra.mxu0 0.0
  %751 = vmatpush.msra.mxu0 0.0
  %752 = vmatpush.msra.mxu0 0.0
  %753 = vmatpush.msra.mxu0 0.0
  %754 = vmatpush.msra.mxu0 0.0
  %755 = vmatpush.msra.mxu0 0.0
  %756 = vmatpush.msra.mxu0 0.0
  %757 = vmatpush.msra.mxu0 %v737
  %758 = vmatmul.f32.gmra.mxu0 %v740
  %v759 = vpop.f32.mrf.mxu0
  %v760 = vadd.f32 0.0, %v759
  %761 = vdwg.mxu0
  %762 = vrot.lane.b32.xlu0 %v372, 64
  %v763 = vpop.permute.xlu0 %762
  %v766 = vsel %vm392, %v704, 0
  %768 = vmatpush.msra.mxu0 0.0
  %769 = vmatpush.msra.mxu0 0.0
  %770 = vmatpush.msra.mxu0 0.0
  %771 = vmatpush.msra.mxu0 0.0
  %772 = vmatpush.msra.mxu0 0.0
  %773 = vmatpush.msra.mxu0 0.0
  %774 = vmatpush.msra.mxu0 0.0
  %775 = vmatpush.msra.mxu0 0.0
  %776 = vmatpush.msra.mxu0 0.0
  %777 = vmatpush.msra.mxu0 0.0
  %778 = vmatpush.msra.mxu0 0.0
  %779 = vmatpush.msra.mxu0 0.0
  %780 = vmatpush.msra.mxu0 0.0
  %781 = vmatpush.msra.mxu0 0.0
  %782 = vmatpush.msra.mxu0 0.0
  %783 = vmatpush.msra.mxu0 %v763
  %784 = vmatmul.f32.gmra.mxu0 %v766
  %v785 = vpop.f32.mrf.mxu0
  %v786 = vadd.f32 0.0, %v785
  %787 = vdwg.mxu0
  %788 = vrot.lane.b32.xlu0 %v375, 64
  %v789 = vpop.permute.xlu0 %788
  %v792 = vsel %vm392, %v705, 0
  %794 = vmatpush.msra.mxu0 0.0
  %795 = vmatpush.msra.mxu0 0.0
  %796 = vmatpush.msra.mxu0 0.0
  %797 = vmatpush.msra.mxu0 0.0
  %798 = vmatpush.msra.mxu0 0.0
  %799 = vmatpush.msra.mxu0 0.0
  %800 = vmatpush.msra.mxu0 0.0
  %801 = vmatpush.msra.mxu0 0.0
  %802 = vmatpush.msra.mxu0 0.0
  %803 = vmatpush.msra.mxu0 0.0
  %804 = vmatpush.msra.mxu0 0.0
  %805 = vmatpush.msra.mxu0 0.0
  %806 = vmatpush.msra.mxu0 0.0
  %807 = vmatpush.msra.mxu0 0.0
  %808 = vmatpush.msra.mxu0 0.0
  %809 = vmatpush.msra.mxu0 %v789
  %810 = vmatmul.f32.gmra.mxu0 %v792
  %v811 = vpop.f32.mrf.mxu0
  %v812 = vadd.f32 0.0, %v811
  %813 = vdwg.mxu0
  %814 = vrot.lane.b32.xlu0 %v378, 64
  %v815 = vpop.permute.xlu0 %814
  %v818 = vsel %vm392, %v706, 0
  %820 = vmatpush.msra.mxu0 0.0
  %821 = vmatpush.msra.mxu0 0.0
  %822 = vmatpush.msra.mxu0 0.0
  %823 = vmatpush.msra.mxu0 0.0
  %824 = vmatpush.msra.mxu0 0.0
  %825 = vmatpush.msra.mxu0 0.0
  %826 = vmatpush.msra.mxu0 0.0
  %827 = vmatpush.msra.mxu0 0.0
  %828 = vmatpush.msra.mxu0 0.0
  %829 = vmatpush.msra.mxu0 0.0
  %830 = vmatpush.msra.mxu0 0.0
  %831 = vmatpush.msra.mxu0 0.0
  %832 = vmatpush.msra.mxu0 0.0
  %833 = vmatpush.msra.mxu0 0.0
  %834 = vmatpush.msra.mxu0 0.0
  %835 = vmatpush.msra.mxu0 %v815
  %836 = vmatmul.f32.gmra.mxu0 %v818
  %v837 = vpop.f32.mrf.mxu0
  %v838 = vadd.f32 0.0, %v837
  %839 = vdwg.mxu0
  %840 = vrot.lane.b32.xlu0 %v381, 64
  %v841 = vpop.permute.xlu0 %840
  %v844 = vsel %vm392, %v707, 0
  %846 = vmatpush.msra.mxu0 0.0
  %847 = vmatpush.msra.mxu0 0.0
  %848 = vmatpush.msra.mxu0 0.0
  %849 = vmatpush.msra.mxu0 0.0
  %850 = vmatpush.msra.mxu0 0.0
  %851 = vmatpush.msra.mxu0 0.0
  %852 = vmatpush.msra.mxu0 0.0
  %853 = vmatpush.msra.mxu0 0.0
  %854 = vmatpush.msra.mxu0 0.0
  %855 = vmatpush.msra.mxu0 0.0
  %856 = vmatpush.msra.mxu0 0.0
  %857 = vmatpush.msra.mxu0 0.0
  %858 = vmatpush.msra.mxu0 0.0
  %859 = vmatpush.msra.mxu0 0.0
  %860 = vmatpush.msra.mxu0 0.0
  %861 = vmatpush.msra.mxu0 %v841
  %862 = vmatmul.f32.gmra.mxu0 %v844
  %v863 = vpop.f32.mrf.mxu0
  %v864 = vadd.f32 0.0, %v863
  %865 = vdwg.mxu0
  %866 = vrot.lane.b32.xlu0 %v384, 64
  %v867 = vpop.permute.xlu0 %866
  %v870 = vsel %vm392, %v708, 0
  %872 = vmatpush.msra.mxu0 0.0
  %873 = vmatpush.msra.mxu0 0.0
  %874 = vmatpush.msra.mxu0 0.0
  %875 = vmatpush.msra.mxu0 0.0
  %876 = vmatpush.msra.mxu0 0.0
  %877 = vmatpush.msra.mxu0 0.0
  %878 = vmatpush.msra.mxu0 0.0
  %879 = vmatpush.msra.mxu0 0.0
  %880 = vmatpush.msra.mxu0 0.0
  %881 = vmatpush.msra.mxu0 0.0
  %882 = vmatpush.msra.mxu0 0.0
  %883 = vmatpush.msra.mxu0 0.0
  %884 = vmatpush.msra.mxu0 0.0
  %885 = vmatpush.msra.mxu0 0.0
  %886 = vmatpush.msra.mxu0 0.0
  %887 = vmatpush.msra.mxu0 %v867
  %888 = vmatmul.f32.gmra.mxu0 %v870
  %v889 = vpop.f32.mrf.mxu0
  %v890 = vadd.f32 0.0, %v889
  %891 = vdwg.mxu0
  %892 = vrot.lane.b32.xlu0 %v387, 64
  %v893 = vpop.permute.xlu0 %892
  %v896 = vsel %vm392, %v709, 0
  %898 = vmatpush.msra.mxu0 0.0
  %899 = vmatpush.msra.mxu0 0.0
  %900 = vmatpush.msra.mxu0 0.0
  %901 = vmatpush.msra.mxu0 0.0
  %902 = vmatpush.msra.mxu0 0.0
  %903 = vmatpush.msra.mxu0 0.0
  %904 = vmatpush.msra.mxu0 0.0
  %905 = vmatpush.msra.mxu0 0.0
  %906 = vmatpush.msra.mxu0 0.0
  %907 = vmatpush.msra.mxu0 0.0
  %908 = vmatpush.msra.mxu0 0.0
  %909 = vmatpush.msra.mxu0 0.0
  %910 = vmatpush.msra.mxu0 0.0
  %911 = vmatpush.msra.mxu0 0.0
  %912 = vmatpush.msra.mxu0 0.0
  %913 = vmatpush.msra.mxu0 %v893
  %914 = vmatmul.f32.gmra.mxu0 %v896
  %v915 = vpop.f32.mrf.mxu0
  %v916 = vadd.f32 0.0, %v915
  %917 = vdwg.mxu0
  %918 = vrot.lane.b32.xlu0 %v366, 88
  %v919 = vpop.permute.xlu0 %918
  %920 = vrot.lane.b32.xlu0 %v366, 120
  %v921 = vpop.permute.xlu0 %920
  %v922 = vsel %vm392, %v919, 0
  %v924 = vsel %vm392, %v921, 0
  %926 = vmatpush.xpose.msra.mxu0 0.0
  %927 = vmatpush.xpose.msra.mxu0 0.0
  %928 = vmatpush.xpose.msra.mxu0 0.0
  %929 = vmatpush.xpose.msra.mxu0 0.0
  %930 = vmatpush.xpose.msra.mxu0 0.0
  %931 = vmatpush.xpose.msra.mxu0 0.0
  %932 = vmatpush.xpose.msra.mxu0 0.0
  %933 = vmatpush.xpose.msra.mxu0 0.0
  %934 = vmatpush.xpose.msra.mxu0 0.0
  %935 = vmatpush.xpose.msra.mxu0 0.0
  %936 = vmatpush.xpose.msra.mxu0 0.0
  %937 = vmatpush.xpose.msra.mxu0 0.0
  %938 = vmatpush.xpose.msra.mxu0 0.0
  %939 = vmatpush.xpose.msra.mxu0 0.0
  %940 = vmatpush.xpose.msra.mxu0 0.0
  %941 = vmatpush.xpose.msra.mxu0 %v924
  %942 = vmatmul.f32.gmra.mxu0 %v922
  %v943 = vpop.f32.mrf.mxu0
  %v944 = vadd.f32 0.0, %v943
  %945 = vdwg.mxu0
  %946 = vrot.lane.b32.xlu0 %v369, 88
  %v947 = vpop.permute.xlu0 %946
  %948 = vrot.lane.b32.xlu0 %v369, 120
  %v949 = vpop.permute.xlu0 %948
  %v950 = vsel %vm392, %v947, 0
  %v952 = vsel %vm392, %v949, 0
  %954 = vmatpush.xpose.msra.mxu0 0.0
  %955 = vmatpush.xpose.msra.mxu0 0.0
  %956 = vmatpush.xpose.msra.mxu0 0.0
  %957 = vmatpush.xpose.msra.mxu0 0.0
  %958 = vmatpush.xpose.msra.mxu0 0.0
  %959 = vmatpush.xpose.msra.mxu0 0.0
  %960 = vmatpush.xpose.msra.mxu0 0.0
  %961 = vmatpush.xpose.msra.mxu0 0.0
  %962 = vmatpush.xpose.msra.mxu0 0.0
  %963 = vmatpush.xpose.msra.mxu0 0.0
  %964 = vmatpush.xpose.msra.mxu0 0.0
  %965 = vmatpush.xpose.msra.mxu0 0.0
  %966 = vmatpush.xpose.msra.mxu0 0.0
  %967 = vmatpush.xpose.msra.mxu0 0.0
  %968 = vmatpush.xpose.msra.mxu0 0.0
  %969 = vmatpush.xpose.msra.mxu0 %v952
  %970 = vmatmul.f32.gmra.mxu0 %v950
  %v971 = vpop.f32.mrf.mxu0
  %v972 = vadd.f32 0.0, %v971
  %973 = vdwg.mxu0
  %974 = vrot.lane.b32.xlu0 %v372, 88
  %v975 = vpop.permute.xlu0 %974
  %976 = vrot.lane.b32.xlu0 %v372, 120
  %v977 = vpop.permute.xlu0 %976
  %v978 = vsel %vm392, %v975, 0
  %v980 = vsel %vm392, %v977, 0
  %982 = vmatpush.xpose.msra.mxu0 0.0
  %983 = vmatpush.xpose.msra.mxu0 0.0
  %984 = vmatpush.xpose.msra.mxu0 0.0
  %985 = vmatpush.xpose.msra.mxu0 0.0
  %986 = vmatpush.xpose.msra.mxu0 0.0
  %987 = vmatpush.xpose.msra.mxu0 0.0
  %988 = vmatpush.xpose.msra.mxu0 0.0
  %989 = vmatpush.xpose.msra.mxu0 0.0
  %990 = vmatpush.xpose.msra.mxu0 0.0
  %991 = vmatpush.xpose.msra.mxu0 0.0
  %992 = vmatpush.xpose.msra.mxu0 0.0
  %993 = vmatpush.xpose.msra.mxu0 0.0
  %994 = vmatpush.xpose.msra.mxu0 0.0
  %995 = vmatpush.xpose.msra.mxu0 0.0
  %996 = vmatpush.xpose.msra.mxu0 0.0
  %997 = vmatpush.xpose.msra.mxu0 %v980
  %998 = vmatmul.f32.gmra.mxu0 %v978
  %v999 = vpop.f32.mrf.mxu0
  %v1000 = vadd.f32 0.0, %v999
  %1001 = vdwg.mxu0
  %1002 = vrot.lane.b32.xlu0 %v375, 88
  %v1003 = vpop.permute.xlu0 %1002
  %1004 = vrot.lane.b32.xlu0 %v375, 120
  %v1005 = vpop.permute.xlu0 %1004
  %v1006 = vsel %vm392, %v1003, 0
  %v1008 = vsel %vm392, %v1005, 0
  %1010 = vmatpush.xpose.msra.mxu0 0.0
  %1011 = vmatpush.xpose.msra.mxu0 0.0
  %1012 = vmatpush.xpose.msra.mxu0 0.0
  %1013 = vmatpush.xpose.msra.mxu0 0.0
  %1014 = vmatpush.xpose.msra.mxu0 0.0
  %1015 = vmatpush.xpose.msra.mxu0 0.0
  %1016 = vmatpush.xpose.msra.mxu0 0.0
  %1017 = vmatpush.xpose.msra.mxu0 0.0
  %1018 = vmatpush.xpose.msra.mxu0 0.0
  %1019 = vmatpush.xpose.msra.mxu0 0.0
  %1020 = vmatpush.xpose.msra.mxu0 0.0
  %1021 = vmatpush.xpose.msra.mxu0 0.0
  %1022 = vmatpush.xpose.msra.mxu0 0.0
  %1023 = vmatpush.xpose.msra.mxu0 0.0
  %1024 = vmatpush.xpose.msra.mxu0 0.0
  %1025 = vmatpush.xpose.msra.mxu0 %v1008
  %1026 = vmatmul.f32.gmra.mxu0 %v1006
  %v1027 = vpop.f32.mrf.mxu0
  %v1028 = vadd.f32 0.0, %v1027
  %1029 = vdwg.mxu0
  %1030 = vrot.lane.b32.xlu0 %v378, 88
  %v1031 = vpop.permute.xlu0 %1030
  %1032 = vrot.lane.b32.xlu0 %v378, 120
  %v1033 = vpop.permute.xlu0 %1032
  %v1034 = vsel %vm392, %v1031, 0
  %v1036 = vsel %vm392, %v1033, 0
  %1038 = vmatpush.xpose.msra.mxu0 0.0
  %1039 = vmatpush.xpose.msra.mxu0 0.0
  %1040 = vmatpush.xpose.msra.mxu0 0.0
  %1041 = vmatpush.xpose.msra.mxu0 0.0
  %1042 = vmatpush.xpose.msra.mxu0 0.0
  %1043 = vmatpush.xpose.msra.mxu0 0.0
  %1044 = vmatpush.xpose.msra.mxu0 0.0
  %1045 = vmatpush.xpose.msra.mxu0 0.0
  %1046 = vmatpush.xpose.msra.mxu0 0.0
  %1047 = vmatpush.xpose.msra.mxu0 0.0
  %1048 = vmatpush.xpose.msra.mxu0 0.0
  %1049 = vmatpush.xpose.msra.mxu0 0.0
  %1050 = vmatpush.xpose.msra.mxu0 0.0
  %1051 = vmatpush.xpose.msra.mxu0 0.0
  %1052 = vmatpush.xpose.msra.mxu0 0.0
  %1053 = vmatpush.xpose.msra.mxu0 %v1036
  %1054 = vmatmul.f32.gmra.mxu0 %v1034
  %v1055 = vpop.f32.mrf.mxu0
  %v1056 = vadd.f32 0.0, %v1055
  %1057 = vdwg.mxu0
  %1058 = vrot.lane.b32.xlu0 %v381, 88
  %v1059 = vpop.permute.xlu0 %1058
  %1060 = vrot.lane.b32.xlu0 %v381, 120
  %v1061 = vpop.permute.xlu0 %1060
  %v1062 = vsel %vm392, %v1059, 0
  %v1064 = vsel %vm392, %v1061, 0
  %1066 = vmatpush.xpose.msra.mxu0 0.0
  %1067 = vmatpush.xpose.msra.mxu0 0.0
  %1068 = vmatpush.xpose.msra.mxu0 0.0
  %1069 = vmatpush.xpose.msra.mxu0 0.0
  %1070 = vmatpush.xpose.msra.mxu0 0.0
  %1071 = vmatpush.xpose.msra.mxu0 0.0
  %1072 = vmatpush.xpose.msra.mxu0 0.0
  %1073 = vmatpush.xpose.msra.mxu0 0.0
  %1074 = vmatpush.xpose.msra.mxu0 0.0
  %1075 = vmatpush.xpose.msra.mxu0 0.0
  %1076 = vmatpush.xpose.msra.mxu0 0.0
  %1077 = vmatpush.xpose.msra.mxu0 0.0
  %1078 = vmatpush.xpose.msra.mxu0 0.0
  %1079 = vmatpush.xpose.msra.mxu0 0.0
  %1080 = vmatpush.xpose.msra.mxu0 0.0
  %1081 = vmatpush.xpose.msra.mxu0 %v1064
  %1082 = vmatmul.f32.gmra.mxu0 %v1062
  %v1083 = vpop.f32.mrf.mxu0
  %v1084 = vadd.f32 0.0, %v1083
  %1085 = vdwg.mxu0
  %1086 = vrot.lane.b32.xlu0 %v384, 88
  %v1087 = vpop.permute.xlu0 %1086
  %1088 = vrot.lane.b32.xlu0 %v384, 120
  %v1089 = vpop.permute.xlu0 %1088
  %v1090 = vsel %vm392, %v1087, 0
  %v1092 = vsel %vm392, %v1089, 0
  %1094 = vmatpush.xpose.msra.mxu0 0.0
  %1095 = vmatpush.xpose.msra.mxu0 0.0
  %1096 = vmatpush.xpose.msra.mxu0 0.0
  %1097 = vmatpush.xpose.msra.mxu0 0.0
  %1098 = vmatpush.xpose.msra.mxu0 0.0
  %1099 = vmatpush.xpose.msra.mxu0 0.0
  %1100 = vmatpush.xpose.msra.mxu0 0.0
  %1101 = vmatpush.xpose.msra.mxu0 0.0
  %1102 = vmatpush.xpose.msra.mxu0 0.0
  %1103 = vmatpush.xpose.msra.mxu0 0.0
  %1104 = vmatpush.xpose.msra.mxu0 0.0
  %1105 = vmatpush.xpose.msra.mxu0 0.0
  %1106 = vmatpush.xpose.msra.mxu0 0.0
  %1107 = vmatpush.xpose.msra.mxu0 0.0
  %1108 = vmatpush.xpose.msra.mxu0 0.0
  %1109 = vmatpush.xpose.msra.mxu0 %v1092
  %1110 = vmatmul.f32.gmra.mxu0 %v1090
  %v1111 = vpop.f32.mrf.mxu0
  %v1112 = vadd.f32 0.0, %v1111
  %1113 = vdwg.mxu0
  %1114 = vrot.lane.b32.xlu0 %v387, 88
  %v1115 = vpop.permute.xlu0 %1114
  %1116 = vrot.lane.b32.xlu0 %v387, 120
  %v1117 = vpop.permute.xlu0 %1116
  %v1118 = vsel %vm392, %v1115, 0
  %v1120 = vsel %vm392, %v1117, 0
  %1122 = vmatpush.xpose.msra.mxu0 0.0
  %1123 = vmatpush.xpose.msra.mxu0 0.0
  %1124 = vmatpush.xpose.msra.mxu0 0.0
  %1125 = vmatpush.xpose.msra.mxu0 0.0
  %1126 = vmatpush.xpose.msra.mxu0 0.0
  %1127 = vmatpush.xpose.msra.mxu0 0.0
  %1128 = vmatpush.xpose.msra.mxu0 0.0
  %1129 = vmatpush.xpose.msra.mxu0 0.0
  %1130 = vmatpush.xpose.msra.mxu0 0.0
  %1131 = vmatpush.xpose.msra.mxu0 0.0
  %1132 = vmatpush.xpose.msra.mxu0 0.0
  %1133 = vmatpush.xpose.msra.mxu0 0.0
  %1134 = vmatpush.xpose.msra.mxu0 0.0
  %1135 = vmatpush.xpose.msra.mxu0 0.0
  %1136 = vmatpush.xpose.msra.mxu0 0.0
  %1137 = vmatpush.xpose.msra.mxu0 %v1120
  %1138 = vmatmul.f32.gmra.mxu0 %v1118
  %v1139 = vpop.f32.mrf.mxu0
  %v1140 = vadd.f32 0.0, %v1139
  %1141 = vdwg.mxu0
  %v1142 = vmul.f32 %v944, 0.35355338
  %v1143 = vmul.f32 %v972, 0.35355338
  %v1144 = vmul.f32 %v1000, 0.35355338
  %v1145 = vmul.f32 %v1028, 0.35355338
  %v1146 = vmul.f32 %v1056, 0.35355338
  %v1147 = vmul.f32 %v1084, 0.35355338
  %v1148 = vmul.f32 %v1112, 0.35355338
  %v1149 = vmul.f32 %v1140, 0.35355338
  %v1150 = vadd.f32 %v1142, %v56
  %v1151 = vadd.f32 %v1143, %v60
  %v1152 = vadd.f32 %v1144, %v64
  %v1153 = vadd.f32 %v1145, %v68
  %v1154 = vadd.f32 %v1146, %v72
  %v1155 = vadd.f32 %v1147, %v76
  %v1156 = vadd.f32 %v1148, %v80
  %v1157 = vadd.f32 %v1149, %v84
  %v1158 = vsel %vm392, %v1150, -inf
  %1159 = vmax.xlane.f32.xlu0 %v1158
  %v1160 = vpop.xlane.xlu0 %1159
  %v1161 = vsel %vm392, %v1151, -inf
  %1162 = vmax.xlane.f32.xlu0 %v1161
  %v1163 = vpop.xlane.xlu0 %1162
  %v1164 = vsel %vm392, %v1152, -inf
  %1165 = vmax.xlane.f32.xlu0 %v1164
  %v1166 = vpop.xlane.xlu0 %1165
  %v1167 = vsel %vm392, %v1153, -inf
  %1168 = vmax.xlane.f32.xlu0 %v1167
  %v1169 = vpop.xlane.xlu0 %1168
  %v1170 = vsel %vm392, %v1154, -inf
  %1171 = vmax.xlane.f32.xlu0 %v1170
  %v1172 = vpop.xlane.xlu0 %1171
  %v1173 = vsel %vm392, %v1155, -inf
  %1174 = vmax.xlane.f32.xlu0 %v1173
  %v1175 = vpop.xlane.xlu0 %1174
  %v1176 = vsel %vm392, %v1156, -inf
  %1177 = vmax.xlane.f32.xlu0 %v1176
  %v1178 = vpop.xlane.xlu0 %1177
  %v1179 = vsel %vm392, %v1157, -inf
  %1180 = vmax.xlane.f32.xlu0 %v1179
  %v1181 = vpop.xlane.xlu0 %1180
  %v1182 = vsub.f32 %v1150, %v1160
  %v1183 = vsub.f32 %v1151, %v1163
  %v1184 = vsub.f32 %v1152, %v1166
  %v1185 = vsub.f32 %v1153, %v1169
  %v1186 = vsub.f32 %v1154, %v1172
  %v1187 = vsub.f32 %v1155, %v1175
  %v1188 = vsub.f32 %v1156, %v1178
  %v1189 = vsub.f32 %v1157, %v1181
  %v1190 = vmul.f32 %v1182, 1.442695
  %v1191 = vpow.pop %v1190
  %v1192 = vmul.f32 %v1183, 1.442695
  %v1193 = vpow.pop %v1192
  %v1194 = vmul.f32 %v1184, 1.442695
  %v1195 = vpow.pop %v1194
  %v1196 = vmul.f32 %v1185, 1.442695
  %v1197 = vpow.pop %v1196
  %v1198 = vmul.f32 %v1186, 1.442695
  %v1199 = vpow.pop %v1198
  %v1200 = vmul.f32 %v1187, 1.442695
  %v1201 = vpow.pop %v1200
  %v1202 = vmul.f32 %v1188, 1.442695
  %v1203 = vpow.pop %v1202
  %v1204 = vmul.f32 %v1189, 1.442695
  %v1205 = vpow.pop %v1204
  %v1206 = vsel %vm392, %v1191, 0.0
  %1207 = vadd.xlane.f32.xlu0 %v1206
  %v1208 = vpop.xlane.xlu0 %1207
  %v1209 = vsel %vm392, %v1193, 0.0
  %1210 = vadd.xlane.f32.xlu0 %v1209
  %v1211 = vpop.xlane.xlu0 %1210
  %v1212 = vsel %vm392, %v1195, 0.0
  %1213 = vadd.xlane.f32.xlu0 %v1212
  %v1214 = vpop.xlane.xlu0 %1213
  %v1215 = vsel %vm392, %v1197, 0.0
  %1216 = vadd.xlane.f32.xlu0 %v1215
  %v1217 = vpop.xlane.xlu0 %1216
  %v1218 = vsel %vm392, %v1199, 0.0
  %1219 = vadd.xlane.f32.xlu0 %v1218
  %v1220 = vpop.xlane.xlu0 %1219
  %v1221 = vsel %vm392, %v1201, 0.0
  %1222 = vadd.xlane.f32.xlu0 %v1221
  %v1223 = vpop.xlane.xlu0 %1222
  %v1224 = vsel %vm392, %v1203, 0.0
  %1225 = vadd.xlane.f32.xlu0 %v1224
  %v1226 = vpop.xlane.xlu0 %1225
  %v1227 = vsel %vm392, %v1205, 0.0
  %1228 = vadd.xlane.f32.xlu0 %v1227
  %v1229 = vpop.xlane.xlu0 %1228
  %v1230 = vrcp.pop %v1208
  %v1231 = vrcp.pop %v1211
  %v1232 = vrcp.pop %v1214
  %v1233 = vrcp.pop %v1217
  %v1234 = vrcp.pop %v1220
  %v1235 = vrcp.pop %v1223
  %v1236 = vrcp.pop %v1226
  %v1237 = vrcp.pop %v1229
  %v1238 = vmul.f32 %v1191, %v1230
  %v1239 = vmul.f32 %v1193, %v1231
  %v1240 = vmul.f32 %v1195, %v1232
  %v1241 = vmul.f32 %v1197, %v1233
  %v1242 = vmul.f32 %v1199, %v1234
  %v1243 = vmul.f32 %v1201, %v1235
  %v1244 = vmul.f32 %v1203, %v1236
  %v1245 = vmul.f32 %v1205, %v1237
  %1246 = vrot.lane.b32.xlu0 %v366, 56
  %v1247 = vpop.permute.xlu0 %1246
  %v1250 = vsel %vm392, %v1238, 0
  %1252 = vmatpush.msra.mxu0 0.0
  %1253 = vmatpush.msra.mxu0 0.0
  %1254 = vmatpush.msra.mxu0 0.0
  %1255 = vmatpush.msra.mxu0 0.0
  %1256 = vmatpush.msra.mxu0 0.0
  %1257 = vmatpush.msra.mxu0 0.0
  %1258 = vmatpush.msra.mxu0 0.0
  %1259 = vmatpush.msra.mxu0 0.0
  %1260 = vmatpush.msra.mxu0 0.0
  %1261 = vmatpush.msra.mxu0 0.0
  %1262 = vmatpush.msra.mxu0 0.0
  %1263 = vmatpush.msra.mxu0 0.0
  %1264 = vmatpush.msra.mxu0 0.0
  %1265 = vmatpush.msra.mxu0 0.0
  %1266 = vmatpush.msra.mxu0 0.0
  %1267 = vmatpush.msra.mxu0 %v1247
  %1268 = vmatmul.f32.gmra.mxu0 %v1250
  %v1269 = vpop.f32.mrf.mxu0
  %v1270 = vadd.f32 0.0, %v1269
  %1271 = vdwg.mxu0
  %1272 = vrot.lane.b32.xlu0 %v369, 56
  %v1273 = vpop.permute.xlu0 %1272
  %v1276 = vsel %vm392, %v1239, 0
  %1278 = vmatpush.msra.mxu0 0.0
  %1279 = vmatpush.msra.mxu0 0.0
  %1280 = vmatpush.msra.mxu0 0.0
  %1281 = vmatpush.msra.mxu0 0.0
  %1282 = vmatpush.msra.mxu0 0.0
  %1283 = vmatpush.msra.mxu0 0.0
  %1284 = vmatpush.msra.mxu0 0.0
  %1285 = vmatpush.msra.mxu0 0.0
  %1286 = vmatpush.msra.mxu0 0.0
  %1287 = vmatpush.msra.mxu0 0.0
  %1288 = vmatpush.msra.mxu0 0.0
  %1289 = vmatpush.msra.mxu0 0.0
  %1290 = vmatpush.msra.mxu0 0.0
  %1291 = vmatpush.msra.mxu0 0.0
  %1292 = vmatpush.msra.mxu0 0.0
  %1293 = vmatpush.msra.mxu0 %v1273
  %1294 = vmatmul.f32.gmra.mxu0 %v1276
  %v1295 = vpop.f32.mrf.mxu0
  %v1296 = vadd.f32 0.0, %v1295
  %1297 = vdwg.mxu0
  %1298 = vrot.lane.b32.xlu0 %v372, 56
  %v1299 = vpop.permute.xlu0 %1298
  %v1302 = vsel %vm392, %v1240, 0
  %1304 = vmatpush.msra.mxu0 0.0
  %1305 = vmatpush.msra.mxu0 0.0
  %1306 = vmatpush.msra.mxu0 0.0
  %1307 = vmatpush.msra.mxu0 0.0
  %1308 = vmatpush.msra.mxu0 0.0
  %1309 = vmatpush.msra.mxu0 0.0
  %1310 = vmatpush.msra.mxu0 0.0
  %1311 = vmatpush.msra.mxu0 0.0
  %1312 = vmatpush.msra.mxu0 0.0
  %1313 = vmatpush.msra.mxu0 0.0
  %1314 = vmatpush.msra.mxu0 0.0
  %1315 = vmatpush.msra.mxu0 0.0
  %1316 = vmatpush.msra.mxu0 0.0
  %1317 = vmatpush.msra.mxu0 0.0
  %1318 = vmatpush.msra.mxu0 0.0
  %1319 = vmatpush.msra.mxu0 %v1299
  %1320 = vmatmul.f32.gmra.mxu0 %v1302
  %v1321 = vpop.f32.mrf.mxu0
  %v1322 = vadd.f32 0.0, %v1321
  %1323 = vdwg.mxu0
  %1324 = vrot.lane.b32.xlu0 %v375, 56
  %v1325 = vpop.permute.xlu0 %1324
  %v1328 = vsel %vm392, %v1241, 0
  %1330 = vmatpush.msra.mxu0 0.0
  %1331 = vmatpush.msra.mxu0 0.0
  %1332 = vmatpush.msra.mxu0 0.0
  %1333 = vmatpush.msra.mxu0 0.0
  %1334 = vmatpush.msra.mxu0 0.0
  %1335 = vmatpush.msra.mxu0 0.0
  %1336 = vmatpush.msra.mxu0 0.0
  %1337 = vmatpush.msra.mxu0 0.0
  %1338 = vmatpush.msra.mxu0 0.0
  %1339 = vmatpush.msra.mxu0 0.0
  %1340 = vmatpush.msra.mxu0 0.0
  %1341 = vmatpush.msra.mxu0 0.0
  %1342 = vmatpush.msra.mxu0 0.0
  %1343 = vmatpush.msra.mxu0 0.0
  %1344 = vmatpush.msra.mxu0 0.0
  %1345 = vmatpush.msra.mxu0 %v1325
  %1346 = vmatmul.f32.gmra.mxu0 %v1328
  %v1347 = vpop.f32.mrf.mxu0
  %v1348 = vadd.f32 0.0, %v1347
  %1349 = vdwg.mxu0
  %1350 = vrot.lane.b32.xlu0 %v378, 56
  %v1351 = vpop.permute.xlu0 %1350
  %v1354 = vsel %vm392, %v1242, 0
  %1356 = vmatpush.msra.mxu0 0.0
  %1357 = vmatpush.msra.mxu0 0.0
  %1358 = vmatpush.msra.mxu0 0.0
  %1359 = vmatpush.msra.mxu0 0.0
  %1360 = vmatpush.msra.mxu0 0.0
  %1361 = vmatpush.msra.mxu0 0.0
  %1362 = vmatpush.msra.mxu0 0.0
  %1363 = vmatpush.msra.mxu0 0.0
  %1364 = vmatpush.msra.mxu0 0.0
  %1365 = vmatpush.msra.mxu0 0.0
  %1366 = vmatpush.msra.mxu0 0.0
  %1367 = vmatpush.msra.mxu0 0.0
  %1368 = vmatpush.msra.mxu0 0.0
  %1369 = vmatpush.msra.mxu0 0.0
  %1370 = vmatpush.msra.mxu0 0.0
  %1371 = vmatpush.msra.mxu0 %v1351
  %1372 = vmatmul.f32.gmra.mxu0 %v1354
  %v1373 = vpop.f32.mrf.mxu0
  %v1374 = vadd.f32 0.0, %v1373
  %1375 = vdwg.mxu0
  %1376 = vrot.lane.b32.xlu0 %v381, 56
  %v1377 = vpop.permute.xlu0 %1376
  %v1380 = vsel %vm392, %v1243, 0
  %1382 = vmatpush.msra.mxu0 0.0
  %1383 = vmatpush.msra.mxu0 0.0
  %1384 = vmatpush.msra.mxu0 0.0
  %1385 = vmatpush.msra.mxu0 0.0
  %1386 = vmatpush.msra.mxu0 0.0
  %1387 = vmatpush.msra.mxu0 0.0
  %1388 = vmatpush.msra.mxu0 0.0
  %1389 = vmatpush.msra.mxu0 0.0
  %1390 = vmatpush.msra.mxu0 0.0
  %1391 = vmatpush.msra.mxu0 0.0
  %1392 = vmatpush.msra.mxu0 0.0
  %1393 = vmatpush.msra.mxu0 0.0
  %1394 = vmatpush.msra.mxu0 0.0
  %1395 = vmatpush.msra.mxu0 0.0
  %1396 = vmatpush.msra.mxu0 0.0
  %1397 = vmatpush.msra.mxu0 %v1377
  %1398 = vmatmul.f32.gmra.mxu0 %v1380
  %v1399 = vpop.f32.mrf.mxu0
  %v1400 = vadd.f32 0.0, %v1399
  %1401 = vdwg.mxu0
  %1402 = vrot.lane.b32.xlu0 %v384, 56
  %v1403 = vpop.permute.xlu0 %1402
  %v1406 = vsel %vm392, %v1244, 0
  %1408 = vmatpush.msra.mxu0 0.0
  %1409 = vmatpush.msra.mxu0 0.0
  %1410 = vmatpush.msra.mxu0 0.0
  %1411 = vmatpush.msra.mxu0 0.0
  %1412 = vmatpush.msra.mxu0 0.0
  %1413 = vmatpush.msra.mxu0 0.0
  %1414 = vmatpush.msra.mxu0 0.0
  %1415 = vmatpush.msra.mxu0 0.0
  %1416 = vmatpush.msra.mxu0 0.0
  %1417 = vmatpush.msra.mxu0 0.0
  %1418 = vmatpush.msra.mxu0 0.0
  %1419 = vmatpush.msra.mxu0 0.0
  %1420 = vmatpush.msra.mxu0 0.0
  %1421 = vmatpush.msra.mxu0 0.0
  %1422 = vmatpush.msra.mxu0 0.0
  %1423 = vmatpush.msra.mxu0 %v1403
  %1424 = vmatmul.f32.gmra.mxu0 %v1406
  %v1425 = vpop.f32.mrf.mxu0
  %v1426 = vadd.f32 0.0, %v1425
  %1427 = vdwg.mxu0
  %1428 = vrot.lane.b32.xlu0 %v387, 56
  %v1429 = vpop.permute.xlu0 %1428
  %v1432 = vsel %vm392, %v1245, 0
  %1434 = vmatpush.msra.mxu0 0.0
  %1435 = vmatpush.msra.mxu0 0.0
  %1436 = vmatpush.msra.mxu0 0.0
  %1437 = vmatpush.msra.mxu0 0.0
  %1438 = vmatpush.msra.mxu0 0.0
  %1439 = vmatpush.msra.mxu0 0.0
  %1440 = vmatpush.msra.mxu0 0.0
  %1441 = vmatpush.msra.mxu0 0.0
  %1442 = vmatpush.msra.mxu0 0.0
  %1443 = vmatpush.msra.mxu0 0.0
  %1444 = vmatpush.msra.mxu0 0.0
  %1445 = vmatpush.msra.mxu0 0.0
  %1446 = vmatpush.msra.mxu0 0.0
  %1447 = vmatpush.msra.mxu0 0.0
  %1448 = vmatpush.msra.mxu0 0.0
  %1449 = vmatpush.msra.mxu0 %v1429
  %1450 = vmatmul.f32.gmra.mxu0 %v1432
  %v1451 = vpop.f32.mrf.mxu0
  %v1452 = vadd.f32 0.0, %v1451
  %1453 = vdwg.mxu0
  %v1455 = vsel %vm392, %v1270, 0
  %v1458 = vsel %vm392, %v1296, 0
  %v1461 = vsel %vm392, %v1322, 0
  %v1464 = vsel %vm392, %v1348, 0
  %v1467 = vsel %vm392, %v1374, 0
  %v1470 = vsel %vm392, %v1400, 0
  %v1473 = vsel %vm392, %v1426, 0
  %v1476 = vsel %vm392, %v1452, 0
  %1478 = vmatpush.msra.mxu0 0.0
  %1479 = vmatpush.msra.mxu0 0.0
  %1480 = vmatpush.msra.mxu0 0.0
  %1481 = vmatpush.msra.mxu0 0.0
  %1482 = vmatpush.msra.mxu0 0.0
  %1483 = vmatpush.msra.mxu0 0.0
  %1484 = vmatpush.msra.mxu0 0.0
  %1485 = vmatpush.msra.mxu0 0.0
  %1486 = vmatpush.msra.mxu0 0.0
  %1487 = vmatpush.msra.mxu0 0.0
  %1488 = vmatpush.msra.mxu0 0.0
  %1489 = vmatpush.msra.mxu0 0.0
  %1490 = vmatpush.msra.mxu0 0.0
  %1491 = vmatpush.msra.mxu0 0.0
  %1492 = vmatpush.msra.mxu0 0.0
  %1493 = vmatpush.msra.mxu0 %v95
  %1494 = vmatmul.f32.gmra.mxu0 %v1455
  %v1495 = vpop.f32.mrf.mxu0
  %v1496 = vadd.f32 0.0, %v1495
  %1497 = vmatmul.f32.gmra.mxu0 %v1458
  %v1498 = vpop.f32.mrf.mxu0
  %v1499 = vadd.f32 0.0, %v1498
  %1500 = vmatmul.f32.gmra.mxu0 %v1461
  %v1501 = vpop.f32.mrf.mxu0
  %v1502 = vadd.f32 0.0, %v1501
  %1503 = vmatmul.f32.gmra.mxu0 %v1464
  %v1504 = vpop.f32.mrf.mxu0
  %v1505 = vadd.f32 0.0, %v1504
  %1506 = vmatmul.f32.gmra.mxu0 %v1467
  %v1507 = vpop.f32.mrf.mxu0
  %v1508 = vadd.f32 0.0, %v1507
  %1509 = vmatmul.f32.gmra.mxu0 %v1470
  %v1510 = vpop.f32.mrf.mxu0
  %v1511 = vadd.f32 0.0, %v1510
  %1512 = vmatmul.f32.gmra.mxu0 %v1473
  %v1513 = vpop.f32.mrf.mxu0
  %v1514 = vadd.f32 0.0, %v1513
  %1515 = vmatmul.f32.gmra.mxu0 %v1476
  %v1516 = vpop.f32.mrf.mxu0
  %v1517 = vadd.f32 0.0, %v1516
  %1518 = vdwg.mxu0
  %v1520 = vsel %vm392, %v734, 0
  %v1523 = vsel %vm392, %v760, 0
  %v1526 = vsel %vm392, %v786, 0
  %v1529 = vsel %vm392, %v812, 0
  %v1532 = vsel %vm392, %v838, 0
  %v1535 = vsel %vm392, %v864, 0
  %v1538 = vsel %vm392, %v890, 0
  %v1541 = vsel %vm392, %v916, 0
  %1543 = vmatpush.msra.mxu0 0.0
  %1544 = vmatpush.msra.mxu0 0.0
  %1545 = vmatpush.msra.mxu0 0.0
  %1546 = vmatpush.msra.mxu0 0.0
  %1547 = vmatpush.msra.mxu0 0.0
  %1548 = vmatpush.msra.mxu0 0.0
  %1549 = vmatpush.msra.mxu0 0.0
  %1550 = vmatpush.msra.mxu0 0.0
  %1551 = vmatpush.msra.mxu0 0.0
  %1552 = vmatpush.msra.mxu0 0.0
  %1553 = vmatpush.msra.mxu0 0.0
  %1554 = vmatpush.msra.mxu0 0.0
  %1555 = vmatpush.msra.mxu0 0.0
  %1556 = vmatpush.msra.mxu0 0.0
  %1557 = vmatpush.msra.mxu0 0.0
  %1558 = vmatpush.msra.mxu0 %v94
  %1559 = vmatmul.f32.gmra.mxu0 %v1520
  %v1560 = vpop.f32.mrf.mxu0
  %v1561 = vadd.f32 %v1496, %v1560
  %1562 = vmatmul.f32.gmra.mxu0 %v1523
  %v1563 = vpop.f32.mrf.mxu0
  %v1564 = vadd.f32 %v1499, %v1563
  %1565 = vmatmul.f32.gmra.mxu0 %v1526
  %v1566 = vpop.f32.mrf.mxu0
  %v1567 = vadd.f32 %v1502, %v1566
  %1568 = vmatmul.f32.gmra.mxu0 %v1529
  %v1569 = vpop.f32.mrf.mxu0
  %v1570 = vadd.f32 %v1505, %v1569
  %1571 = vmatmul.f32.gmra.mxu0 %v1532
  %v1572 = vpop.f32.mrf.mxu0
  %v1573 = vadd.f32 %v1508, %v1572
  %1574 = vmatmul.f32.gmra.mxu0 %v1535
  %v1575 = vpop.f32.mrf.mxu0
  %v1576 = vadd.f32 %v1511, %v1575
  %1577 = vmatmul.f32.gmra.mxu0 %v1538
  %v1578 = vpop.f32.mrf.mxu0
  %v1579 = vadd.f32 %v1514, %v1578
  %1580 = vmatmul.f32.gmra.mxu0 %v1541
  %v1581 = vpop.f32.mrf.mxu0
  %v1582 = vadd.f32 %v1517, %v1581
  %1583 = vdwg.mxu0
  %1584 = vrot.lane.b32.xlu0 %v366, 80
  %v1585 = vpop.permute.xlu0 %1584
  %1586 = vrot.lane.b32.xlu0 %v366, 112
  %v1587 = vpop.permute.xlu0 %1586
  %v1588 = vsel %vm392, %v1585, 0
  %v1590 = vsel %vm392, %v1587, 0
  %1592 = vmatpush.xpose.msra.mxu0 0.0
  %1593 = vmatpush.xpose.msra.mxu0 0.0
  %1594 = vmatpush.xpose.msra.mxu0 0.0
  %1595 = vmatpush.xpose.msra.mxu0 0.0
  %1596 = vmatpush.xpose.msra.mxu0 0.0
  %1597 = vmatpush.xpose.msra.mxu0 0.0
  %1598 = vmatpush.xpose.msra.mxu0 0.0
  %1599 = vmatpush.xpose.msra.mxu0 0.0
  %1600 = vmatpush.xpose.msra.mxu0 0.0
  %1601 = vmatpush.xpose.msra.mxu0 0.0
  %1602 = vmatpush.xpose.msra.mxu0 0.0
  %1603 = vmatpush.xpose.msra.mxu0 0.0
  %1604 = vmatpush.xpose.msra.mxu0 0.0
  %1605 = vmatpush.xpose.msra.mxu0 0.0
  %1606 = vmatpush.xpose.msra.mxu0 0.0
  %1607 = vmatpush.xpose.msra.mxu0 %v1590
  %1608 = vmatmul.f32.gmra.mxu0 %v1588
  %v1609 = vpop.f32.mrf.mxu0
  %v1610 = vadd.f32 0.0, %v1609
  %1611 = vdwg.mxu0
  %1612 = vrot.lane.b32.xlu0 %v369, 80
  %v1613 = vpop.permute.xlu0 %1612
  %1614 = vrot.lane.b32.xlu0 %v369, 112
  %v1615 = vpop.permute.xlu0 %1614
  %v1616 = vsel %vm392, %v1613, 0
  %v1618 = vsel %vm392, %v1615, 0
  %1620 = vmatpush.xpose.msra.mxu0 0.0
  %1621 = vmatpush.xpose.msra.mxu0 0.0
  %1622 = vmatpush.xpose.msra.mxu0 0.0
  %1623 = vmatpush.xpose.msra.mxu0 0.0
  %1624 = vmatpush.xpose.msra.mxu0 0.0
  %1625 = vmatpush.xpose.msra.mxu0 0.0
  %1626 = vmatpush.xpose.msra.mxu0 0.0
  %1627 = vmatpush.xpose.msra.mxu0 0.0
  %1628 = vmatpush.xpose.msra.mxu0 0.0
  %1629 = vmatpush.xpose.msra.mxu0 0.0
  %1630 = vmatpush.xpose.msra.mxu0 0.0
  %1631 = vmatpush.xpose.msra.mxu0 0.0
  %1632 = vmatpush.xpose.msra.mxu0 0.0
  %1633 = vmatpush.xpose.msra.mxu0 0.0
  %1634 = vmatpush.xpose.msra.mxu0 0.0
  %1635 = vmatpush.xpose.msra.mxu0 %v1618
  %1636 = vmatmul.f32.gmra.mxu0 %v1616
  %v1637 = vpop.f32.mrf.mxu0
  %v1638 = vadd.f32 0.0, %v1637
  %1639 = vdwg.mxu0
  %1640 = vrot.lane.b32.xlu0 %v372, 80
  %v1641 = vpop.permute.xlu0 %1640
  %1642 = vrot.lane.b32.xlu0 %v372, 112
  %v1643 = vpop.permute.xlu0 %1642
  %v1644 = vsel %vm392, %v1641, 0
  %v1646 = vsel %vm392, %v1643, 0
  %1648 = vmatpush.xpose.msra.mxu0 0.0
  %1649 = vmatpush.xpose.msra.mxu0 0.0
  %1650 = vmatpush.xpose.msra.mxu0 0.0
  %1651 = vmatpush.xpose.msra.mxu0 0.0
  %1652 = vmatpush.xpose.msra.mxu0 0.0
  %1653 = vmatpush.xpose.msra.mxu0 0.0
  %1654 = vmatpush.xpose.msra.mxu0 0.0
  %1655 = vmatpush.xpose.msra.mxu0 0.0
  %1656 = vmatpush.xpose.msra.mxu0 0.0
  %1657 = vmatpush.xpose.msra.mxu0 0.0
  %1658 = vmatpush.xpose.msra.mxu0 0.0
  %1659 = vmatpush.xpose.msra.mxu0 0.0
  %1660 = vmatpush.xpose.msra.mxu0 0.0
  %1661 = vmatpush.xpose.msra.mxu0 0.0
  %1662 = vmatpush.xpose.msra.mxu0 0.0
  %1663 = vmatpush.xpose.msra.mxu0 %v1646
  %1664 = vmatmul.f32.gmra.mxu0 %v1644
  %v1665 = vpop.f32.mrf.mxu0
  %v1666 = vadd.f32 0.0, %v1665
  %1667 = vdwg.mxu0
  %1668 = vrot.lane.b32.xlu0 %v375, 80
  %v1669 = vpop.permute.xlu0 %1668
  %1670 = vrot.lane.b32.xlu0 %v375, 112
  %v1671 = vpop.permute.xlu0 %1670
  %v1672 = vsel %vm392, %v1669, 0
  %v1674 = vsel %vm392, %v1671, 0
  %1676 = vmatpush.xpose.msra.mxu0 0.0
  %1677 = vmatpush.xpose.msra.mxu0 0.0
  %1678 = vmatpush.xpose.msra.mxu0 0.0
  %1679 = vmatpush.xpose.msra.mxu0 0.0
  %1680 = vmatpush.xpose.msra.mxu0 0.0
  %1681 = vmatpush.xpose.msra.mxu0 0.0
  %1682 = vmatpush.xpose.msra.mxu0 0.0
  %1683 = vmatpush.xpose.msra.mxu0 0.0
  %1684 = vmatpush.xpose.msra.mxu0 0.0
  %1685 = vmatpush.xpose.msra.mxu0 0.0
  %1686 = vmatpush.xpose.msra.mxu0 0.0
  %1687 = vmatpush.xpose.msra.mxu0 0.0
  %1688 = vmatpush.xpose.msra.mxu0 0.0
  %1689 = vmatpush.xpose.msra.mxu0 0.0
  %1690 = vmatpush.xpose.msra.mxu0 0.0
  %1691 = vmatpush.xpose.msra.mxu0 %v1674
  %1692 = vmatmul.f32.gmra.mxu0 %v1672
  %v1693 = vpop.f32.mrf.mxu0
  %v1694 = vadd.f32 0.0, %v1693
  %1695 = vdwg.mxu0
  %1696 = vrot.lane.b32.xlu0 %v378, 80
  %v1697 = vpop.permute.xlu0 %1696
  %1698 = vrot.lane.b32.xlu0 %v378, 112
  %v1699 = vpop.permute.xlu0 %1698
  %v1700 = vsel %vm392, %v1697, 0
  %v1702 = vsel %vm392, %v1699, 0
  %1704 = vmatpush.xpose.msra.mxu0 0.0
  %1705 = vmatpush.xpose.msra.mxu0 0.0
  %1706 = vmatpush.xpose.msra.mxu0 0.0
  %1707 = vmatpush.xpose.msra.mxu0 0.0
  %1708 = vmatpush.xpose.msra.mxu0 0.0
  %1709 = vmatpush.xpose.msra.mxu0 0.0
  %1710 = vmatpush.xpose.msra.mxu0 0.0
  %1711 = vmatpush.xpose.msra.mxu0 0.0
  %1712 = vmatpush.xpose.msra.mxu0 0.0
  %1713 = vmatpush.xpose.msra.mxu0 0.0
  %1714 = vmatpush.xpose.msra.mxu0 0.0
  %1715 = vmatpush.xpose.msra.mxu0 0.0
  %1716 = vmatpush.xpose.msra.mxu0 0.0
  %1717 = vmatpush.xpose.msra.mxu0 0.0
  %1718 = vmatpush.xpose.msra.mxu0 0.0
  %1719 = vmatpush.xpose.msra.mxu0 %v1702
  %1720 = vmatmul.f32.gmra.mxu0 %v1700
  %v1721 = vpop.f32.mrf.mxu0
  %v1722 = vadd.f32 0.0, %v1721
  %1723 = vdwg.mxu0
  %1724 = vrot.lane.b32.xlu0 %v381, 80
  %v1725 = vpop.permute.xlu0 %1724
  %1726 = vrot.lane.b32.xlu0 %v381, 112
  %v1727 = vpop.permute.xlu0 %1726
  %v1728 = vsel %vm392, %v1725, 0
  %v1730 = vsel %vm392, %v1727, 0
  %1732 = vmatpush.xpose.msra.mxu0 0.0
  %1733 = vmatpush.xpose.msra.mxu0 0.0
  %1734 = vmatpush.xpose.msra.mxu0 0.0
  %1735 = vmatpush.xpose.msra.mxu0 0.0
  %1736 = vmatpush.xpose.msra.mxu0 0.0
  %1737 = vmatpush.xpose.msra.mxu0 0.0
  %1738 = vmatpush.xpose.msra.mxu0 0.0
  %1739 = vmatpush.xpose.msra.mxu0 0.0
  %1740 = vmatpush.xpose.msra.mxu0 0.0
  %1741 = vmatpush.xpose.msra.mxu0 0.0
  %1742 = vmatpush.xpose.msra.mxu0 0.0
  %1743 = vmatpush.xpose.msra.mxu0 0.0
  %1744 = vmatpush.xpose.msra.mxu0 0.0
  %1745 = vmatpush.xpose.msra.mxu0 0.0
  %1746 = vmatpush.xpose.msra.mxu0 0.0
  %1747 = vmatpush.xpose.msra.mxu0 %v1730
  %1748 = vmatmul.f32.gmra.mxu0 %v1728
  %v1749 = vpop.f32.mrf.mxu0
  %v1750 = vadd.f32 0.0, %v1749
  %1751 = vdwg.mxu0
  %1752 = vrot.lane.b32.xlu0 %v384, 80
  %v1753 = vpop.permute.xlu0 %1752
  %1754 = vrot.lane.b32.xlu0 %v384, 112
  %v1755 = vpop.permute.xlu0 %1754
  %v1756 = vsel %vm392, %v1753, 0
  %v1758 = vsel %vm392, %v1755, 0
  %1760 = vmatpush.xpose.msra.mxu0 0.0
  %1761 = vmatpush.xpose.msra.mxu0 0.0
  %1762 = vmatpush.xpose.msra.mxu0 0.0
  %1763 = vmatpush.xpose.msra.mxu0 0.0
  %1764 = vmatpush.xpose.msra.mxu0 0.0
  %1765 = vmatpush.xpose.msra.mxu0 0.0
  %1766 = vmatpush.xpose.msra.mxu0 0.0
  %1767 = vmatpush.xpose.msra.mxu0 0.0
  %1768 = vmatpush.xpose.msra.mxu0 0.0
  %1769 = vmatpush.xpose.msra.mxu0 0.0
  %1770 = vmatpush.xpose.msra.mxu0 0.0
  %1771 = vmatpush.xpose.msra.mxu0 0.0
  %1772 = vmatpush.xpose.msra.mxu0 0.0
  %1773 = vmatpush.xpose.msra.mxu0 0.0
  %1774 = vmatpush.xpose.msra.mxu0 0.0
  %1775 = vmatpush.xpose.msra.mxu0 %v1758
  %1776 = vmatmul.f32.gmra.mxu0 %v1756
  %v1777 = vpop.f32.mrf.mxu0
  %v1778 = vadd.f32 0.0, %v1777
  %1779 = vdwg.mxu0
  %1780 = vrot.lane.b32.xlu0 %v387, 80
  %v1781 = vpop.permute.xlu0 %1780
  %1782 = vrot.lane.b32.xlu0 %v387, 112
  %v1783 = vpop.permute.xlu0 %1782
  %v1784 = vsel %vm392, %v1781, 0
  %v1786 = vsel %vm392, %v1783, 0
  %1788 = vmatpush.xpose.msra.mxu0 0.0
  %1789 = vmatpush.xpose.msra.mxu0 0.0
  %1790 = vmatpush.xpose.msra.mxu0 0.0
  %1791 = vmatpush.xpose.msra.mxu0 0.0
  %1792 = vmatpush.xpose.msra.mxu0 0.0
  %1793 = vmatpush.xpose.msra.mxu0 0.0
  %1794 = vmatpush.xpose.msra.mxu0 0.0
  %1795 = vmatpush.xpose.msra.mxu0 0.0
  %1796 = vmatpush.xpose.msra.mxu0 0.0
  %1797 = vmatpush.xpose.msra.mxu0 0.0
  %1798 = vmatpush.xpose.msra.mxu0 0.0
  %1799 = vmatpush.xpose.msra.mxu0 0.0
  %1800 = vmatpush.xpose.msra.mxu0 0.0
  %1801 = vmatpush.xpose.msra.mxu0 0.0
  %1802 = vmatpush.xpose.msra.mxu0 0.0
  %1803 = vmatpush.xpose.msra.mxu0 %v1786
  %1804 = vmatmul.f32.gmra.mxu0 %v1784
  %v1805 = vpop.f32.mrf.mxu0
  %v1806 = vadd.f32 0.0, %v1805
  %1807 = vdwg.mxu0
  %v1808 = vmul.f32 %v1610, 0.35355338
  %v1809 = vmul.f32 %v1638, 0.35355338
  %v1810 = vmul.f32 %v1666, 0.35355338
  %v1811 = vmul.f32 %v1694, 0.35355338
  %v1812 = vmul.f32 %v1722, 0.35355338
  %v1813 = vmul.f32 %v1750, 0.35355338
  %v1814 = vmul.f32 %v1778, 0.35355338
  %v1815 = vmul.f32 %v1806, 0.35355338
  %v1816 = vadd.f32 %v1808, %v57
  %v1817 = vadd.f32 %v1809, %v61
  %v1818 = vadd.f32 %v1810, %v65
  %v1819 = vadd.f32 %v1811, %v69
  %v1820 = vadd.f32 %v1812, %v73
  %v1821 = vadd.f32 %v1813, %v77
  %v1822 = vadd.f32 %v1814, %v81
  %v1823 = vadd.f32 %v1815, %v85
  %v1824 = vsel %vm392, %v1816, -inf
  %1825 = vmax.xlane.f32.xlu0 %v1824
  %v1826 = vpop.xlane.xlu0 %1825
  %v1827 = vsel %vm392, %v1817, -inf
  %1828 = vmax.xlane.f32.xlu0 %v1827
  %v1829 = vpop.xlane.xlu0 %1828
  %v1830 = vsel %vm392, %v1818, -inf
  %1831 = vmax.xlane.f32.xlu0 %v1830
  %v1832 = vpop.xlane.xlu0 %1831
  %v1833 = vsel %vm392, %v1819, -inf
  %1834 = vmax.xlane.f32.xlu0 %v1833
  %v1835 = vpop.xlane.xlu0 %1834
  %v1836 = vsel %vm392, %v1820, -inf
  %1837 = vmax.xlane.f32.xlu0 %v1836
  %v1838 = vpop.xlane.xlu0 %1837
  %v1839 = vsel %vm392, %v1821, -inf
  %1840 = vmax.xlane.f32.xlu0 %v1839
  %v1841 = vpop.xlane.xlu0 %1840
  %v1842 = vsel %vm392, %v1822, -inf
  %1843 = vmax.xlane.f32.xlu0 %v1842
  %v1844 = vpop.xlane.xlu0 %1843
  %v1845 = vsel %vm392, %v1823, -inf
  %1846 = vmax.xlane.f32.xlu0 %v1845
  %v1847 = vpop.xlane.xlu0 %1846
  %v1848 = vsub.f32 %v1816, %v1826
  %v1849 = vsub.f32 %v1817, %v1829
  %v1850 = vsub.f32 %v1818, %v1832
  %v1851 = vsub.f32 %v1819, %v1835
  %v1852 = vsub.f32 %v1820, %v1838
  %v1853 = vsub.f32 %v1821, %v1841
  %v1854 = vsub.f32 %v1822, %v1844
  %v1855 = vsub.f32 %v1823, %v1847
  %v1856 = vmul.f32 %v1848, 1.442695
  %v1857 = vpow.pop %v1856
  %v1858 = vmul.f32 %v1849, 1.442695
  %v1859 = vpow.pop %v1858
  %v1860 = vmul.f32 %v1850, 1.442695
  %v1861 = vpow.pop %v1860
  %v1862 = vmul.f32 %v1851, 1.442695
  %v1863 = vpow.pop %v1862
  %v1864 = vmul.f32 %v1852, 1.442695
  %v1865 = vpow.pop %v1864
  %v1866 = vmul.f32 %v1853, 1.442695
  %v1867 = vpow.pop %v1866
  %v1868 = vmul.f32 %v1854, 1.442695
  %v1869 = vpow.pop %v1868
  %v1870 = vmul.f32 %v1855, 1.442695
  %v1871 = vpow.pop %v1870
  %v1872 = vsel %vm392, %v1857, 0.0
  %1873 = vadd.xlane.f32.xlu0 %v1872
  %v1874 = vpop.xlane.xlu0 %1873
  %v1875 = vsel %vm392, %v1859, 0.0
  %1876 = vadd.xlane.f32.xlu0 %v1875
  %v1877 = vpop.xlane.xlu0 %1876
  %v1878 = vsel %vm392, %v1861, 0.0
  %1879 = vadd.xlane.f32.xlu0 %v1878
  %v1880 = vpop.xlane.xlu0 %1879
  %v1881 = vsel %vm392, %v1863, 0.0
  %1882 = vadd.xlane.f32.xlu0 %v1881
  %v1883 = vpop.xlane.xlu0 %1882
  %v1884 = vsel %vm392, %v1865, 0.0
  %1885 = vadd.xlane.f32.xlu0 %v1884
  %v1886 = vpop.xlane.xlu0 %1885
  %v1887 = vsel %vm392, %v1867, 0.0
  %1888 = vadd.xlane.f32.xlu0 %v1887
  %v1889 = vpop.xlane.xlu0 %1888
  %v1890 = vsel %vm392, %v1869, 0.0
  %1891 = vadd.xlane.f32.xlu0 %v1890
  %v1892 = vpop.xlane.xlu0 %1891
  %v1893 = vsel %vm392, %v1871, 0.0
  %1894 = vadd.xlane.f32.xlu0 %v1893
  %v1895 = vpop.xlane.xlu0 %1894
  %v1896 = vrcp.pop %v1874
  %v1897 = vrcp.pop %v1877
  %v1898 = vrcp.pop %v1880
  %v1899 = vrcp.pop %v1883
  %v1900 = vrcp.pop %v1886
  %v1901 = vrcp.pop %v1889
  %v1902 = vrcp.pop %v1892
  %v1903 = vrcp.pop %v1895
  %v1904 = vmul.f32 %v1857, %v1896
  %v1905 = vmul.f32 %v1859, %v1897
  %v1906 = vmul.f32 %v1861, %v1898
  %v1907 = vmul.f32 %v1863, %v1899
  %v1908 = vmul.f32 %v1865, %v1900
  %v1909 = vmul.f32 %v1867, %v1901
  %v1910 = vmul.f32 %v1869, %v1902
  %v1911 = vmul.f32 %v1871, %v1903
  %1912 = vrot.lane.b32.xlu0 %v366, 48
  %v1913 = vpop.permute.xlu0 %1912
  %v1916 = vsel %vm392, %v1904, 0
  %1918 = vmatpush.msra.mxu0 0.0
  %1919 = vmatpush.msra.mxu0 0.0
  %1920 = vmatpush.msra.mxu0 0.0
  %1921 = vmatpush.msra.mxu0 0.0
  %1922 = vmatpush.msra.mxu0 0.0
  %1923 = vmatpush.msra.mxu0 0.0
  %1924 = vmatpush.msra.mxu0 0.0
  %1925 = vmatpush.msra.mxu0 0.0
  %1926 = vmatpush.msra.mxu0 0.0
  %1927 = vmatpush.msra.mxu0 0.0
  %1928 = vmatpush.msra.mxu0 0.0
  %1929 = vmatpush.msra.mxu0 0.0
  %1930 = vmatpush.msra.mxu0 0.0
  %1931 = vmatpush.msra.mxu0 0.0
  %1932 = vmatpush.msra.mxu0 0.0
  %1933 = vmatpush.msra.mxu0 %v1913
  %1934 = vmatmul.f32.gmra.mxu0 %v1916
  %v1935 = vpop.f32.mrf.mxu0
  %v1936 = vadd.f32 0.0, %v1935
  %1937 = vdwg.mxu0
  %1938 = vrot.lane.b32.xlu0 %v369, 48
  %v1939 = vpop.permute.xlu0 %1938
  %v1942 = vsel %vm392, %v1905, 0
  %1944 = vmatpush.msra.mxu0 0.0
  %1945 = vmatpush.msra.mxu0 0.0
  %1946 = vmatpush.msra.mxu0 0.0
  %1947 = vmatpush.msra.mxu0 0.0
  %1948 = vmatpush.msra.mxu0 0.0
  %1949 = vmatpush.msra.mxu0 0.0
  %1950 = vmatpush.msra.mxu0 0.0
  %1951 = vmatpush.msra.mxu0 0.0
  %1952 = vmatpush.msra.mxu0 0.0
  %1953 = vmatpush.msra.mxu0 0.0
  %1954 = vmatpush.msra.mxu0 0.0
  %1955 = vmatpush.msra.mxu0 0.0
  %1956 = vmatpush.msra.mxu0 0.0
  %1957 = vmatpush.msra.mxu0 0.0
  %1958 = vmatpush.msra.mxu0 0.0
  %1959 = vmatpush.msra.mxu0 %v1939
  %1960 = vmatmul.f32.gmra.mxu0 %v1942
  %v1961 = vpop.f32.mrf.mxu0
  %v1962 = vadd.f32 0.0, %v1961
  %1963 = vdwg.mxu0
  %1964 = vrot.lane.b32.xlu0 %v372, 48
  %v1965 = vpop.permute.xlu0 %1964
  %v1968 = vsel %vm392, %v1906, 0
  %1970 = vmatpush.msra.mxu0 0.0
  %1971 = vmatpush.msra.mxu0 0.0
  %1972 = vmatpush.msra.mxu0 0.0
  %1973 = vmatpush.msra.mxu0 0.0
  %1974 = vmatpush.msra.mxu0 0.0
  %1975 = vmatpush.msra.mxu0 0.0
  %1976 = vmatpush.msra.mxu0 0.0
  %1977 = vmatpush.msra.mxu0 0.0
  %1978 = vmatpush.msra.mxu0 0.0
  %1979 = vmatpush.msra.mxu0 0.0
  %1980 = vmatpush.msra.mxu0 0.0
  %1981 = vmatpush.msra.mxu0 0.0
  %1982 = vmatpush.msra.mxu0 0.0
  %1983 = vmatpush.msra.mxu0 0.0
  %1984 = vmatpush.msra.mxu0 0.0
  %1985 = vmatpush.msra.mxu0 %v1965
  %1986 = vmatmul.f32.gmra.mxu0 %v1968
  %v1987 = vpop.f32.mrf.mxu0
  %v1988 = vadd.f32 0.0, %v1987
  %1989 = vdwg.mxu0
  %1990 = vrot.lane.b32.xlu0 %v375, 48
  %v1991 = vpop.permute.xlu0 %1990
  %v1994 = vsel %vm392, %v1907, 0
  %1996 = vmatpush.msra.mxu0 0.0
  %1997 = vmatpush.msra.mxu0 0.0
  %1998 = vmatpush.msra.mxu0 0.0
  %1999 = vmatpush.msra.mxu0 0.0
  %2000 = vmatpush.msra.mxu0 0.0
  %2001 = vmatpush.msra.mxu0 0.0
  %2002 = vmatpush.msra.mxu0 0.0
  %2003 = vmatpush.msra.mxu0 0.0
  %2004 = vmatpush.msra.mxu0 0.0
  %2005 = vmatpush.msra.mxu0 0.0
  %2006 = vmatpush.msra.mxu0 0.0
  %2007 = vmatpush.msra.mxu0 0.0
  %2008 = vmatpush.msra.mxu0 0.0
  %2009 = vmatpush.msra.mxu0 0.0
  %2010 = vmatpush.msra.mxu0 0.0
  %2011 = vmatpush.msra.mxu0 %v1991
  %2012 = vmatmul.f32.gmra.mxu0 %v1994
  %v2013 = vpop.f32.mrf.mxu0
  %v2014 = vadd.f32 0.0, %v2013
  %2015 = vdwg.mxu0
  %2016 = vrot.lane.b32.xlu0 %v378, 48
  %v2017 = vpop.permute.xlu0 %2016
  %v2020 = vsel %vm392, %v1908, 0
  %2022 = vmatpush.msra.mxu0 0.0
  %2023 = vmatpush.msra.mxu0 0.0
  %2024 = vmatpush.msra.mxu0 0.0
  %2025 = vmatpush.msra.mxu0 0.0
  %2026 = vmatpush.msra.mxu0 0.0
  %2027 = vmatpush.msra.mxu0 0.0
  %2028 = vmatpush.msra.mxu0 0.0
  %2029 = vmatpush.msra.mxu0 0.0
  %2030 = vmatpush.msra.mxu0 0.0
  %2031 = vmatpush.msra.mxu0 0.0
  %2032 = vmatpush.msra.mxu0 0.0
  %2033 = vmatpush.msra.mxu0 0.0
  %2034 = vmatpush.msra.mxu0 0.0
  %2035 = vmatpush.msra.mxu0 0.0
  %2036 = vmatpush.msra.mxu0 0.0
  %2037 = vmatpush.msra.mxu0 %v2017
  %2038 = vmatmul.f32.gmra.mxu0 %v2020
  %v2039 = vpop.f32.mrf.mxu0
  %v2040 = vadd.f32 0.0, %v2039
  %2041 = vdwg.mxu0
  %2042 = vrot.lane.b32.xlu0 %v381, 48
  %v2043 = vpop.permute.xlu0 %2042
  %v2046 = vsel %vm392, %v1909, 0
  %2048 = vmatpush.msra.mxu0 0.0
  %2049 = vmatpush.msra.mxu0 0.0
  %2050 = vmatpush.msra.mxu0 0.0
  %2051 = vmatpush.msra.mxu0 0.0
  %2052 = vmatpush.msra.mxu0 0.0
  %2053 = vmatpush.msra.mxu0 0.0
  %2054 = vmatpush.msra.mxu0 0.0
  %2055 = vmatpush.msra.mxu0 0.0
  %2056 = vmatpush.msra.mxu0 0.0
  %2057 = vmatpush.msra.mxu0 0.0
  %2058 = vmatpush.msra.mxu0 0.0
  %2059 = vmatpush.msra.mxu0 0.0
  %2060 = vmatpush.msra.mxu0 0.0
  %2061 = vmatpush.msra.mxu0 0.0
  %2062 = vmatpush.msra.mxu0 0.0
  %2063 = vmatpush.msra.mxu0 %v2043
  %2064 = vmatmul.f32.gmra.mxu0 %v2046
  %v2065 = vpop.f32.mrf.mxu0
  %v2066 = vadd.f32 0.0, %v2065
  %2067 = vdwg.mxu0
  %2068 = vrot.lane.b32.xlu0 %v384, 48
  %v2069 = vpop.permute.xlu0 %2068
  %v2072 = vsel %vm392, %v1910, 0
  %2074 = vmatpush.msra.mxu0 0.0
  %2075 = vmatpush.msra.mxu0 0.0
  %2076 = vmatpush.msra.mxu0 0.0
  %2077 = vmatpush.msra.mxu0 0.0
  %2078 = vmatpush.msra.mxu0 0.0
  %2079 = vmatpush.msra.mxu0 0.0
  %2080 = vmatpush.msra.mxu0 0.0
  %2081 = vmatpush.msra.mxu0 0.0
  %2082 = vmatpush.msra.mxu0 0.0
  %2083 = vmatpush.msra.mxu0 0.0
  %2084 = vmatpush.msra.mxu0 0.0
  %2085 = vmatpush.msra.mxu0 0.0
  %2086 = vmatpush.msra.mxu0 0.0
  %2087 = vmatpush.msra.mxu0 0.0
  %2088 = vmatpush.msra.mxu0 0.0
  %2089 = vmatpush.msra.mxu0 %v2069
  %2090 = vmatmul.f32.gmra.mxu0 %v2072
  %v2091 = vpop.f32.mrf.mxu0
  %v2092 = vadd.f32 0.0, %v2091
  %2093 = vdwg.mxu0
  %2094 = vrot.lane.b32.xlu0 %v387, 48
  %v2095 = vpop.permute.xlu0 %2094
  %v2098 = vsel %vm392, %v1911, 0
  %2100 = vmatpush.msra.mxu0 0.0
  %2101 = vmatpush.msra.mxu0 0.0
  %2102 = vmatpush.msra.mxu0 0.0
  %2103 = vmatpush.msra.mxu0 0.0
  %2104 = vmatpush.msra.mxu0 0.0
  %2105 = vmatpush.msra.mxu0 0.0
  %2106 = vmatpush.msra.mxu0 0.0
  %2107 = vmatpush.msra.mxu0 0.0
  %2108 = vmatpush.msra.mxu0 0.0
  %2109 = vmatpush.msra.mxu0 0.0
  %2110 = vmatpush.msra.mxu0 0.0
  %2111 = vmatpush.msra.mxu0 0.0
  %2112 = vmatpush.msra.mxu0 0.0
  %2113 = vmatpush.msra.mxu0 0.0
  %2114 = vmatpush.msra.mxu0 0.0
  %2115 = vmatpush.msra.mxu0 %v2095
  %2116 = vmatmul.f32.gmra.mxu0 %v2098
  %v2117 = vpop.f32.mrf.mxu0
  %v2118 = vadd.f32 0.0, %v2117
  %2119 = vdwg.mxu0
  %v2121 = vsel %vm392, %v1936, 0
  %v2124 = vsel %vm392, %v1962, 0
  %v2127 = vsel %vm392, %v1988, 0
  %v2130 = vsel %vm392, %v2014, 0
  %v2133 = vsel %vm392, %v2040, 0
  %v2136 = vsel %vm392, %v2066, 0
  %v2139 = vsel %vm392, %v2092, 0
  %v2142 = vsel %vm392, %v2118, 0
  %2144 = vmatpush.msra.mxu0 0.0
  %2145 = vmatpush.msra.mxu0 0.0
  %2146 = vmatpush.msra.mxu0 0.0
  %2147 = vmatpush.msra.mxu0 0.0
  %2148 = vmatpush.msra.mxu0 0.0
  %2149 = vmatpush.msra.mxu0 0.0
  %2150 = vmatpush.msra.mxu0 0.0
  %2151 = vmatpush.msra.mxu0 0.0
  %2152 = vmatpush.msra.mxu0 0.0
  %2153 = vmatpush.msra.mxu0 0.0
  %2154 = vmatpush.msra.mxu0 0.0
  %2155 = vmatpush.msra.mxu0 0.0
  %2156 = vmatpush.msra.mxu0 0.0
  %2157 = vmatpush.msra.mxu0 0.0
  %2158 = vmatpush.msra.mxu0 0.0
  %2159 = vmatpush.msra.mxu0 %v96
  %2160 = vmatmul.f32.gmra.mxu0 %v2121
  %v2161 = vpop.f32.mrf.mxu0
  %v2162 = vadd.f32 0.0, %v2161
  %2163 = vmatmul.f32.gmra.mxu0 %v2124
  %v2164 = vpop.f32.mrf.mxu0
  %v2165 = vadd.f32 0.0, %v2164
  %2166 = vmatmul.f32.gmra.mxu0 %v2127
  %v2167 = vpop.f32.mrf.mxu0
  %v2168 = vadd.f32 0.0, %v2167
  %2169 = vmatmul.f32.gmra.mxu0 %v2130
  %v2170 = vpop.f32.mrf.mxu0
  %v2171 = vadd.f32 0.0, %v2170
  %2172 = vmatmul.f32.gmra.mxu0 %v2133
  %v2173 = vpop.f32.mrf.mxu0
  %v2174 = vadd.f32 0.0, %v2173
  %2175 = vmatmul.f32.gmra.mxu0 %v2136
  %v2176 = vpop.f32.mrf.mxu0
  %v2177 = vadd.f32 0.0, %v2176
  %2178 = vmatmul.f32.gmra.mxu0 %v2139
  %v2179 = vpop.f32.mrf.mxu0
  %v2180 = vadd.f32 0.0, %v2179
  %2181 = vmatmul.f32.gmra.mxu0 %v2142
  %v2182 = vpop.f32.mrf.mxu0
  %v2183 = vadd.f32 0.0, %v2182
  %2184 = vdwg.mxu0
  %v2185 = vadd.f32 %v1561, %v2162
  %v2186 = vadd.f32 %v1564, %v2165
  %v2187 = vadd.f32 %v1567, %v2168
  %v2188 = vadd.f32 %v1570, %v2171
  %v2189 = vadd.f32 %v1573, %v2174
  %v2190 = vadd.f32 %v1576, %v2177
  %v2191 = vadd.f32 %v1579, %v2180
  %v2192 = vadd.f32 %v1582, %v2183
  %2193 = vrot.lane.b32.xlu0 %v366, 72
  %v2194 = vpop.permute.xlu0 %2193
  %2195 = vrot.lane.b32.xlu0 %v366, 104
  %v2196 = vpop.permute.xlu0 %2195
  %v2197 = vsel %vm392, %v2194, 0
  %v2199 = vsel %vm392, %v2196, 0
  %2201 = vmatpush.xpose.msra.mxu0 0.0
  %2202 = vmatpush.xpose.msra.mxu0 0.0
  %2203 = vmatpush.xpose.msra.mxu0 0.0
  %2204 = vmatpush.xpose.msra.mxu0 0.0
  %2205 = vmatpush.xpose.msra.mxu0 0.0
  %2206 = vmatpush.xpose.msra.mxu0 0.0
  %2207 = vmatpush.xpose.msra.mxu0 0.0
  %2208 = vmatpush.xpose.msra.mxu0 0.0
  %2209 = vmatpush.xpose.msra.mxu0 0.0
  %2210 = vmatpush.xpose.msra.mxu0 0.0
  %2211 = vmatpush.xpose.msra.mxu0 0.0
  %2212 = vmatpush.xpose.msra.mxu0 0.0
  %2213 = vmatpush.xpose.msra.mxu0 0.0
  %2214 = vmatpush.xpose.msra.mxu0 0.0
  %2215 = vmatpush.xpose.msra.mxu0 0.0
  %2216 = vmatpush.xpose.msra.mxu0 %v2199
  %2217 = vmatmul.f32.gmra.mxu0 %v2197
  %v2218 = vpop.f32.mrf.mxu0
  %v2219 = vadd.f32 0.0, %v2218
  %2220 = vdwg.mxu0
  %2221 = vrot.lane.b32.xlu0 %v369, 72
  %v2222 = vpop.permute.xlu0 %2221
  %2223 = vrot.lane.b32.xlu0 %v369, 104
  %v2224 = vpop.permute.xlu0 %2223
  %v2225 = vsel %vm392, %v2222, 0
  %v2227 = vsel %vm392, %v2224, 0
  %2229 = vmatpush.xpose.msra.mxu0 0.0
  %2230 = vmatpush.xpose.msra.mxu0 0.0
  %2231 = vmatpush.xpose.msra.mxu0 0.0
  %2232 = vmatpush.xpose.msra.mxu0 0.0
  %2233 = vmatpush.xpose.msra.mxu0 0.0
  %2234 = vmatpush.xpose.msra.mxu0 0.0
  %2235 = vmatpush.xpose.msra.mxu0 0.0
  %2236 = vmatpush.xpose.msra.mxu0 0.0
  %2237 = vmatpush.xpose.msra.mxu0 0.0
  %2238 = vmatpush.xpose.msra.mxu0 0.0
  %2239 = vmatpush.xpose.msra.mxu0 0.0
  %2240 = vmatpush.xpose.msra.mxu0 0.0
  %2241 = vmatpush.xpose.msra.mxu0 0.0
  %2242 = vmatpush.xpose.msra.mxu0 0.0
  %2243 = vmatpush.xpose.msra.mxu0 0.0
  %2244 = vmatpush.xpose.msra.mxu0 %v2227
  %2245 = vmatmul.f32.gmra.mxu0 %v2225
  %v2246 = vpop.f32.mrf.mxu0
  %v2247 = vadd.f32 0.0, %v2246
  %2248 = vdwg.mxu0
  %2249 = vrot.lane.b32.xlu0 %v372, 72
  %v2250 = vpop.permute.xlu0 %2249
  %2251 = vrot.lane.b32.xlu0 %v372, 104
  %v2252 = vpop.permute.xlu0 %2251
  %v2253 = vsel %vm392, %v2250, 0
  %v2255 = vsel %vm392, %v2252, 0
  %2257 = vmatpush.xpose.msra.mxu0 0.0
  %2258 = vmatpush.xpose.msra.mxu0 0.0
  %2259 = vmatpush.xpose.msra.mxu0 0.0
  %2260 = vmatpush.xpose.msra.mxu0 0.0
  %2261 = vmatpush.xpose.msra.mxu0 0.0
  %2262 = vmatpush.xpose.msra.mxu0 0.0
  %2263 = vmatpush.xpose.msra.mxu0 0.0
  %2264 = vmatpush.xpose.msra.mxu0 0.0
  %2265 = vmatpush.xpose.msra.mxu0 0.0
  %2266 = vmatpush.xpose.msra.mxu0 0.0
  %2267 = vmatpush.xpose.msra.mxu0 0.0
  %2268 = vmatpush.xpose.msra.mxu0 0.0
  %2269 = vmatpush.xpose.msra.mxu0 0.0
  %2270 = vmatpush.xpose.msra.mxu0 0.0
  %2271 = vmatpush.xpose.msra.mxu0 0.0
  %2272 = vmatpush.xpose.msra.mxu0 %v2255
  %2273 = vmatmul.f32.gmra.mxu0 %v2253
  %v2274 = vpop.f32.mrf.mxu0
  %v2275 = vadd.f32 0.0, %v2274
  %2276 = vdwg.mxu0
  %2277 = vrot.lane.b32.xlu0 %v375, 72
  %v2278 = vpop.permute.xlu0 %2277
  %2279 = vrot.lane.b32.xlu0 %v375, 104
  %v2280 = vpop.permute.xlu0 %2279
  %v2281 = vsel %vm392, %v2278, 0
  %v2283 = vsel %vm392, %v2280, 0
  %2285 = vmatpush.xpose.msra.mxu0 0.0
  %2286 = vmatpush.xpose.msra.mxu0 0.0
  %2287 = vmatpush.xpose.msra.mxu0 0.0
  %2288 = vmatpush.xpose.msra.mxu0 0.0
  %2289 = vmatpush.xpose.msra.mxu0 0.0
  %2290 = vmatpush.xpose.msra.mxu0 0.0
  %2291 = vmatpush.xpose.msra.mxu0 0.0
  %2292 = vmatpush.xpose.msra.mxu0 0.0
  %2293 = vmatpush.xpose.msra.mxu0 0.0
  %2294 = vmatpush.xpose.msra.mxu0 0.0
  %2295 = vmatpush.xpose.msra.mxu0 0.0
  %2296 = vmatpush.xpose.msra.mxu0 0.0
  %2297 = vmatpush.xpose.msra.mxu0 0.0
  %2298 = vmatpush.xpose.msra.mxu0 0.0
  %2299 = vmatpush.xpose.msra.mxu0 0.0
  %2300 = vmatpush.xpose.msra.mxu0 %v2283
  %2301 = vmatmul.f32.gmra.mxu0 %v2281
  %v2302 = vpop.f32.mrf.mxu0
  %v2303 = vadd.f32 0.0, %v2302
  %2304 = vdwg.mxu0
  %2305 = vrot.lane.b32.xlu0 %v378, 72
  %v2306 = vpop.permute.xlu0 %2305
  %2307 = vrot.lane.b32.xlu0 %v378, 104
  %v2308 = vpop.permute.xlu0 %2307
  %v2309 = vsel %vm392, %v2306, 0
  %v2311 = vsel %vm392, %v2308, 0
  %2313 = vmatpush.xpose.msra.mxu0 0.0
  %2314 = vmatpush.xpose.msra.mxu0 0.0
  %2315 = vmatpush.xpose.msra.mxu0 0.0
  %2316 = vmatpush.xpose.msra.mxu0 0.0
  %2317 = vmatpush.xpose.msra.mxu0 0.0
  %2318 = vmatpush.xpose.msra.mxu0 0.0
  %2319 = vmatpush.xpose.msra.mxu0 0.0
  %2320 = vmatpush.xpose.msra.mxu0 0.0
  %2321 = vmatpush.xpose.msra.mxu0 0.0
  %2322 = vmatpush.xpose.msra.mxu0 0.0
  %2323 = vmatpush.xpose.msra.mxu0 0.0
  %2324 = vmatpush.xpose.msra.mxu0 0.0
  %2325 = vmatpush.xpose.msra.mxu0 0.0
  %2326 = vmatpush.xpose.msra.mxu0 0.0
  %2327 = vmatpush.xpose.msra.mxu0 0.0
  %2328 = vmatpush.xpose.msra.mxu0 %v2311
  %2329 = vmatmul.f32.gmra.mxu0 %v2309
  %v2330 = vpop.f32.mrf.mxu0
  %v2331 = vadd.f32 0.0, %v2330
  %2332 = vdwg.mxu0
  %2333 = vrot.lane.b32.xlu0 %v381, 72
  %v2334 = vpop.permute.xlu0 %2333
  %2335 = vrot.lane.b32.xlu0 %v381, 104
  %v2336 = vpop.permute.xlu0 %2335
  %v2337 = vsel %vm392, %v2334, 0
  %v2339 = vsel %vm392, %v2336, 0
  %2341 = vmatpush.xpose.msra.mxu0 0.0
  %2342 = vmatpush.xpose.msra.mxu0 0.0
  %2343 = vmatpush.xpose.msra.mxu0 0.0
  %2344 = vmatpush.xpose.msra.mxu0 0.0
  %2345 = vmatpush.xpose.msra.mxu0 0.0
  %2346 = vmatpush.xpose.msra.mxu0 0.0
  %2347 = vmatpush.xpose.msra.mxu0 0.0
  %2348 = vmatpush.xpose.msra.mxu0 0.0
  %2349 = vmatpush.xpose.msra.mxu0 0.0
  %2350 = vmatpush.xpose.msra.mxu0 0.0
  %2351 = vmatpush.xpose.msra.mxu0 0.0
  %2352 = vmatpush.xpose.msra.mxu0 0.0
  %2353 = vmatpush.xpose.msra.mxu0 0.0
  %2354 = vmatpush.xpose.msra.mxu0 0.0
  %2355 = vmatpush.xpose.msra.mxu0 0.0
  %2356 = vmatpush.xpose.msra.mxu0 %v2339
  %2357 = vmatmul.f32.gmra.mxu0 %v2337
  %v2358 = vpop.f32.mrf.mxu0
  %v2359 = vadd.f32 0.0, %v2358
  %2360 = vdwg.mxu0
  %2361 = vrot.lane.b32.xlu0 %v384, 72
  %v2362 = vpop.permute.xlu0 %2361
  %2363 = vrot.lane.b32.xlu0 %v384, 104
  %v2364 = vpop.permute.xlu0 %2363
  %v2365 = vsel %vm392, %v2362, 0
  %v2367 = vsel %vm392, %v2364, 0
  %2369 = vmatpush.xpose.msra.mxu0 0.0
  %2370 = vmatpush.xpose.msra.mxu0 0.0
  %2371 = vmatpush.xpose.msra.mxu0 0.0
  %2372 = vmatpush.xpose.msra.mxu0 0.0
  %2373 = vmatpush.xpose.msra.mxu0 0.0
  %2374 = vmatpush.xpose.msra.mxu0 0.0
  %2375 = vmatpush.xpose.msra.mxu0 0.0
  %2376 = vmatpush.xpose.msra.mxu0 0.0
  %2377 = vmatpush.xpose.msra.mxu0 0.0
  %2378 = vmatpush.xpose.msra.mxu0 0.0
  %2379 = vmatpush.xpose.msra.mxu0 0.0
  %2380 = vmatpush.xpose.msra.mxu0 0.0
  %2381 = vmatpush.xpose.msra.mxu0 0.0
  %2382 = vmatpush.xpose.msra.mxu0 0.0
  %2383 = vmatpush.xpose.msra.mxu0 0.0
  %2384 = vmatpush.xpose.msra.mxu0 %v2367
  %2385 = vmatmul.f32.gmra.mxu0 %v2365
  %v2386 = vpop.f32.mrf.mxu0
  %v2387 = vadd.f32 0.0, %v2386
  %2388 = vdwg.mxu0
  %2389 = vrot.lane.b32.xlu0 %v387, 72
  %v2390 = vpop.permute.xlu0 %2389
  %2391 = vrot.lane.b32.xlu0 %v387, 104
  %v2392 = vpop.permute.xlu0 %2391
  %v2393 = vsel %vm392, %v2390, 0
  %v2395 = vsel %vm392, %v2392, 0
  %2397 = vmatpush.xpose.msra.mxu0 0.0
  %2398 = vmatpush.xpose.msra.mxu0 0.0
  %2399 = vmatpush.xpose.msra.mxu0 0.0
  %2400 = vmatpush.xpose.msra.mxu0 0.0
  %2401 = vmatpush.xpose.msra.mxu0 0.0
  %2402 = vmatpush.xpose.msra.mxu0 0.0
  %2403 = vmatpush.xpose.msra.mxu0 0.0
  %2404 = vmatpush.xpose.msra.mxu0 0.0
  %2405 = vmatpush.xpose.msra.mxu0 0.0
  %2406 = vmatpush.xpose.msra.mxu0 0.0
  %2407 = vmatpush.xpose.msra.mxu0 0.0
  %2408 = vmatpush.xpose.msra.mxu0 0.0
  %2409 = vmatpush.xpose.msra.mxu0 0.0
  %2410 = vmatpush.xpose.msra.mxu0 0.0
  %2411 = vmatpush.xpose.msra.mxu0 0.0
  %2412 = vmatpush.xpose.msra.mxu0 %v2395
  %2413 = vmatmul.f32.gmra.mxu0 %v2393
  %v2414 = vpop.f32.mrf.mxu0
  %v2415 = vadd.f32 0.0, %v2414
  %2416 = vdwg.mxu0
  %v2417 = vmul.f32 %v2219, 0.35355338
  %v2418 = vmul.f32 %v2247, 0.35355338
  %v2419 = vmul.f32 %v2275, 0.35355338
  %v2420 = vmul.f32 %v2303, 0.35355338
  %v2421 = vmul.f32 %v2331, 0.35355338
  %v2422 = vmul.f32 %v2359, 0.35355338
  %v2423 = vmul.f32 %v2387, 0.35355338
  %v2424 = vmul.f32 %v2415, 0.35355338
  %v2425 = vadd.f32 %v2417, %v58
  %v2426 = vadd.f32 %v2418, %v62
  %v2427 = vadd.f32 %v2419, %v66
  %v2428 = vadd.f32 %v2420, %v70
  %v2429 = vadd.f32 %v2421, %v74
  %v2430 = vadd.f32 %v2422, %v78
  %v2431 = vadd.f32 %v2423, %v82
  %v2432 = vadd.f32 %v2424, %v86
  %v2433 = vsel %vm392, %v2425, -inf
  %2434 = vmax.xlane.f32.xlu0 %v2433
  %v2435 = vpop.xlane.xlu0 %2434
  %v2436 = vsel %vm392, %v2426, -inf
  %2437 = vmax.xlane.f32.xlu0 %v2436
  %v2438 = vpop.xlane.xlu0 %2437
  %v2439 = vsel %vm392, %v2427, -inf
  %2440 = vmax.xlane.f32.xlu0 %v2439
  %v2441 = vpop.xlane.xlu0 %2440
  %v2442 = vsel %vm392, %v2428, -inf
  %2443 = vmax.xlane.f32.xlu0 %v2442
  %v2444 = vpop.xlane.xlu0 %2443
  %v2445 = vsel %vm392, %v2429, -inf
  %2446 = vmax.xlane.f32.xlu0 %v2445
  %v2447 = vpop.xlane.xlu0 %2446
  %v2448 = vsel %vm392, %v2430, -inf
  %2449 = vmax.xlane.f32.xlu0 %v2448
  %v2450 = vpop.xlane.xlu0 %2449
  %v2451 = vsel %vm392, %v2431, -inf
  %2452 = vmax.xlane.f32.xlu0 %v2451
  %v2453 = vpop.xlane.xlu0 %2452
  %v2454 = vsel %vm392, %v2432, -inf
  %2455 = vmax.xlane.f32.xlu0 %v2454
  %v2456 = vpop.xlane.xlu0 %2455
  %v2457 = vsub.f32 %v2425, %v2435
  %v2458 = vsub.f32 %v2426, %v2438
  %v2459 = vsub.f32 %v2427, %v2441
  %v2460 = vsub.f32 %v2428, %v2444
  %v2461 = vsub.f32 %v2429, %v2447
  %v2462 = vsub.f32 %v2430, %v2450
  %v2463 = vsub.f32 %v2431, %v2453
  %v2464 = vsub.f32 %v2432, %v2456
  %v2465 = vmul.f32 %v2457, 1.442695
  %v2466 = vpow.pop %v2465
  %v2467 = vmul.f32 %v2458, 1.442695
  %v2468 = vpow.pop %v2467
  %v2469 = vmul.f32 %v2459, 1.442695
  %v2470 = vpow.pop %v2469
  %v2471 = vmul.f32 %v2460, 1.442695
  %v2472 = vpow.pop %v2471
  %v2473 = vmul.f32 %v2461, 1.442695
  %v2474 = vpow.pop %v2473
  %v2475 = vmul.f32 %v2462, 1.442695
  %v2476 = vpow.pop %v2475
  %v2477 = vmul.f32 %v2463, 1.442695
  %v2478 = vpow.pop %v2477
  %v2479 = vmul.f32 %v2464, 1.442695
  %v2480 = vpow.pop %v2479
  %v2481 = vsel %vm392, %v2466, 0.0
  %2482 = vadd.xlane.f32.xlu0 %v2481
  %v2483 = vpop.xlane.xlu0 %2482
  %v2484 = vsel %vm392, %v2468, 0.0
  %2485 = vadd.xlane.f32.xlu0 %v2484
  %v2486 = vpop.xlane.xlu0 %2485
  %v2487 = vsel %vm392, %v2470, 0.0
  %2488 = vadd.xlane.f32.xlu0 %v2487
  %v2489 = vpop.xlane.xlu0 %2488
  %v2490 = vsel %vm392, %v2472, 0.0
  %2491 = vadd.xlane.f32.xlu0 %v2490
  %v2492 = vpop.xlane.xlu0 %2491
  %v2493 = vsel %vm392, %v2474, 0.0
  %2494 = vadd.xlane.f32.xlu0 %v2493
  %v2495 = vpop.xlane.xlu0 %2494
  %v2496 = vsel %vm392, %v2476, 0.0
  %2497 = vadd.xlane.f32.xlu0 %v2496
  %v2498 = vpop.xlane.xlu0 %2497
  %v2499 = vsel %vm392, %v2478, 0.0
  %2500 = vadd.xlane.f32.xlu0 %v2499
  %v2501 = vpop.xlane.xlu0 %2500
  %v2502 = vsel %vm392, %v2480, 0.0
  %2503 = vadd.xlane.f32.xlu0 %v2502
  %v2504 = vpop.xlane.xlu0 %2503
  %v2505 = vrcp.pop %v2483
  %v2506 = vrcp.pop %v2486
  %v2507 = vrcp.pop %v2489
  %v2508 = vrcp.pop %v2492
  %v2509 = vrcp.pop %v2495
  %v2510 = vrcp.pop %v2498
  %v2511 = vrcp.pop %v2501
  %v2512 = vrcp.pop %v2504
  %v2513 = vmul.f32 %v2466, %v2505
  %v2514 = vmul.f32 %v2468, %v2506
  %v2515 = vmul.f32 %v2470, %v2507
  %v2516 = vmul.f32 %v2472, %v2508
  %v2517 = vmul.f32 %v2474, %v2509
  %v2518 = vmul.f32 %v2476, %v2510
  %v2519 = vmul.f32 %v2478, %v2511
  %v2520 = vmul.f32 %v2480, %v2512
  %2521 = vrot.lane.b32.xlu0 %v366, 40
  %v2522 = vpop.permute.xlu0 %2521
  %v2525 = vsel %vm392, %v2513, 0
  %2527 = vmatpush.msra.mxu0 0.0
  %2528 = vmatpush.msra.mxu0 0.0
  %2529 = vmatpush.msra.mxu0 0.0
  %2530 = vmatpush.msra.mxu0 0.0
  %2531 = vmatpush.msra.mxu0 0.0
  %2532 = vmatpush.msra.mxu0 0.0
  %2533 = vmatpush.msra.mxu0 0.0
  %2534 = vmatpush.msra.mxu0 0.0
  %2535 = vmatpush.msra.mxu0 0.0
  %2536 = vmatpush.msra.mxu0 0.0
  %2537 = vmatpush.msra.mxu0 0.0
  %2538 = vmatpush.msra.mxu0 0.0
  %2539 = vmatpush.msra.mxu0 0.0
  %2540 = vmatpush.msra.mxu0 0.0
  %2541 = vmatpush.msra.mxu0 0.0
  %2542 = vmatpush.msra.mxu0 %v2522
  %2543 = vmatmul.f32.gmra.mxu0 %v2525
  %v2544 = vpop.f32.mrf.mxu0
  %v2545 = vadd.f32 0.0, %v2544
  %2546 = vdwg.mxu0
  %2547 = vrot.lane.b32.xlu0 %v369, 40
  %v2548 = vpop.permute.xlu0 %2547
  %v2551 = vsel %vm392, %v2514, 0
  %2553 = vmatpush.msra.mxu0 0.0
  %2554 = vmatpush.msra.mxu0 0.0
  %2555 = vmatpush.msra.mxu0 0.0
  %2556 = vmatpush.msra.mxu0 0.0
  %2557 = vmatpush.msra.mxu0 0.0
  %2558 = vmatpush.msra.mxu0 0.0
  %2559 = vmatpush.msra.mxu0 0.0
  %2560 = vmatpush.msra.mxu0 0.0
  %2561 = vmatpush.msra.mxu0 0.0
  %2562 = vmatpush.msra.mxu0 0.0
  %2563 = vmatpush.msra.mxu0 0.0
  %2564 = vmatpush.msra.mxu0 0.0
  %2565 = vmatpush.msra.mxu0 0.0
  %2566 = vmatpush.msra.mxu0 0.0
  %2567 = vmatpush.msra.mxu0 0.0
  %2568 = vmatpush.msra.mxu0 %v2548
  %2569 = vmatmul.f32.gmra.mxu0 %v2551
  %v2570 = vpop.f32.mrf.mxu0
  %v2571 = vadd.f32 0.0, %v2570
  %2572 = vdwg.mxu0
  %2573 = vrot.lane.b32.xlu0 %v372, 40
  %v2574 = vpop.permute.xlu0 %2573
  %v2577 = vsel %vm392, %v2515, 0
  %2579 = vmatpush.msra.mxu0 0.0
  %2580 = vmatpush.msra.mxu0 0.0
  %2581 = vmatpush.msra.mxu0 0.0
  %2582 = vmatpush.msra.mxu0 0.0
  %2583 = vmatpush.msra.mxu0 0.0
  %2584 = vmatpush.msra.mxu0 0.0
  %2585 = vmatpush.msra.mxu0 0.0
  %2586 = vmatpush.msra.mxu0 0.0
  %2587 = vmatpush.msra.mxu0 0.0
  %2588 = vmatpush.msra.mxu0 0.0
  %2589 = vmatpush.msra.mxu0 0.0
  %2590 = vmatpush.msra.mxu0 0.0
  %2591 = vmatpush.msra.mxu0 0.0
  %2592 = vmatpush.msra.mxu0 0.0
  %2593 = vmatpush.msra.mxu0 0.0
  %2594 = vmatpush.msra.mxu0 %v2574
  %2595 = vmatmul.f32.gmra.mxu0 %v2577
  %v2596 = vpop.f32.mrf.mxu0
  %v2597 = vadd.f32 0.0, %v2596
  %2598 = vdwg.mxu0
  %2599 = vrot.lane.b32.xlu0 %v375, 40
  %v2600 = vpop.permute.xlu0 %2599
  %v2603 = vsel %vm392, %v2516, 0
  %2605 = vmatpush.msra.mxu0 0.0
  %2606 = vmatpush.msra.mxu0 0.0
  %2607 = vmatpush.msra.mxu0 0.0
  %2608 = vmatpush.msra.mxu0 0.0
  %2609 = vmatpush.msra.mxu0 0.0
  %2610 = vmatpush.msra.mxu0 0.0
  %2611 = vmatpush.msra.mxu0 0.0
  %2612 = vmatpush.msra.mxu0 0.0
  %2613 = vmatpush.msra.mxu0 0.0
  %2614 = vmatpush.msra.mxu0 0.0
  %2615 = vmatpush.msra.mxu0 0.0
  %2616 = vmatpush.msra.mxu0 0.0
  %2617 = vmatpush.msra.mxu0 0.0
  %2618 = vmatpush.msra.mxu0 0.0
  %2619 = vmatpush.msra.mxu0 0.0
  %2620 = vmatpush.msra.mxu0 %v2600
  %2621 = vmatmul.f32.gmra.mxu0 %v2603
  %v2622 = vpop.f32.mrf.mxu0
  %v2623 = vadd.f32 0.0, %v2622
  %2624 = vdwg.mxu0
  %2625 = vrot.lane.b32.xlu0 %v378, 40
  %v2626 = vpop.permute.xlu0 %2625
  %v2629 = vsel %vm392, %v2517, 0
  %2631 = vmatpush.msra.mxu0 0.0
  %2632 = vmatpush.msra.mxu0 0.0
  %2633 = vmatpush.msra.mxu0 0.0
  %2634 = vmatpush.msra.mxu0 0.0
  %2635 = vmatpush.msra.mxu0 0.0
  %2636 = vmatpush.msra.mxu0 0.0
  %2637 = vmatpush.msra.mxu0 0.0
  %2638 = vmatpush.msra.mxu0 0.0
  %2639 = vmatpush.msra.mxu0 0.0
  %2640 = vmatpush.msra.mxu0 0.0
  %2641 = vmatpush.msra.mxu0 0.0
  %2642 = vmatpush.msra.mxu0 0.0
  %2643 = vmatpush.msra.mxu0 0.0
  %2644 = vmatpush.msra.mxu0 0.0
  %2645 = vmatpush.msra.mxu0 0.0
  %2646 = vmatpush.msra.mxu0 %v2626
  %2647 = vmatmul.f32.gmra.mxu0 %v2629
  %v2648 = vpop.f32.mrf.mxu0
  %v2649 = vadd.f32 0.0, %v2648
  %2650 = vdwg.mxu0
  %2651 = vrot.lane.b32.xlu0 %v381, 40
  %v2652 = vpop.permute.xlu0 %2651
  %v2655 = vsel %vm392, %v2518, 0
  %2657 = vmatpush.msra.mxu0 0.0
  %2658 = vmatpush.msra.mxu0 0.0
  %2659 = vmatpush.msra.mxu0 0.0
  %2660 = vmatpush.msra.mxu0 0.0
  %2661 = vmatpush.msra.mxu0 0.0
  %2662 = vmatpush.msra.mxu0 0.0
  %2663 = vmatpush.msra.mxu0 0.0
  %2664 = vmatpush.msra.mxu0 0.0
  %2665 = vmatpush.msra.mxu0 0.0
  %2666 = vmatpush.msra.mxu0 0.0
  %2667 = vmatpush.msra.mxu0 0.0
  %2668 = vmatpush.msra.mxu0 0.0
  %2669 = vmatpush.msra.mxu0 0.0
  %2670 = vmatpush.msra.mxu0 0.0
  %2671 = vmatpush.msra.mxu0 0.0
  %2672 = vmatpush.msra.mxu0 %v2652
  %2673 = vmatmul.f32.gmra.mxu0 %v2655
  %v2674 = vpop.f32.mrf.mxu0
  %v2675 = vadd.f32 0.0, %v2674
  %2676 = vdwg.mxu0
  %2677 = vrot.lane.b32.xlu0 %v384, 40
  %v2678 = vpop.permute.xlu0 %2677
  %v2681 = vsel %vm392, %v2519, 0
  %2683 = vmatpush.msra.mxu0 0.0
  %2684 = vmatpush.msra.mxu0 0.0
  %2685 = vmatpush.msra.mxu0 0.0
  %2686 = vmatpush.msra.mxu0 0.0
  %2687 = vmatpush.msra.mxu0 0.0
  %2688 = vmatpush.msra.mxu0 0.0
  %2689 = vmatpush.msra.mxu0 0.0
  %2690 = vmatpush.msra.mxu0 0.0
  %2691 = vmatpush.msra.mxu0 0.0
  %2692 = vmatpush.msra.mxu0 0.0
  %2693 = vmatpush.msra.mxu0 0.0
  %2694 = vmatpush.msra.mxu0 0.0
  %2695 = vmatpush.msra.mxu0 0.0
  %2696 = vmatpush.msra.mxu0 0.0
  %2697 = vmatpush.msra.mxu0 0.0
  %2698 = vmatpush.msra.mxu0 %v2678
  %2699 = vmatmul.f32.gmra.mxu0 %v2681
  %v2700 = vpop.f32.mrf.mxu0
  %v2701 = vadd.f32 0.0, %v2700
  %2702 = vdwg.mxu0
  %2703 = vrot.lane.b32.xlu0 %v387, 40
  %v2704 = vpop.permute.xlu0 %2703
  %v2707 = vsel %vm392, %v2520, 0
  %2709 = vmatpush.msra.mxu0 0.0
  %2710 = vmatpush.msra.mxu0 0.0
  %2711 = vmatpush.msra.mxu0 0.0
  %2712 = vmatpush.msra.mxu0 0.0
  %2713 = vmatpush.msra.mxu0 0.0
  %2714 = vmatpush.msra.mxu0 0.0
  %2715 = vmatpush.msra.mxu0 0.0
  %2716 = vmatpush.msra.mxu0 0.0
  %2717 = vmatpush.msra.mxu0 0.0
  %2718 = vmatpush.msra.mxu0 0.0
  %2719 = vmatpush.msra.mxu0 0.0
  %2720 = vmatpush.msra.mxu0 0.0
  %2721 = vmatpush.msra.mxu0 0.0
  %2722 = vmatpush.msra.mxu0 0.0
  %2723 = vmatpush.msra.mxu0 0.0
  %2724 = vmatpush.msra.mxu0 %v2704
  %2725 = vmatmul.f32.gmra.mxu0 %v2707
  %v2726 = vpop.f32.mrf.mxu0
  %v2727 = vadd.f32 0.0, %v2726
  %2728 = vdwg.mxu0
  %v2730 = vsel %vm392, %v2545, 0
  %v2733 = vsel %vm392, %v2571, 0
  %v2736 = vsel %vm392, %v2597, 0
  %v2739 = vsel %vm392, %v2623, 0
  %v2742 = vsel %vm392, %v2649, 0
  %v2745 = vsel %vm392, %v2675, 0
  %v2748 = vsel %vm392, %v2701, 0
  %v2751 = vsel %vm392, %v2727, 0
  %2753 = vmatpush.msra.mxu0 0.0
  %2754 = vmatpush.msra.mxu0 0.0
  %2755 = vmatpush.msra.mxu0 0.0
  %2756 = vmatpush.msra.mxu0 0.0
  %2757 = vmatpush.msra.mxu0 0.0
  %2758 = vmatpush.msra.mxu0 0.0
  %2759 = vmatpush.msra.mxu0 0.0
  %2760 = vmatpush.msra.mxu0 0.0
  %2761 = vmatpush.msra.mxu0 0.0
  %2762 = vmatpush.msra.mxu0 0.0
  %2763 = vmatpush.msra.mxu0 0.0
  %2764 = vmatpush.msra.mxu0 0.0
  %2765 = vmatpush.msra.mxu0 0.0
  %2766 = vmatpush.msra.mxu0 0.0
  %2767 = vmatpush.msra.mxu0 0.0
  %2768 = vmatpush.msra.mxu0 %v97
  %2769 = vmatmul.f32.gmra.mxu0 %v2730
  %v2770 = vpop.f32.mrf.mxu0
  %v2771 = vadd.f32 0.0, %v2770
  %2772 = vmatmul.f32.gmra.mxu0 %v2733
  %v2773 = vpop.f32.mrf.mxu0
  %v2774 = vadd.f32 0.0, %v2773
  %2775 = vmatmul.f32.gmra.mxu0 %v2736
  %v2776 = vpop.f32.mrf.mxu0
  %v2777 = vadd.f32 0.0, %v2776
  %2778 = vmatmul.f32.gmra.mxu0 %v2739
  %v2779 = vpop.f32.mrf.mxu0
  %v2780 = vadd.f32 0.0, %v2779
  %2781 = vmatmul.f32.gmra.mxu0 %v2742
  %v2782 = vpop.f32.mrf.mxu0
  %v2783 = vadd.f32 0.0, %v2782
  %2784 = vmatmul.f32.gmra.mxu0 %v2745
  %v2785 = vpop.f32.mrf.mxu0
  %v2786 = vadd.f32 0.0, %v2785
  %2787 = vmatmul.f32.gmra.mxu0 %v2748
  %v2788 = vpop.f32.mrf.mxu0
  %v2789 = vadd.f32 0.0, %v2788
  %2790 = vmatmul.f32.gmra.mxu0 %v2751
  %v2791 = vpop.f32.mrf.mxu0
  %v2792 = vadd.f32 0.0, %v2791
  %2793 = vdwg.mxu0
  %v2794 = vadd.f32 %v2185, %v2771
  %v2795 = vadd.f32 %v2186, %v2774
  %v2796 = vadd.f32 %v2187, %v2777
  %v2797 = vadd.f32 %v2188, %v2780
  %v2798 = vadd.f32 %v2189, %v2783
  %v2799 = vadd.f32 %v2190, %v2786
  %v2800 = vadd.f32 %v2191, %v2789
  %v2801 = vadd.f32 %v2192, %v2792
  %v2802 = vadd.f32 %v47, %v2794
  %v2803 = vadd.f32 %v48, %v2795
  %v2804 = vadd.f32 %v49, %v2796
  %v2805 = vadd.f32 %v50, %v2797
  %v2806 = vadd.f32 %v51, %v2798
  %v2807 = vadd.f32 %v52, %v2799
  %v2808 = vadd.f32 %v53, %v2800
  %v2809 = vadd.f32 %v54, %v2801
  %v2811 = vperm.slane %v98, 0
  %v2813 = vadd.f32 %v2802, %v2811
  %v2814 = vadd.f32 %v2803, %v2811
  %v2815 = vadd.f32 %v2804, %v2811
  %v2816 = vadd.f32 %v2805, %v2811
  %v2817 = vadd.f32 %v2806, %v2811
  %v2818 = vadd.f32 %v2807, %v2811
  %v2819 = vadd.f32 %v2808, %v2811
  %v2820 = vadd.f32 %v2809, %v2811
  %v2821 = vsel %vm115, %v2813, 0.0
  %2822 = vadd.xlane.f32.xlu0 %v2821
  %v2823 = vpop.xlane.xlu0 %2822
  %v2824 = vsel %vm115, %v2814, 0.0
  %2825 = vadd.xlane.f32.xlu0 %v2824
  %v2826 = vpop.xlane.xlu0 %2825
  %v2827 = vsel %vm115, %v2815, 0.0
  %2828 = vadd.xlane.f32.xlu0 %v2827
  %v2829 = vpop.xlane.xlu0 %2828
  %v2830 = vsel %vm115, %v2816, 0.0
  %2831 = vadd.xlane.f32.xlu0 %v2830
  %v2832 = vpop.xlane.xlu0 %2831
  %v2833 = vsel %vm115, %v2817, 0.0
  %2834 = vadd.xlane.f32.xlu0 %v2833
  %v2835 = vpop.xlane.xlu0 %2834
  %v2836 = vsel %vm115, %v2818, 0.0
  %2837 = vadd.xlane.f32.xlu0 %v2836
  %v2838 = vpop.xlane.xlu0 %2837
  %v2839 = vsel %vm115, %v2819, 0.0
  %2840 = vadd.xlane.f32.xlu0 %v2839
  %v2841 = vpop.xlane.xlu0 %2840
  %v2842 = vsel %vm115, %v2820, 0.0
  %2843 = vadd.xlane.f32.xlu0 %v2842
  %v2844 = vpop.xlane.xlu0 %2843
  %v2845 = vmul.f32 %v2823, %v146
  %v2846 = vmul.f32 %v2826, %v146
  %v2847 = vmul.f32 %v2829, %v146
  %v2848 = vmul.f32 %v2832, %v146
  %v2849 = vmul.f32 %v2835, %v146
  %v2850 = vmul.f32 %v2838, %v146
  %v2851 = vmul.f32 %v2841, %v146
  %v2852 = vmul.f32 %v2844, %v146
  %v2853 = vsub.f32 %v2813, %v2845
  %v2854 = vsub.f32 %v2814, %v2846
  %v2855 = vsub.f32 %v2815, %v2847
  %v2856 = vsub.f32 %v2816, %v2848
  %v2857 = vsub.f32 %v2817, %v2849
  %v2858 = vsub.f32 %v2818, %v2850
  %v2859 = vsub.f32 %v2819, %v2851
  %v2860 = vsub.f32 %v2820, %v2852
  %v2861 = vmul.f32 %v2853, %v2853
  %v2862 = vmul.f32 %v2854, %v2854
  %v2863 = vmul.f32 %v2855, %v2855
  %v2864 = vmul.f32 %v2856, %v2856
  %v2865 = vmul.f32 %v2857, %v2857
  %v2866 = vmul.f32 %v2858, %v2858
  %v2867 = vmul.f32 %v2859, %v2859
  %v2868 = vmul.f32 %v2860, %v2860
  %v2869 = vsel %vm115, %v2861, 0.0
  %2870 = vadd.xlane.f32.xlu0 %v2869
  %v2871 = vpop.xlane.xlu0 %2870
  %v2872 = vsel %vm115, %v2862, 0.0
  %2873 = vadd.xlane.f32.xlu0 %v2872
  %v2874 = vpop.xlane.xlu0 %2873
  %v2875 = vsel %vm115, %v2863, 0.0
  %2876 = vadd.xlane.f32.xlu0 %v2875
  %v2877 = vpop.xlane.xlu0 %2876
  %v2878 = vsel %vm115, %v2864, 0.0
  %2879 = vadd.xlane.f32.xlu0 %v2878
  %v2880 = vpop.xlane.xlu0 %2879
  %v2881 = vsel %vm115, %v2865, 0.0
  %2882 = vadd.xlane.f32.xlu0 %v2881
  %v2883 = vpop.xlane.xlu0 %2882
  %v2884 = vsel %vm115, %v2866, 0.0
  %2885 = vadd.xlane.f32.xlu0 %v2884
  %v2886 = vpop.xlane.xlu0 %2885
  %v2887 = vsel %vm115, %v2867, 0.0
  %2888 = vadd.xlane.f32.xlu0 %v2887
  %v2889 = vpop.xlane.xlu0 %2888
  %v2890 = vsel %vm115, %v2868, 0.0
  %2891 = vadd.xlane.f32.xlu0 %v2890
  %v2892 = vpop.xlane.xlu0 %2891
  %v2893 = vmul.f32 %v2871, %v146
  %v2894 = vmul.f32 %v2874, %v146
  %v2895 = vmul.f32 %v2877, %v146
  %v2896 = vmul.f32 %v2880, %v146
  %v2897 = vmul.f32 %v2883, %v146
  %v2898 = vmul.f32 %v2886, %v146
  %v2899 = vmul.f32 %v2889, %v146
  %v2900 = vmul.f32 %v2892, %v146
  %v2901 = vadd.f32 %v2893, 1e-05
  %v2902 = vadd.f32 %v2894, 1e-05
  %v2903 = vadd.f32 %v2895, 1e-05
  %v2904 = vadd.f32 %v2896, 1e-05
  %v2905 = vadd.f32 %v2897, 1e-05
  %v2906 = vadd.f32 %v2898, 1e-05
  %v2907 = vadd.f32 %v2899, 1e-05
  %v2908 = vadd.f32 %v2900, 1e-05
  %v2909 = vrsqrt.pop %v2901
  %v2910 = vmul.f32 %v2909, %v2901
  %v2911 = vmul.f32 %v2910, %v2909
  %v2912 = vmul.f32 0.5, %v2911
  %v2913 = vsub.f32 1.5, %v2912
  %v2914 = vmul.f32 %v2909, %v2913
  %vm2915 = vweird.f32 %v2901
  %vm2916 = vweird.f32 %v2909
  %vm2917 = vmor %vm2915, %vm2916
  %v2918 = vsel %vm2917, %v2909, %v2914
  %v2919 = vrsqrt.pop %v2902
  %v2920 = vmul.f32 %v2919, %v2902
  %v2921 = vmul.f32 %v2920, %v2919
  %v2922 = vmul.f32 0.5, %v2921
  %v2923 = vsub.f32 1.5, %v2922
  %v2924 = vmul.f32 %v2919, %v2923
  %vm2925 = vweird.f32 %v2902
  %vm2926 = vweird.f32 %v2919
  %vm2927 = vmor %vm2925, %vm2926
  %v2928 = vsel %vm2927, %v2919, %v2924
  %v2929 = vrsqrt.pop %v2903
  %v2930 = vmul.f32 %v2929, %v2903
  %v2931 = vmul.f32 %v2930, %v2929
  %v2932 = vmul.f32 0.5, %v2931
  %v2933 = vsub.f32 1.5, %v2932
  %v2934 = vmul.f32 %v2929, %v2933
  %vm2935 = vweird.f32 %v2903
  %vm2936 = vweird.f32 %v2929
  %vm2937 = vmor %vm2935, %vm2936
  %v2938 = vsel %vm2937, %v2929, %v2934
  %v2939 = vrsqrt.pop %v2904
  %v2940 = vmul.f32 %v2939, %v2904
  %v2941 = vmul.f32 %v2940, %v2939
  %v2942 = vmul.f32 0.5, %v2941
  %v2943 = vsub.f32 1.5, %v2942
  %v2944 = vmul.f32 %v2939, %v2943
  %vm2945 = vweird.f32 %v2904
  %vm2946 = vweird.f32 %v2939
  %vm2947 = vmor %vm2945, %vm2946
  %v2948 = vsel %vm2947, %v2939, %v2944
  %v2949 = vrsqrt.pop %v2905
  %v2950 = vmul.f32 %v2949, %v2905
  %v2951 = vmul.f32 %v2950, %v2949
  %v2952 = vmul.f32 0.5, %v2951
  %v2953 = vsub.f32 1.5, %v2952
  %v2954 = vmul.f32 %v2949, %v2953
  %vm2955 = vweird.f32 %v2905
  %vm2956 = vweird.f32 %v2949
  %vm2957 = vmor %vm2955, %vm2956
  %v2958 = vsel %vm2957, %v2949, %v2954
  %v2959 = vrsqrt.pop %v2906
  %v2960 = vmul.f32 %v2959, %v2906
  %v2961 = vmul.f32 %v2960, %v2959
  %v2962 = vmul.f32 0.5, %v2961
  %v2963 = vsub.f32 1.5, %v2962
  %v2964 = vmul.f32 %v2959, %v2963
  %vm2965 = vweird.f32 %v2906
  %vm2966 = vweird.f32 %v2959
  %vm2967 = vmor %vm2965, %vm2966
  %v2968 = vsel %vm2967, %v2959, %v2964
  %v2969 = vrsqrt.pop %v2907
  %v2970 = vmul.f32 %v2969, %v2907
  %v2971 = vmul.f32 %v2970, %v2969
  %v2972 = vmul.f32 0.5, %v2971
  %v2973 = vsub.f32 1.5, %v2972
  %v2974 = vmul.f32 %v2969, %v2973
  %vm2975 = vweird.f32 %v2907
  %vm2976 = vweird.f32 %v2969
  %vm2977 = vmor %vm2975, %vm2976
  %v2978 = vsel %vm2977, %v2969, %v2974
  %v2979 = vrsqrt.pop %v2908
  %v2980 = vmul.f32 %v2979, %v2908
  %v2981 = vmul.f32 %v2980, %v2979
  %v2982 = vmul.f32 0.5, %v2981
  %v2983 = vsub.f32 1.5, %v2982
  %v2984 = vmul.f32 %v2979, %v2983
  %vm2985 = vweird.f32 %v2908
  %vm2986 = vweird.f32 %v2979
  %vm2987 = vmor %vm2985, %vm2986
  %v2988 = vsel %vm2987, %v2979, %v2984
  %v2989 = vmul.f32 %v2853, %v2918
  %v2990 = vmul.f32 %v2854, %v2928
  %v2991 = vmul.f32 %v2855, %v2938
  %v2992 = vmul.f32 %v2856, %v2948
  %v2993 = vmul.f32 %v2857, %v2958
  %v2994 = vmul.f32 %v2858, %v2968
  %v2995 = vmul.f32 %v2859, %v2978
  %v2996 = vmul.f32 %v2860, %v2988
  %v2998 = vperm.slane %v99, 0
  %v3000 = vmul.f32 %v2989, %v2998
  %v3001 = vmul.f32 %v2990, %v2998
  %v3002 = vmul.f32 %v2991, %v2998
  %v3003 = vmul.f32 %v2992, %v2998
  %v3004 = vmul.f32 %v2993, %v2998
  %v3005 = vmul.f32 %v2994, %v2998
  %v3006 = vmul.f32 %v2995, %v2998
  %v3007 = vmul.f32 %v2996, %v2998
  %v3009 = vperm.slane %v100, 0
  %v3011 = vadd.f32 %v3000, %v3009
  %v3012 = vadd.f32 %v3001, %v3009
  %v3013 = vadd.f32 %v3002, %v3009
  %v3014 = vadd.f32 %v3003, %v3009
  %v3015 = vadd.f32 %v3004, %v3009
  %v3016 = vadd.f32 %v3005, %v3009
  %v3017 = vadd.f32 %v3006, %v3009
  %v3018 = vadd.f32 %v3007, %v3009
  %v3020 = vperm.slane %v105, 0
  %v3023 = vsel %vm115, %v3011, 0
  %v3026 = vsel %vm115, %v3012, 0
  %v3029 = vsel %vm115, %v3013, 0
  %v3032 = vsel %vm115, %v3014, 0
  %v3035 = vsel %vm115, %v3015, 0
  %v3038 = vsel %vm115, %v3016, 0
  %v3041 = vsel %vm115, %v3017, 0
  %v3044 = vsel %vm115, %v3018, 0
  %3046 = vmatpush.msra.mxu0 0.0
  %3047 = vmatpush.msra.mxu0 0.0
  %3048 = vmatpush.msra.mxu0 0.0
  %3049 = vmatpush.msra.mxu0 0.0
  %3050 = vmatpush.msra.mxu0 0.0
  %3051 = vmatpush.msra.mxu0 0.0
  %3052 = vmatpush.msra.mxu0 0.0
  %3053 = vmatpush.msra.mxu0 0.0
  %3054 = vmatpush.msra.mxu0 0.0
  %3055 = vmatpush.msra.mxu0 0.0
  %3056 = vmatpush.msra.mxu0 0.0
  %3057 = vmatpush.msra.mxu0 0.0
  %3058 = vmatpush.msra.mxu0 %v104
  %3059 = vmatpush.msra.mxu0 %v103
  %3060 = vmatpush.msra.mxu0 %v102
  %3061 = vmatpush.msra.mxu0 %v101
  %3062 = vmatmul.f32.gmra.mxu0 %v3023
  %v3063 = vpop.f32.mrf.mxu0
  %v3064 = vadd.f32 %v3020, %v3063
  %3065 = vmatmul.f32.gmra.mxu0 %v3026
  %v3066 = vpop.f32.mrf.mxu0
  %v3067 = vadd.f32 %v3020, %v3066
  %3068 = vmatmul.f32.gmra.mxu0 %v3029
  %v3069 = vpop.f32.mrf.mxu0
  %v3070 = vadd.f32 %v3020, %v3069
  %3071 = vmatmul.f32.gmra.mxu0 %v3032
  %v3072 = vpop.f32.mrf.mxu0
  %v3073 = vadd.f32 %v3020, %v3072
  %3074 = vmatmul.f32.gmra.mxu0 %v3035
  %v3075 = vpop.f32.mrf.mxu0
  %v3076 = vadd.f32 %v3020, %v3075
  %3077 = vmatmul.f32.gmra.mxu0 %v3038
  %v3078 = vpop.f32.mrf.mxu0
  %v3079 = vadd.f32 %v3020, %v3078
  %3080 = vmatmul.f32.gmra.mxu0 %v3041
  %v3081 = vpop.f32.mrf.mxu0
  %v3082 = vadd.f32 %v3020, %v3081
  %3083 = vmatmul.f32.gmra.mxu0 %v3044
  %v3084 = vpop.f32.mrf.mxu0
  %v3085 = vadd.f32 %v3020, %v3084
  %3086 = vdwg.mxu0
  %v3087 = vmax.f32 %v3064, 0.0
  %v3088 = vmax.f32 %v3067, 0.0
  %v3089 = vmax.f32 %v3070, 0.0
  %v3090 = vmax.f32 %v3073, 0.0
  %v3091 = vmax.f32 %v3076, 0.0
  %v3092 = vmax.f32 %v3079, 0.0
  %v3093 = vmax.f32 %v3082, 0.0
  %v3094 = vmax.f32 %v3085, 0.0
  %v3096 = vperm.slane %v114, 0
  %vm3098 = vcmask 523264
  %v3100 = vsel %vm3098, %v3087, 0
  %v3103 = vsel %vm3098, %v3088, 0
  %v3106 = vsel %vm3098, %v3089, 0
  %v3109 = vsel %vm3098, %v3090, 0
  %v3112 = vsel %vm3098, %v3091, 0
  %v3115 = vsel %vm3098, %v3092, 0
  %v3118 = vsel %vm3098, %v3093, 0
  %v3121 = vsel %vm3098, %v3094, 0
  %3123 = vmatpush.msra.mxu0 0.0
  %3124 = vmatpush.msra.mxu0 0.0
  %3125 = vmatpush.msra.mxu0 0.0
  %3126 = vmatpush.msra.mxu0 0.0
  %3127 = vmatpush.msra.mxu0 0.0
  %3128 = vmatpush.msra.mxu0 0.0
  %3129 = vmatpush.msra.mxu0 0.0
  %3130 = vmatpush.msra.mxu0 0.0
  %3131 = vmatpush.msra.mxu0 %v113
  %3132 = vmatpush.msra.mxu0 %v112
  %3133 = vmatpush.msra.mxu0 %v111
  %3134 = vmatpush.msra.mxu0 %v110
  %3135 = vmatpush.msra.mxu0 %v109
  %3136 = vmatpush.msra.mxu0 %v108
  %3137 = vmatpush.msra.mxu0 %v107
  %3138 = vmatpush.msra.mxu0 %v106
  %3139 = vmatmul.f32.gmra.mxu0 %v3100
  %v3140 = vpop.f32.mrf.mxu0
  %v3141 = vadd.f32 %v3096, %v3140
  %3142 = vmatmul.f32.gmra.mxu0 %v3103
  %v3143 = vpop.f32.mrf.mxu0
  %v3144 = vadd.f32 %v3096, %v3143
  %3145 = vmatmul.f32.gmra.mxu0 %v3106
  %v3146 = vpop.f32.mrf.mxu0
  %v3147 = vadd.f32 %v3096, %v3146
  %3148 = vmatmul.f32.gmra.mxu0 %v3109
  %v3149 = vpop.f32.mrf.mxu0
  %v3150 = vadd.f32 %v3096, %v3149
  %3151 = vmatmul.f32.gmra.mxu0 %v3112
  %v3152 = vpop.f32.mrf.mxu0
  %v3153 = vadd.f32 %v3096, %v3152
  %3154 = vmatmul.f32.gmra.mxu0 %v3115
  %v3155 = vpop.f32.mrf.mxu0
  %v3156 = vadd.f32 %v3096, %v3155
  %3157 = vmatmul.f32.gmra.mxu0 %v3118
  %v3158 = vpop.f32.mrf.mxu0
  %v3159 = vadd.f32 %v3096, %v3158
  %3160 = vmatmul.f32.gmra.mxu0 %v3121
  %v3161 = vpop.f32.mrf.mxu0
  %v3162 = vadd.f32 %v3096, %v3161
  %3163 = vdwg.mxu0
  %v3164 = vadd.f32 %v2813, %v3141
  %v3165 = vadd.f32 %v2814, %v3144
  %v3166 = vadd.f32 %v2815, %v3147
  %v3167 = vadd.f32 %v2816, %v3150
  %v3168 = vadd.f32 %v2817, %v3153
  %v3169 = vadd.f32 %v2818, %v3156
  %v3170 = vadd.f32 %v2819, %v3159
  %v3171 = vadd.f32 %v2820, %v3162
  %3172 = vst.msk [vmem:[%s14] sm:$0xff] %vm115, %v3164
  %3173 = vst.msk [vmem:[%s14 + $0x8] sm:$0xff] %vm115, %v3165
  %3174 = vst.msk [vmem:[%s14 + $0x10] sm:$0xff] %vm115, %v3166
  %3175 = vst.msk [vmem:[%s14 + $0x18] sm:$0xff] %vm115, %v3167
  %3176 = vst.msk [vmem:[%s14 + $0x20] sm:$0xff] %vm115, %v3168
  %3177 = vst.msk [vmem:[%s14 + $0x28] sm:$0xff] %vm115, %v3169
  %3178 = vst.msk [vmem:[%s14 + $0x30] sm:$0xff] %vm115, %v3170
  %3179 = vst.msk [vmem:[%s14 + $0x38] sm:$0xff] %vm115, %v3171
  // Predicated region
  $region58: #{forward.4} parent=0 // pred_check
    _
  $region59: #{forward.4} parent=0 // pred_check_branch
    %3181 = sbr.rel (0) target = $region61
  $region60: #{forward.4} parent=0 // pred_region
    _
  $region61: #{forward.4} parent=0 // pred_fallthru
    _
  // Predicated region
  $region62: #{forward.4} parent=0 // pred_check
    _
  $region63: #{forward.4} parent=0 // pred_check_branch
    %3183 = sbr.rel (0) target = $region65
  $region64: #{forward.4} parent=0 // pred_region
    _
  $region65: #{forward.4} parent=0 // pred_fallthru
    _

// kernel: forward.5
$region0: #{forward.5}
  #allocation0 [shape = 'u32[]', space=smem, size = 0x4, offset = 0x4, fixed_abs, tag = 'smem constant byte address 0x4 - core index']
  #allocation1 [shape = 'u32[72,128]{1,0:T(1,128)}', space=vmem, size = 0x9000, scoped, tag = 'internal scratch']
  %s0 = inlined_call_operand.vmem [shape: f32[64,32], index: 0, kind: input, shape index: {}]
  %s1 = inlined_call_operand.vmem [shape: f32[1,4,8,8], index: 1, kind: input, shape index: {}]
  %s2 = inlined_call_operand.vmem [shape: f32[1,32], index: 2, kind: input, shape index: {}]
  %s3 = inlined_call_operand.vmem [shape: f32[1,32], index: 3, kind: input, shape index: {}]
  %s4 = inlined_call_operand.vmem [shape: f32[32,96], index: 4, kind: input, shape index: {}]
  %s5 = inlined_call_operand.vmem [shape: f32[1,96], index: 5, kind: input, shape index: {}]
  %s6 = inlined_call_operand.vmem [shape: f32[32,32], index: 6, kind: input, shape index: {}]
  %s7 = inlined_call_operand.vmem [shape: f32[1,32], index: 7, kind: input, shape index: {}]
  %s8 = inlined_call_operand.vmem [shape: f32[1,32], index: 8, kind: input, shape index: {}]
  %s9 = inlined_call_operand.vmem [shape: f32[1,32], index: 9, kind: input, shape index: {}]
  %s10 = inlined_call_operand.vmem [shape: f32[32,64], index: 10, kind: input, shape index: {}]
  %s11 = inlined_call_operand.vmem [shape: f32[1,64], index: 11, kind: input, shape index: {}]
  %s12 = inlined_call_operand.vmem [shape: f32[64,32], index: 12, kind: input, shape index: {}]
  %s13 = inlined_call_operand.vmem [shape: f32[1,32], index: 13, kind: input, shape index: {}]
  %s14 = inlined_call_operand.vmem [shape: f32[8,8], index: 14, kind: input, shape index: {}]
  %s15 = inlined_call_operand.vmem [shape: f32[8,8], index: 15, kind: input, shape index: {}]
  %s16 = inlined_call_operand.vmem [shape: f32[1,32], index: 16, kind: input, shape index: {}]
  %s17 = inlined_call_operand.vmem [shape: f32[1,32], index: 17, kind: input, shape index: {}]
  %s18 = inlined_call_operand.vmem [shape: f32[1,32], index: 18, kind: input, shape index: {}]
  %s19 = inlined_call_operand.vmem [shape: f32[8,8], index: 19, kind: output, shape index: {}]
  %s20 = sld [smem:[#allocation0]]
  $region86: #{forward.5} parent=0
    _
  %s22 = ssub.s32 1, %s20
  %s23 = scalar_select 0, %s22, %s20
  // Predicated region
  $region2: #{forward.5} parent=0 // pred_check
    _
  $region3: #{forward.5} parent=0 // pred_check_branch
    %25 = sbr.rel (0) target = $region5
  $region4: #{forward.5} parent=0 // pred_region
    _
  $region5: #{forward.5} parent=0 // pred_fallthru
    _
  // Predicated region
  $region6: #{forward.5} parent=0 // pred_check
    _
  $region7: #{forward.5} parent=0 // pred_check_branch
    %27 = sbr.rel (0) target = $region9
  $region8: #{forward.5} parent=0 // pred_region
    _
  $region9: #{forward.5} parent=0 // pred_fallthru
    _
  // Predicated region
  $region10: #{forward.5} parent=0 // pred_check
    _
  $region11: #{forward.5} parent=0 // pred_check_branch
    %29 = sbr.rel (0) target = $region13
  $region12: #{forward.5} parent=0 // pred_region
    _
  $region13: #{forward.5} parent=0 // pred_fallthru
    _
  // Predicated region
  $region14: #{forward.5} parent=0 // pred_check
    _
  $region15: #{forward.5} parent=0 // pred_check_branch
    %31 = sbr.rel (0) target = $region17
  $region16: #{forward.5} parent=0 // pred_region
    _
  $region17: #{forward.5} parent=0 // pred_fallthru
    _
  // Predicated region
  $region18: #{forward.5} parent=0 // pred_check
    _
  $region19: #{forward.5} parent=0 // pred_check_branch
    %33 = sbr.rel (0) target = $region21
  $region20: #{forward.5} parent=0 // pred_region
    _
  $region21: #{forward.5} parent=0 // pred_fallthru
    _
  // Predicated region
  $region22: #{forward.5} parent=0 // pred_check
    _
  $region23: #{forward.5} parent=0 // pred_check_branch
    %35 = sbr.rel (0) target = $region25
  $region24: #{forward.5} parent=0 // pred_region
    _
  $region25: #{forward.5} parent=0 // pred_fallthru
    _
  // Predicated region
  $region26: #{forward.5} parent=0 // pred_check
    _
  $region27: #{forward.5} parent=0 // pred_check_branch
    %37 = sbr.rel (0) target = $region29
  $region28: #{forward.5} parent=0 // pred_region
    _
  $region29: #{forward.5} parent=0 // pred_fallthru
    _
  // Predicated region
  $region30: #{forward.5} parent=0 // pred_check
    _
  $region31: #{forward.5} parent=0 // pred_check_branch
    %39 = sbr.rel (0) target = $region33
  $region32: #{forward.5} parent=0 // pred_region
    _
  $region33: #{forward.5} parent=0 // pred_fallthru
    _
  // Predicated region
  $region34: #{forward.5} parent=0 // pred_check
    _
  $region35: #{forward.5} parent=0 // pred_check_branch
    %41 = sbr.rel (0) target = $region37
  $region36: #{forward.5} parent=0 // pred_region
    _
  $region37: #{forward.5} parent=0 // pred_fallthru
    _
  // Predicated region
  $region38: #{forward.5} parent=0 // pred_check
    _
  $region39: #{forward.5} parent=0 // pred_check_branch
    %43 = sbr.rel (0) target = $region41
  $region40: #{forward.5} parent=0 // pred_region
    _
  $region41: #{forward.5} parent=0 // pred_fallthru
    _
  // Predicated region
  $region42: #{forward.5} parent=0 // pred_check
    _
  $region43: #{forward.5} parent=0 // pred_check_branch
    %45 = sbr.rel (0) target = $region45
  $region44: #{forward.5} parent=0 // pred_region
    _
  $region45: #{forward.5} parent=0 // pred_fallthru
    _
  // Predicated region
  $region46: #{forward.5} parent=0 // pred_check
    _
  $region47: #{forward.5} parent=0 // pred_check_branch
    %47 = sbr.rel (0) target = $region49
  $region48: #{forward.5} parent=0 // pred_region
    _
  $region49: #{forward.5} parent=0 // pred_fallthru
    _
  // Predicated region
  $region50: #{forward.5} parent=0 // pred_check
    _
  $region51: #{forward.5} parent=0 // pred_check_branch
    %49 = sbr.rel (0) target = $region53
  $region52: #{forward.5} parent=0 // pred_region
    _
  $region53: #{forward.5} parent=0 // pred_fallthru
    _
  // Predicated region
  $region54: #{forward.5} parent=0 // pred_check
    _
  $region55: #{forward.5} parent=0 // pred_check_branch
    %51 = sbr.rel (0) target = $region57
  $region56: #{forward.5} parent=0 // pred_region
    _
  $region57: #{forward.5} parent=0 // pred_fallthru
    _
  // Predicated region
  $region58: #{forward.5} parent=0 // pred_check
    _
  $region59: #{forward.5} parent=0 // pred_check_branch
    %53 = sbr.rel (0) target = $region61
  $region60: #{forward.5} parent=0 // pred_region
    _
  $region61: #{forward.5} parent=0 // pred_fallthru
    _
  // Predicated region
  $region62: #{forward.5} parent=0 // pred_check
    _
  $region63: #{forward.5} parent=0 // pred_check_branch
    %55 = sbr.rel (0) target = $region65
  $region64: #{forward.5} parent=0 // pred_region
    _
  $region65: #{forward.5} parent=0 // pred_fallthru
    _
  // Predicated region
  $region66: #{forward.5} parent=0 // pred_check
    _
  $region67: #{forward.5} parent=0 // pred_check_branch
    %57 = sbr.rel (0) target = $region69
  $region68: #{forward.5} parent=0 // pred_region
    _
  $region69: #{forward.5} parent=0 // pred_fallthru
    _
  // Predicated region
  $region70: #{forward.5} parent=0 // pred_check
    _
  $region71: #{forward.5} parent=0 // pred_check_branch
    %59 = sbr.rel (0) target = $region73
  $region72: #{forward.5} parent=0 // pred_region
    _
  $region73: #{forward.5} parent=0 // pred_fallthru
    _
  // Predicated region
  $region74: #{forward.5} parent=0 // pred_check
    _
  $region75: #{forward.5} parent=0 // pred_check_branch
    %61 = sbr.rel (0) target = $region77
  $region76: #{forward.5} parent=0 // pred_region
    _
  $region77: #{forward.5} parent=0 // pred_fallthru
    _
  %v62 = vld [vmem:[%s0] sm:$0xff]
  %v63 = vld [vmem:[%s0 + $0x8] sm:$0xff]
  %v64 = vld [vmem:[%s0 + $0x10] sm:$0xff]
  %v65 = vld [vmem:[%s0 + $0x18] sm:$0xff]
  %v66 = vld [vmem:[%s0 + $0x20] sm:$0xff]
  %v67 = vld [vmem:[%s0 + $0x28] sm:$0xff]
  %v68 = vld [vmem:[%s0 + $0x30] sm:$0xff]
  %v69 = vld [vmem:[%s0 + $0x38] sm:$0xff]
  %v70 = vld [vmem:[%s1] sm:$0xff]
  %v71 = vld [vmem:[%s1 + $0x8] sm:$0xff]
  %v72 = vld [vmem:[%s1 + $0x10] sm:$0xff]
  %v73 = vld [vmem:[%s1 + $0x18] sm:$0xff]
  %v74 = vld [vmem:[%s4] sm:$0xff]
  %v75 = vld [vmem:[%s4 + $0x8] sm:$0xff]
  %v76 = vld [vmem:[%s4 + $0x10] sm:$0xff]
  %v77 = vld [vmem:[%s4 + $0x18] sm:$0xff]
  %v78 = vld [vmem:[%s5] sm:$0x1]
  %v79 = vld [vmem:[%s6] sm:$0xff]
  %v80 = vld [vmem:[%s6 + $0x8] sm:$0xff]
  %v81 = vld [vmem:[%s6 + $0x10] sm:$0xff]
  %v82 = vld [vmem:[%s6 + $0x18] sm:$0xff]
  %v83 = vld [vmem:[%s7] sm:$0x1]
  %v84 = vld [vmem:[%s8] sm:$0x1]
  %v85 = vld [vmem:[%s9] sm:$0x1]
  %v86 = vld [vmem:[%s10] sm:$0xff]
  %v87 = vld [vmem:[%s10 + $0x8] sm:$0xff]
  %v88 = vld [vmem:[%s10 + $0x10] sm:$0xff]
  %v89 = vld [vmem:[%s10 + $0x18] sm:$0xff]
  %v90 = vld [vmem:[%s11] sm:$0x1]
  %v91 = vld [vmem:[%s12] sm:$0xff]
  %v92 = vld [vmem:[%s12 + $0x8] sm:$0xff]
  %v93 = vld [vmem:[%s12 + $0x10] sm:$0xff]
  %v94 = vld [vmem:[%s12 + $0x18] sm:$0xff]
  %v95 = vld [vmem:[%s12 + $0x20] sm:$0xff]
  %v96 = vld [vmem:[%s12 + $0x28] sm:$0xff]
  %v97 = vld [vmem:[%s12 + $0x30] sm:$0xff]
  %v98 = vld [vmem:[%s12 + $0x38] sm:$0xff]
  %v99 = vld [vmem:[%s13] sm:$0x1]
  %v101 = vperm.slane %v78, 0
  %vm103 = vcmask 261120
  %v105 = vsel %vm103, %v62, 0
  %v108 = vsel %vm103, %v63, 0
  %v111 = vsel %vm103, %v64, 0
  %v114 = vsel %vm103, %v65, 0
  %v117 = vsel %vm103, %v66, 0
  %v120 = vsel %vm103, %v67, 0
  %v123 = vsel %vm103, %v68, 0
  %v126 = vsel %vm103, %v69, 0
  %128 = vmatpush.msra.mxu0 0.0
  %129 = vmatpush.msra.mxu0 0.0
  %130 = vmatpush.msra.mxu0 0.0
  %131 = vmatpush.msra.mxu0 0.0
  %132 = vmatpush.msra.mxu0 0.0
  %133 = vmatpush.msra.mxu0 0.0
  %134 = vmatpush.msra.mxu0 0.0
  %135 = vmatpush.msra.mxu0 0.0
  %136 = vmatpush.msra.mxu0 0.0
  %137 = vmatpush.msra.mxu0 0.0
  %138 = vmatpush.msra.mxu0 0.0
  %139 = vmatpush.msra.mxu0 0.0
  %140 = vmatpush.msra.mxu0 %v77
  %141 = vmatpush.msra.mxu0 %v76
  %142 = vmatpush.msra.mxu0 %v75
  %143 = vmatpush.msra.mxu0 %v74
  %144 = vmatmul.f32.gmra.mxu0 %v105
  %v145 = vpop.f32.mrf.mxu0
  %v146 = vadd.f32 %v101, %v145
  %147 = vmatmul.f32.gmra.mxu0 %v108
  %v148 = vpop.f32.mrf.mxu0
  %v149 = vadd.f32 %v101, %v148
  %150 = vmatmul.f32.gmra.mxu0 %v111
  %v151 = vpop.f32.mrf.mxu0
  %v152 = vadd.f32 %v101, %v151
  %153 = vmatmul.f32.gmra.mxu0 %v114
  %v154 = vpop.f32.mrf.mxu0
  %v155 = vadd.f32 %v101, %v154
  %156 = vmatmul.f32.gmra.mxu0 %v117
  %v157 = vpop.f32.mrf.mxu0
  %v158 = vadd.f32 %v101, %v157
  %159 = vmatmul.f32.gmra.mxu0 %v120
  %v160 = vpop.f32.mrf.mxu0
  %v161 = vadd.f32 %v101, %v160
  %162 = vmatmul.f32.gmra.mxu0 %v123
  %v163 = vpop.f32.mrf.mxu0
  %v164 = vadd.f32 %v101, %v163
  %165 = vmatmul.f32.gmra.mxu0 %v126
  %v166 = vpop.f32.mrf.mxu0
  %v167 = vadd.f32 %v101, %v166
  %168 = vdwg.mxu0
  %170 = vrot.lane.b32.xlu0 %v146, 96
  %v171 = vpop.permute.xlu0 %170
  %vm172 = vcmask 64512
  %v173 = vsel %vm172, %v171, 0
  %v175 = vsel %vm172, %v146, 0
  %177 = vmatpush.xpose.msra.mxu0 0.0
  %178 = vmatpush.xpose.msra.mxu0 0.0
  %179 = vmatpush.xpose.msra.mxu0 0.0
  %180 = vmatpush.xpose.msra.mxu0 0.0
  %181 = vmatpush.xpose.msra.mxu0 0.0
  %182 = vmatpush.xpose.msra.mxu0 0.0
  %183 = vmatpush.xpose.msra.mxu0 0.0
  %184 = vmatpush.xpose.msra.mxu0 0.0
  %185 = vmatpush.xpose.msra.mxu0 0.0
  %186 = vmatpush.xpose.msra.mxu0 0.0
  %187 = vmatpush.xpose.msra.mxu0 0.0
  %188 = vmatpush.xpose.msra.mxu0 0.0
  %189 = vmatpush.xpose.msra.mxu0 0.0
  %190 = vmatpush.xpose.msra.mxu0 0.0
  %191 = vmatpush.xpose.msra.mxu0 0.0
  %192 = vmatpush.xpose.msra.mxu0 %v175
  %193 = vmatmul.f32.gmra.mxu0 %v173
  %v194 = vpop.f32.mrf.mxu0
  %v195 = vadd.f32 0.0, %v194
  %196 = vdwg.mxu0
  %198 = vrot.lane.b32.xlu0 %v149, 96
  %v199 = vpop.permute.xlu0 %198
  %v200 = vsel %vm172, %v199, 0
  %v202 = vsel %vm172, %v149, 0
  %204 = vmatpush.xpose.msra.mxu0 0.0
  %205 = vmatpush.xpose.msra.mxu0 0.0
  %206 = vmatpush.xpose.msra.mxu0 0.0
  %207 = vmatpush.xpose.msra.mxu0 0.0
  %208 = vmatpush.xpose.msra.mxu0 0.0
  %209 = vmatpush.xpose.msra.mxu0 0.0
  %210 = vmatpush.xpose.msra.mxu0 0.0
  %211 = vmatpush.xpose.msra.mxu0 0.0
  %212 = vmatpush.xpose.msra.mxu0 0.0
  %213 = vmatpush.xpose.msra.mxu0 0.0
  %214 = vmatpush.xpose.msra.mxu0 0.0
  %215 = vmatpush.xpose.msra.mxu0 0.0
  %216 = vmatpush.xpose.msra.mxu0 0.0
  %217 = vmatpush.xpose.msra.mxu0 0.0
  %218 = vmatpush.xpose.msra.mxu0 0.0
  %219 = vmatpush.xpose.msra.mxu0 %v202
  %220 = vmatmul.f32.gmra.mxu0 %v200
  %v221 = vpop.f32.mrf.mxu0
  %v222 = vadd.f32 0.0, %v221
  %223 = vdwg.mxu0
  %225 = vrot.lane.b32.xlu0 %v152, 96
  %v226 = vpop.permute.xlu0 %225
  %v227 = vsel %vm172, %v226, 0
  %v229 = vsel %vm172, %v152, 0
  %231 = vmatpush.xpose.msra.mxu0 0.0
  %232 = vmatpush.xpose.msra.mxu0 0.0
  %233 = vmatpush.xpose.msra.mxu0 0.0
  %234 = vmatpush.xpose.msra.mxu0 0.0
  %235 = vmatpush.xpose.msra.mxu0 0.0
  %236 = vmatpush.xpose.msra.mxu0 0.0
  %237 = vmatpush.xpose.msra.mxu0 0.0
  %238 = vmatpush.xpose.msra.mxu0 0.0
  %239 = vmatpush.xpose.msra.mxu0 0.0
  %240 = vmatpush.xpose.msra.mxu0 0.0
  %241 = vmatpush.xpose.msra.mxu0 0.0
  %242 = vmatpush.xpose.msra.mxu0 0.0
  %243 = vmatpush.xpose.msra.mxu0 0.0
  %244 = vmatpush.xpose.msra.mxu0 0.0
  %245 = vmatpush.xpose.msra.mxu0 0.0
  %246 = vmatpush.xpose.msra.mxu0 %v229
  %247 = vmatmul.f32.gmra.mxu0 %v227
  %v248 = vpop.f32.mrf.mxu0
  %v249 = vadd.f32 0.0, %v248
  %250 = vdwg.mxu0
  %252 = vrot.lane.b32.xlu0 %v155, 96
  %v253 = vpop.permute.xlu0 %252
  %v254 = vsel %vm172, %v253, 0
  %v256 = vsel %vm172, %v155, 0
  %258 = vmatpush.xpose.msra.mxu0 0.0
  %259 = vmatpush.xpose.msra.mxu0 0.0
  %260 = vmatpush.xpose.msra.mxu0 0.0
  %261 = vmatpush.xpose.msra.mxu0 0.0
  %262 = vmatpush.xpose.msra.mxu0 0.0
  %263 = vmatpush.xpose.msra.mxu0 0.0
  %264 = vmatpush.xpose.msra.mxu0 0.0
  %265 = vmatpush.xpose.msra.mxu0 0.0
  %266 = vmatpush.xpose.msra.mxu0 0.0
  %267 = vmatpush.xpose.msra.mxu0 0.0
  %268 = vmatpush.xpose.msra.mxu0 0.0
  %269 = vmatpush.xpose.msra.mxu0 0.0
  %270 = vmatpush.xpose.msra.mxu0 0.0
  %271 = vmatpush.xpose.msra.mxu0 0.0
  %272 = vmatpush.xpose.msra.mxu0 0.0
  %273 = vmatpush.xpose.msra.mxu0 %v256
  %274 = vmatmul.f32.gmra.mxu0 %v254
  %v275 = vpop.f32.mrf.mxu0
  %v276 = vadd.f32 0.0, %v275
  %277 = vdwg.mxu0
  %279 = vrot.lane.b32.xlu0 %v158, 96
  %v280 = vpop.permute.xlu0 %279
  %v281 = vsel %vm172, %v280, 0
  %v283 = vsel %vm172, %v158, 0
  %285 = vmatpush.xpose.msra.mxu0 0.0
  %286 = vmatpush.xpose.msra.mxu0 0.0
  %287 = vmatpush.xpose.msra.mxu0 0.0
  %288 = vmatpush.xpose.msra.mxu0 0.0
  %289 = vmatpush.xpose.msra.mxu0 0.0
  %290 = vmatpush.xpose.msra.mxu0 0.0
  %291 = vmatpush.xpose.msra.mxu0 0.0
  %292 = vmatpush.xpose.msra.mxu0 0.0
  %293 = vmatpush.xpose.msra.mxu0 0.0
  %294 = vmatpush.xpose.msra.mxu0 0.0
  %295 = vmatpush.xpose.msra.mxu0 0.0
  %296 = vmatpush.xpose.msra.mxu0 0.0
  %297 = vmatpush.xpose.msra.mxu0 0.0
  %298 = vmatpush.xpose.msra.mxu0 0.0
  %299 = vmatpush.xpose.msra.mxu0 0.0
  %300 = vmatpush.xpose.msra.mxu0 %v283
  %301 = vmatmul.f32.gmra.mxu0 %v281
  %v302 = vpop.f32.mrf.mxu0
  %v303 = vadd.f32 0.0, %v302
  %304 = vdwg.mxu0
  %306 = vrot.lane.b32.xlu0 %v161, 96
  %v307 = vpop.permute.xlu0 %306
  %v308 = vsel %vm172, %v307, 0
  %v310 = vsel %vm172, %v161, 0
  %312 = vmatpush.xpose.msra.mxu0 0.0
  %313 = vmatpush.xpose.msra.mxu0 0.0
  %314 = vmatpush.xpose.msra.mxu0 0.0
  %315 = vmatpush.xpose.msra.mxu0 0.0
  %316 = vmatpush.xpose.msra.mxu0 0.0
  %317 = vmatpush.xpose.msra.mxu0 0.0
  %318 = vmatpush.xpose.msra.mxu0 0.0
  %319 = vmatpush.xpose.msra.mxu0 0.0
  %320 = vmatpush.xpose.msra.mxu0 0.0
  %321 = vmatpush.xpose.msra.mxu0 0.0
  %322 = vmatpush.xpose.msra.mxu0 0.0
  %323 = vmatpush.xpose.msra.mxu0 0.0
  %324 = vmatpush.xpose.msra.mxu0 0.0
  %325 = vmatpush.xpose.msra.mxu0 0.0
  %326 = vmatpush.xpose.msra.mxu0 0.0
  %327 = vmatpush.xpose.msra.mxu0 %v310
  %328 = vmatmul.f32.gmra.mxu0 %v308
  %v329 = vpop.f32.mrf.mxu0
  %v330 = vadd.f32 0.0, %v329
  %331 = vdwg.mxu0
  %333 = vrot.lane.b32.xlu0 %v164, 96
  %v334 = vpop.permute.xlu0 %333
  %v335 = vsel %vm172, %v334, 0
  %v337 = vsel %vm172, %v164, 0
  %339 = vmatpush.xpose.msra.mxu0 0.0
  %340 = vmatpush.xpose.msra.mxu0 0.0
  %341 = vmatpush.xpose.msra.mxu0 0.0
  %342 = vmatpush.xpose.msra.mxu0 0.0
  %343 = vmatpush.xpose.msra.mxu0 0.0
  %344 = vmatpush.xpose.msra.mxu0 0.0
  %345 = vmatpush.xpose.msra.mxu0 0.0
  %346 = vmatpush.xpose.msra.mxu0 0.0
  %347 = vmatpush.xpose.msra.mxu0 0.0
  %348 = vmatpush.xpose.msra.mxu0 0.0
  %349 = vmatpush.xpose.msra.mxu0 0.0
  %350 = vmatpush.xpose.msra.mxu0 0.0
  %351 = vmatpush.xpose.msra.mxu0 0.0
  %352 = vmatpush.xpose.msra.mxu0 0.0
  %353 = vmatpush.xpose.msra.mxu0 0.0
  %354 = vmatpush.xpose.msra.mxu0 %v337
  %355 = vmatmul.f32.gmra.mxu0 %v335
  %v356 = vpop.f32.mrf.mxu0
  %v357 = vadd.f32 0.0, %v356
  %358 = vdwg.mxu0
  %360 = vrot.lane.b32.xlu0 %v167, 96
  %v361 = vpop.permute.xlu0 %360
  %v362 = vsel %vm172, %v361, 0
  %v364 = vsel %vm172, %v167, 0
  %366 = vmatpush.xpose.msra.mxu0 0.0
  %367 = vmatpush.xpose.msra.mxu0 0.0
  %368 = vmatpush.xpose.msra.mxu0 0.0
  %369 = vmatpush.xpose.msra.mxu0 0.0
  %370 = vmatpush.xpose.msra.mxu0 0.0
  %371 = vmatpush.xpose.msra.mxu0 0.0
  %372 = vmatpush.xpose.msra.mxu0 0.0
  %373 = vmatpush.xpose.msra.mxu0 0.0
  %374 = vmatpush.xpose.msra.mxu0 0.0
  %375 = vmatpush.xpose.msra.mxu0 0.0
  %376 = vmatpush.xpose.msra.mxu0 0.0
  %377 = vmatpush.xpose.msra.mxu0 0.0
  %378 = vmatpush.xpose.msra.mxu0 0.0
  %379 = vmatpush.xpose.msra.mxu0 0.0
  %380 = vmatpush.xpose.msra.mxu0 0.0
  %381 = vmatpush.xpose.msra.mxu0 %v364
  %382 = vmatmul.f32.gmra.mxu0 %v362
  %v383 = vpop.f32.mrf.mxu0
  %v384 = vadd.f32 0.0, %v383
  %385 = vdwg.mxu0
  %v386 = vmul.f32 %v195, 0.35355338
  %v387 = vmul.f32 %v222, 0.35355338
  %v388 = vmul.f32 %v249, 0.35355338
  %v389 = vmul.f32 %v276, 0.35355338
  %v390 = vmul.f32 %v303, 0.35355338
  %v391 = vmul.f32 %v330, 0.35355338
  %v392 = vmul.f32 %v357, 0.35355338
  %v393 = vmul.f32 %v384, 0.35355338
  %v394 = vadd.f32 %v386, %v70
  %v395 = vadd.f32 %v387, %v70
  %v396 = vadd.f32 %v388, %v70
  %v397 = vadd.f32 %v389, %v70
  %v398 = vadd.f32 %v390, %v70
  %v399 = vadd.f32 %v391, %v70
  %v400 = vadd.f32 %v392, %v70
  %v401 = vadd.f32 %v393, %v70
  %v402 = vsel %vm172, %v394, -inf
  %403 = vmax.xlane.f32.xlu0 %v402
  %v404 = vpop.xlane.xlu0 %403
  %v405 = vsel %vm172, %v395, -inf
  %406 = vmax.xlane.f32.xlu0 %v405
  %v407 = vpop.xlane.xlu0 %406
  %v408 = vsel %vm172, %v396, -inf
  %409 = vmax.xlane.f32.xlu0 %v408
  %v410 = vpop.xlane.xlu0 %409
  %v411 = vsel %vm172, %v397, -inf
  %412 = vmax.xlane.f32.xlu0 %v411
  %v413 = vpop.xlane.xlu0 %412
  %v414 = vsel %vm172, %v398, -inf
  %415 = vmax.xlane.f32.xlu0 %v414
  %v416 = vpop.xlane.xlu0 %415
  %v417 = vsel %vm172, %v399, -inf
  %418 = vmax.xlane.f32.xlu0 %v417
  %v419 = vpop.xlane.xlu0 %418
  %v420 = vsel %vm172, %v400, -inf
  %421 = vmax.xlane.f32.xlu0 %v420
  %v422 = vpop.xlane.xlu0 %421
  %v423 = vsel %vm172, %v401, -inf
  %424 = vmax.xlane.f32.xlu0 %v423
  %v425 = vpop.xlane.xlu0 %424
  %v426 = vsub.f32 %v394, %v404
  %v427 = vsub.f32 %v395, %v407
  %v428 = vsub.f32 %v396, %v410
  %v429 = vsub.f32 %v397, %v413
  %v430 = vsub.f32 %v398, %v416
  %v431 = vsub.f32 %v399, %v419
  %v432 = vsub.f32 %v400, %v422
  %v433 = vsub.f32 %v401, %v425
  %v434 = vmul.f32 %v426, 1.442695
  %v435 = vpow.pop %v434
  %v436 = vmul.f32 %v427, 1.442695
  %v437 = vpow.pop %v436
  %v438 = vmul.f32 %v428, 1.442695
  %v439 = vpow.pop %v438
  %v440 = vmul.f32 %v429, 1.442695
  %v441 = vpow.pop %v440
  %v442 = vmul.f32 %v430, 1.442695
  %v443 = vpow.pop %v442
  %v444 = vmul.f32 %v431, 1.442695
  %v445 = vpow.pop %v444
  %v446 = vmul.f32 %v432, 1.442695
  %v447 = vpow.pop %v446
  %v448 = vmul.f32 %v433, 1.442695
  %v449 = vpow.pop %v448
  %v450 = vsel %vm172, %v435, 0.0
  %451 = vadd.xlane.f32.xlu0 %v450
  %v452 = vpop.xlane.xlu0 %451
  %v453 = vsel %vm172, %v437, 0.0
  %454 = vadd.xlane.f32.xlu0 %v453
  %v455 = vpop.xlane.xlu0 %454
  %v456 = vsel %vm172, %v439, 0.0
  %457 = vadd.xlane.f32.xlu0 %v456
  %v458 = vpop.xlane.xlu0 %457
  %v459 = vsel %vm172, %v441, 0.0
  %460 = vadd.xlane.f32.xlu0 %v459
  %v461 = vpop.xlane.xlu0 %460
  %v462 = vsel %vm172, %v443, 0.0
  %463 = vadd.xlane.f32.xlu0 %v462
  %v464 = vpop.xlane.xlu0 %463
  %v465 = vsel %vm172, %v445, 0.0
  %466 = vadd.xlane.f32.xlu0 %v465
  %v467 = vpop.xlane.xlu0 %466
  %v468 = vsel %vm172, %v447, 0.0
  %469 = vadd.xlane.f32.xlu0 %v468
  %v470 = vpop.xlane.xlu0 %469
  %v471 = vsel %vm172, %v449, 0.0
  %472 = vadd.xlane.f32.xlu0 %v471
  %v473 = vpop.xlane.xlu0 %472
  %v474 = vrcp.pop %v452
  %v475 = vrcp.pop %v455
  %v476 = vrcp.pop %v458
  %v477 = vrcp.pop %v461
  %v478 = vrcp.pop %v464
  %v479 = vrcp.pop %v467
  %v480 = vrcp.pop %v470
  %v481 = vrcp.pop %v473
  %v482 = vmul.f32 %v435, %v474
  %v483 = vmul.f32 %v437, %v475
  %v484 = vmul.f32 %v439, %v476
  %v485 = vmul.f32 %v441, %v477
  %v486 = vmul.f32 %v443, %v478
  %v487 = vmul.f32 %v445, %v479
  %v488 = vmul.f32 %v447, %v480
  %v489 = vmul.f32 %v449, %v481
  %490 = vrot.lane.b32.xlu0 %v146, 64
  %v491 = vpop.permute.xlu0 %490
  %v494 = vsel %vm172, %v482, 0
  %496 = vmatpush.msra.mxu0 0.0
  %497 = vmatpush.msra.mxu0 0.0
  %498 = vmatpush.msra.mxu0 0.0
  %499 = vmatpush.msra.mxu0 0.0
  %500 = vmatpush.msra.mxu0 0.0
  %501 = vmatpush.msra.mxu0 0.0
  %502 = vmatpush.msra.mxu0 0.0
  %503 = vmatpush.msra.mxu0 0.0
  %504 = vmatpush.msra.mxu0 0.0
  %505 = vmatpush.msra.mxu0 0.0
  %506 = vmatpush.msra.mxu0 0.0
  %507 = vmatpush.msra.mxu0 0.0
  %508 = vmatpush.msra.mxu0 0.0
  %509 = vmatpush.msra.mxu0 0.0
  %510 = vmatpush.msra.mxu0 0.0
  %511 = vmatpush.msra.mxu0 %v491
  %512 = vmatmul.f32.gmra.mxu0 %v494
  %v513 = vpop.f32.mrf.mxu0
  %v514 = vadd.f32 0.0, %v513
  %515 = vdwg.mxu0
  %516 = vrot.lane.b32.xlu0 %v149, 64
  %v517 = vpop.permute.xlu0 %516
  %v520 = vsel %vm172, %v483, 0
  %522 = vmatpush.msra.mxu0 0.0
  %523 = vmatpush.msra.mxu0 0.0
  %524 = vmatpush.msra.mxu0 0.0
  %525 = vmatpush.msra.mxu0 0.0
  %526 = vmatpush.msra.mxu0 0.0
  %527 = vmatpush.msra.mxu0 0.0
  %528 = vmatpush.msra.mxu0 0.0
  %529 = vmatpush.msra.mxu0 0.0
  %530 = vmatpush.msra.mxu0 0.0
  %531 = vmatpush.msra.mxu0 0.0
  %532 = vmatpush.msra.mxu0 0.0
  %533 = vmatpush.msra.mxu0 0.0
  %534 = vmatpush.msra.mxu0 0.0
  %535 = vmatpush.msra.mxu0 0.0
  %536 = vmatpush.msra.mxu0 0.0
  %537 = vmatpush.msra.mxu0 %v517
  %538 = vmatmul.f32.gmra.mxu0 %v520
  %v539 = vpop.f32.mrf.mxu0
  %v540 = vadd.f32 0.0, %v539
  %541 = vdwg.mxu0
  %542 = vrot.lane.b32.xlu0 %v152, 64
  %v543 = vpop.permute.xlu0 %542
  %v546 = vsel %vm172, %v484, 0
  %548 = vmatpush.msra.mxu0 0.0
  %549 = vmatpush.msra.mxu0 0.0
  %550 = vmatpush.msra.mxu0 0.0
  %551 = vmatpush.msra.mxu0 0.0
  %552 = vmatpush.msra.mxu0 0.0
  %553 = vmatpush.msra.mxu0 0.0
  %554 = vmatpush.msra.mxu0 0.0
  %555 = vmatpush.msra.mxu0 0.0
  %556 = vmatpush.msra.mxu0 0.0
  %557 = vmatpush.msra.mxu0 0.0
  %558 = vmatpush.msra.mxu0 0.0
  %559 = vmatpush.msra.mxu0 0.0
  %560 = vmatpush.msra.mxu0 0.0
  %561 = vmatpush.msra.mxu0 0.0
  %562 = vmatpush.msra.mxu0 0.0
  %563 = vmatpush.msra.mxu0 %v543
  %564 = vmatmul.f32.gmra.mxu0 %v546
  %v565 = vpop.f32.mrf.mxu0
  %v566 = vadd.f32 0.0, %v565
  %567 = vdwg.mxu0
  %568 = vrot.lane.b32.xlu0 %v155, 64
  %v569 = vpop.permute.xlu0 %568
  %v572 = vsel %vm172, %v485, 0
  %574 = vmatpush.msra.mxu0 0.0
  %575 = vmatpush.msra.mxu0 0.0
  %576 = vmatpush.msra.mxu0 0.0
  %577 = vmatpush.msra.mxu0 0.0
  %578 = vmatpush.msra.mxu0 0.0
  %579 = vmatpush.msra.mxu0 0.0
  %580 = vmatpush.msra.mxu0 0.0
  %581 = vmatpush.msra.mxu0 0.0
  %582 = vmatpush.msra.mxu0 0.0
  %583 = vmatpush.msra.mxu0 0.0
  %584 = vmatpush.msra.mxu0 0.0
  %585 = vmatpush.msra.mxu0 0.0
  %586 = vmatpush.msra.mxu0 0.0
  %587 = vmatpush.msra.mxu0 0.0
  %588 = vmatpush.msra.mxu0 0.0
  %589 = vmatpush.msra.mxu0 %v569
  %590 = vmatmul.f32.gmra.mxu0 %v572
  %v591 = vpop.f32.mrf.mxu0
  %v592 = vadd.f32 0.0, %v591
  %593 = vdwg.mxu0
  %594 = vrot.lane.b32.xlu0 %v158, 64
  %v595 = vpop.permute.xlu0 %594
  %v598 = vsel %vm172, %v486, 0
  %600 = vmatpush.msra.mxu0 0.0
  %601 = vmatpush.msra.mxu0 0.0
  %602 = vmatpush.msra.mxu0 0.0
  %603 = vmatpush.msra.mxu0 0.0
  %604 = vmatpush.msra.mxu0 0.0
  %605 = vmatpush.msra.mxu0 0.0
  %606 = vmatpush.msra.mxu0 0.0
  %607 = vmatpush.msra.mxu0 0.0
  %608 = vmatpush.msra.mxu0 0.0
  %609 = vmatpush.msra.mxu0 0.0
  %610 = vmatpush.msra.mxu0 0.0
  %611 = vmatpush.msra.mxu0 0.0
  %612 = vmatpush.msra.mxu0 0.0
  %613 = vmatpush.msra.mxu0 0.0
  %614 = vmatpush.msra.mxu0 0.0
  %615 = vmatpush.msra.mxu0 %v595
  %616 = vmatmul.f32.gmra.mxu0 %v598
  %v617 = vpop.f32.mrf.mxu0
  %v618 = vadd.f32 0.0, %v617
  %619 = vdwg.mxu0
  %620 = vrot.lane.b32.xlu0 %v161, 64
  %v621 = vpop.permute.xlu0 %620
  %v624 = vsel %vm172, %v487, 0
  %626 = vmatpush.msra.mxu0 0.0
  %627 = vmatpush.msra.mxu0 0.0
  %628 = vmatpush.msra.mxu0 0.0
  %629 = vmatpush.msra.mxu0 0.0
  %630 = vmatpush.msra.mxu0 0.0
  %631 = vmatpush.msra.mxu0 0.0
  %632 = vmatpush.msra.mxu0 0.0
  %633 = vmatpush.msra.mxu0 0.0
  %634 = vmatpush.msra.mxu0 0.0
  %635 = vmatpush.msra.mxu0 0.0
  %636 = vmatpush.msra.mxu0 0.0
  %637 = vmatpush.msra.mxu0 0.0
  %638 = vmatpush.msra.mxu0 0.0
  %639 = vmatpush.msra.mxu0 0.0
  %640 = vmatpush.msra.mxu0 0.0
  %641 = vmatpush.msra.mxu0 %v621
  %642 = vmatmul.f32.gmra.mxu0 %v624
  %v643 = vpop.f32.mrf.mxu0
  %v644 = vadd.f32 0.0, %v643
  %645 = vdwg.mxu0
  %646 = vrot.lane.b32.xlu0 %v164, 64
  %v647 = vpop.permute.xlu0 %646
  %v650 = vsel %vm172, %v488, 0
  %652 = vmatpush.msra.mxu0 0.0
  %653 = vmatpush.msra.mxu0 0.0
  %654 = vmatpush.msra.mxu0 0.0
  %655 = vmatpush.msra.mxu0 0.0
  %656 = vmatpush.msra.mxu0 0.0
  %657 = vmatpush.msra.mxu0 0.0
  %658 = vmatpush.msra.mxu0 0.0
  %659 = vmatpush.msra.mxu0 0.0
  %660 = vmatpush.msra.mxu0 0.0
  %661 = vmatpush.msra.mxu0 0.0
  %662 = vmatpush.msra.mxu0 0.0
  %663 = vmatpush.msra.mxu0 0.0
  %664 = vmatpush.msra.mxu0 0.0
  %665 = vmatpush.msra.mxu0 0.0
  %666 = vmatpush.msra.mxu0 0.0
  %667 = vmatpush.msra.mxu0 %v647
  %668 = vmatmul.f32.gmra.mxu0 %v650
  %v669 = vpop.f32.mrf.mxu0
  %v670 = vadd.f32 0.0, %v669
  %671 = vdwg.mxu0
  %672 = vrot.lane.b32.xlu0 %v167, 64
  %v673 = vpop.permute.xlu0 %672
  %v676 = vsel %vm172, %v489, 0
  %678 = vmatpush.msra.mxu0 0.0
  %679 = vmatpush.msra.mxu0 0.0
  %680 = vmatpush.msra.mxu0 0.0
  %681 = vmatpush.msra.mxu0 0.0
  %682 = vmatpush.msra.mxu0 0.0
  %683 = vmatpush.msra.mxu0 0.0
  %684 = vmatpush.msra.mxu0 0.0
  %685 = vmatpush.msra.mxu0 0.0
  %686 = vmatpush.msra.mxu0 0.0
  %687 = vmatpush.msra.mxu0 0.0
  %688 = vmatpush.msra.mxu0 0.0
  %689 = vmatpush.msra.mxu0 0.0
  %690 = vmatpush.msra.mxu0 0.0
  %691 = vmatpush.msra.mxu0 0.0
  %692 = vmatpush.msra.mxu0 0.0
  %693 = vmatpush.msra.mxu0 %v673
  %694 = vmatmul.f32.gmra.mxu0 %v676
  %v695 = vpop.f32.mrf.mxu0
  %v696 = vadd.f32 0.0, %v695
  %697 = vdwg.mxu0
  %698 = vrot.lane.b32.xlu0 %v146, 88
  %v699 = vpop.permute.xlu0 %698
  %700 = vrot.lane.b32.xlu0 %v146, 120
  %v701 = vpop.permute.xlu0 %700
  %v702 = vsel %vm172, %v699, 0
  %v704 = vsel %vm172, %v701, 0
  %706 = vmatpush.xpose.msra.mxu0 0.0
  %707 = vmatpush.xpose.msra.mxu0 0.0
  %708 = vmatpush.xpose.msra.mxu0 0.0
  %709 = vmatpush.xpose.msra.mxu0 0.0
  %710 = vmatpush.xpose.msra.mxu0 0.0
  %711 = vmatpush.xpose.msra.mxu0 0.0
  %712 = vmatpush.xpose.msra.mxu0 0.0
  %713 = vmatpush.xpose.msra.mxu0 0.0
  %714 = vmatpush.xpose.msra.mxu0 0.0
  %715 = vmatpush.xpose.msra.mxu0 0.0
  %716 = vmatpush.xpose.msra.mxu0 0.0
  %717 = vmatpush.xpose.msra.mxu0 0.0
  %718 = vmatpush.xpose.msra.mxu0 0.0
  %719 = vmatpush.xpose.msra.mxu0 0.0
  %720 = vmatpush.xpose.msra.mxu0 0.0
  %721 = vmatpush.xpose.msra.mxu0 %v704
  %722 = vmatmul.f32.gmra.mxu0 %v702
  %v723 = vpop.f32.mrf.mxu0
  %v724 = vadd.f32 0.0, %v723
  %725 = vdwg.mxu0
  %726 = vrot.lane.b32.xlu0 %v149, 88
  %v727 = vpop.permute.xlu0 %726
  %728 = vrot.lane.b32.xlu0 %v149, 120
  %v729 = vpop.permute.xlu0 %728
  %v730 = vsel %vm172, %v727, 0
  %v732 = vsel %vm172, %v729, 0
  %734 = vmatpush.xpose.msra.mxu0 0.0
  %735 = vmatpush.xpose.msra.mxu0 0.0
  %736 = vmatpush.xpose.msra.mxu0 0.0
  %737 = vmatpush.xpose.msra.mxu0 0.0
  %738 = vmatpush.xpose.msra.mxu0 0.0
  %739 = vmatpush.xpose.msra.mxu0 0.0
  %740 = vmatpush.xpose.msra.mxu0 0.0
  %741 = vmatpush.xpose.msra.mxu0 0.0
  %742 = vmatpush.xpose.msra.mxu0 0.0
  %743 = vmatpush.xpose.msra.mxu0 0.0
  %744 = vmatpush.xpose.msra.mxu0 0.0
  %745 = vmatpush.xpose.msra.mxu0 0.0
  %746 = vmatpush.xpose.msra.mxu0 0.0
  %747 = vmatpush.xpose.msra.mxu0 0.0
  %748 = vmatpush.xpose.msra.mxu0 0.0
  %749 = vmatpush.xpose.msra.mxu0 %v732
  %750 = vmatmul.f32.gmra.mxu0 %v730
  %v751 = vpop.f32.mrf.mxu0
  %v752 = vadd.f32 0.0, %v751
  %753 = vdwg.mxu0
  %754 = vrot.lane.b32.xlu0 %v152, 88
  %v755 = vpop.permute.xlu0 %754
  %756 = vrot.lane.b32.xlu0 %v152, 120
  %v757 = vpop.permute.xlu0 %756
  %v758 = vsel %vm172, %v755, 0
  %v760 = vsel %vm172, %v757, 0
  %762 = vmatpush.xpose.msra.mxu0 0.0
  %763 = vmatpush.xpose.msra.mxu0 0.0
  %764 = vmatpush.xpose.msra.mxu0 0.0
  %765 = vmatpush.xpose.msra.mxu0 0.0
  %766 = vmatpush.xpose.msra.mxu0 0.0
  %767 = vmatpush.xpose.msra.mxu0 0.0
  %768 = vmatpush.xpose.msra.mxu0 0.0
  %769 = vmatpush.xpose.msra.mxu0 0.0
  %770 = vmatpush.xpose.msra.mxu0 0.0
  %771 = vmatpush.xpose.msra.mxu0 0.0
  %772 = vmatpush.xpose.msra.mxu0 0.0
  %773 = vmatpush.xpose.msra.mxu0 0.0
  %774 = vmatpush.xpose.msra.mxu0 0.0
  %775 = vmatpush.xpose.msra.mxu0 0.0
  %776 = vmatpush.xpose.msra.mxu0 0.0
  %777 = vmatpush.xpose.msra.mxu0 %v760
  %778 = vmatmul.f32.gmra.mxu0 %v758
  %v779 = vpop.f32.mrf.mxu0
  %v780 = vadd.f32 0.0, %v779
  %781 = vdwg.mxu0
  %782 = vrot.lane.b32.xlu0 %v155, 88
  %v783 = vpop.permute.xlu0 %782
  %784 = vrot.lane.b32.xlu0 %v155, 120
  %v785 = vpop.permute.xlu0 %784
  %v786 = vsel %vm172, %v783, 0
  %v788 = vsel %vm172, %v785, 0
  %790 = vmatpush.xpose.msra.mxu0 0.0
  %791 = vmatpush.xpose.msra.mxu0 0.0
  %792 = vmatpush.xpose.msra.mxu0 0.0
  %793 = vmatpush.xpose.msra.mxu0 0.0
  %794 = vmatpush.xpose.msra.mxu0 0.0
  %795 = vmatpush.xpose.msra.mxu0 0.0
  %796 = vmatpush.xpose.msra.mxu0 0.0
  %797 = vmatpush.xpose.msra.mxu0 0.0
  %798 = vmatpush.xpose.msra.mxu0 0.0
  %799 = vmatpush.xpose.msra.mxu0 0.0
  %800 = vmatpush.xpose.msra.mxu0 0.0
  %801 = vmatpush.xpose.msra.mxu0 0.0
  %802 = vmatpush.xpose.msra.mxu0 0.0
  %803 = vmatpush.xpose.msra.mxu0 0.0
  %804 = vmatpush.xpose.msra.mxu0 0.0
  %805 = vmatpush.xpose.msra.mxu0 %v788
  %806 = vmatmul.f32.gmra.mxu0 %v786
  %v807 = vpop.f32.mrf.mxu0
  %v808 = vadd.f32 0.0, %v807
  %809 = vdwg.mxu0
  %810 = vrot.lane.b32.xlu0 %v158, 88
  %v811 = vpop.permute.xlu0 %810
  %812 = vrot.lane.b32.xlu0 %v158, 120
  %v813 = vpop.permute.xlu0 %812
  %v814 = vsel %vm172, %v811, 0
  %v816 = vsel %vm172, %v813, 0
  %818 = vmatpush.xpose.msra.mxu0 0.0
  %819 = vmatpush.xpose.msra.mxu0 0.0
  %820 = vmatpush.xpose.msra.mxu0 0.0
  %821 = vmatpush.xpose.msra.mxu0 0.0
  %822 = vmatpush.xpose.msra.mxu0 0.0
  %823 = vmatpush.xpose.msra.mxu0 0.0
  %824 = vmatpush.xpose.msra.mxu0 0.0
  %825 = vmatpush.xpose.msra.mxu0 0.0
  %826 = vmatpush.xpose.msra.mxu0 0.0
  %827 = vmatpush.xpose.msra.mxu0 0.0
  %828 = vmatpush.xpose.msra.mxu0 0.0
  %829 = vmatpush.xpose.msra.mxu0 0.0
  %830 = vmatpush.xpose.msra.mxu0 0.0
  %831 = vmatpush.xpose.msra.mxu0 0.0
  %832 = vmatpush.xpose.msra.mxu0 0.0
  %833 = vmatpush.xpose.msra.mxu0 %v816
  %834 = vmatmul.f32.gmra.mxu0 %v814
  %v835 = vpop.f32.mrf.mxu0
  %v836 = vadd.f32 0.0, %v835
  %837 = vdwg.mxu0
  %838 = vrot.lane.b32.xlu0 %v161, 88
  %v839 = vpop.permute.xlu0 %838
  %840 = vrot.lane.b32.xlu0 %v161, 120
  %v841 = vpop.permute.xlu0 %840
  %v842 = vsel %vm172, %v839, 0
  %v844 = vsel %vm172, %v841, 0
  %846 = vmatpush.xpose.msra.mxu0 0.0
  %847 = vmatpush.xpose.msra.mxu0 0.0
  %848 = vmatpush.xpose.msra.mxu0 0.0
  %849 = vmatpush.xpose.msra.mxu0 0.0
  %850 = vmatpush.xpose.msra.mxu0 0.0
  %851 = vmatpush.xpose.msra.mxu0 0.0
  %852 = vmatpush.xpose.msra.mxu0 0.0
  %853 = vmatpush.xpose.msra.mxu0 0.0
  %854 = vmatpush.xpose.msra.mxu0 0.0
  %855 = vmatpush.xpose.msra.mxu0 0.0
  %856 = vmatpush.xpose.msra.mxu0 0.0
  %857 = vmatpush.xpose.msra.mxu0 0.0
  %858 = vmatpush.xpose.msra.mxu0 0.0
  %859 = vmatpush.xpose.msra.mxu0 0.0
  %860 = vmatpush.xpose.msra.mxu0 0.0
  %861 = vmatpush.xpose.msra.mxu0 %v844
  %862 = vmatmul.f32.gmra.mxu0 %v842
  %v863 = vpop.f32.mrf.mxu0
  %v864 = vadd.f32 0.0, %v863
  %865 = vdwg.mxu0
  %866 = vrot.lane.b32.xlu0 %v164, 88
  %v867 = vpop.permute.xlu0 %866
  %868 = vrot.lane.b32.xlu0 %v164, 120
  %v869 = vpop.permute.xlu0 %868
  %v870 = vsel %vm172, %v867, 0
  %v872 = vsel %vm172, %v869, 0
  %874 = vmatpush.xpose.msra.mxu0 0.0
  %875 = vmatpush.xpose.msra.mxu0 0.0
  %876 = vmatpush.xpose.msra.mxu0 0.0
  %877 = vmatpush.xpose.msra.mxu0 0.0
  %878 = vmatpush.xpose.msra.mxu0 0.0
  %879 = vmatpush.xpose.msra.mxu0 0.0
  %880 = vmatpush.xpose.msra.mxu0 0.0
  %881 = vmatpush.xpose.msra.mxu0 0.0
  %882 = vmatpush.xpose.msra.mxu0 0.0
  %883 = vmatpush.xpose.msra.mxu0 0.0
  %884 = vmatpush.xpose.msra.mxu0 0.0
  %885 = vmatpush.xpose.msra.mxu0 0.0
  %886 = vmatpush.xpose.msra.mxu0 0.0
  %887 = vmatpush.xpose.msra.mxu0 0.0
  %888 = vmatpush.xpose.msra.mxu0 0.0
  %889 = vmatpush.xpose.msra.mxu0 %v872
  %890 = vmatmul.f32.gmra.mxu0 %v870
  %v891 = vpop.f32.mrf.mxu0
  %v892 = vadd.f32 0.0, %v891
  %893 = vdwg.mxu0
  %894 = vrot.lane.b32.xlu0 %v167, 88
  %v895 = vpop.permute.xlu0 %894
  %896 = vrot.lane.b32.xlu0 %v167, 120
  %v897 = vpop.permute.xlu0 %896
  %v898 = vsel %vm172, %v895, 0
  %v900 = vsel %vm172, %v897, 0
  %902 = vmatpush.xpose.msra.mxu0 0.0
  %903 = vmatpush.xpose.msra.mxu0 0.0
  %904 = vmatpush.xpose.msra.mxu0 0.0
  %905 = vmatpush.xpose.msra.mxu0 0.0
  %906 = vmatpush.xpose.msra.mxu0 0.0
  %907 = vmatpush.xpose.msra.mxu0 0.0
  %908 = vmatpush.xpose.msra.mxu0 0.0
  %909 = vmatpush.xpose.msra.mxu0 0.0
  %910 = vmatpush.xpose.msra.mxu0 0.0
  %911 = vmatpush.xpose.msra.mxu0 0.0
  %912 = vmatpush.xpose.msra.mxu0 0.0
  %913 = vmatpush.xpose.msra.mxu0 0.0
  %914 = vmatpush.xpose.msra.mxu0 0.0
  %915 = vmatpush.xpose.msra.mxu0 0.0
  %916 = vmatpush.xpose.msra.mxu0 0.0
  %917 = vmatpush.xpose.msra.mxu0 %v900
  %918 = vmatmul.f32.gmra.mxu0 %v898
  %v919 = vpop.f32.mrf.mxu0
  %v920 = vadd.f32 0.0, %v919
  %921 = vdwg.mxu0
  %v922 = vmul.f32 %v724, 0.35355338
  %v923 = vmul.f32 %v752, 0.35355338
  %v924 = vmul.f32 %v780, 0.35355338
  %v925 = vmul.f32 %v808, 0.35355338
  %v926 = vmul.f32 %v836, 0.35355338
  %v927 = vmul.f32 %v864, 0.35355338
  %v928 = vmul.f32 %v892, 0.35355338
  %v929 = vmul.f32 %v920, 0.35355338
  %v930 = vadd.f32 %v922, %v71
  %v931 = vadd.f32 %v923, %v71
  %v932 = vadd.f32 %v924, %v71
  %v933 = vadd.f32 %v925, %v71
  %v934 = vadd.f32 %v926, %v71
  %v935 = vadd.f32 %v927, %v71
  %v936 = vadd.f32 %v928, %v71
  %v937 = vadd.f32 %v929, %v71
  %v938 = vsel %vm172, %v930, -inf
  %939 = vmax.xlane.f32.xlu0 %v938
  %v940 = vpop.xlane.xlu0 %939
  %v941 = vsel %vm172, %v931, -inf
  %942 = vmax.xlane.f32.xlu0 %v941
  %v943 = vpop.xlane.xlu0 %942
  %v944 = vsel %vm172, %v932, -inf
  %945 = vmax.xlane.f32.xlu0 %v944
  %v946 = vpop.xlane.xlu0 %945
  %v947 = vsel %vm172, %v933, -inf
  %948 = vmax.xlane.f32.xlu0 %v947
  %v949 = vpop.xlane.xlu0 %948
  %v950 = vsel %vm172, %v934, -inf
  %951 = vmax.xlane.f32.xlu0 %v950
  %v952 = vpop.xlane.xlu0 %951
  %v953 = vsel %vm172, %v935, -inf
  %954 = vmax.xlane.f32.xlu0 %v953
  %v955 = vpop.xlane.xlu0 %954
  %v956 = vsel %vm172, %v936, -inf
  %957 = vmax.xlane.f32.xlu0 %v956
  %v958 = vpop.xlane.xlu0 %957
  %v959 = vsel %vm172, %v937, -inf
  %960 = vmax.xlane.f32.xlu0 %v959
  %v961 = vpop.xlane.xlu0 %960
  %v962 = vsub.f32 %v930, %v940
  %v963 = vsub.f32 %v931, %v943
  %v964 = vsub.f32 %v932, %v946
  %v965 = vsub.f32 %v933, %v949
  %v966 = vsub.f32 %v934, %v952
  %v967 = vsub.f32 %v935, %v955
  %v968 = vsub.f32 %v936, %v958
  %v969 = vsub.f32 %v937, %v961
  %v970 = vmul.f32 %v962, 1.442695
  %v971 = vpow.pop %v970
  %v972 = vmul.f32 %v963, 1.442695
  %v973 = vpow.pop %v972
  %v974 = vmul.f32 %v964, 1.442695
  %v975 = vpow.pop %v974
  %v976 = vmul.f32 %v965, 1.442695
  %v977 = vpow.pop %v976
  %v978 = vmul.f32 %v966, 1.442695
  %v979 = vpow.pop %v978
  %v980 = vmul.f32 %v967, 1.442695
  %v981 = vpow.pop %v980
  %v982 = vmul.f32 %v968, 1.442695
  %v983 = vpow.pop %v982
  %v984 = vmul.f32 %v969, 1.442695
  %v985 = vpow.pop %v984
  %v986 = vsel %vm172, %v971, 0.0
  %987 = vadd.xlane.f32.xlu0 %v986
  %v988 = vpop.xlane.xlu0 %987
  %v989 = vsel %vm172, %v973, 0.0
  %990 = vadd.xlane.f32.xlu0 %v989
  %v991 = vpop.xlane.xlu0 %990
  %v992 = vsel %vm172, %v975, 0.0
  %993 = vadd.xlane.f32.xlu0 %v992
  %v994 = vpop.xlane.xlu0 %993
  %v995 = vsel %vm172, %v977, 0.0
  %996 = vadd.xlane.f32.xlu0 %v995
  %v997 = vpop.xlane.xlu0 %996
  %v998 = vsel %vm172, %v979, 0.0
  %999 = vadd.xlane.f32.xlu0 %v998
  %v1000 = vpop.xlane.xlu0 %999
  %v1001 = vsel %vm172, %v981, 0.0
  %1002 = vadd.xlane.f32.xlu0 %v1001
  %v1003 = vpop.xlane.xlu0 %1002
  %v1004 = vsel %vm172, %v983, 0.0
  %1005 = vadd.xlane.f32.xlu0 %v1004
  %v1006 = vpop.xlane.xlu0 %1005
  %v1007 = vsel %vm172, %v985, 0.0
  %1008 = vadd.xlane.f32.xlu0 %v1007
  %v1009 = vpop.xlane.xlu0 %1008
  %v1010 = vrcp.pop %v988
  %v1011 = vrcp.pop %v991
  %v1012 = vrcp.pop %v994
  %v1013 = vrcp.pop %v997
  %v1014 = vrcp.pop %v1000
  %v1015 = vrcp.pop %v1003
  %v1016 = vrcp.pop %v1006
  %v1017 = vrcp.pop %v1009
  %v1018 = vmul.f32 %v971, %v1010
  %v1019 = vmul.f32 %v973, %v1011
  %v1020 = vmul.f32 %v975, %v1012
  %v1021 = vmul.f32 %v977, %v1013
  %v1022 = vmul.f32 %v979, %v1014
  %v1023 = vmul.f32 %v981, %v1015
  %v1024 = vmul.f32 %v983, %v1016
  %v1025 = vmul.f32 %v985, %v1017
  %1026 = vrot.lane.b32.xlu0 %v146, 56
  %v1027 = vpop.permute.xlu0 %1026
  %v1030 = vsel %vm172, %v1018, 0
  %1032 = vmatpush.msra.mxu0 0.0
  %1033 = vmatpush.msra.mxu0 0.0
  %1034 = vmatpush.msra.mxu0 0.0
  %1035 = vmatpush.msra.mxu0 0.0
  %1036 = vmatpush.msra.mxu0 0.0
  %1037 = vmatpush.msra.mxu0 0.0
  %1038 = vmatpush.msra.mxu0 0.0
  %1039 = vmatpush.msra.mxu0 0.0
  %1040 = vmatpush.msra.mxu0 0.0
  %1041 = vmatpush.msra.mxu0 0.0
  %1042 = vmatpush.msra.mxu0 0.0
  %1043 = vmatpush.msra.mxu0 0.0
  %1044 = vmatpush.msra.mxu0 0.0
  %1045 = vmatpush.msra.mxu0 0.0
  %1046 = vmatpush.msra.mxu0 0.0
  %1047 = vmatpush.msra.mxu0 %v1027
  %1048 = vmatmul.f32.gmra.mxu0 %v1030
  %v1049 = vpop.f32.mrf.mxu0
  %v1050 = vadd.f32 0.0, %v1049
  %1051 = vdwg.mxu0
  %1052 = vrot.lane.b32.xlu0 %v149, 56
  %v1053 = vpop.permute.xlu0 %1052
  %v1056 = vsel %vm172, %v1019, 0
  %1058 = vmatpush.msra.mxu0 0.0
  %1059 = vmatpush.msra.mxu0 0.0
  %1060 = vmatpush.msra.mxu0 0.0
  %1061 = vmatpush.msra.mxu0 0.0
  %1062 = vmatpush.msra.mxu0 0.0
  %1063 = vmatpush.msra.mxu0 0.0
  %1064 = vmatpush.msra.mxu0 0.0
  %1065 = vmatpush.msra.mxu0 0.0
  %1066 = vmatpush.msra.mxu0 0.0
  %1067 = vmatpush.msra.mxu0 0.0
  %1068 = vmatpush.msra.mxu0 0.0
  %1069 = vmatpush.msra.mxu0 0.0
  %1070 = vmatpush.msra.mxu0 0.0
  %1071 = vmatpush.msra.mxu0 0.0
  %1072 = vmatpush.msra.mxu0 0.0
  %1073 = vmatpush.msra.mxu0 %v1053
  %1074 = vmatmul.f32.gmra.mxu0 %v1056
  %v1075 = vpop.f32.mrf.mxu0
  %v1076 = vadd.f32 0.0, %v1075
  %1077 = vdwg.mxu0
  %1078 = vrot.lane.b32.xlu0 %v152, 56
  %v1079 = vpop.permute.xlu0 %1078
  %v1082 = vsel %vm172, %v1020, 0
  %1084 = vmatpush.msra.mxu0 0.0
  %1085 = vmatpush.msra.mxu0 0.0
  %1086 = vmatpush.msra.mxu0 0.0
  %1087 = vmatpush.msra.mxu0 0.0
  %1088 = vmatpush.msra.mxu0 0.0
  %1089 = vmatpush.msra.mxu0 0.0
  %1090 = vmatpush.msra.mxu0 0.0
  %1091 = vmatpush.msra.mxu0 0.0
  %1092 = vmatpush.msra.mxu0 0.0
  %1093 = vmatpush.msra.mxu0 0.0
  %1094 = vmatpush.msra.mxu0 0.0
  %1095 = vmatpush.msra.mxu0 0.0
  %1096 = vmatpush.msra.mxu0 0.0
  %1097 = vmatpush.msra.mxu0 0.0
  %1098 = vmatpush.msra.mxu0 0.0
  %1099 = vmatpush.msra.mxu0 %v1079
  %1100 = vmatmul.f32.gmra.mxu0 %v1082
  %v1101 = vpop.f32.mrf.mxu0
  %v1102 = vadd.f32 0.0, %v1101
  %1103 = vdwg.mxu0
  %1104 = vrot.lane.b32.xlu0 %v155, 56
  %v1105 = vpop.permute.xlu0 %1104
  %v1108 = vsel %vm172, %v1021, 0
  %1110 = vmatpush.msra.mxu0 0.0
  %1111 = vmatpush.msra.mxu0 0.0
  %1112 = vmatpush.msra.mxu0 0.0
  %1113 = vmatpush.msra.mxu0 0.0
  %1114 = vmatpush.msra.mxu0 0.0
  %1115 = vmatpush.msra.mxu0 0.0
  %1116 = vmatpush.msra.mxu0 0.0
  %1117 = vmatpush.msra.mxu0 0.0
  %1118 = vmatpush.msra.mxu0 0.0
  %1119 = vmatpush.msra.mxu0 0.0
  %1120 = vmatpush.msra.mxu0 0.0
  %1121 = vmatpush.msra.mxu0 0.0
  %1122 = vmatpush.msra.mxu0 0.0
  %1123 = vmatpush.msra.mxu0 0.0
  %1124 = vmatpush.msra.mxu0 0.0
  %1125 = vmatpush.msra.mxu0 %v1105
  %1126 = vmatmul.f32.gmra.mxu0 %v1108
  %v1127 = vpop.f32.mrf.mxu0
  %v1128 = vadd.f32 0.0, %v1127
  %1129 = vdwg.mxu0
  %1130 = vrot.lane.b32.xlu0 %v158, 56
  %v1131 = vpop.permute.xlu0 %1130
  %v1134 = vsel %vm172, %v1022, 0
  %1136 = vmatpush.msra.mxu0 0.0
  %1137 = vmatpush.msra.mxu0 0.0
  %1138 = vmatpush.msra.mxu0 0.0
  %1139 = vmatpush.msra.mxu0 0.0
  %1140 = vmatpush.msra.mxu0 0.0
  %1141 = vmatpush.msra.mxu0 0.0
  %1142 = vmatpush.msra.mxu0 0.0
  %1143 = vmatpush.msra.mxu0 0.0
  %1144 = vmatpush.msra.mxu0 0.0
  %1145 = vmatpush.msra.mxu0 0.0
  %1146 = vmatpush.msra.mxu0 0.0
  %1147 = vmatpush.msra.mxu0 0.0
  %1148 = vmatpush.msra.mxu0 0.0
  %1149 = vmatpush.msra.mxu0 0.0
  %1150 = vmatpush.msra.mxu0 0.0
  %1151 = vmatpush.msra.mxu0 %v1131
  %1152 = vmatmul.f32.gmra.mxu0 %v1134
  %v1153 = vpop.f32.mrf.mxu0
  %v1154 = vadd.f32 0.0, %v1153
  %1155 = vdwg.mxu0
  %1156 = vrot.lane.b32.xlu0 %v161, 56
  %v1157 = vpop.permute.xlu0 %1156
  %v1160 = vsel %vm172, %v1023, 0
  %1162 = vmatpush.msra.mxu0 0.0
  %1163 = vmatpush.msra.mxu0 0.0
  %1164 = vmatpush.msra.mxu0 0.0
  %1165 = vmatpush.msra.mxu0 0.0
  %1166 = vmatpush.msra.mxu0 0.0
  %1167 = vmatpush.msra.mxu0 0.0
  %1168 = vmatpush.msra.mxu0 0.0
  %1169 = vmatpush.msra.mxu0 0.0
  %1170 = vmatpush.msra.mxu0 0.0
  %1171 = vmatpush.msra.mxu0 0.0
  %1172 = vmatpush.msra.mxu0 0.0
  %1173 = vmatpush.msra.mxu0 0.0
  %1174 = vmatpush.msra.mxu0 0.0
  %1175 = vmatpush.msra.mxu0 0.0
  %1176 = vmatpush.msra.mxu0 0.0
  %1177 = vmatpush.msra.mxu0 %v1157
  %1178 = vmatmul.f32.gmra.mxu0 %v1160
  %v1179 = vpop.f32.mrf.mxu0
  %v1180 = vadd.f32 0.0, %v1179
  %1181 = vdwg.mxu0
  %1182 = vrot.lane.b32.xlu0 %v164, 56
  %v1183 = vpop.permute.xlu0 %1182
  %v1186 = vsel %vm172, %v1024, 0
  %1188 = vmatpush.msra.mxu0 0.0
  %1189 = vmatpush.msra.mxu0 0.0
  %1190 = vmatpush.msra.mxu0 0.0
  %1191 = vmatpush.msra.mxu0 0.0
  %1192 = vmatpush.msra.mxu0 0.0
  %1193 = vmatpush.msra.mxu0 0.0
  %1194 = vmatpush.msra.mxu0 0.0
  %1195 = vmatpush.msra.mxu0 0.0
  %1196 = vmatpush.msra.mxu0 0.0
  %1197 = vmatpush.msra.mxu0 0.0
  %1198 = vmatpush.msra.mxu0 0.0
  %1199 = vmatpush.msra.mxu0 0.0
  %1200 = vmatpush.msra.mxu0 0.0
  %1201 = vmatpush.msra.mxu0 0.0
  %1202 = vmatpush.msra.mxu0 0.0
  %1203 = vmatpush.msra.mxu0 %v1183
  %1204 = vmatmul.f32.gmra.mxu0 %v1186
  %v1205 = vpop.f32.mrf.mxu0
  %v1206 = vadd.f32 0.0, %v1205
  %1207 = vdwg.mxu0
  %1208 = vrot.lane.b32.xlu0 %v167, 56
  %v1209 = vpop.permute.xlu0 %1208
  %v1212 = vsel %vm172, %v1025, 0
  %1214 = vmatpush.msra.mxu0 0.0
  %1215 = vmatpush.msra.mxu0 0.0
  %1216 = vmatpush.msra.mxu0 0.0
  %1217 = vmatpush.msra.mxu0 0.0
  %1218 = vmatpush.msra.mxu0 0.0
  %1219 = vmatpush.msra.mxu0 0.0
  %1220 = vmatpush.msra.mxu0 0.0
  %1221 = vmatpush.msra.mxu0 0.0
  %1222 = vmatpush.msra.mxu0 0.0
  %1223 = vmatpush.msra.mxu0 0.0
  %1224 = vmatpush.msra.mxu0 0.0
  %1225 = vmatpush.msra.mxu0 0.0
  %1226 = vmatpush.msra.mxu0 0.0
  %1227 = vmatpush.msra.mxu0 0.0
  %1228 = vmatpush.msra.mxu0 0.0
  %1229 = vmatpush.msra.mxu0 %v1209
  %1230 = vmatmul.f32.gmra.mxu0 %v1212
  %v1231 = vpop.f32.mrf.mxu0
  %v1232 = vadd.f32 0.0, %v1231
  %1233 = vdwg.mxu0
  %v1235 = vsel %vm172, %v1050, 0
  %v1238 = vsel %vm172, %v1076, 0
  %v1241 = vsel %vm172, %v1102, 0
  %v1244 = vsel %vm172, %v1128, 0
  %v1247 = vsel %vm172, %v1154, 0
  %v1250 = vsel %vm172, %v1180, 0
  %v1253 = vsel %vm172, %v1206, 0
  %v1256 = vsel %vm172, %v1232, 0
  %1258 = vmatpush.msra.mxu0 0.0
  %1259 = vmatpush.msra.mxu0 0.0
  %1260 = vmatpush.msra.mxu0 0.0
  %1261 = vmatpush.msra.mxu0 0.0
  %1262 = vmatpush.msra.mxu0 0.0
  %1263 = vmatpush.msra.mxu0 0.0
  %1264 = vmatpush.msra.mxu0 0.0
  %1265 = vmatpush.msra.mxu0 0.0
  %1266 = vmatpush.msra.mxu0 0.0
  %1267 = vmatpush.msra.mxu0 0.0
  %1268 = vmatpush.msra.mxu0 0.0
  %1269 = vmatpush.msra.mxu0 0.0
  %1270 = vmatpush.msra.mxu0 0.0
  %1271 = vmatpush.msra.mxu0 0.0
  %1272 = vmatpush.msra.mxu0 0.0
  %1273 = vmatpush.msra.mxu0 %v80
  %1274 = vmatmul.f32.gmra.mxu0 %v1235
  %v1275 = vpop.f32.mrf.mxu0
  %v1276 = vadd.f32 0.0, %v1275
  %1277 = vmatmul.f32.gmra.mxu0 %v1238
  %v1278 = vpop.f32.mrf.mxu0
  %v1279 = vadd.f32 0.0, %v1278
  %1280 = vmatmul.f32.gmra.mxu0 %v1241
  %v1281 = vpop.f32.mrf.mxu0
  %v1282 = vadd.f32 0.0, %v1281
  %1283 = vmatmul.f32.gmra.mxu0 %v1244
  %v1284 = vpop.f32.mrf.mxu0
  %v1285 = vadd.f32 0.0, %v1284
  %1286 = vmatmul.f32.gmra.mxu0 %v1247
  %v1287 = vpop.f32.mrf.mxu0
  %v1288 = vadd.f32 0.0, %v1287
  %1289 = vmatmul.f32.gmra.mxu0 %v1250
  %v1290 = vpop.f32.mrf.mxu0
  %v1291 = vadd.f32 0.0, %v1290
  %1292 = vmatmul.f32.gmra.mxu0 %v1253
  %v1293 = vpop.f32.mrf.mxu0
  %v1294 = vadd.f32 0.0, %v1293
  %1295 = vmatmul.f32.gmra.mxu0 %v1256
  %v1296 = vpop.f32.mrf.mxu0
  %v1297 = vadd.f32 0.0, %v1296
  %1298 = vdwg.mxu0
  %v1300 = vsel %vm172, %v514, 0
  %v1303 = vsel %vm172, %v540, 0
  %v1306 = vsel %vm172, %v566, 0
  %v1309 = vsel %vm172, %v592, 0
  %v1312 = vsel %vm172, %v618, 0
  %v1315 = vsel %vm172, %v644, 0
  %v1318 = vsel %vm172, %v670, 0
  %v1321 = vsel %vm172, %v696, 0
  %1323 = vmatpush.msra.mxu0 0.0
  %1324 = vmatpush.msra.mxu0 0.0
  %1325 = vmatpush.msra.mxu0 0.0
  %1326 = vmatpush.msra.mxu0 0.0
  %1327 = vmatpush.msra.mxu0 0.0
  %1328 = vmatpush.msra.mxu0 0.0
  %1329 = vmatpush.msra.mxu0 0.0
  %1330 = vmatpush.msra.mxu0 0.0
  %1331 = vmatpush.msra.mxu0 0.0
  %1332 = vmatpush.msra.mxu0 0.0
  %1333 = vmatpush.msra.mxu0 0.0
  %1334 = vmatpush.msra.mxu0 0.0
  %1335 = vmatpush.msra.mxu0 0.0
  %1336 = vmatpush.msra.mxu0 0.0
  %1337 = vmatpush.msra.mxu0 0.0
  %1338 = vmatpush.msra.mxu0 %v79
  %1339 = vmatmul.f32.gmra.mxu0 %v1300
  %v1340 = vpop.f32.mrf.mxu0
  %v1341 = vadd.f32 %v1276, %v1340
  %1342 = vmatmul.f32.gmra.mxu0 %v1303
  %v1343 = vpop.f32.mrf.mxu0
  %v1344 = vadd.f32 %v1279, %v1343
  %1345 = vmatmul.f32.gmra.mxu0 %v1306
  %v1346 = vpop.f32.mrf.mxu0
  %v1347 = vadd.f32 %v1282, %v1346
  %1348 = vmatmul.f32.gmra.mxu0 %v1309
  %v1349 = vpop.f32.mrf.mxu0
  %v1350 = vadd.f32 %v1285, %v1349
  %1351 = vmatmul.f32.gmra.mxu0 %v1312
  %v1352 = vpop.f32.mrf.mxu0
  %v1353 = vadd.f32 %v1288, %v1352
  %1354 = vmatmul.f32.gmra.mxu0 %v1315
  %v1355 = vpop.f32.mrf.mxu0
  %v1356 = vadd.f32 %v1291, %v1355
  %1357 = vmatmul.f32.gmra.mxu0 %v1318
  %v1358 = vpop.f32.mrf.mxu0
  %v1359 = vadd.f32 %v1294, %v1358
  %1360 = vmatmul.f32.gmra.mxu0 %v1321
  %v1361 = vpop.f32.mrf.mxu0
  %v1362 = vadd.f32 %v1297, %v1361
  %1363 = vdwg.mxu0
  %1364 = vrot.lane.b32.xlu0 %v146, 80
  %v1365 = vpop.permute.xlu0 %1364
  %1366 = vrot.lane.b32.xlu0 %v146, 112
  %v1367 = vpop.permute.xlu0 %1366
  %v1368 = vsel %vm172, %v1365, 0
  %v1370 = vsel %vm172, %v1367, 0
  %1372 = vmatpush.xpose.msra.mxu0 0.0
  %1373 = vmatpush.xpose.msra.mxu0 0.0
  %1374 = vmatpush.xpose.msra.mxu0 0.0
  %1375 = vmatpush.xpose.msra.mxu0 0.0
  %1376 = vmatpush.xpose.msra.mxu0 0.0
  %1377 = vmatpush.xpose.msra.mxu0 0.0
  %1378 = vmatpush.xpose.msra.mxu0 0.0
  %1379 = vmatpush.xpose.msra.mxu0 0.0
  %1380 = vmatpush.xpose.msra.mxu0 0.0
  %1381 = vmatpush.xpose.msra.mxu0 0.0
  %1382 = vmatpush.xpose.msra.mxu0 0.0
  %1383 = vmatpush.xpose.msra.mxu0 0.0
  %1384 = vmatpush.xpose.msra.mxu0 0.0
  %1385 = vmatpush.xpose.msra.mxu0 0.0
  %1386 = vmatpush.xpose.msra.mxu0 0.0
  %1387 = vmatpush.xpose.msra.mxu0 %v1370
  %1388 = vmatmul.f32.gmra.mxu0 %v1368
  %v1389 = vpop.f32.mrf.mxu0
  %v1390 = vadd.f32 0.0, %v1389
  %1391 = vdwg.mxu0
  %1392 = vrot.lane.b32.xlu0 %v149, 80
  %v1393 = vpop.permute.xlu0 %1392
  %1394 = vrot.lane.b32.xlu0 %v149, 112
  %v1395 = vpop.permute.xlu0 %1394
  %v1396 = vsel %vm172, %v1393, 0
  %v1398 = vsel %vm172, %v1395, 0
  %1400 = vmatpush.xpose.msra.mxu0 0.0
  %1401 = vmatpush.xpose.msra.mxu0 0.0
  %1402 = vmatpush.xpose.msra.mxu0 0.0
  %1403 = vmatpush.xpose.msra.mxu0 0.0
  %1404 = vmatpush.xpose.msra.mxu0 0.0
  %1405 = vmatpush.xpose.msra.mxu0 0.0
  %1406 = vmatpush.xpose.msra.mxu0 0.0
  %1407 = vmatpush.xpose.msra.mxu0 0.0
  %1408 = vmatpush.xpose.msra.mxu0 0.0
  %1409 = vmatpush.xpose.msra.mxu0 0.0
  %1410 = vmatpush.xpose.msra.mxu0 0.0
  %1411 = vmatpush.xpose.msra.mxu0 0.0
  %1412 = vmatpush.xpose.msra.mxu0 0.0
  %1413 = vmatpush.xpose.msra.mxu0 0.0
  %1414 = vmatpush.xpose.msra.mxu0 0.0
  %1415 = vmatpush.xpose.msra.mxu0 %v1398
  %1416 = vmatmul.f32.gmra.mxu0 %v1396
  %v1417 = vpop.f32.mrf.mxu0
  %v1418 = vadd.f32 0.0, %v1417
  %1419 = vdwg.mxu0
  %1420 = vrot.lane.b32.xlu0 %v152, 80
  %v1421 = vpop.permute.xlu0 %1420
  %1422 = vrot.lane.b32.xlu0 %v152, 112
  %v1423 = vpop.permute.xlu0 %1422
  %v1424 = vsel %vm172, %v1421, 0
  %v1426 = vsel %vm172, %v1423, 0
  %1428 = vmatpush.xpose.msra.mxu0 0.0
  %1429 = vmatpush.xpose.msra.mxu0 0.0
  %1430 = vmatpush.xpose.msra.mxu0 0.0
  %1431 = vmatpush.xpose.msra.mxu0 0.0
  %1432 = vmatpush.xpose.msra.mxu0 0.0
  %1433 = vmatpush.xpose.msra.mxu0 0.0
  %1434 = vmatpush.xpose.msra.mxu0 0.0
  %1435 = vmatpush.xpose.msra.mxu0 0.0
  %1436 = vmatpush.xpose.msra.mxu0 0.0
  %1437 = vmatpush.xpose.msra.mxu0 0.0
  %1438 = vmatpush.xpose.msra.mxu0 0.0
  %1439 = vmatpush.xpose.msra.mxu0 0.0
  %1440 = vmatpush.xpose.msra.mxu0 0.0
  %1441 = vmatpush.xpose.msra.mxu0 0.0
  %1442 = vmatpush.xpose.msra.mxu0 0.0
  %1443 = vmatpush.xpose.msra.mxu0 %v1426
  %1444 = vmatmul.f32.gmra.mxu0 %v1424
  %v1445 = vpop.f32.mrf.mxu0
  %v1446 = vadd.f32 0.0, %v1445
  %1447 = vdwg.mxu0
  %1448 = vrot.lane.b32.xlu0 %v155, 80
  %v1449 = vpop.permute.xlu0 %1448
  %1450 = vrot.lane.b32.xlu0 %v155, 112
  %v1451 = vpop.permute.xlu0 %1450
  %v1452 = vsel %vm172, %v1449, 0
  %v1454 = vsel %vm172, %v1451, 0
  %1456 = vmatpush.xpose.msra.mxu0 0.0
  %1457 = vmatpush.xpose.msra.mxu0 0.0
  %1458 = vmatpush.xpose.msra.mxu0 0.0
  %1459 = vmatpush.xpose.msra.mxu0 0.0
  %1460 = vmatpush.xpose.msra.mxu0 0.0
  %1461 = vmatpush.xpose.msra.mxu0 0.0
  %1462 = vmatpush.xpose.msra.mxu0 0.0
  %1463 = vmatpush.xpose.msra.mxu0 0.0
  %1464 = vmatpush.xpose.msra.mxu0 0.0
  %1465 = vmatpush.xpose.msra.mxu0 0.0
  %1466 = vmatpush.xpose.msra.mxu0 0.0
  %1467 = vmatpush.xpose.msra.mxu0 0.0
  %1468 = vmatpush.xpose.msra.mxu0 0.0
  %1469 = vmatpush.xpose.msra.mxu0 0.0
  %1470 = vmatpush.xpose.msra.mxu0 0.0
  %1471 = vmatpush.xpose.msra.mxu0 %v1454
  %1472 = vmatmul.f32.gmra.mxu0 %v1452
  %v1473 = vpop.f32.mrf.mxu0
  %v1474 = vadd.f32 0.0, %v1473
  %1475 = vdwg.mxu0
  %1476 = vrot.lane.b32.xlu0 %v158, 80
  %v1477 = vpop.permute.xlu0 %1476
  %1478 = vrot.lane.b32.xlu0 %v158, 112
  %v1479 = vpop.permute.xlu0 %1478
  %v1480 = vsel %vm172, %v1477, 0
  %v1482 = vsel %vm172, %v1479, 0
  %1484 = vmatpush.xpose.msra.mxu0 0.0
  %1485 = vmatpush.xpose.msra.mxu0 0.0
  %1486 = vmatpush.xpose.msra.mxu0 0.0
  %1487 = vmatpush.xpose.msra.mxu0 0.0
  %1488 = vmatpush.xpose.msra.mxu0 0.0
  %1489 = vmatpush.xpose.msra.mxu0 0.0
  %1490 = vmatpush.xpose.msra.mxu0 0.0
  %1491 = vmatpush.xpose.msra.mxu0 0.0
  %1492 = vmatpush.xpose.msra.mxu0 0.0
  %1493 = vmatpush.xpose.msra.mxu0 0.0
  %1494 = vmatpush.xpose.msra.mxu0 0.0
  %1495 = vmatpush.xpose.msra.mxu0 0.0
  %1496 = vmatpush.xpose.msra.mxu0 0.0
  %1497 = vmatpush.xpose.msra.mxu0 0.0
  %1498 = vmatpush.xpose.msra.mxu0 0.0
  %1499 = vmatpush.xpose.msra.mxu0 %v1482
  %1500 = vmatmul.f32.gmra.mxu0 %v1480
  %v1501 = vpop.f32.mrf.mxu0
  %v1502 = vadd.f32 0.0, %v1501
  %1503 = vdwg.mxu0
  %1504 = vrot.lane.b32.xlu0 %v161, 80
  %v1505 = vpop.permute.xlu0 %1504
  %1506 = vrot.lane.b32.xlu0 %v161, 112
  %v1507 = vpop.permute.xlu0 %1506
  %v1508 = vsel %vm172, %v1505, 0
  %v1510 = vsel %vm172, %v1507, 0
  %1512 = vmatpush.xpose.msra.mxu0 0.0
  %1513 = vmatpush.xpose.msra.mxu0 0.0
  %1514 = vmatpush.xpose.msra.mxu0 0.0
  %1515 = vmatpush.xpose.msra.mxu0 0.0
  %1516 = vmatpush.xpose.msra.mxu0 0.0
  %1517 = vmatpush.xpose.msra.mxu0 0.0
  %1518 = vmatpush.xpose.msra.mxu0 0.0
  %1519 = vmatpush.xpose.msra.mxu0 0.0
  %1520 = vmatpush.xpose.msra.mxu0 0.0
  %1521 = vmatpush.xpose.msra.mxu0 0.0
  %1522 = vmatpush.xpose.msra.mxu0 0.0
  %1523 = vmatpush.xpose.msra.mxu0 0.0
  %1524 = vmatpush.xpose.msra.mxu0 0.0
  %1525 = vmatpush.xpose.msra.mxu0 0.0
  %1526 = vmatpush.xpose.msra.mxu0 0.0
  %1527 = vmatpush.xpose.msra.mxu0 %v1510
  %1528 = vmatmul.f32.gmra.mxu0 %v1508
  %v1529 = vpop.f32.mrf.mxu0
  %v1530 = vadd.f32 0.0, %v1529
  %1531 = vdwg.mxu0
  %1532 = vrot.lane.b32.xlu0 %v164, 80
  %v1533 = vpop.permute.xlu0 %1532
  %1534 = vrot.lane.b32.xlu0 %v164, 112
  %v1535 = vpop.permute.xlu0 %1534
  %v1536 = vsel %vm172, %v1533, 0
  %v1538 = vsel %vm172, %v1535, 0
  %1540 = vmatpush.xpose.msra.mxu0 0.0
  %1541 = vmatpush.xpose.msra.mxu0 0.0
  %1542 = vmatpush.xpose.msra.mxu0 0.0
  %1543 = vmatpush.xpose.msra.mxu0 0.0
  %1544 = vmatpush.xpose.msra.mxu0 0.0
  %1545 = vmatpush.xpose.msra.mxu0 0.0
  %1546 = vmatpush.xpose.msra.mxu0 0.0
  %1547 = vmatpush.xpose.msra.mxu0 0.0
  %1548 = vmatpush.xpose.msra.mxu0 0.0
  %1549 = vmatpush.xpose.msra.mxu0 0.0
  %1550 = vmatpush.xpose.msra.mxu0 0.0
  %1551 = vmatpush.xpose.msra.mxu0 0.0
  %1552 = vmatpush.xpose.msra.mxu0 0.0
  %1553 = vmatpush.xpose.msra.mxu0 0.0
  %1554 = vmatpush.xpose.msra.mxu0 0.0
  %1555 = vmatpush.xpose.msra.mxu0 %v1538
  %1556 = vmatmul.f32.gmra.mxu0 %v1536
  %v1557 = vpop.f32.mrf.mxu0
  %v1558 = vadd.f32 0.0, %v1557
  %1559 = vdwg.mxu0
  %1560 = vrot.lane.b32.xlu0 %v167, 80
  %v1561 = vpop.permute.xlu0 %1560
  %1562 = vrot.lane.b32.xlu0 %v167, 112
  %v1563 = vpop.permute.xlu0 %1562
  %v1564 = vsel %vm172, %v1561, 0
  %v1566 = vsel %vm172, %v1563, 0
  %1568 = vmatpush.xpose.msra.mxu0 0.0
  %1569 = vmatpush.xpose.msra.mxu0 0.0
  %1570 = vmatpush.xpose.msra.mxu0 0.0
  %1571 = vmatpush.xpose.msra.mxu0 0.0
  %1572 = vmatpush.xpose.msra.mxu0 0.0
  %1573 = vmatpush.xpose.msra.mxu0 0.0
  %1574 = vmatpush.xpose.msra.mxu0 0.0
  %1575 = vmatpush.xpose.msra.mxu0 0.0
  %1576 = vmatpush.xpose.msra.mxu0 0.0
  %1577 = vmatpush.xpose.msra.mxu0 0.0
  %1578 = vmatpush.xpose.msra.mxu0 0.0
  %1579 = vmatpush.xpose.msra.mxu0 0.0
  %1580 = vmatpush.xpose.msra.mxu0 0.0
  %1581 = vmatpush.xpose.msra.mxu0 0.0
  %1582 = vmatpush.xpose.msra.mxu0 0.0
  %1583 = vmatpush.xpose.msra.mxu0 %v1566
  %1584 = vmatmul.f32.gmra.mxu0 %v1564
  %v1585 = vpop.f32.mrf.mxu0
  %v1586 = vadd.f32 0.0, %v1585
  %1587 = vdwg.mxu0
  %v1588 = vmul.f32 %v1390, 0.35355338
  %v1589 = vmul.f32 %v1418, 0.35355338
  %v1590 = vmul.f32 %v1446, 0.35355338
  %v1591 = vmul.f32 %v1474, 0.35355338
  %v1592 = vmul.f32 %v1502, 0.35355338
  %v1593 = vmul.f32 %v1530, 0.35355338
  %v1594 = vmul.f32 %v1558, 0.35355338
  %v1595 = vmul.f32 %v1586, 0.35355338
  %v1596 = vadd.f32 %v1588, %v72
  %v1597 = vadd.f32 %v1589, %v72
  %v1598 = vadd.f32 %v1590, %v72
  %v1599 = vadd.f32 %v1591, %v72
  %v1600 = vadd.f32 %v1592, %v72
  %v1601 = vadd.f32 %v1593, %v72
  %v1602 = vadd.f32 %v1594, %v72
  %v1603 = vadd.f32 %v1595, %v72
  %v1604 = vsel %vm172, %v1596, -inf
  %1605 = vmax.xlane.f32.xlu0 %v1604
  %v1606 = vpop.xlane.xlu0 %1605
  %v1607 = vsel %vm172, %v1597, -inf
  %1608 = vmax.xlane.f32.xlu0 %v1607
  %v1609 = vpop.xlane.xlu0 %1608
  %v1610 = vsel %vm172, %v1598, -inf
  %1611 = vmax.xlane.f32.xlu0 %v1610
  %v1612 = vpop.xlane.xlu0 %1611
  %v1613 = vsel %vm172, %v1599, -inf
  %1614 = vmax.xlane.f32.xlu0 %v1613
  %v1615 = vpop.xlane.xlu0 %1614
  %v1616 = vsel %vm172, %v1600, -inf
  %1617 = vmax.xlane.f32.xlu0 %v1616
  %v1618 = vpop.xlane.xlu0 %1617
  %v1619 = vsel %vm172, %v1601, -inf
  %1620 = vmax.xlane.f32.xlu0 %v1619
  %v1621 = vpop.xlane.xlu0 %1620
  %v1622 = vsel %vm172, %v1602, -inf
  %1623 = vmax.xlane.f32.xlu0 %v1622
  %v1624 = vpop.xlane.xlu0 %1623
  %v1625 = vsel %vm172, %v1603, -inf
  %1626 = vmax.xlane.f32.xlu0 %v1625
  %v1627 = vpop.xlane.xlu0 %1626
  %v1628 = vsub.f32 %v1596, %v1606
  %v1629 = vsub.f32 %v1597, %v1609
  %v1630 = vsub.f32 %v1598, %v1612
  %v1631 = vsub.f32 %v1599, %v1615
  %v1632 = vsub.f32 %v1600, %v1618
  %v1633 = vsub.f32 %v1601, %v1621
  %v1634 = vsub.f32 %v1602, %v1624
  %v1635 = vsub.f32 %v1603, %v1627
  %v1636 = vmul.f32 %v1628, 1.442695
  %v1637 = vpow.pop %v1636
  %v1638 = vmul.f32 %v1629, 1.442695
  %v1639 = vpow.pop %v1638
  %v1640 = vmul.f32 %v1630, 1.442695
  %v1641 = vpow.pop %v1640
  %v1642 = vmul.f32 %v1631, 1.442695
  %v1643 = vpow.pop %v1642
  %v1644 = vmul.f32 %v1632, 1.442695
  %v1645 = vpow.pop %v1644
  %v1646 = vmul.f32 %v1633, 1.442695
  %v1647 = vpow.pop %v1646
  %v1648 = vmul.f32 %v1634, 1.442695
  %v1649 = vpow.pop %v1648
  %v1650 = vmul.f32 %v1635, 1.442695
  %v1651 = vpow.pop %v1650
  %v1652 = vsel %vm172, %v1637, 0.0
  %1653 = vadd.xlane.f32.xlu0 %v1652
  %v1654 = vpop.xlane.xlu0 %1653
  %v1655 = vsel %vm172, %v1639, 0.0
  %1656 = vadd.xlane.f32.xlu0 %v1655
  %v1657 = vpop.xlane.xlu0 %1656
  %v1658 = vsel %vm172, %v1641, 0.0
  %1659 = vadd.xlane.f32.xlu0 %v1658
  %v1660 = vpop.xlane.xlu0 %1659
  %v1661 = vsel %vm172, %v1643, 0.0
  %1662 = vadd.xlane.f32.xlu0 %v1661
  %v1663 = vpop.xlane.xlu0 %1662
  %v1664 = vsel %vm172, %v1645, 0.0
  %1665 = vadd.xlane.f32.xlu0 %v1664
  %v1666 = vpop.xlane.xlu0 %1665
  %v1667 = vsel %vm172, %v1647, 0.0
  %1668 = vadd.xlane.f32.xlu0 %v1667
  %v1669 = vpop.xlane.xlu0 %1668
  %v1670 = vsel %vm172, %v1649, 0.0
  %1671 = vadd.xlane.f32.xlu0 %v1670
  %v1672 = vpop.xlane.xlu0 %1671
  %v1673 = vsel %vm172, %v1651, 0.0
  %1674 = vadd.xlane.f32.xlu0 %v1673
  %v1675 = vpop.xlane.xlu0 %1674
  %v1676 = vrcp.pop %v1654
  %v1677 = vrcp.pop %v1657
  %v1678 = vrcp.pop %v1660
  %v1679 = vrcp.pop %v1663
  %v1680 = vrcp.pop %v1666
  %v1681 = vrcp.pop %v1669
  %v1682 = vrcp.pop %v1672
  %v1683 = vrcp.pop %v1675
  %v1684 = vmul.f32 %v1637, %v1676
  %v1685 = vmul.f32 %v1639, %v1677
  %v1686 = vmul.f32 %v1641, %v1678
  %v1687 = vmul.f32 %v1643, %v1679
  %v1688 = vmul.f32 %v1645, %v1680
  %v1689 = vmul.f32 %v1647, %v1681
  %v1690 = vmul.f32 %v1649, %v1682
  %v1691 = vmul.f32 %v1651, %v1683
  %1692 = vrot.lane.b32.xlu0 %v146, 48
  %v1693 = vpop.permute.xlu0 %1692
  %v1696 = vsel %vm172, %v1684, 0
  %1698 = vmatpush.msra.mxu0 0.0
  %1699 = vmatpush.msra.mxu0 0.0
  %1700 = vmatpush.msra.mxu0 0.0
  %1701 = vmatpush.msra.mxu0 0.0
  %1702 = vmatpush.msra.mxu0 0.0
  %1703 = vmatpush.msra.mxu0 0.0
  %1704 = vmatpush.msra.mxu0 0.0
  %1705 = vmatpush.msra.mxu0 0.0
  %1706 = vmatpush.msra.mxu0 0.0
  %1707 = vmatpush.msra.mxu0 0.0
  %1708 = vmatpush.msra.mxu0 0.0
  %1709 = vmatpush.msra.mxu0 0.0
  %1710 = vmatpush.msra.mxu0 0.0
  %1711 = vmatpush.msra.mxu0 0.0
  %1712 = vmatpush.msra.mxu0 0.0
  %1713 = vmatpush.msra.mxu0 %v1693
  %1714 = vmatmul.f32.gmra.mxu0 %v1696
  %v1715 = vpop.f32.mrf.mxu0
  %v1716 = vadd.f32 0.0, %v1715
  %1717 = vdwg.mxu0
  %1718 = vrot.lane.b32.xlu0 %v149, 48
  %v1719 = vpop.permute.xlu0 %1718
  %v1722 = vsel %vm172, %v1685, 0
  %1724 = vmatpush.msra.mxu0 0.0
  %1725 = vmatpush.msra.mxu0 0.0
  %1726 = vmatpush.msra.mxu0 0.0
  %1727 = vmatpush.msra.mxu0 0.0
  %1728 = vmatpush.msra.mxu0 0.0
  %1729 = vmatpush.msra.mxu0 0.0
  %1730 = vmatpush.msra.mxu0 0.0
  %1731 = vmatpush.msra.mxu0 0.0
  %1732 = vmatpush.msra.mxu0 0.0
  %1733 = vmatpush.msra.mxu0 0.0
  %1734 = vmatpush.msra.mxu0 0.0
  %1735 = vmatpush.msra.mxu0 0.0
  %1736 = vmatpush.msra.mxu0 0.0
  %1737 = vmatpush.msra.mxu0 0.0
  %1738 = vmatpush.msra.mxu0 0.0
  %1739 = vmatpush.msra.mxu0 %v1719
  %1740 = vmatmul.f32.gmra.mxu0 %v1722
  %v1741 = vpop.f32.mrf.mxu0
  %v1742 = vadd.f32 0.0, %v1741
  %1743 = vdwg.mxu0
  %1744 = vrot.lane.b32.xlu0 %v152, 48
  %v1745 = vpop.permute.xlu0 %1744
  %v1748 = vsel %vm172, %v1686, 0
  %1750 = vmatpush.msra.mxu0 0.0
  %1751 = vmatpush.msra.mxu0 0.0
  %1752 = vmatpush.msra.mxu0 0.0
  %1753 = vmatpush.msra.mxu0 0.0
  %1754 = vmatpush.msra.mxu0 0.0
  %1755 = vmatpush.msra.mxu0 0.0
  %1756 = vmatpush.msra.mxu0 0.0
  %1757 = vmatpush.msra.mxu0 0.0
  %1758 = vmatpush.msra.mxu0 0.0
  %1759 = vmatpush.msra.mxu0 0.0
  %1760 = vmatpush.msra.mxu0 0.0
  %1761 = vmatpush.msra.mxu0 0.0
  %1762 = vmatpush.msra.mxu0 0.0
  %1763 = vmatpush.msra.mxu0 0.0
  %1764 = vmatpush.msra.mxu0 0.0
  %1765 = vmatpush.msra.mxu0 %v1745
  %1766 = vmatmul.f32.gmra.mxu0 %v1748
  %v1767 = vpop.f32.mrf.mxu0
  %v1768 = vadd.f32 0.0, %v1767
  %1769 = vdwg.mxu0
  %1770 = vrot.lane.b32.xlu0 %v155, 48
  %v1771 = vpop.permute.xlu0 %1770
  %v1774 = vsel %vm172, %v1687, 0
  %1776 = vmatpush.msra.mxu0 0.0
  %1777 = vmatpush.msra.mxu0 0.0
  %1778 = vmatpush.msra.mxu0 0.0
  %1779 = vmatpush.msra.mxu0 0.0
  %1780 = vmatpush.msra.mxu0 0.0
  %1781 = vmatpush.msra.mxu0 0.0
  %1782 = vmatpush.msra.mxu0 0.0
  %1783 = vmatpush.msra.mxu0 0.0
  %1784 = vmatpush.msra.mxu0 0.0
  %1785 = vmatpush.msra.mxu0 0.0
  %1786 = vmatpush.msra.mxu0 0.0
  %1787 = vmatpush.msra.mxu0 0.0
  %1788 = vmatpush.msra.mxu0 0.0
  %1789 = vmatpush.msra.mxu0 0.0
  %1790 = vmatpush.msra.mxu0 0.0
  %1791 = vmatpush.msra.mxu0 %v1771
  %1792 = vmatmul.f32.gmra.mxu0 %v1774
  %v1793 = vpop.f32.mrf.mxu0
  %v1794 = vadd.f32 0.0, %v1793
  %1795 = vdwg.mxu0
  %1796 = vrot.lane.b32.xlu0 %v158, 48
  %v1797 = vpop.permute.xlu0 %1796
  %v1800 = vsel %vm172, %v1688, 0
  %1802 = vmatpush.msra.mxu0 0.0
  %1803 = vmatpush.msra.mxu0 0.0
  %1804 = vmatpush.msra.mxu0 0.0
  %1805 = vmatpush.msra.mxu0 0.0
  %1806 = vmatpush.msra.mxu0 0.0
  %1807 = vmatpush.msra.mxu0 0.0
  %1808 = vmatpush.msra.mxu0 0.0
  %1809 = vmatpush.msra.mxu0 0.0
  %1810 = vmatpush.msra.mxu0 0.0
  %1811 = vmatpush.msra.mxu0 0.0
  %1812 = vmatpush.msra.mxu0 0.0
  %1813 = vmatpush.msra.mxu0 0.0
  %1814 = vmatpush.msra.mxu0 0.0
  %1815 = vmatpush.msra.mxu0 0.0
  %1816 = vmatpush.msra.mxu0 0.0
  %1817 = vmatpush.msra.mxu0 %v1797
  %1818 = vmatmul.f32.gmra.mxu0 %v1800
  %v1819 = vpop.f32.mrf.mxu0
  %v1820 = vadd.f32 0.0, %v1819
  %1821 = vdwg.mxu0
  %1822 = vrot.lane.b32.xlu0 %v161, 48
  %v1823 = vpop.permute.xlu0 %1822
  %v1826 = vsel %vm172, %v1689, 0
  %1828 = vmatpush.msra.mxu0 0.0
  %1829 = vmatpush.msra.mxu0 0.0
  %1830 = vmatpush.msra.mxu0 0.0
  %1831 = vmatpush.msra.mxu0 0.0
  %1832 = vmatpush.msra.mxu0 0.0
  %1833 = vmatpush.msra.mxu0 0.0
  %1834 = vmatpush.msra.mxu0 0.0
  %1835 = vmatpush.msra.mxu0 0.0
  %1836 = vmatpush.msra.mxu0 0.0
  %1837 = vmatpush.msra.mxu0 0.0
  %1838 = vmatpush.msra.mxu0 0.0
  %1839 = vmatpush.msra.mxu0 0.0
  %1840 = vmatpush.msra.mxu0 0.0
  %1841 = vmatpush.msra.mxu0 0.0
  %1842 = vmatpush.msra.mxu0 0.0
  %1843 = vmatpush.msra.mxu0 %v1823
  %1844 = vmatmul.f32.gmra.mxu0 %v1826
  %v1845 = vpop.f32.mrf.mxu0
  %v1846 = vadd.f32 0.0, %v1845
  %1847 = vdwg.mxu0
  %1848 = vrot.lane.b32.xlu0 %v164, 48
  %v1849 = vpop.permute.xlu0 %1848
  %v1852 = vsel %vm172, %v1690, 0
  %1854 = vmatpush.msra.mxu0 0.0
  %1855 = vmatpush.msra.mxu0 0.0
  %1856 = vmatpush.msra.mxu0 0.0
  %1857 = vmatpush.msra.mxu0 0.0
  %1858 = vmatpush.msra.mxu0 0.0
  %1859 = vmatpush.msra.mxu0 0.0
  %1860 = vmatpush.msra.mxu0 0.0
  %1861 = vmatpush.msra.mxu0 0.0
  %1862 = vmatpush.msra.mxu0 0.0
  %1863 = vmatpush.msra.mxu0 0.0
  %1864 = vmatpush.msra.mxu0 0.0
  %1865 = vmatpush.msra.mxu0 0.0
  %1866 = vmatpush.msra.mxu0 0.0
  %1867 = vmatpush.msra.mxu0 0.0
  %1868 = vmatpush.msra.mxu0 0.0
  %1869 = vmatpush.msra.mxu0 %v1849
  %1870 = vmatmul.f32.gmra.mxu0 %v1852
  %v1871 = vpop.f32.mrf.mxu0
  %v1872 = vadd.f32 0.0, %v1871
  %1873 = vdwg.mxu0
  %1874 = vrot.lane.b32.xlu0 %v167, 48
  %v1875 = vpop.permute.xlu0 %1874
  %v1878 = vsel %vm172, %v1691, 0
  %1880 = vmatpush.msra.mxu0 0.0
  %1881 = vmatpush.msra.mxu0 0.0
  %1882 = vmatpush.msra.mxu0 0.0
  %1883 = vmatpush.msra.mxu0 0.0
  %1884 = vmatpush.msra.mxu0 0.0
  %1885 = vmatpush.msra.mxu0 0.0
  %1886 = vmatpush.msra.mxu0 0.0
  %1887 = vmatpush.msra.mxu0 0.0
  %1888 = vmatpush.msra.mxu0 0.0
  %1889 = vmatpush.msra.mxu0 0.0
  %1890 = vmatpush.msra.mxu0 0.0
  %1891 = vmatpush.msra.mxu0 0.0
  %1892 = vmatpush.msra.mxu0 0.0
  %1893 = vmatpush.msra.mxu0 0.0
  %1894 = vmatpush.msra.mxu0 0.0
  %1895 = vmatpush.msra.mxu0 %v1875
  %1896 = vmatmul.f32.gmra.mxu0 %v1878
  %v1897 = vpop.f32.mrf.mxu0
  %v1898 = vadd.f32 0.0, %v1897
  %1899 = vdwg.mxu0
  %v1901 = vsel %vm172, %v1716, 0
  %v1904 = vsel %vm172, %v1742, 0
  %v1907 = vsel %vm172, %v1768, 0
  %v1910 = vsel %vm172, %v1794, 0
  %v1913 = vsel %vm172, %v1820, 0
  %v1916 = vsel %vm172, %v1846, 0
  %v1919 = vsel %vm172, %v1872, 0
  %v1922 = vsel %vm172, %v1898, 0
  %1924 = vmatpush.msra.mxu0 0.0
  %1925 = vmatpush.msra.mxu0 0.0
  %1926 = vmatpush.msra.mxu0 0.0
  %1927 = vmatpush.msra.mxu0 0.0
  %1928 = vmatpush.msra.mxu0 0.0
  %1929 = vmatpush.msra.mxu0 0.0
  %1930 = vmatpush.msra.mxu0 0.0
  %1931 = vmatpush.msra.mxu0 0.0
  %1932 = vmatpush.msra.mxu0 0.0
  %1933 = vmatpush.msra.mxu0 0.0
  %1934 = vmatpush.msra.mxu0 0.0
  %1935 = vmatpush.msra.mxu0 0.0
  %1936 = vmatpush.msra.mxu0 0.0
  %1937 = vmatpush.msra.mxu0 0.0
  %1938 = vmatpush.msra.mxu0 0.0
  %1939 = vmatpush.msra.mxu0 %v81
  %1940 = vmatmul.f32.gmra.mxu0 %v1901
  %v1941 = vpop.f32.mrf.mxu0
  %v1942 = vadd.f32 0.0, %v1941
  %1943 = vmatmul.f32.gmra.mxu0 %v1904
  %v1944 = vpop.f32.mrf.mxu0
  %v1945 = vadd.f32 0.0, %v1944
  %1946 = vmatmul.f32.gmra.mxu0 %v1907
  %v1947 = vpop.f32.mrf.mxu0
  %v1948 = vadd.f32 0.0, %v1947
  %1949 = vmatmul.f32.gmra.mxu0 %v1910
  %v1950 = vpop.f32.mrf.mxu0
  %v1951 = vadd.f32 0.0, %v1950
  %1952 = vmatmul.f32.gmra.mxu0 %v1913
  %v1953 = vpop.f32.mrf.mxu0
  %v1954 = vadd.f32 0.0, %v1953
  %1955 = vmatmul.f32.gmra.mxu0 %v1916
  %v1956 = vpop.f32.mrf.mxu0
  %v1957 = vadd.f32 0.0, %v1956
  %1958 = vmatmul.f32.gmra.mxu0 %v1919
  %v1959 = vpop.f32.mrf.mxu0
  %v1960 = vadd.f32 0.0, %v1959
  %1961 = vmatmul.f32.gmra.mxu0 %v1922
  %v1962 = vpop.f32.mrf.mxu0
  %v1963 = vadd.f32 0.0, %v1962
  %1964 = vdwg.mxu0
  %v1965 = vadd.f32 %v1341, %v1942
  %v1966 = vadd.f32 %v1344, %v1945
  %v1967 = vadd.f32 %v1347, %v1948
  %v1968 = vadd.f32 %v1350, %v1951
  %v1969 = vadd.f32 %v1353, %v1954
  %v1970 = vadd.f32 %v1356, %v1957
  %v1971 = vadd.f32 %v1359, %v1960
  %v1972 = vadd.f32 %v1362, %v1963
  %1973 = vrot.lane.b32.xlu0 %v146, 72
  %v1974 = vpop.permute.xlu0 %1973
  %1975 = vrot.lane.b32.xlu0 %v146, 104
  %v1976 = vpop.permute.xlu0 %1975
  %v1977 = vsel %vm172, %v1974, 0
  %v1979 = vsel %vm172, %v1976, 0
  %1981 = vmatpush.xpose.msra.mxu0 0.0
  %1982 = vmatpush.xpose.msra.mxu0 0.0
  %1983 = vmatpush.xpose.msra.mxu0 0.0
  %1984 = vmatpush.xpose.msra.mxu0 0.0
  %1985 = vmatpush.xpose.msra.mxu0 0.0
  %1986 = vmatpush.xpose.msra.mxu0 0.0
  %1987 = vmatpush.xpose.msra.mxu0 0.0
  %1988 = vmatpush.xpose.msra.mxu0 0.0
  %1989 = vmatpush.xpose.msra.mxu0 0.0
  %1990 = vmatpush.xpose.msra.mxu0 0.0
  %1991 = vmatpush.xpose.msra.mxu0 0.0
  %1992 = vmatpush.xpose.msra.mxu0 0.0
  %1993 = vmatpush.xpose.msra.mxu0 0.0
  %1994 = vmatpush.xpose.msra.mxu0 0.0
  %1995 = vmatpush.xpose.msra.mxu0 0.0
  %1996 = vmatpush.xpose.msra.mxu0 %v1979
  %1997 = vmatmul.f32.gmra.mxu0 %v1977
  %v1998 = vpop.f32.mrf.mxu0
  %v1999 = vadd.f32 0.0, %v1998
  %2000 = vdwg.mxu0
  %2001 = vrot.lane.b32.xlu0 %v149, 72
  %v2002 = vpop.permute.xlu0 %2001
  %2003 = vrot.lane.b32.xlu0 %v149, 104
  %v2004 = vpop.permute.xlu0 %2003
  %v2005 = vsel %vm172, %v2002, 0
  %v2007 = vsel %vm172, %v2004, 0
  %2009 = vmatpush.xpose.msra.mxu0 0.0
  %2010 = vmatpush.xpose.msra.mxu0 0.0
  %2011 = vmatpush.xpose.msra.mxu0 0.0
  %2012 = vmatpush.xpose.msra.mxu0 0.0
  %2013 = vmatpush.xpose.msra.mxu0 0.0
  %2014 = vmatpush.xpose.msra.mxu0 0.0
  %2015 = vmatpush.xpose.msra.mxu0 0.0
  %2016 = vmatpush.xpose.msra.mxu0 0.0
  %2017 = vmatpush.xpose.msra.mxu0 0.0
  %2018 = vmatpush.xpose.msra.mxu0 0.0
  %2019 = vmatpush.xpose.msra.mxu0 0.0
  %2020 = vmatpush.xpose.msra.mxu0 0.0
  %2021 = vmatpush.xpose.msra.mxu0 0.0
  %2022 = vmatpush.xpose.msra.mxu0 0.0
  %2023 = vmatpush.xpose.msra.mxu0 0.0
  %2024 = vmatpush.xpose.msra.mxu0 %v2007
  %2025 = vmatmul.f32.gmra.mxu0 %v2005
  %v2026 = vpop.f32.mrf.mxu0
  %v2027 = vadd.f32 0.0, %v2026
  %2028 = vdwg.mxu0
  %2029 = vrot.lane.b32.xlu0 %v152, 72
  %v2030 = vpop.permute.xlu0 %2029
  %2031 = vrot.lane.b32.xlu0 %v152, 104
  %v2032 = vpop.permute.xlu0 %2031
  %v2033 = vsel %vm172, %v2030, 0
  %v2035 = vsel %vm172, %v2032, 0
  %2037 = vmatpush.xpose.msra.mxu0 0.0
  %2038 = vmatpush.xpose.msra.mxu0 0.0
  %2039 = vmatpush.xpose.msra.mxu0 0.0
  %2040 = vmatpush.xpose.msra.mxu0 0.0
  %2041 = vmatpush.xpose.msra.mxu0 0.0
  %2042 = vmatpush.xpose.msra.mxu0 0.0
  %2043 = vmatpush.xpose.msra.mxu0 0.0
  %2044 = vmatpush.xpose.msra.mxu0 0.0
  %2045 = vmatpush.xpose.msra.mxu0 0.0
  %2046 = vmatpush.xpose.msra.mxu0 0.0
  %2047 = vmatpush.xpose.msra.mxu0 0.0
  %2048 = vmatpush.xpose.msra.mxu0 0.0
  %2049 = vmatpush.xpose.msra.mxu0 0.0
  %2050 = vmatpush.xpose.msra.mxu0 0.0
  %2051 = vmatpush.xpose.msra.mxu0 0.0
  %2052 = vmatpush.xpose.msra.mxu0 %v2035
  %2053 = vmatmul.f32.gmra.mxu0 %v2033
  %v2054 = vpop.f32.mrf.mxu0
  %v2055 = vadd.f32 0.0, %v2054
  %2056 = vdwg.mxu0
  %2057 = vrot.lane.b32.xlu0 %v155, 72
  %v2058 = vpop.permute.xlu0 %2057
  %2059 = vrot.lane.b32.xlu0 %v155, 104
  %v2060 = vpop.permute.xlu0 %2059
  %v2061 = vsel %vm172, %v2058, 0
  %v2063 = vsel %vm172, %v2060, 0
  %2065 = vmatpush.xpose.msra.mxu0 0.0
  %2066 = vmatpush.xpose.msra.mxu0 0.0
  %2067 = vmatpush.xpose.msra.mxu0 0.0
  %2068 = vmatpush.xpose.msra.mxu0 0.0
  %2069 = vmatpush.xpose.msra.mxu0 0.0
  %2070 = vmatpush.xpose.msra.mxu0 0.0
  %2071 = vmatpush.xpose.msra.mxu0 0.0
  %2072 = vmatpush.xpose.msra.mxu0 0.0
  %2073 = vmatpush.xpose.msra.mxu0 0.0
  %2074 = vmatpush.xpose.msra.mxu0 0.0
  %2075 = vmatpush.xpose.msra.mxu0 0.0
  %2076 = vmatpush.xpose.msra.mxu0 0.0
  %2077 = vmatpush.xpose.msra.mxu0 0.0
  %2078 = vmatpush.xpose.msra.mxu0 0.0
  %2079 = vmatpush.xpose.msra.mxu0 0.0
  %2080 = vmatpush.xpose.msra.mxu0 %v2063
  %2081 = vmatmul.f32.gmra.mxu0 %v2061
  %v2082 = vpop.f32.mrf.mxu0
  %v2083 = vadd.f32 0.0, %v2082
  %2084 = vdwg.mxu0
  %2085 = vrot.lane.b32.xlu0 %v158, 72
  %v2086 = vpop.permute.xlu0 %2085
  %2087 = vrot.lane.b32.xlu0 %v158, 104
  %v2088 = vpop.permute.xlu0 %2087
  %v2089 = vsel %vm172, %v2086, 0
  %v2091 = vsel %vm172, %v2088, 0
  %2093 = vmatpush.xpose.msra.mxu0 0.0
  %2094 = vmatpush.xpose.msra.mxu0 0.0
  %2095 = vmatpush.xpose.msra.mxu0 0.0
  %2096 = vmatpush.xpose.msra.mxu0 0.0
  %2097 = vmatpush.xpose.msra.mxu0 0.0
  %2098 = vmatpush.xpose.msra.mxu0 0.0
  %2099 = vmatpush.xpose.msra.mxu0 0.0
  %2100 = vmatpush.xpose.msra.mxu0 0.0
  %2101 = vmatpush.xpose.msra.mxu0 0.0
  %2102 = vmatpush.xpose.msra.mxu0 0.0
  %2103 = vmatpush.xpose.msra.mxu0 0.0
  %2104 = vmatpush.xpose.msra.mxu0 0.0
  %2105 = vmatpush.xpose.msra.mxu0 0.0
  %2106 = vmatpush.xpose.msra.mxu0 0.0
  %2107 = vmatpush.xpose.msra.mxu0 0.0
  %2108 = vmatpush.xpose.msra.mxu0 %v2091
  %2109 = vmatmul.f32.gmra.mxu0 %v2089
  %v2110 = vpop.f32.mrf.mxu0
  %v2111 = vadd.f32 0.0, %v2110
  %2112 = vdwg.mxu0
  %2113 = vrot.lane.b32.xlu0 %v161, 72
  %v2114 = vpop.permute.xlu0 %2113
  %2115 = vrot.lane.b32.xlu0 %v161, 104
  %v2116 = vpop.permute.xlu0 %2115
  %v2117 = vsel %vm172, %v2114, 0
  %v2119 = vsel %vm172, %v2116, 0
  %2121 = vmatpush.xpose.msra.mxu0 0.0
  %2122 = vmatpush.xpose.msra.mxu0 0.0
  %2123 = vmatpush.xpose.msra.mxu0 0.0
  %2124 = vmatpush.xpose.msra.mxu0 0.0
  %2125 = vmatpush.xpose.msra.mxu0 0.0
  %2126 = vmatpush.xpose.msra.mxu0 0.0
  %2127 = vmatpush.xpose.msra.mxu0 0.0
  %2128 = vmatpush.xpose.msra.mxu0 0.0
  %2129 = vmatpush.xpose.msra.mxu0 0.0
  %2130 = vmatpush.xpose.msra.mxu0 0.0
  %2131 = vmatpush.xpose.msra.mxu0 0.0
  %2132 = vmatpush.xpose.msra.mxu0 0.0
  %2133 = vmatpush.xpose.msra.mxu0 0.0
  %2134 = vmatpush.xpose.msra.mxu0 0.0
  %2135 = vmatpush.xpose.msra.mxu0 0.0
  %2136 = vmatpush.xpose.msra.mxu0 %v2119
  %2137 = vmatmul.f32.gmra.mxu0 %v2117
  %v2138 = vpop.f32.mrf.mxu0
  %v2139 = vadd.f32 0.0, %v2138
  %2140 = vdwg.mxu0
  %2141 = vrot.lane.b32.xlu0 %v164, 72
  %v2142 = vpop.permute.xlu0 %2141
  %2143 = vrot.lane.b32.xlu0 %v164, 104
  %v2144 = vpop.permute.xlu0 %2143
  %v2145 = vsel %vm172, %v2142, 0
  %v2147 = vsel %vm172, %v2144, 0
  %2149 = vmatpush.xpose.msra.mxu0 0.0
  %2150 = vmatpush.xpose.msra.mxu0 0.0
  %2151 = vmatpush.xpose.msra.mxu0 0.0
  %2152 = vmatpush.xpose.msra.mxu0 0.0
  %2153 = vmatpush.xpose.msra.mxu0 0.0
  %2154 = vmatpush.xpose.msra.mxu0 0.0
  %2155 = vmatpush.xpose.msra.mxu0 0.0
  %2156 = vmatpush.xpose.msra.mxu0 0.0
  %2157 = vmatpush.xpose.msra.mxu0 0.0
  %2158 = vmatpush.xpose.msra.mxu0 0.0
  %2159 = vmatpush.xpose.msra.mxu0 0.0
  %2160 = vmatpush.xpose.msra.mxu0 0.0
  %2161 = vmatpush.xpose.msra.mxu0 0.0
  %2162 = vmatpush.xpose.msra.mxu0 0.0
  %2163 = vmatpush.xpose.msra.mxu0 0.0
  %2164 = vmatpush.xpose.msra.mxu0 %v2147
  %2165 = vmatmul.f32.gmra.mxu0 %v2145
  %v2166 = vpop.f32.mrf.mxu0
  %v2167 = vadd.f32 0.0, %v2166
  %2168 = vdwg.mxu0
  %2169 = vrot.lane.b32.xlu0 %v167, 72
  %v2170 = vpop.permute.xlu0 %2169
  %2171 = vrot.lane.b32.xlu0 %v167, 104
  %v2172 = vpop.permute.xlu0 %2171
  %v2173 = vsel %vm172, %v2170, 0
  %v2175 = vsel %vm172, %v2172, 0
  %2177 = vmatpush.xpose.msra.mxu0 0.0
  %2178 = vmatpush.xpose.msra.mxu0 0.0
  %2179 = vmatpush.xpose.msra.mxu0 0.0
  %2180 = vmatpush.xpose.msra.mxu0 0.0
  %2181 = vmatpush.xpose.msra.mxu0 0.0
  %2182 = vmatpush.xpose.msra.mxu0 0.0
  %2183 = vmatpush.xpose.msra.mxu0 0.0
  %2184 = vmatpush.xpose.msra.mxu0 0.0
  %2185 = vmatpush.xpose.msra.mxu0 0.0
  %2186 = vmatpush.xpose.msra.mxu0 0.0
  %2187 = vmatpush.xpose.msra.mxu0 0.0
  %2188 = vmatpush.xpose.msra.mxu0 0.0
  %2189 = vmatpush.xpose.msra.mxu0 0.0
  %2190 = vmatpush.xpose.msra.mxu0 0.0
  %2191 = vmatpush.xpose.msra.mxu0 0.0
  %2192 = vmatpush.xpose.msra.mxu0 %v2175
  %2193 = vmatmul.f32.gmra.mxu0 %v2173
  %v2194 = vpop.f32.mrf.mxu0
  %v2195 = vadd.f32 0.0, %v2194
  %2196 = vdwg.mxu0
  %v2197 = vmul.f32 %v1999, 0.35355338
  %v2198 = vmul.f32 %v2027, 0.35355338
  %v2199 = vmul.f32 %v2055, 0.35355338
  %v2200 = vmul.f32 %v2083, 0.35355338
  %v2201 = vmul.f32 %v2111, 0.35355338
  %v2202 = vmul.f32 %v2139, 0.35355338
  %v2203 = vmul.f32 %v2167, 0.35355338
  %v2204 = vmul.f32 %v2195, 0.35355338
  %v2205 = vadd.f32 %v2197, %v73
  %v2206 = vadd.f32 %v2198, %v73
  %v2207 = vadd.f32 %v2199, %v73
  %v2208 = vadd.f32 %v2200, %v73
  %v2209 = vadd.f32 %v2201, %v73
  %v2210 = vadd.f32 %v2202, %v73
  %v2211 = vadd.f32 %v2203, %v73
  %v2212 = vadd.f32 %v2204, %v73
  %v2213 = vsel %vm172, %v2205, -inf
  %2214 = vmax.xlane.f32.xlu0 %v2213
  %v2215 = vpop.xlane.xlu0 %2214
  %v2216 = vsel %vm172, %v2206, -inf
  %2217 = vmax.xlane.f32.xlu0 %v2216
  %v2218 = vpop.xlane.xlu0 %2217
  %v2219 = vsel %vm172, %v2207, -inf
  %2220 = vmax.xlane.f32.xlu0 %v2219
  %v2221 = vpop.xlane.xlu0 %2220
  %v2222 = vsel %vm172, %v2208, -inf
  %2223 = vmax.xlane.f32.xlu0 %v2222
  %v2224 = vpop.xlane.xlu0 %2223
  %v2225 = vsel %vm172, %v2209, -inf
  %2226 = vmax.xlane.f32.xlu0 %v2225
  %v2227 = vpop.xlane.xlu0 %2226
  %v2228 = vsel %vm172, %v2210, -inf
  %2229 = vmax.xlane.f32.xlu0 %v2228
  %v2230 = vpop.xlane.xlu0 %2229
  %v2231 = vsel %vm172, %v2211, -inf
  %2232 = vmax.xlane.f32.xlu0 %v2231
  %v2233 = vpop.xlane.xlu0 %2232
  %v2234 = vsel %vm172, %v2212, -inf
  %2235 = vmax.xlane.f32.xlu0 %v2234
  %v2236 = vpop.xlane.xlu0 %2235
  %v2237 = vsub.f32 %v2205, %v2215
  %v2238 = vsub.f32 %v2206, %v2218
  %v2239 = vsub.f32 %v2207, %v2221
  %v2240 = vsub.f32 %v2208, %v2224
  %v2241 = vsub.f32 %v2209, %v2227
  %v2242 = vsub.f32 %v2210, %v2230
  %v2243 = vsub.f32 %v2211, %v2233
  %v2244 = vsub.f32 %v2212, %v2236
  %v2245 = vmul.f32 %v2237, 1.442695
  %v2246 = vpow.pop %v2245
  %v2247 = vmul.f32 %v2238, 1.442695
  %v2248 = vpow.pop %v2247
  %v2249 = vmul.f32 %v2239, 1.442695
  %v2250 = vpow.pop %v2249
  %v2251 = vmul.f32 %v2240, 1.442695
  %v2252 = vpow.pop %v2251
  %v2253 = vmul.f32 %v2241, 1.442695
  %v2254 = vpow.pop %v2253
  %v2255 = vmul.f32 %v2242, 1.442695
  %v2256 = vpow.pop %v2255
  %v2257 = vmul.f32 %v2243, 1.442695
  %v2258 = vpow.pop %v2257
  %v2259 = vmul.f32 %v2244, 1.442695
  %v2260 = vpow.pop %v2259
  %v2261 = vsel %vm172, %v2246, 0.0
  %2262 = vadd.xlane.f32.xlu0 %v2261
  %v2263 = vpop.xlane.xlu0 %2262
  %v2264 = vsel %vm172, %v2248, 0.0
  %2265 = vadd.xlane.f32.xlu0 %v2264
  %v2266 = vpop.xlane.xlu0 %2265
  %v2267 = vsel %vm172, %v2250, 0.0
  %2268 = vadd.xlane.f32.xlu0 %v2267
  %v2269 = vpop.xlane.xlu0 %2268
  %v2270 = vsel %vm172, %v2252, 0.0
  %2271 = vadd.xlane.f32.xlu0 %v2270
  %v2272 = vpop.xlane.xlu0 %2271
  %v2273 = vsel %vm172, %v2254, 0.0
  %2274 = vadd.xlane.f32.xlu0 %v2273
  %v2275 = vpop.xlane.xlu0 %2274
  %v2276 = vsel %vm172, %v2256, 0.0
  %2277 = vadd.xlane.f32.xlu0 %v2276
  %v2278 = vpop.xlane.xlu0 %2277
  %v2279 = vsel %vm172, %v2258, 0.0
  %2280 = vadd.xlane.f32.xlu0 %v2279
  %v2281 = vpop.xlane.xlu0 %2280
  %v2282 = vsel %vm172, %v2260, 0.0
  %2283 = vadd.xlane.f32.xlu0 %v2282
  %v2284 = vpop.xlane.xlu0 %2283
  %v2285 = vrcp.pop %v2263
  %v2286 = vrcp.pop %v2266
  %v2287 = vrcp.pop %v2269
  %v2288 = vrcp.pop %v2272
  %v2289 = vrcp.pop %v2275
  %v2290 = vrcp.pop %v2278
  %v2291 = vrcp.pop %v2281
  %v2292 = vrcp.pop %v2284
  %v2293 = vmul.f32 %v2246, %v2285
  %v2294 = vmul.f32 %v2248, %v2286
  %v2295 = vmul.f32 %v2250, %v2287
  %v2296 = vmul.f32 %v2252, %v2288
  %v2297 = vmul.f32 %v2254, %v2289
  %v2298 = vmul.f32 %v2256, %v2290
  %v2299 = vmul.f32 %v2258, %v2291
  %v2300 = vmul.f32 %v2260, %v2292
  %2301 = vrot.lane.b32.xlu0 %v146, 40
  %v2302 = vpop.permute.xlu0 %2301
  %v2305 = vsel %vm172, %v2293, 0
  %2307 = vmatpush.msra.mxu0 0.0
  %2308 = vmatpush.msra.mxu0 0.0
  %2309 = vmatpush.msra.mxu0 0.0
  %2310 = vmatpush.msra.mxu0 0.0
  %2311 = vmatpush.msra.mxu0 0.0
  %2312 = vmatpush.msra.mxu0 0.0
  %2313 = vmatpush.msra.mxu0 0.0
  %2314 = vmatpush.msra.mxu0 0.0
  %2315 = vmatpush.msra.mxu0 0.0
  %2316 = vmatpush.msra.mxu0 0.0
  %2317 = vmatpush.msra.mxu0 0.0
  %2318 = vmatpush.msra.mxu0 0.0
  %2319 = vmatpush.msra.mxu0 0.0
  %2320 = vmatpush.msra.mxu0 0.0
  %2321 = vmatpush.msra.mxu0 0.0
  %2322 = vmatpush.msra.mxu0 %v2302
  %2323 = vmatmul.f32.gmra.mxu0 %v2305
  %v2324 = vpop.f32.mrf.mxu0
  %v2325 = vadd.f32 0.0, %v2324
  %2326 = vdwg.mxu0
  %2327 = vrot.lane.b32.xlu0 %v149, 40
  %v2328 = vpop.permute.xlu0 %2327
  %v2331 = vsel %vm172, %v2294, 0
  %2333 = vmatpush.msra.mxu0 0.0
  %2334 = vmatpush.msra.mxu0 0.0
  %2335 = vmatpush.msra.mxu0 0.0
  %2336 = vmatpush.msra.mxu0 0.0
  %2337 = vmatpush.msra.mxu0 0.0
  %2338 = vmatpush.msra.mxu0 0.0
  %2339 = vmatpush.msra.mxu0 0.0
  %2340 = vmatpush.msra.mxu0 0.0
  %2341 = vmatpush.msra.mxu0 0.0
  %2342 = vmatpush.msra.mxu0 0.0
  %2343 = vmatpush.msra.mxu0 0.0
  %2344 = vmatpush.msra.mxu0 0.0
  %2345 = vmatpush.msra.mxu0 0.0
  %2346 = vmatpush.msra.mxu0 0.0
  %2347 = vmatpush.msra.mxu0 0.0
  %2348 = vmatpush.msra.mxu0 %v2328
  %2349 = vmatmul.f32.gmra.mxu0 %v2331
  %v2350 = vpop.f32.mrf.mxu0
  %v2351 = vadd.f32 0.0, %v2350
  %2352 = vdwg.mxu0
  %2353 = vrot.lane.b32.xlu0 %v152, 40
  %v2354 = vpop.permute.xlu0 %2353
  %v2357 = vsel %vm172, %v2295, 0
  %2359 = vmatpush.msra.mxu0 0.0
  %2360 = vmatpush.msra.mxu0 0.0
  %2361 = vmatpush.msra.mxu0 0.0
  %2362 = vmatpush.msra.mxu0 0.0
  %2363 = vmatpush.msra.mxu0 0.0
  %2364 = vmatpush.msra.mxu0 0.0
  %2365 = vmatpush.msra.mxu0 0.0
  %2366 = vmatpush.msra.mxu0 0.0
  %2367 = vmatpush.msra.mxu0 0.0
  %2368 = vmatpush.msra.mxu0 0.0
  %2369 = vmatpush.msra.mxu0 0.0
  %2370 = vmatpush.msra.mxu0 0.0
  %2371 = vmatpush.msra.mxu0 0.0
  %2372 = vmatpush.msra.mxu0 0.0
  %2373 = vmatpush.msra.mxu0 0.0
  %2374 = vmatpush.msra.mxu0 %v2354
  %2375 = vmatmul.f32.gmra.mxu0 %v2357
  %v2376 = vpop.f32.mrf.mxu0
  %v2377 = vadd.f32 0.0, %v2376
  %2378 = vdwg.mxu0
  %2379 = vrot.lane.b32.xlu0 %v155, 40
  %v2380 = vpop.permute.xlu0 %2379
  %v2383 = vsel %vm172, %v2296, 0
  %2385 = vmatpush.msra.mxu0 0.0
  %2386 = vmatpush.msra.mxu0 0.0
  %2387 = vmatpush.msra.mxu0 0.0
  %2388 = vmatpush.msra.mxu0 0.0
  %2389 = vmatpush.msra.mxu0 0.0
  %2390 = vmatpush.msra.mxu0 0.0
  %2391 = vmatpush.msra.mxu0 0.0
  %2392 = vmatpush.msra.mxu0 0.0
  %2393 = vmatpush.msra.mxu0 0.0
  %2394 = vmatpush.msra.mxu0 0.0
  %2395 = vmatpush.msra.mxu0 0.0
  %2396 = vmatpush.msra.mxu0 0.0
  %2397 = vmatpush.msra.mxu0 0.0
  %2398 = vmatpush.msra.mxu0 0.0
  %2399 = vmatpush.msra.mxu0 0.0
  %2400 = vmatpush.msra.mxu0 %v2380
  %2401 = vmatmul.f32.gmra.mxu0 %v2383
  %v2402 = vpop.f32.mrf.mxu0
  %v2403 = vadd.f32 0.0, %v2402
  %2404 = vdwg.mxu0
  %2405 = vrot.lane.b32.xlu0 %v158, 40
  %v2406 = vpop.permute.xlu0 %2405
  %v2409 = vsel %vm172, %v2297, 0
  %2411 = vmatpush.msra.mxu0 0.0
  %2412 = vmatpush.msra.mxu0 0.0
  %2413 = vmatpush.msra.mxu0 0.0
  %2414 = vmatpush.msra.mxu0 0.0
  %2415 = vmatpush.msra.mxu0 0.0
  %2416 = vmatpush.msra.mxu0 0.0
  %2417 = vmatpush.msra.mxu0 0.0
  %2418 = vmatpush.msra.mxu0 0.0
  %2419 = vmatpush.msra.mxu0 0.0
  %2420 = vmatpush.msra.mxu0 0.0
  %2421 = vmatpush.msra.mxu0 0.0
  %2422 = vmatpush.msra.mxu0 0.0
  %2423 = vmatpush.msra.mxu0 0.0
  %2424 = vmatpush.msra.mxu0 0.0
  %2425 = vmatpush.msra.mxu0 0.0
  %2426 = vmatpush.msra.mxu0 %v2406
  %2427 = vmatmul.f32.gmra.mxu0 %v2409
  %v2428 = vpop.f32.mrf.mxu0
  %v2429 = vadd.f32 0.0, %v2428
  %2430 = vdwg.mxu0
  %2431 = vrot.lane.b32.xlu0 %v161, 40
  %v2432 = vpop.permute.xlu0 %2431
  %v2435 = vsel %vm172, %v2298, 0
  %2437 = vmatpush.msra.mxu0 0.0
  %2438 = vmatpush.msra.mxu0 0.0
  %2439 = vmatpush.msra.mxu0 0.0
  %2440 = vmatpush.msra.mxu0 0.0
  %2441 = vmatpush.msra.mxu0 0.0
  %2442 = vmatpush.msra.mxu0 0.0
  %2443 = vmatpush.msra.mxu0 0.0
  %2444 = vmatpush.msra.mxu0 0.0
  %2445 = vmatpush.msra.mxu0 0.0
  %2446 = vmatpush.msra.mxu0 0.0
  %2447 = vmatpush.msra.mxu0 0.0
  %2448 = vmatpush.msra.mxu0 0.0
  %2449 = vmatpush.msra.mxu0 0.0
  %2450 = vmatpush.msra.mxu0 0.0
  %2451 = vmatpush.msra.mxu0 0.0
  %2452 = vmatpush.msra.mxu0 %v2432
  %2453 = vmatmul.f32.gmra.mxu0 %v2435
  %v2454 = vpop.f32.mrf.mxu0
  %v2455 = vadd.f32 0.0, %v2454
  %2456 = vdwg.mxu0
  %2457 = vrot.lane.b32.xlu0 %v164, 40
  %v2458 = vpop.permute.xlu0 %2457
  %v2461 = vsel %vm172, %v2299, 0
  %2463 = vmatpush.msra.mxu0 0.0
  %2464 = vmatpush.msra.mxu0 0.0
  %2465 = vmatpush.msra.mxu0 0.0
  %2466 = vmatpush.msra.mxu0 0.0
  %2467 = vmatpush.msra.mxu0 0.0
  %2468 = vmatpush.msra.mxu0 0.0
  %2469 = vmatpush.msra.mxu0 0.0
  %2470 = vmatpush.msra.mxu0 0.0
  %2471 = vmatpush.msra.mxu0 0.0
  %2472 = vmatpush.msra.mxu0 0.0
  %2473 = vmatpush.msra.mxu0 0.0
  %2474 = vmatpush.msra.mxu0 0.0
  %2475 = vmatpush.msra.mxu0 0.0
  %2476 = vmatpush.msra.mxu0 0.0
  %2477 = vmatpush.msra.mxu0 0.0
  %2478 = vmatpush.msra.mxu0 %v2458
  %2479 = vmatmul.f32.gmra.mxu0 %v2461
  %v2480 = vpop.f32.mrf.mxu0
  %v2481 = vadd.f32 0.0, %v2480
  %2482 = vdwg.mxu0
  %2483 = vrot.lane.b32.xlu0 %v167, 40
  %v2484 = vpop.permute.xlu0 %2483
  %v2487 = vsel %vm172, %v2300, 0
  %2489 = vmatpush.msra.mxu0 0.0
  %2490 = vmatpush.msra.mxu0 0.0
  %2491 = vmatpush.msra.mxu0 0.0
  %2492 = vmatpush.msra.mxu0 0.0
  %2493 = vmatpush.msra.mxu0 0.0
  %2494 = vmatpush.msra.mxu0 0.0
  %2495 = vmatpush.msra.mxu0 0.0
  %2496 = vmatpush.msra.mxu0 0.0
  %2497 = vmatpush.msra.mxu0 0.0
  %2498 = vmatpush.msra.mxu0 0.0
  %2499 = vmatpush.msra.mxu0 0.0
  %2500 = vmatpush.msra.mxu0 0.0
  %2501 = vmatpush.msra.mxu0 0.0
  %2502 = vmatpush.msra.mxu0 0.0
  %2503 = vmatpush.msra.mxu0 0.0
  %2504 = vmatpush.msra.mxu0 %v2484
  %2505 = vmatmul.f32.gmra.mxu0 %v2487
  %v2506 = vpop.f32.mrf.mxu0
  %v2507 = vadd.f32 0.0, %v2506
  %2508 = vdwg.mxu0
  %v2510 = vsel %vm172, %v2325, 0
  %v2513 = vsel %vm172, %v2351, 0
  %v2516 = vsel %vm172, %v2377, 0
  %v2519 = vsel %vm172, %v2403, 0
  %v2522 = vsel %vm172, %v2429, 0
  %v2525 = vsel %vm172, %v2455, 0
  %v2528 = vsel %vm172, %v2481, 0
  %v2531 = vsel %vm172, %v2507, 0
  %2533 = vmatpush.msra.mxu0 0.0
  %2534 = vmatpush.msra.mxu0 0.0
  %2535 = vmatpush.msra.mxu0 0.0
  %2536 = vmatpush.msra.mxu0 0.0
  %2537 = vmatpush.msra.mxu0 0.0
  %2538 = vmatpush.msra.mxu0 0.0
  %2539 = vmatpush.msra.mxu0 0.0
  %2540 = vmatpush.msra.mxu0 0.0
  %2541 = vmatpush.msra.mxu0 0.0
  %2542 = vmatpush.msra.mxu0 0.0
  %2543 = vmatpush.msra.mxu0 0.0
  %2544 = vmatpush.msra.mxu0 0.0
  %2545 = vmatpush.msra.mxu0 0.0
  %2546 = vmatpush.msra.mxu0 0.0
  %2547 = vmatpush.msra.mxu0 0.0
  %2548 = vmatpush.msra.mxu0 %v82
  %2549 = vmatmul.f32.gmra.mxu0 %v2510
  %v2550 = vpop.f32.mrf.mxu0
  %v2551 = vadd.f32 0.0, %v2550
  %2552 = vmatmul.f32.gmra.mxu0 %v2513
  %v2553 = vpop.f32.mrf.mxu0
  %v2554 = vadd.f32 0.0, %v2553
  %2555 = vmatmul.f32.gmra.mxu0 %v2516
  %v2556 = vpop.f32.mrf.mxu0
  %v2557 = vadd.f32 0.0, %v2556
  %2558 = vmatmul.f32.gmra.mxu0 %v2519
  %v2559 = vpop.f32.mrf.mxu0
  %v2560 = vadd.f32 0.0, %v2559
  %2561 = vmatmul.f32.gmra.mxu0 %v2522
  %v2562 = vpop.f32.mrf.mxu0
  %v2563 = vadd.f32 0.0, %v2562
  %2564 = vmatmul.f32.gmra.mxu0 %v2525
  %v2565 = vpop.f32.mrf.mxu0
  %v2566 = vadd.f32 0.0, %v2565
  %2567 = vmatmul.f32.gmra.mxu0 %v2528
  %v2568 = vpop.f32.mrf.mxu0
  %v2569 = vadd.f32 0.0, %v2568
  %2570 = vmatmul.f32.gmra.mxu0 %v2531
  %v2571 = vpop.f32.mrf.mxu0
  %v2572 = vadd.f32 0.0, %v2571
  %2573 = vdwg.mxu0
  %v2574 = vadd.f32 %v1965, %v2551
  %v2575 = vadd.f32 %v1966, %v2554
  %v2576 = vadd.f32 %v1967, %v2557
  %v2577 = vadd.f32 %v1968, %v2560
  %v2578 = vadd.f32 %v1969, %v2563
  %v2579 = vadd.f32 %v1970, %v2566
  %v2580 = vadd.f32 %v1971, %v2569
  %v2581 = vadd.f32 %v1972, %v2572
  %v2582 = vadd.f32 %v62, %v2574
  %v2583 = vadd.f32 %v63, %v2575
  %v2584 = vadd.f32 %v64, %v2576
  %v2585 = vadd.f32 %v65, %v2577
  %v2586 = vadd.f32 %v66, %v2578
  %v2587 = vadd.f32 %v67, %v2579
  %v2588 = vadd.f32 %v68, %v2580
  %v2589 = vadd.f32 %v69, %v2581
  %v2591 = vperm.slane %v83, 0
  %v2593 = vadd.f32 %v2582, %v2591
  %v2594 = vadd.f32 %v2583, %v2591
  %v2595 = vadd.f32 %v2584, %v2591
  %v2596 = vadd.f32 %v2585, %v2591
  %v2597 = vadd.f32 %v2586, %v2591
  %v2598 = vadd.f32 %v2587, %v2591
  %v2599 = vadd.f32 %v2588, %v2591
  %v2600 = vadd.f32 %v2589, %v2591
  %v2601 = vsel %vm103, %v2593, 0.0
  %2602 = vadd.xlane.f32.xlu0 %v2601
  %v2603 = vpop.xlane.xlu0 %2602
  %v2604 = vsel %vm103, %v2594, 0.0
  %2605 = vadd.xlane.f32.xlu0 %v2604
  %v2606 = vpop.xlane.xlu0 %2605
  %v2607 = vsel %vm103, %v2595, 0.0
  %2608 = vadd.xlane.f32.xlu0 %v2607
  %v2609 = vpop.xlane.xlu0 %2608
  %v2610 = vsel %vm103, %v2596, 0.0
  %2611 = vadd.xlane.f32.xlu0 %v2610
  %v2612 = vpop.xlane.xlu0 %2611
  %v2613 = vsel %vm103, %v2597, 0.0
  %2614 = vadd.xlane.f32.xlu0 %v2613
  %v2615 = vpop.xlane.xlu0 %2614
  %v2616 = vsel %vm103, %v2598, 0.0
  %2617 = vadd.xlane.f32.xlu0 %v2616
  %v2618 = vpop.xlane.xlu0 %2617
  %v2619 = vsel %vm103, %v2599, 0.0
  %2620 = vadd.xlane.f32.xlu0 %v2619
  %v2621 = vpop.xlane.xlu0 %2620
  %v2622 = vsel %vm103, %v2600, 0.0
  %2623 = vadd.xlane.f32.xlu0 %v2622
  %v2624 = vpop.xlane.xlu0 %2623
  %v2625 = vrcp.pop 32.0
  %v2626 = vmul.f32 32.0, %v2625
  %v2627 = vsub.f32 1.0, %v2626
  %v2628 = vmul.f32 %v2625, %v2627
  %v2629 = vadd.f32 %v2625, %v2628
  %vm2630 = vweird.f32 %v2625
  %v2631 = vsel %vm2630, %v2625, %v2629
  %v2632 = vmul.f32 %v2603, %v2631
  %v2633 = vmul.f32 %v2606, %v2631
  %v2634 = vmul.f32 %v2609, %v2631
  %v2635 = vmul.f32 %v2612, %v2631
  %v2636 = vmul.f32 %v2615, %v2631
  %v2637 = vmul.f32 %v2618, %v2631
  %v2638 = vmul.f32 %v2621, %v2631
  %v2639 = vmul.f32 %v2624, %v2631
  %v2640 = vsub.f32 %v2593, %v2632
  %v2641 = vsub.f32 %v2594, %v2633
  %v2642 = vsub.f32 %v2595, %v2634
  %v2643 = vsub.f32 %v2596, %v2635
  %v2644 = vsub.f32 %v2597, %v2636
  %v2645 = vsub.f32 %v2598, %v2637
  %v2646 = vsub.f32 %v2599, %v2638
  %v2647 = vsub.f32 %v2600, %v2639
  %v2648 = vmul.f32 %v2640, %v2640
  %v2649 = vmul.f32 %v2641, %v2641
  %v2650 = vmul.f32 %v2642, %v2642
  %v2651 = vmul.f32 %v2643, %v2643
  %v2652 = vmul.f32 %v2644, %v2644
  %v2653 = vmul.f32 %v2645, %v2645
  %v2654 = vmul.f32 %v2646, %v2646
  %v2655 = vmul.f32 %v2647, %v2647
  %v2656 = vsel %vm103, %v2648, 0.0
  %2657 = vadd.xlane.f32.xlu0 %v2656
  %v2658 = vpop.xlane.xlu0 %2657
  %v2659 = vsel %vm103, %v2649, 0.0
  %2660 = vadd.xlane.f32.xlu0 %v2659
  %v2661 = vpop.xlane.xlu0 %2660
  %v2662 = vsel %vm103, %v2650, 0.0
  %2663 = vadd.xlane.f32.xlu0 %v2662
  %v2664 = vpop.xlane.xlu0 %2663
  %v2665 = vsel %vm103, %v2651, 0.0
  %2666 = vadd.xlane.f32.xlu0 %v2665
  %v2667 = vpop.xlane.xlu0 %2666
  %v2668 = vsel %vm103, %v2652, 0.0
  %2669 = vadd.xlane.f32.xlu0 %v2668
  %v2670 = vpop.xlane.xlu0 %2669
  %v2671 = vsel %vm103, %v2653, 0.0
  %2672 = vadd.xlane.f32.xlu0 %v2671
  %v2673 = vpop.xlane.xlu0 %2672
  %v2674 = vsel %vm103, %v2654, 0.0
  %2675 = vadd.xlane.f32.xlu0 %v2674
  %v2676 = vpop.xlane.xlu0 %2675
  %v2677 = vsel %vm103, %v2655, 0.0
  %2678 = vadd.xlane.f32.xlu0 %v2677
  %v2679 = vpop.xlane.xlu0 %2678
  %v2680 = vmul.f32 %v2658, %v2631
  %v2681 = vmul.f32 %v2661, %v2631
  %v2682 = vmul.f32 %v2664, %v2631
  %v2683 = vmul.f32 %v2667, %v2631
  %v2684 = vmul.f32 %v2670, %v2631
  %v2685 = vmul.f32 %v2673, %v2631
  %v2686 = vmul.f32 %v2676, %v2631
  %v2687 = vmul.f32 %v2679, %v2631
  %v2688 = vadd.f32 %v2680, 1e-05
  %v2689 = vadd.f32 %v2681, 1e-05
  %v2690 = vadd.f32 %v2682, 1e-05
  %v2691 = vadd.f32 %v2683, 1e-05
  %v2692 = vadd.f32 %v2684, 1e-05
  %v2693 = vadd.f32 %v2685, 1e-05
  %v2694 = vadd.f32 %v2686, 1e-05
  %v2695 = vadd.f32 %v2687, 1e-05
  %v2696 = vrsqrt.pop %v2688
  %v2697 = vmul.f32 %v2696, %v2688
  %v2698 = vmul.f32 %v2697, %v2696
  %v2699 = vmul.f32 0.5, %v2698
  %v2700 = vsub.f32 1.5, %v2699
  %v2701 = vmul.f32 %v2696, %v2700
  %vm2702 = vweird.f32 %v2688
  %vm2703 = vweird.f32 %v2696
  %vm2704 = vmor %vm2702, %vm2703
  %v2705 = vsel %vm2704, %v2696, %v2701
  %v2706 = vrsqrt.pop %v2689
  %v2707 = vmul.f32 %v2706, %v2689
  %v2708 = vmul.f32 %v2707, %v2706
  %v2709 = vmul.f32 0.5, %v2708
  %v2710 = vsub.f32 1.5, %v2709
  %v2711 = vmul.f32 %v2706, %v2710
  %vm2712 = vweird.f32 %v2689
  %vm2713 = vweird.f32 %v2706
  %vm2714 = vmor %vm2712, %vm2713
  %v2715 = vsel %vm2714, %v2706, %v2711
  %v2716 = vrsqrt.pop %v2690
  %v2717 = vmul.f32 %v2716, %v2690
  %v2718 = vmul.f32 %v2717, %v2716
  %v2719 = vmul.f32 0.5, %v2718
  %v2720 = vsub.f32 1.5, %v2719
  %v2721 = vmul.f32 %v2716, %v2720
  %vm2722 = vweird.f32 %v2690
  %vm2723 = vweird.f32 %v2716
  %vm2724 = vmor %vm2722, %vm2723
  %v2725 = vsel %vm2724, %v2716, %v2721
  %v2726 = vrsqrt.pop %v2691
  %v2727 = vmul.f32 %v2726, %v2691
  %v2728 = vmul.f32 %v2727, %v2726
  %v2729 = vmul.f32 0.5, %v2728
  %v2730 = vsub.f32 1.5, %v2729
  %v2731 = vmul.f32 %v2726, %v2730
  %vm2732 = vweird.f32 %v2691
  %vm2733 = vweird.f32 %v2726
  %vm2734 = vmor %vm2732, %vm2733
  %v2735 = vsel %vm2734, %v2726, %v2731
  %v2736 = vrsqrt.pop %v2692
  %v2737 = vmul.f32 %v2736, %v2692
  %v2738 = vmul.f32 %v2737, %v2736
  %v2739 = vmul.f32 0.5, %v2738
  %v2740 = vsub.f32 1.5, %v2739
  %v2741 = vmul.f32 %v2736, %v2740
  %vm2742 = vweird.f32 %v2692
  %vm2743 = vweird.f32 %v2736
  %vm2744 = vmor %vm2742, %vm2743
  %v2745 = vsel %vm2744, %v2736, %v2741
  %v2746 = vrsqrt.pop %v2693
  %v2747 = vmul.f32 %v2746, %v2693
  %v2748 = vmul.f32 %v2747, %v2746
  %v2749 = vmul.f32 0.5, %v2748
  %v2750 = vsub.f32 1.5, %v2749
  %v2751 = vmul.f32 %v2746, %v2750
  %vm2752 = vweird.f32 %v2693
  %vm2753 = vweird.f32 %v2746
  %vm2754 = vmor %vm2752, %vm2753
  %v2755 = vsel %vm2754, %v2746, %v2751
  %v2756 = vrsqrt.pop %v2694
  %v2757 = vmul.f32 %v2756, %v2694
  %v2758 = vmul.f32 %v2757, %v2756
  %v2759 = vmul.f32 0.5, %v2758
  %v2760 = vsub.f32 1.5, %v2759
  %v2761 = vmul.f32 %v2756, %v2760
  %vm2762 = vweird.f32 %v2694
  %vm2763 = vweird.f32 %v2756
  %vm2764 = vmor %vm2762, %vm2763
  %v2765 = vsel %vm2764, %v2756, %v2761
  %v2766 = vrsqrt.pop %v2695
  %v2767 = vmul.f32 %v2766, %v2695
  %v2768 = vmul.f32 %v2767, %v2766
  %v2769 = vmul.f32 0.5, %v2768
  %v2770 = vsub.f32 1.5, %v2769
  %v2771 = vmul.f32 %v2766, %v2770
  %vm2772 = vweird.f32 %v2695
  %vm2773 = vweird.f32 %v2766
  %vm2774 = vmor %vm2772, %vm2773
  %v2775 = vsel %vm2774, %v2766, %v2771
  %v2776 = vmul.f32 %v2640, %v2705
  %v2777 = vmul.f32 %v2641, %v2715
  %v2778 = vmul.f32 %v2642, %v2725
  %v2779 = vmul.f32 %v2643, %v2735
  %v2780 = vmul.f32 %v2644, %v2745
  %v2781 = vmul.f32 %v2645, %v2755
  %v2782 = vmul.f32 %v2646, %v2765
  %v2783 = vmul.f32 %v2647, %v2775
  %v2785 = vperm.slane %v84, 0
  %v2787 = vmul.f32 %v2776, %v2785
  %v2788 = vmul.f32 %v2777, %v2785
  %v2789 = vmul.f32 %v2778, %v2785
  %v2790 = vmul.f32 %v2779, %v2785
  %v2791 = vmul.f32 %v2780, %v2785
  %v2792 = vmul.f32 %v2781, %v2785
  %v2793 = vmul.f32 %v2782, %v2785
  %v2794 = vmul.f32 %v2783, %v2785
  %v2796 = vperm.slane %v85, 0
  %v2798 = vadd.f32 %v2787, %v2796
  %v2799 = vadd.f32 %v2788, %v2796
  %v2800 = vadd.f32 %v2789, %v2796
  %v2801 = vadd.f32 %v2790, %v2796
  %v2802 = vadd.f32 %v2791, %v2796
  %v2803 = vadd.f32 %v2792, %v2796
  %v2804 = vadd.f32 %v2793, %v2796
  %v2805 = vadd.f32 %v2794, %v2796
  %v2807 = vperm.slane %v90, 0
  %v2810 = vsel %vm103, %v2798, 0
  %v2813 = vsel %vm103, %v2799, 0
  %v2816 = vsel %vm103, %v2800, 0
  %v2819 = vsel %vm103, %v2801, 0
  %v2822 = vsel %vm103, %v2802, 0
  %v2825 = vsel %vm103, %v2803, 0
  %v2828 = vsel %vm103, %v2804, 0
  %v2831 = vsel %vm103, %v2805, 0
  %2833 = vmatpush.msra.mxu0 0.0
  %2834 = vmatpush.msra.mxu0 0.0
  %2835 = vmatpush.msra.mxu0 0.0
  %2836 = vmatpush.msra.mxu0 0.0
  %2837 = vmatpush.msra.mxu0 0.0
  %2838 = vmatpush.msra.mxu0 0.0
  %2839 = vmatpush.msra.mxu0 0.0
  %2840 = vmatpush.msra.mxu0 0.0
  %2841 = vmatpush.msra.mxu0 0.0
  %2842 = vmatpush.msra.mxu0 0.0
  %2843 = vmatpush.msra.mxu0 0.0
  %2844 = vmatpush.msra.mxu0 0.0
  %2845 = vmatpush.msra.mxu0 %v89
  %2846 = vmatpush.msra.mxu0 %v88
  %2847 = vmatpush.msra.mxu0 %v87
  %2848 = vmatpush.msra.mxu0 %v86
  %2849 = vmatmul.f32.gmra.mxu0 %v2810
  %v2850 = vpop.f32.mrf.mxu0
  %v2851 = vadd.f32 %v2807, %v2850
  %2852 = vmatmul.f32.gmra.mxu0 %v2813
  %v2853 = vpop.f32.mrf.mxu0
  %v2854 = vadd.f32 %v2807, %v2853
  %2855 = vmatmul.f32.gmra.mxu0 %v2816
  %v2856 = vpop.f32.mrf.mxu0
  %v2857 = vadd.f32 %v2807, %v2856
  %2858 = vmatmul.f32.gmra.mxu0 %v2819
  %v2859 = vpop.f32.mrf.mxu0
  %v2860 = vadd.f32 %v2807, %v2859
  %2861 = vmatmul.f32.gmra.mxu0 %v2822
  %v2862 = vpop.f32.mrf.mxu0
  %v2863 = vadd.f32 %v2807, %v2862
  %2864 = vmatmul.f32.gmra.mxu0 %v2825
  %v2865 = vpop.f32.mrf.mxu0
  %v2866 = vadd.f32 %v2807, %v2865
  %2867 = vmatmul.f32.gmra.mxu0 %v2828
  %v2868 = vpop.f32.mrf.mxu0
  %v2869 = vadd.f32 %v2807, %v2868
  %2870 = vmatmul.f32.gmra.mxu0 %v2831
  %v2871 = vpop.f32.mrf.mxu0
  %v2872 = vadd.f32 %v2807, %v2871
  %2873 = vdwg.mxu0
  %v2874 = vmax.f32 %v2851, 0.0
  %v2875 = vmax.f32 %v2854, 0.0
  %v2876 = vmax.f32 %v2857, 0.0
  %v2877 = vmax.f32 %v2860, 0.0
  %v2878 = vmax.f32 %v2863, 0.0
  %v2879 = vmax.f32 %v2866, 0.0
  %v2880 = vmax.f32 %v2869, 0.0
  %v2881 = vmax.f32 %v2872, 0.0
  %v2883 = vperm.slane %v99, 0
  %vm2885 = vcmask 523264
  %v2887 = vsel %vm2885, %v2874, 0
  %v2890 = vsel %vm2885, %v2875, 0
  %v2893 = vsel %vm2885, %v2876, 0
  %v2896 = vsel %vm2885, %v2877, 0
  %v2899 = vsel %vm2885, %v2878, 0
  %v2902 = vsel %vm2885, %v2879, 0
  %v2905 = vsel %vm2885, %v2880, 0
  %v2908 = vsel %vm2885, %v2881, 0
  %2910 = vmatpush.msra.mxu0 0.0
  %2911 = vmatpush.msra.mxu0 0.0
  %2912 = vmatpush.msra.mxu0 0.0
  %2913 = vmatpush.msra.mxu0 0.0
  %2914 = vmatpush.msra.mxu0 0.0
  %2915 = vmatpush.msra.mxu0 0.0
  %2916 = vmatpush.msra.mxu0 0.0
  %2917 = vmatpush.msra.mxu0 0.0
  %2918 = vmatpush.msra.mxu0 %v98
  %2919 = vmatpush.msra.mxu0 %v97
  %2920 = vmatpush.msra.mxu0 %v96
  %2921 = vmatpush.msra.mxu0 %v95
  %2922 = vmatpush.msra.mxu0 %v94
  %2923 = vmatpush.msra.mxu0 %v93
  %2924 = vmatpush.msra.mxu0 %v92
  %2925 = vmatpush.msra.mxu0 %v91
  %2926 = vmatmul.f32.gmra.mxu0 %v2887
  %v2927 = vpop.f32.mrf.mxu0
  %v2928 = vadd.f32 %v2883, %v2927
  %2929 = vmatmul.f32.gmra.mxu0 %v2890
  %v2930 = vpop.f32.mrf.mxu0
  %v2931 = vadd.f32 %v2883, %v2930
  %2932 = vmatmul.f32.gmra.mxu0 %v2893
  %v2933 = vpop.f32.mrf.mxu0
  %v2934 = vadd.f32 %v2883, %v2933
  %2935 = vmatmul.f32.gmra.mxu0 %v2896
  %v2936 = vpop.f32.mrf.mxu0
  %v2937 = vadd.f32 %v2883, %v2936
  %2938 = vmatmul.f32.gmra.mxu0 %v2899
  %v2939 = vpop.f32.mrf.mxu0
  %v2940 = vadd.f32 %v2883, %v2939
  %2941 = vmatmul.f32.gmra.mxu0 %v2902
  %v2942 = vpop.f32.mrf.mxu0
  %v2943 = vadd.f32 %v2883, %v2942
  %2944 = vmatmul.f32.gmra.mxu0 %v2905
  %v2945 = vpop.f32.mrf.mxu0
  %v2946 = vadd.f32 %v2883, %v2945
  %2947 = vmatmul.f32.gmra.mxu0 %v2908
  %v2948 = vpop.f32.mrf.mxu0
  %v2949 = vadd.f32 %v2883, %v2948
  %2950 = vdwg.mxu0
  %v2951 = vadd.f32 %v2593, %v2928
  %v2952 = vadd.f32 %v2594, %v2931
  %v2953 = vadd.f32 %v2595, %v2934
  %v2954 = vadd.f32 %v2596, %v2937
  %v2955 = vadd.f32 %v2597, %v2940
  %v2956 = vadd.f32 %v2598, %v2943
  %v2957 = vadd.f32 %v2599, %v2946
  %v2958 = vadd.f32 %v2600, %v2949
  %v2959 = vld [vmem:[%s16] sm:$0x1]
  %v2960 = vld [vmem:[%s17] sm:$0x1]
  %v2961 = vsel %vm103, %v2951, 0.0
  %2962 = vadd.xlane.f32.xlu0 %v2961
  %v2963 = vpop.xlane.xlu0 %2962
  %v2964 = vsel %vm103, %v2952, 0.0
  %2965 = vadd.xlane.f32.xlu0 %v2964
  %v2966 = vpop.xlane.xlu0 %2965
  %v2967 = vsel %vm103, %v2953, 0.0
  %2968 = vadd.xlane.f32.xlu0 %v2967
  %v2969 = vpop.xlane.xlu0 %2968
  %v2970 = vsel %vm103, %v2954, 0.0
  %2971 = vadd.xlane.f32.xlu0 %v2970
  %v2972 = vpop.xlane.xlu0 %2971
  %v2973 = vsel %vm103, %v2955, 0.0
  %2974 = vadd.xlane.f32.xlu0 %v2973
  %v2975 = vpop.xlane.xlu0 %2974
  %v2976 = vsel %vm103, %v2956, 0.0
  %2977 = vadd.xlane.f32.xlu0 %v2976
  %v2978 = vpop.xlane.xlu0 %2977
  %v2979 = vsel %vm103, %v2957, 0.0
  %2980 = vadd.xlane.f32.xlu0 %v2979
  %v2981 = vpop.xlane.xlu0 %2980
  %v2982 = vsel %vm103, %v2958, 0.0
  %2983 = vadd.xlane.f32.xlu0 %v2982
  %v2984 = vpop.xlane.xlu0 %2983
  %v2985 = vmul.f32 %v2963, %v2631
  %v2986 = vmul.f32 %v2966, %v2631
  %v2987 = vmul.f32 %v2969, %v2631
  %v2988 = vmul.f32 %v2972, %v2631
  %v2989 = vmul.f32 %v2975, %v2631
  %v2990 = vmul.f32 %v2978, %v2631
  %v2991 = vmul.f32 %v2981, %v2631
  %v2992 = vmul.f32 %v2984, %v2631
  %v2993 = vsub.f32 %v2951, %v2985
  %v2994 = vsub.f32 %v2952, %v2986
  %v2995 = vsub.f32 %v2953, %v2987
  %v2996 = vsub.f32 %v2954, %v2988
  %v2997 = vsub.f32 %v2955, %v2989
  %v2998 = vsub.f32 %v2956, %v2990
  %v2999 = vsub.f32 %v2957, %v2991
  %v3000 = vsub.f32 %v2958, %v2992
  %v3001 = vmul.f32 %v2993, %v2993
  %v3002 = vmul.f32 %v2994, %v2994
  %v3003 = vmul.f32 %v2995, %v2995
  %v3004 = vmul.f32 %v2996, %v2996
  %v3005 = vmul.f32 %v2997, %v2997
  %v3006 = vmul.f32 %v2998, %v2998
  %v3007 = vmul.f32 %v2999, %v2999
  %v3008 = vmul.f32 %v3000, %v3000
  %v3009 = vsel %vm103, %v3001, 0.0
  %3010 = vadd.xlane.f32.xlu0 %v3009
  %v3011 = vpop.xlane.xlu0 %3010
  %v3012 = vsel %vm103, %v3002, 0.0
  %3013 = vadd.xlane.f32.xlu0 %v3012
  %v3014 = vpop.xlane.xlu0 %3013
  %v3015 = vsel %vm103, %v3003, 0.0
  %3016 = vadd.xlane.f32.xlu0 %v3015
  %v3017 = vpop.xlane.xlu0 %3016
  %v3018 = vsel %vm103, %v3004, 0.0
  %3019 = vadd.xlane.f32.xlu0 %v3018
  %v3020 = vpop.xlane.xlu0 %3019
  %v3021 = vsel %vm103, %v3005, 0.0
  %3022 = vadd.xlane.f32.xlu0 %v3021
  %v3023 = vpop.xlane.xlu0 %3022
  %v3024 = vsel %vm103, %v3006, 0.0
  %3025 = vadd.xlane.f32.xlu0 %v3024
  %v3026 = vpop.xlane.xlu0 %3025
  %v3027 = vsel %vm103, %v3007, 0.0
  %3028 = vadd.xlane.f32.xlu0 %v3027
  %v3029 = vpop.xlane.xlu0 %3028
  %v3030 = vsel %vm103, %v3008, 0.0
  %3031 = vadd.xlane.f32.xlu0 %v3030
  %v3032 = vpop.xlane.xlu0 %3031
  %v3033 = vmul.f32 %v3011, %v2631
  %v3034 = vmul.f32 %v3014, %v2631
  %v3035 = vmul.f32 %v3017, %v2631
  %v3036 = vmul.f32 %v3020, %v2631
  %v3037 = vmul.f32 %v3023, %v2631
  %v3038 = vmul.f32 %v3026, %v2631
  %v3039 = vmul.f32 %v3029, %v2631
  %v3040 = vmul.f32 %v3032, %v2631
  %v3041 = vadd.f32 %v3033, 1e-05
  %v3042 = vadd.f32 %v3034, 1e-05
  %v3043 = vadd.f32 %v3035, 1e-05
  %v3044 = vadd.f32 %v3036, 1e-05
  %v3045 = vadd.f32 %v3037, 1e-05
  %v3046 = vadd.f32 %v3038, 1e-05
  %v3047 = vadd.f32 %v3039, 1e-05
  %v3048 = vadd.f32 %v3040, 1e-05
  %v3049 = vrsqrt.pop %v3041
  %v3050 = vmul.f32 %v3049, %v3041
  %v3051 = vmul.f32 %v3050, %v3049
  %v3052 = vmul.f32 0.5, %v3051
  %v3053 = vsub.f32 1.5, %v3052
  %v3054 = vmul.f32 %v3049, %v3053
  %vm3055 = vweird.f32 %v3041
  %vm3056 = vweird.f32 %v3049
  %vm3057 = vmor %vm3055, %vm3056
  %v3058 = vsel %vm3057, %v3049, %v3054
  %v3059 = vrsqrt.pop %v3042
  %v3060 = vmul.f32 %v3059, %v3042
  %v3061 = vmul.f32 %v3060, %v3059
  %v3062 = vmul.f32 0.5, %v3061
  %v3063 = vsub.f32 1.5, %v3062
  %v3064 = vmul.f32 %v3059, %v3063
  %vm3065 = vweird.f32 %v3042
  %vm3066 = vweird.f32 %v3059
  %vm3067 = vmor %vm3065, %vm3066
  %v3068 = vsel %vm3067, %v3059, %v3064
  %v3069 = vrsqrt.pop %v3043
  %v3070 = vmul.f32 %v3069, %v3043
  %v3071 = vmul.f32 %v3070, %v3069
  %v3072 = vmul.f32 0.5, %v3071
  %v3073 = vsub.f32 1.5, %v3072
  %v3074 = vmul.f32 %v3069, %v3073
  %vm3075 = vweird.f32 %v3043
  %vm3076 = vweird.f32 %v3069
  %vm3077 = vmor %vm3075, %vm3076
  %v3078 = vsel %vm3077, %v3069, %v3074
  %v3079 = vrsqrt.pop %v3044
  %v3080 = vmul.f32 %v3079, %v3044
  %v3081 = vmul.f32 %v3080, %v3079
  %v3082 = vmul.f32 0.5, %v3081
  %v3083 = vsub.f32 1.5, %v3082
  %v3084 = vmul.f32 %v3079, %v3083
  %vm3085 = vweird.f32 %v3044
  %vm3086 = vweird.f32 %v3079
  %vm3087 = vmor %vm3085, %vm3086
  %v3088 = vsel %vm3087, %v3079, %v3084
  %v3089 = vrsqrt.pop %v3045
  %v3090 = vmul.f32 %v3089, %v3045
  %v3091 = vmul.f32 %v3090, %v3089
  %v3092 = vmul.f32 0.5, %v3091
  %v3093 = vsub.f32 1.5, %v3092
  %v3094 = vmul.f32 %v3089, %v3093
  %vm3095 = vweird.f32 %v3045
  %vm3096 = vweird.f32 %v3089
  %vm3097 = vmor %vm3095, %vm3096
  %v3098 = vsel %vm3097, %v3089, %v3094
  %v3099 = vrsqrt.pop %v3046
  %v3100 = vmul.f32 %v3099, %v3046
  %v3101 = vmul.f32 %v3100, %v3099
  %v3102 = vmul.f32 0.5, %v3101
  %v3103 = vsub.f32 1.5, %v3102
  %v3104 = vmul.f32 %v3099, %v3103
  %vm3105 = vweird.f32 %v3046
  %vm3106 = vweird.f32 %v3099
  %vm3107 = vmor %vm3105, %vm3106
  %v3108 = vsel %vm3107, %v3099, %v3104
  %v3109 = vrsqrt.pop %v3047
  %v3110 = vmul.f32 %v3109, %v3047
  %v3111 = vmul.f32 %v3110, %v3109
  %v3112 = vmul.f32 0.5, %v3111
  %v3113 = vsub.f32 1.5, %v3112
  %v3114 = vmul.f32 %v3109, %v3113
  %vm3115 = vweird.f32 %v3047
  %vm3116 = vweird.f32 %v3109
  %vm3117 = vmor %vm3115, %vm3116
  %v3118 = vsel %vm3117, %v3109, %v3114
  %v3119 = vrsqrt.pop %v3048
  %v3120 = vmul.f32 %v3119, %v3048
  %v3121 = vmul.f32 %v3120, %v3119
  %v3122 = vmul.f32 0.5, %v3121
  %v3123 = vsub.f32 1.5, %v3122
  %v3124 = vmul.f32 %v3119, %v3123
  %vm3125 = vweird.f32 %v3048
  %vm3126 = vweird.f32 %v3119
  %vm3127 = vmor %vm3125, %vm3126
  %v3128 = vsel %vm3127, %v3119, %v3124
  %v3129 = vmul.f32 %v2993, %v3058
  %v3130 = vmul.f32 %v2994, %v3068
  %v3131 = vmul.f32 %v2995, %v3078
  %v3132 = vmul.f32 %v2996, %v3088
  %v3133 = vmul.f32 %v2997, %v3098
  %v3134 = vmul.f32 %v2998, %v3108
  %v3135 = vmul.f32 %v2999, %v3118
  %v3136 = vmul.f32 %v3000, %v3128
  %v3138 = vperm.slane %v2959, 0
  %v3140 = vmul.f32 %v3129, %v3138
  %v3141 = vmul.f32 %v3130, %v3138
  %v3142 = vmul.f32 %v3131, %v3138
  %v3143 = vmul.f32 %v3132, %v3138
  %v3144 = vmul.f32 %v3133, %v3138
  %v3145 = vmul.f32 %v3134, %v3138
  %v3146 = vmul.f32 %v3135, %v3138
  %v3147 = vmul.f32 %v3136, %v3138
  %v3149 = vperm.slane %v2960, 0
  %v3151 = vadd.f32 %v3140, %v3149
  %v3152 = vadd.f32 %v3141, %v3149
  %v3153 = vadd.f32 %v3142, %v3149
  %v3154 = vadd.f32 %v3143, %v3149
  %v3155 = vadd.f32 %v3144, %v3149
  %v3156 = vadd.f32 %v3145, %v3149
  %v3157 = vadd.f32 %v3146, %v3149
  %v3158 = vadd.f32 %v3147, %v3149
  %v3159 = vmax.f32 %v3151, 0.0
  %v3160 = vmax.f32 %v3152, 0.0
  %v3161 = vmax.f32 %v3153, 0.0
  %v3162 = vmax.f32 %v3154, 0.0
  %v3163 = vmax.f32 %v3155, 0.0
  %v3164 = vmax.f32 %v3156, 0.0
  %v3165 = vmax.f32 %v3157, 0.0
  %v3166 = vmax.f32 %v3158, 0.0
  %v3167 = vld [vmem:[%s18] sm:$0x1]
  %v3169 = vperm.slane %v3167, 0
  %v3171 = vmul.f32 %v3159, %v3169
  %v3172 = vmul.f32 %v3160, %v3169
  %v3173 = vmul.f32 %v3161, %v3169
  %v3174 = vmul.f32 %v3162, %v3169
  %v3175 = vmul.f32 %v3163, %v3169
  %v3176 = vmul.f32 %v3164, %v3169
  %v3177 = vmul.f32 %v3165, %v3169
  %v3178 = vmul.f32 %v3166, %v3169
  %v3179 = vsel %vm103, %v3171, 0.0
  %3180 = vadd.xlane.f32.xlu0 %v3179
  %v3181 = vpop.xlane.xlu0 %3180
  %v3182 = vsel %vm103, %v3172, 0.0
  %3183 = vadd.xlane.f32.xlu0 %v3182
  %v3184 = vpop.xlane.xlu0 %3183
  %v3185 = vsel %vm103, %v3173, 0.0
  %3186 = vadd.xlane.f32.xlu0 %v3185
  %v3187 = vpop.xlane.xlu0 %3186
  %v3188 = vsel %vm103, %v3174, 0.0
  %3189 = vadd.xlane.f32.xlu0 %v3188
  %v3190 = vpop.xlane.xlu0 %3189
  %v3191 = vsel %vm103, %v3175, 0.0
  %3192 = vadd.xlane.f32.xlu0 %v3191
  %v3193 = vpop.xlane.xlu0 %3192
  %v3194 = vsel %vm103, %v3176, 0.0
  %3195 = vadd.xlane.f32.xlu0 %v3194
  %v3196 = vpop.xlane.xlu0 %3195
  %v3197 = vsel %vm103, %v3177, 0.0
  %3198 = vadd.xlane.f32.xlu0 %v3197
  %v3199 = vpop.xlane.xlu0 %3198
  %v3200 = vsel %vm103, %v3178, 0.0
  %3201 = vadd.xlane.f32.xlu0 %v3200
  %v3202 = vpop.xlane.xlu0 %3201
  %v3203 = vld [vmem:[%s14] sm:$0xff]
  %v3205 = vperm.slane %v3203, 0
  %v3206 = vlaneseq
  %v3207 = vshrl.u32 %v3206, 7
  %3209 = vset.pattern.permute.xlu0 %v3207
  %3210 = vperm.xlu0 %3209, %v3205
  %v3211 = vpop.permute.xlu0 %3210
  %v3212 = vperm.slane %v3203, 1
  %v3213 = vlaneseq
  %v3214 = vshrl.u32 %v3213, 7
  %3216 = vset.pattern.permute.xlu0 %v3214
  %3217 = vperm.xlu0 %3216, %v3212
  %v3218 = vpop.permute.xlu0 %3217
  %v3219 = vperm.slane %v3203, 2
  %v3220 = vlaneseq
  %v3221 = vshrl.u32 %v3220, 7
  %3223 = vset.pattern.permute.xlu0 %v3221
  %3224 = vperm.xlu0 %3223, %v3219
  %v3225 = vpop.permute.xlu0 %3224
  %v3226 = vperm.slane %v3203, 3
  %v3227 = vlaneseq
  %v3228 = vshrl.u32 %v3227, 7
  %3230 = vset.pattern.permute.xlu0 %v3228
  %3231 = vperm.xlu0 %3230, %v3226
  %v3232 = vpop.permute.xlu0 %3231
  %v3233 = vperm.slane %v3203, 4
  %v3234 = vlaneseq
  %v3235 = vshrl.u32 %v3234, 7
  %3237 = vset.pattern.permute.xlu0 %v3235
  %3238 = vperm.xlu0 %3237, %v3233
  %v3239 = vpop.permute.xlu0 %3238
  %v3240 = vperm.slane %v3203, 5
  %v3241 = vlaneseq
  %v3242 = vshrl.u32 %v3241, 7
  %3244 = vset.pattern.permute.xlu0 %v3242
  %3245 = vperm.xlu0 %3244, %v3240
  %v3246 = vpop.permute.xlu0 %3245
  %v3247 = vperm.slane %v3203, 6
  %v3248 = vlaneseq
  %v3249 = vshrl.u32 %v3248, 7
  %3251 = vset.pattern.permute.xlu0 %v3249
  %3252 = vperm.xlu0 %3251, %v3247
  %v3253 = vpop.permute.xlu0 %3252
  %v3254 = vperm.slane %v3203, 7
  %v3255 = vlaneseq
  %v3256 = vshrl.u32 %v3255, 7
  %3258 = vset.pattern.permute.xlu0 %v3256
  %3259 = vperm.xlu0 %3258, %v3254
  %v3260 = vpop.permute.xlu0 %3259
  %v3269 = vsub.f32 %v3181, %v3211
  %v3270 = vsub.f32 %v3184, %v3218
  %v3271 = vsub.f32 %v3187, %v3225
  %v3272 = vsub.f32 %v3190, %v3232
  %v3273 = vsub.f32 %v3193, %v3239
  %v3274 = vsub.f32 %v3196, %v3246
  %v3275 = vsub.f32 %v3199, %v3253
  %v3276 = vsub.f32 %v3202, %v3260
  %v3277 = vmul.f32 %v3269, %v3269
  %v3278 = vmul.f32 %v3270, %v3270
  %v3279 = vmul.f32 %v3271, %v3271
  %v3280 = vmul.f32 %v3272, %v3272
  %v3281 = vmul.f32 %v3273, %v3273
  %v3282 = vmul.f32 %v3274, %v3274
  %v3283 = vmul.f32 %v3275, %v3275
  %v3284 = vmul.f32 %v3276, %v3276
  %v3285 = vld [vmem:[%s15] sm:$0xff]
  %v3287 = vperm.slane %v3285, 0
  %v3288 = vlaneseq
  %v3289 = vshrl.u32 %v3288, 7
  %3291 = vset.pattern.permute.xlu0 %v3289
  %3292 = vperm.xlu0 %3291, %v3287
  %v3293 = vpop.permute.xlu0 %3292
  %v3294 = vperm.slane %v3285, 1
  %v3295 = vlaneseq
  %v3296 = vshrl.u32 %v3295, 7
  %3298 = vset.pattern.permute.xlu0 %v3296
  %3299 = vperm.xlu0 %3298, %v3294
  %v3300 = vpop.permute.xlu0 %3299
  %v3301 = vperm.slane %v3285, 2
  %v3302 = vlaneseq
  %v3303 = vshrl.u32 %v3302, 7
  %3305 = vset.pattern.permute.xlu0 %v3303
  %3306 = vperm.xlu0 %3305, %v3301
  %v3307 = vpop.permute.xlu0 %3306
  %v3308 = vperm.slane %v3285, 3
  %v3309 = vlaneseq
  %v3310 = vshrl.u32 %v3309, 7
  %3312 = vset.pattern.permute.xlu0 %v3310
  %3313 = vperm.xlu0 %3312, %v3308
  %v3314 = vpop.permute.xlu0 %3313
  %v3315 = vperm.slane %v3285, 4
  %v3316 = vlaneseq
  %v3317 = vshrl.u32 %v3316, 7
  %3319 = vset.pattern.permute.xlu0 %v3317
  %3320 = vperm.xlu0 %3319, %v3315
  %v3321 = vpop.permute.xlu0 %3320
  %v3322 = vperm.slane %v3285, 5
  %v3323 = vlaneseq
  %v3324 = vshrl.u32 %v3323, 7
  %3326 = vset.pattern.permute.xlu0 %v3324
  %3327 = vperm.xlu0 %3326, %v3322
  %v3328 = vpop.permute.xlu0 %3327
  %v3329 = vperm.slane %v3285, 6
  %v3330 = vlaneseq
  %v3331 = vshrl.u32 %v3330, 7
  %3333 = vset.pattern.permute.xlu0 %v3331
  %3334 = vperm.xlu0 %3333, %v3329
  %v3335 = vpop.permute.xlu0 %3334
  %v3336 = vperm.slane %v3285, 7
  %v3337 = vlaneseq
  %v3338 = vshrl.u32 %v3337, 7
  %3340 = vset.pattern.permute.xlu0 %v3338
  %3341 = vperm.xlu0 %3340, %v3336
  %v3342 = vpop.permute.xlu0 %3341
  %v3351 = vmul.f32 %v3277, %v3293
  %v3352 = vmul.f32 %v3278, %v3300
  %v3353 = vmul.f32 %v3279, %v3307
  %v3354 = vmul.f32 %v3280, %v3314
  %v3355 = vmul.f32 %v3281, %v3321
  %v3356 = vmul.f32 %v3282, %v3328
  %v3357 = vmul.f32 %v3283, %v3335
  %v3358 = vmul.f32 %v3284, %v3342
  %3367 = vset.pattern.permute.xlu0 0
  %3368 = vperm.xlu0 %3367, %v3351
  %v3369 = vpop.permute.xlu0 %3368
  %3370 = vset.pattern.permute.xlu0 0
  %3371 = vperm.xlu0 %3370, %v3352
  %v3372 = vpop.permute.xlu0 %3371
  %3373 = vset.pattern.permute.xlu0 0
  %3374 = vperm.xlu0 %3373, %v3353
  %v3375 = vpop.permute.xlu0 %3374
  %3376 = vset.pattern.permute.xlu0 0
  %3377 = vperm.xlu0 %3376, %v3354
  %v3378 = vpop.permute.xlu0 %3377
  %3379 = vset.pattern.permute.xlu0 0
  %3380 = vperm.xlu0 %3379, %v3355
  %v3381 = vpop.permute.xlu0 %3380
  %3382 = vset.pattern.permute.xlu0 0
  %3383 = vperm.xlu0 %3382, %v3356
  %v3384 = vpop.permute.xlu0 %3383
  %3385 = vset.pattern.permute.xlu0 0
  %3386 = vperm.xlu0 %3385, %v3357
  %v3387 = vpop.permute.xlu0 %3386
  %3388 = vset.pattern.permute.xlu0 0
  %3389 = vperm.xlu0 %3388, %v3358
  %v3390 = vpop.permute.xlu0 %3389
  %v3391 = vlaneseq
  %v3392 = vand.u32 %v3391, 127
  %v3393 = vperm.slane %v3369, %v3392
  %v3394 = vperm.slane %v3372, %v3392
  %v3395 = vperm.slane %v3375, %v3392
  %v3396 = vperm.slane %v3378, %v3392
  %v3397 = vperm.slane %v3381, %v3392
  %v3398 = vperm.slane %v3384, %v3392
  %v3399 = vperm.slane %v3387, %v3392
  %v3400 = vperm.slane %v3390, %v3392
  %vm3401 = vcmask 1041409
  %v3402 = vsel %vm3401, %v3394, %v3393
  %vm3403 = vcmask 1042434
  %v3404 = vsel %vm3403, %v3395, %v3402
  %vm3405 = vcmask 1043459
  %v3406 = vsel %vm3405, %v3396, %v3404
  %vm3407 = vcmask 1044484
  %v3408 = vsel %vm3407, %v3397, %v3406
  %vm3409 = vcmask 1045509
  %v3410 = vsel %vm3409, %v3398, %v3408
  %vm3411 = vcmask 1046534
  %v3412 = vsel %vm3411, %v3399, %v3410
  %vm3413 = vcmask 1047559
  %v3414 = vsel %vm3413, %v3400, %v3412
  %3416 = vst.msk [vmem:[%s19] sm:$0xff] %vm172, %v3414
  // Predicated region
  $region78: #{forward.5} parent=0 // pred_check
    _
  $region79: #{forward.5} parent=0 // pred_check_branch
    %3418 = sbr.rel (0) target = $region81
  $region80: #{forward.5} parent=0 // pred_region
    _
  $region81: #{forward.5} parent=0 // pred_fallthru
    _
  // Predicated region
  $region82: #{forward.5} parent=0 // pred_check
    _
  $region83: #{forward.5} parent=0 // pred_check_branch
    %3420 = sbr.rel (0) target = $region85
  $region84: #{forward.5} parent=0 // pred_region
    _
  $region85: #{forward.5} parent=0 // pred_fallthru
    _

</llo_original>
